<compile_context>
chip_gen: v5e
topology: v5e:2x2
jax: 0.10.0
libtpu: 0.0.40
codegen_flags: <defaults>
</compile_context>

<pallas_src>
import functools

import jax
import jax.numpy as jnp
from jax.experimental import pallas as pl
from jax.experimental.pallas import tpu as pltpu


def _round_up(x, m):
    return (x + m - 1) // m * m


# ----------------------------------------------------------------------------
# Pallas kernels
# ----------------------------------------------------------------------------
def _mm_bias_kernel(a_ref, w_ref, b_ref, o_ref, acc_ref, *, relu):
    """Tiled (M,K)@(K,N): f32 accumulator, bias + optional ReLU in k==last epilogue."""
    @pl.when(pl.program_id(2) == 0)
    def _init():
        acc_ref[...] = jnp.zeros_like(acc_ref)

    acc_ref[...] += jnp.dot(a_ref[...], w_ref[...],
                            preferred_element_type=jnp.float32)

    @pl.when(pl.program_id(2) == pl.num_programs(2) - 1)
    def _finalize():
        out = acc_ref[...] + b_ref[...]
        if relu:
            out = jnp.maximum(out, 0.0)
        o_ref[...] = out.astype(o_ref.dtype)


def mm_bias(a, w, b, relu, out_dtype=jnp.bfloat16):
    """(M,K) @ (K,N) + (1,N) bias, optional ReLU, bf16 operands / f32 accumulation.
    K and N must be multiples of 128 (callers pre-pad); M is padded here."""
    M, K = a.shape
    K2, N = w.shape
    assert K == K2 and b.shape == (1, N)
    assert K % 128 == 0 and N % 128 == 0

    tm = min(128, _round_up(M, 16))
    Mpad = _round_up(M, tm)
    if Mpad != M:
        a = jnp.pad(a, ((0, Mpad - M), (0, 0)))
    tn = 256 if N % 256 == 0 else 128
    tk = 512 if K % 512 == 0 else (256 if K % 256 == 0 else 128)
    grid = (Mpad // tm, N // tn, K // tk)

    # Per-call VMEM budget: double-buffered in/out tiles + accumulator + headroom,
    # capped well below v7x's 64 MiB per-TensorCore VMEM.
    vmem = (2 * (tm * tk * a.dtype.itemsize + tk * tn * w.dtype.itemsize + tn * 4)
            + 3 * tm * tn * 4 + (4 << 20))
    vmem = int(min(vmem, 48 * 1024 * 1024))

    out = pl.pallas_call(
        functools.partial(_mm_bias_kernel, relu=relu),
        out_shape=jax.ShapeDtypeStruct((Mpad, N), out_dtype),
        grid=grid,
        in_specs=[
            pl.BlockSpec((tm, tk), lambda i, j, k: (i, k)),
            pl.BlockSpec((tk, tn), lambda i, j, k: (k, j)),
            pl.BlockSpec((1, tn), lambda i, j, k: (0, j)),
        ],
        out_specs=pl.BlockSpec((tm, tn), lambda i, j, k: (i, j)),
        scratch_shapes=[pltpu.VMEM((tm, tn), jnp.float32)],
        compiler_params=pltpu.CompilerParams(
            dimension_semantics=("parallel", "parallel", "arbitrary"),
            vmem_limit_bytes=vmem,
        ),
    )(a, w, b)
    return out[:M] if Mpad != M else out


def _bmm_bias_relu_kernel(r_ref, p_ref, b_ref, o_ref):
    acc = jnp.dot(r_ref[0], p_ref[0], preferred_element_type=jnp.float32)
    acc = acc + b_ref[...]
    o_ref[0] = jnp.maximum(acc, 0.0).astype(o_ref.dtype)


def bmm_bias_relu(r, p, b, out_dtype=jnp.bfloat16):
    """Batched relu(r[b] @ p[b] + bias): one pallas_call with a grid axis over B
    (replaces the per-batch Python loop of the cost-volume stage)."""
    B, M, D = r.shape
    B2, D2, N = p.shape
    assert B == B2 and D == D2 and N % 128 == 0 and b.shape == (1, N)
    Mp = _round_up(M, 16)
    if Mp != M:
        r = jnp.pad(r, ((0, 0), (0, Mp - M), (0, 0)))
    out = pl.pallas_call(
        _bmm_bias_relu_kernel,
        out_shape=jax.ShapeDtypeStruct((B, Mp, N), out_dtype),
        grid=(B,),
        in_specs=[
            pl.BlockSpec((1, Mp, D), lambda bi: (bi, 0, 0)),
            pl.BlockSpec((1, D, N), lambda bi: (bi, 0, 0)),
            pl.BlockSpec((1, N), lambda bi: (0, 0)),
        ],
        out_specs=pl.BlockSpec((1, Mp, N), lambda bi: (bi, 0, 0)),
        compiler_params=pltpu.CompilerParams(dimension_semantics=("parallel",)),
    )(r, p, b)
    return out[:, :M] if Mp != M else out


def _masked_l1_kernel(p_ref, g_ref, m_ref, err_ref, cnt_ref):
    d = jnp.abs(p_ref[...] - g_ref[...]) * m_ref[...]
    err_ref[...] = jnp.sum(d, axis=(0, 1), keepdims=True)
    cnt_ref[...] = jnp.sum(m_ref[...], axis=(0, 1), keepdims=True)


def masked_l1_loss(pred, gt, msk):
    """Masked L1 loss, reduced in one lane-dense Pallas kernel: inputs flattened to a
    single (1, Npad) row with Npad % 128 == 0 (zero-mask padding contributes nothing)."""
    p = pred.reshape(1, -1).astype(jnp.float32)
    g = gt.reshape(1, -1).astype(jnp.float32)
    m = msk.reshape(1, -1).astype(jnp.float32)
    n = p.shape[1]
    npad = _round_up(n, 128)
    if npad != n:
        pad = ((0, 0), (0, npad - n))
        p, g, m = jnp.pad(p, pad), jnp.pad(g, pad), jnp.pad(m, pad)
    err, cnt = pl.pallas_call(
        _masked_l1_kernel,
        out_shape=(jax.ShapeDtypeStruct((1, 1), jnp.float32),
                   jax.ShapeDtypeStruct((1, 1), jnp.float32)),
        grid=(1,),
        in_specs=[pl.BlockSpec((1, npad), lambda i: (0, 0))] * 3,
        out_specs=(pl.BlockSpec((1, 1), lambda i: (0, 0)),
                   pl.BlockSpec((1, 1), lambda i: (0, 0))),
        compiler_params=pltpu.CompilerParams(dimension_semantics=("arbitrary",)),
    )(p, g, m)
    return err[0, 0] / (cnt[0, 0] + 1e-6)


# ----------------------------------------------------------------------------
# JAX glue: im2col, conv wrappers, phase-decomposed transposed conv, resize
# ----------------------------------------------------------------------------
def im2col(x, kh, kw, stride, pad):
    """x: (B,H,W,C) -> (B*Ho*Wo, kh*kw*C) with K ordered (kh, kw, C)."""
    B, H, W, C = x.shape
    xp = jnp.pad(x, ((0, 0), (pad, pad), (pad, pad), (0, 0)))
    Ho = (H + 2 * pad - kh) // stride + 1
    Wo = (W + 2 * pad - kw) // stride + 1
    cols = []
    for i in range(kh):
        for j in range(kw):
            cols.append(
                xp[:, i:i + stride * (Ho - 1) + 1:stride,
                      j:j + stride * (Wo - 1) + 1:stride, :])
    patches = jnp.concatenate(cols, axis=-1)            # (B, Ho, Wo, kh*kw*C)
    return patches.reshape(B * Ho * Wo, kh * kw * C), (B, Ho, Wo)


def conv3x3(x, w_mat, b_row, stride, relu, out_dtype=jnp.bfloat16):
    """3x3 conv (padding=1) as bf16 im2col + tiled Pallas matmul.
    w_mat: (>=9*Cin, Ncols) pre-packed bf16, b_row: (1, Ncols) f32, Ncols % 128 == 0."""
    # TODO(synk): fold the 3x3 patch extraction into the matmul kernel via halo tiles
    # to avoid the 9x im2col HBM duplication at large resolutions.
    B = x.shape[0]
    cols, (_, Ho, Wo) = im2col(x.astype(jnp.bfloat16), 3, 3, stride, 1)
    if w_mat.shape[0] > cols.shape[1]:
        cols = jnp.pad(cols, ((0, 0), (0, w_mat.shape[0] - cols.shape[1])))
    out = mm_bias(cols, w_mat, b_row, relu, out_dtype)
    return out.reshape(B, Ho, Wo, w_mat.shape[1])


def conv_transpose2d_phase(x, w_big, b_big):
    """ConvTranspose2d(k=3, stride=2, pad=1, output_padding=1) + ReLU via phase
    decomposition: the 4 output phases (even/odd row x even/odd col) come from one
    dense matmul over 4 shifted views of x.  x: (B,H,W,Cin) -> (B,2H,2W,Cout)."""
    B, H, W, C = x.shape
    x = x.astype(jnp.bfloat16)
    xp = jnp.pad(x, ((0, 0), (0, 1), (0, 1), (0, 0)))
    v0 = x
    v1 = xp[:, :H, 1:W + 1, :]
    v2 = xp[:, 1:H + 1, :W, :]
    v3 = xp[:, 1:H + 1, 1:W + 1, :]
    a = jnp.concatenate([v0, v1, v2, v3], axis=-1).reshape(B * H * W, 4 * C)
    y = mm_bias(a, w_big, b_big, relu=True, out_dtype=jnp.bfloat16)
    cout = w_big.shape[1] // 4
    y = y.reshape(B, H, W, 2, 2, cout)                    # (.., py, px, Cout)
    return jnp.transpose(y, (0, 1, 3, 2, 4, 5)).reshape(B, 2 * H, 2 * W, cout)


def bilinear_resize(x, out_h, out_w):
    """PyTorch F.interpolate(mode='bilinear', align_corners=False). x: (B,H,W)."""
    B, H, W = x.shape
    ys = jnp.clip((jnp.arange(out_h) + 0.5) * (H / out_h) - 0.5, 0.0, H - 1)
    xs = jnp.clip((jnp.arange(out_w) + 0.5) * (W / out_w) - 0.5, 0.0, W - 1)
    y0 = jnp.floor(ys).astype(jnp.int32)
    x0 = jnp.floor(xs).astype(jnp.int32)
    y1 = jnp.minimum(y0 + 1, H - 1)
    x1 = jnp.minimum(x0 + 1, W - 1)
    wy = (ys - y0)[None, :, None]
    wx = (xs - x0)[None, None, :]

    def g(yi, xi):
        return x[:, yi[:, None], xi[None, :]]

    top = g(y0, x0) * (1 - wx) + g(y0, x1) * wx
    bot = g(y1, x0) * (1 - wx) + g(y1, x1) * wx
    return top * (1 - wy) + bot * wy


# ----------------------------------------------------------------------------
# Parameter packing (done once, not per forward)
# ----------------------------------------------------------------------------
def _ct_phase_weight(w_ct):
    """Phase-decomposed ConvTranspose2d(3, stride 2, pad 1, out_pad 1) weight:
    (Cin, Cout, 3, 3) -> (4*Cin, 4*Cout).  Row blocks = the 4 shifted input views
    [x, x>>col, x>>row, x>>row>>col]; column blocks = output phases (0,0),(0,1),(1,0),(1,1)."""
    cin, cout = w_ct.shape[:2]
    z = jnp.zeros((cin, cout), w_ct.dtype)
    t = lambda ky, kx: w_ct[:, :, ky, kx]
    cols = [
        jnp.concatenate([t(1, 1), z,       z,       z      ], axis=0),   # (even, even)
        jnp.concatenate([t(1, 2), t(1, 0), z,       z      ], axis=0),   # (even, odd)
        jnp.concatenate([t(2, 1), z,       t(0, 1), z      ], axis=0),   # (odd,  even)
        jnp.concatenate([t(2, 2), t(2, 0), t(0, 2), t(0, 0)], axis=0),   # (odd,  odd)
    ]
    return jnp.concatenate(cols, axis=1)


def prepare_params(params):
    """Pack PyTorch-layout weights once into matmul-ready bf16 matrices
    ((kh*kw*Cin, Cout), K/N padded to lane multiples); biases as (1, N) f32 rows."""
    def conv_mat(w):                                   # (O,I,kh,kw) -> (kh*kw*I, O)
        o, i, kh, kw = w.shape
        return jnp.transpose(w, (2, 3, 1, 0)).reshape(kh * kw * i, o).astype(jnp.bfloat16)

    def bias_row(b):
        return b.reshape(1, -1).astype(jnp.float32)

    # lin1 (1x1 conv, 3600 -> 256): K zero-padded to a 512 multiple so the big
    # reassociated matmul tiles cleanly with tk=512.
    w1 = params["lin1_w"][:, :, 0, 0].T                          # (3600, 256)
    k1p = _round_up(w1.shape[0], 512)
    w1 = jnp.pad(w1, ((0, k1p - w1.shape[0]), (0, 0))).astype(jnp.bfloat16)

    # regression head: pad Cout 1 -> 128 for lane-dense stores; sliced outside.
    reg_w = jnp.pad(conv_mat(params["reg_w"]), ((0, 0), (0, 127)))
    reg_b = jnp.pad(bias_row(params["reg_b"]), ((0, 0), (0, 127)))

    return {
        "lin1_w": w1,
        "lin1_b": bias_row(params["lin1_b"]),
        "lin1_zero_b": jnp.zeros((1, w1.shape[1]), jnp.float32),
        "lin2_w": conv_mat(params["lin2_w"]), "lin2_b": bias_row(params["lin2_b"]),
        "en1_w": conv_mat(params["en1_w"]),   "en1_b": bias_row(params["en1_b"]),
        "en2_w": conv_mat(params["en2_w"]),   "en2_b": bias_row(params["en2_b"]),
        "up_w": _ct_phase_weight(params["up_w"]).astype(jnp.bfloat16),
        "up_b": jnp.tile(params["up_b"], 4).reshape(1, -1).astype(jnp.float32),
        "de_w": conv_mat(params["de_w"]),     "de_b": bias_row(params["de_b"]),
        "reg_w": reg_w, "reg_b": reg_b,
    }


# ----------------------------------------------------------------------------
# ScaleEstimator forward
# ----------------------------------------------------------------------------
def scale_estimator_forward(prepared, left, right, scale, msk):
    """left: (B,D,H0,W0), right: (B,D,H1,W1), scale: (B,Hs,Ws), msk: (B,Hs,Ws)."""
    B, D, H0, W0 = left.shape
    H1, W1 = right.shape[2], right.shape[3]

    # cost volume + 1x1 conv ("lin1"), reassociated:
    #   relu(cost @ W1 + b1) == relu(R @ (L^T @ W1) + b1)
    # so the (B, H1*W1, 3600) cost volume is never materialized in HBM.
    # TODO(synk): exact normalization of compute_cost_volume lives elsewhere in the
    # repo; plain dot-product correlation implemented here.
    lhs = left.reshape(B * D, H0 * W0).astype(jnp.bfloat16)
    kpad = prepared["lin1_w"].shape[0]
    if kpad > H0 * W0:
        lhs = jnp.pad(lhs, ((0, 0), (0, kpad - H0 * W0)))
    proj = mm_bias(lhs, prepared["lin1_w"], prepared["lin1_zero_b"],
                   relu=False, out_dtype=jnp.bfloat16)            # (B*D, 256)
    proj = proj.reshape(B, D, proj.shape[-1])

    r = jnp.transpose(right, (0, 2, 3, 1)).reshape(B, H1 * W1, D)
    x = bmm_bias_relu(r.astype(jnp.bfloat16), proj, prepared["lin1_b"])
    x = x.reshape(B, H1, W1, -1)                                  # (B,H1,W1,256)

    linear = conv3x3(x, prepared["lin2_w"], prepared["lin2_b"], 1, True)
    e = conv3x3(linear, prepared["en1_w"], prepared["en1_b"], 2, True)
    e = conv3x3(e, prepared["en2_w"], prepared["en2_b"], 1, True)

    up_en = conv_transpose2d_phase(e, prepared["up_w"], prepared["up_b"])

    de_in = jnp.concatenate([up_en, linear], axis=-1)     # cat((up_en, linear), dim=1)
    de = conv3x3(de_in, prepared["de_w"], prepared["de_b"], 1, True)

    # regression head stays lane-dense in the kernel (Cout padded to 128), slice here.
    pred = conv3x3(de, prepared["reg_w"], prepared["reg_b"], 1, False,
                   out_dtype=jnp.float32)[..., :1]                # (B,H1,W1,1)
    scale_pred = jnp.transpose(pred, (0, 3, 1, 2))                # NCHW (B,1,H1,W1)

    scale_gt = bilinear_resize(scale, H1, W1)[:, None]            # (B,1,H1,W1)
    msk_r = jnp.floor(bilinear_resize(msk, H1, W1))[:, None]      # .long().float()

    # TODO(synk): make_scale_evaluator(cfg) is external; masked L1 evaluator used.
    scale_loss = masked_l1_loss(scale_pred, scale_gt, msk_r)
    return scale_pred, scale_loss


def init_params(key, cost_channels=3600):
    ks = jax.random.split(key, 14)

    def w_init(k, shape):
        fan_in = shape[1] * shape[2] * shape[3]
        return jax.random.normal(k, shape, jnp.float32) * (2.0 / fan_in) ** 0.5

    def b_init(k, n):
        return jax.random.normal(k, (n,), jnp.float32) * 0.01

    return {
        "lin1_w": w_init(ks[0], (256, cost_channels, 1, 1)), "lin1_b": b_init(ks[1], 256),
        "lin2_w": w_init(ks[2], (128, 256, 3, 3)),           "lin2_b": b_init(ks[3], 128),
        "en1_w":  w_init(ks[4], (256, 128, 3, 3)),           "en1_b":  b_init(ks[5], 256),
        "en2_w":  w_init(ks[6], (256, 256, 3, 3)),           "en2_b":  b_init(ks[7], 256),
        # ConvTranspose2d weight layout: (Cin, Cout, kh, kw)
        "up_w":   jax.random.normal(ks[8], (256, 128, 3, 3), jnp.float32)
                  * (2.0 / (256 * 9)) ** 0.5,                "up_b":   b_init(ks[9], 128),
        "de_w":   w_init(ks[10], (128, 256, 3, 3)),          "de_b":   b_init(ks[11], 128),
        "reg_w":  w_init(ks[12], (1, 128, 3, 3)),            "reg_b":  b_init(ks[13], 1),
    }


if __name__ == "__main__":
    key = jax.random.PRNGKey(0)
    k_l, k_r, k_s, k_m, k_p = jax.random.split(key, 5)

    B, D = 2, 16
    H0 = W0 = 60      # left spatial -> 60*60 = 3600 cost channels (module hard-codes 3600)
    H1 = W1 = 8       # right spatial (small)
    Hs = Ws = 4       # gt scale / mask spatial

    left = jax.random.normal(k_l, (B, D, H0, W0), jnp.float32)
    right = jax.random.normal(k_r, (B, D, H1, W1), jnp.float32)
    scale = jax.random.uniform(k_s, (B, Hs, Ws), jnp.float32, 0.5, 2.0)
    msk = (jax.random.uniform(k_m, (B, Hs, Ws)) > 0.3).astype(jnp.float32)

    params = init_params(k_p, cost_channels=H0 * W0)
    prepared = prepare_params(params)      # weights packed once, not per forward

    fwd = jax.jit(scale_estimator_forward)
    scale_pred, scale_loss = fwd(prepared, left, right, scale, msk)
    jax.block_until_ready(scale_pred)
    jax.block_until_ready(scale_loss)

    assert scale_pred.shape == (B, 1, H1, W1)
    assert bool(jnp.isfinite(scale_loss))
    print("KERNEL_OK")
</pallas_src>

<mosaic_0001>
module attributes {stable_mosaic.version = 11 : i64} {
  func.func @_mm_bias_kernel(%arg0: i32, %arg1: i32, %arg2: i32, %arg3: memref<32x512xbf16, #tpu.memory_space<vmem>>, %arg4: memref<512x256xbf16, #tpu.memory_space<vmem>>, %arg5: memref<1x256xf32, #tpu.memory_space<vmem>>, %arg6: memref<32x256xbf16, #tpu.memory_space<vmem>>, %arg7: memref<32x256xf32, #tpu.memory_space<vmem>>) attributes {dimension_semantics = [#tpu.dimension_semantics<parallel>, #tpu.dimension_semantics<parallel>, #tpu.dimension_semantics<arbitrary>], iteration_bounds = array<i64: 1, 1, 8>, scalar_prefetch = 0 : i64, scratch_operands = 1 : i64, tpu.core_type = #tpu.core_type<tc>, window_params = [{transform_indices = @transform_0, window_bounds = array<i64: 32, 512>}, {transform_indices = @transform_1, window_bounds = array<i64: 512, 256>}, {transform_indices = @transform_2, window_bounds = array<i64: 1, 256>}, {transform_indices = @transform_3, window_bounds = array<i64: 32, 256>}]} {
    %c0_i32 = arith.constant 0 : i32
    %0 = arith.cmpi eq, %arg2, %c0_i32 : i32
    %1 = arith.extui %0 : i1 to i32
    %c0_i32_0 = arith.constant 0 : i32
    %2 = arith.cmpi ne, %1, %c0_i32_0 : i32
    scf.if %2 {
      %cst_9 = arith.constant 0.000000e+00 : f32
      %12 = vector.broadcast %cst_9 : f32 to vector<32x256xf32>
      %c0_10 = arith.constant 0 : index
      %c0_11 = arith.constant 0 : index
      %13 = vector.load %arg7[%c0_10, %c0_11] : memref<32x256xf32, #tpu.memory_space<vmem>>, vector<32x256xf32>
      tpu.vector_store %arg7[%c0_10, %c0_11], %12 {strides = array<i32>} : memref<32x256xf32, #tpu.memory_space<vmem>>, vector<32x256xf32>,
    } else {
    }
    %c0 = arith.constant 0 : index
    %c0_1 = arith.constant 0 : index
    %3 = vector.load %arg7[%c0, %c0_1] : memref<32x256xf32, #tpu.memory_space<vmem>>, vector<32x256xf32>
    %c0_2 = arith.constant 0 : index
    %c0_3 = arith.constant 0 : index
    %4 = vector.load %arg3[%c0_2, %c0_3] : memref<32x512xbf16, #tpu.memory_space<vmem>>, vector<32x512xbf16>
    %c0_4 = arith.constant 0 : index
    %c0_5 = arith.constant 0 : index
    %5 = vector.load %arg4[%c0_4, %c0_5] : memref<512x256xbf16, #tpu.memory_space<vmem>>, vector<512x256xbf16>
    %cst = arith.constant dense<0.000000e+00> : vector<32x256xf32>
    %6 = tpu.matmul %4, %5, %cst {dimension_numbers = #tpu.dot_dimension_numbers<[1], [0], [0], [1], [0, 0, 1, 1], [], []>} : vector<32x512xbf16>, vector<512x256xbf16>, vector<32x256xf32> -> vector<32x256xf32>
    %7 = arith.addf %3, %6 : vector<32x256xf32>
    %c0_6 = arith.constant 0 : index
    %c0_7 = arith.constant 0 : index
    %8 = vector.load %arg7[%c0_6, %c0_7] : memref<32x256xf32, #tpu.memory_space<vmem>>, vector<32x256xf32>
    tpu.vector_store %arg7[%c0_6, %c0_7], %7 {strides = array<i32>} : memref<32x256xf32, #tpu.memory_space<vmem>>, vector<32x256xf32>,
    %c7_i32 = arith.constant 7 : i32
    %9 = arith.cmpi eq, %arg2, %c7_i32 : i32
    %10 = arith.extui %9 : i1 to i32
    %c0_i32_8 = arith.constant 0 : i32
    %11 = arith.cmpi ne, %10, %c0_i32_8 : i32
    scf.if %11 {
      %c0_9 = arith.constant 0 : index
      %c0_10 = arith.constant 0 : index
      %12 = vector.load %arg7[%c0_9, %c0_10] : memref<32x256xf32, #tpu.memory_space<vmem>>, vector<32x256xf32>
      %c0_11 = arith.constant 0 : index
      %c0_12 = arith.constant 0 : index
      %13 = vector.load %arg5[%c0_11, %c0_12] : memref<1x256xf32, #tpu.memory_space<vmem>>, vector<1x256xf32>
      %14 = vector.broadcast %13 : vector<1x256xf32> to vector<32x256xf32>
      %15 = arith.addf %12, %14 : vector<32x256xf32>
      %16 = arith.truncf %15 : vector<32x256xf32> to vector<32x256xbf16>
      %c0_13 = arith.constant 0 : index
      %c0_14 = arith.constant 0 : index
      %17 = vector.load %arg6[%c0_13, %c0_14] : memref<32x256xbf16, #tpu.memory_space<vmem>>, vector<32x256xbf16>
      tpu.vector_store %arg6[%c0_13, %c0_14], %16 {strides = array<i32>} : memref<32x256xbf16, #tpu.memory_space<vmem>>, vector<32x256xbf16>,
    } else {
    }
    return
  }
  func.func @transform_0(%arg0: i32, %arg1: i32, %arg2: i32) -> (i32, i32) {
    %c0_i32 = arith.constant 0 : i32
    return %arg0, %arg2 : i32, i32
  }
  func.func @transform_1(%arg0: i32, %arg1: i32, %arg2: i32) -> (i32, i32) {
    %c0_i32 = arith.constant 0 : i32
    return %arg2, %arg1 : i32, i32
  }
  func.func @transform_2(%arg0: i32, %arg1: i32, %arg2: i32) -> (i32, i32) {
    %c0_i32 = arith.constant 0 : i32
    %c0_i32_0 = arith.constant 0 : i32
    return %c0_i32, %arg1 : i32, i32
  }
  func.func @transform_3(%arg0: i32, %arg1: i32, %arg2: i32) -> (i32, i32) {
    %c0_i32 = arith.constant 0 : i32
    return %arg0, %arg1 : i32, i32
  }
}

module attributes {stable_mosaic.version = 11 : i64} {
  func.func @_bmm_bias_relu_kernel(%arg0: i32, %arg1: memref<1x64x16xbf16, #tpu.memory_space<vmem>>, %arg2: memref<1x16x256xbf16, #tpu.memory_space<vmem>>, %arg3: memref<1x256xf32, #tpu.memory_space<vmem>>, %arg4: memref<1x64x256xbf16, #tpu.memory_space<vmem>>) attributes {dimension_semantics = [#tpu.dimension_semantics<parallel>], iteration_bounds = array<i64: 2>, scalar_prefetch = 0 : i64, scratch_operands = 0 : i64, tpu.core_type = #tpu.core_type<tc>, window_params = [{transform_indices = @transform_0, window_bounds = array<i64: 1, 64, 16>}, {transform_indices = @transform_1, window_bounds = array<i64: 1, 16, 256>}, {pipeline_mode = #tpu.pipeline_mode<synchronous>, transform_indices = @transform_2, window_bounds = array<i64: 1, 256>}, {transform_indices = @transform_3, window_bounds = array<i64: 1, 64, 256>}]} {
    %c0 = arith.constant 0 : index
    %c0_0 = arith.constant 0 : index
    %c0_1 = arith.constant 0 : index
    %0 = vector.load %arg1[%c0, %c0_0, %c0_1] : memref<1x64x16xbf16, #tpu.memory_space<vmem>>, vector<1x64x16xbf16>
    %1 = vector.shape_cast %0 : vector<1x64x16xbf16> to vector<64x16xbf16>
    %c0_2 = arith.constant 0 : index
    %c0_3 = arith.constant 0 : index
    %c0_4 = arith.constant 0 : index
    %2 = vector.load %arg2[%c0_2, %c0_3, %c0_4] : memref<1x16x256xbf16, #tpu.memory_space<vmem>>, vector<1x16x256xbf16>
    %3 = vector.shape_cast %2 : vector<1x16x256xbf16> to vector<16x256xbf16>
    %cst = arith.constant dense<0.000000e+00> : vector<64x256xf32>
    %4 = tpu.matmul %1, %3, %cst {dimension_numbers = #tpu.dot_dimension_numbers<[1], [0], [0], [1], [0, 0, 1, 1], [], []>} : vector<64x16xbf16>, vector<16x256xbf16>, vector<64x256xf32> -> vector<64x256xf32>
    %c0_5 = arith.constant 0 : index
    %c0_6 = arith.constant 0 : index
    %5 = vector.load %arg3[%c0_5, %c0_6] : memref<1x256xf32, #tpu.memory_space<vmem>>, vector<1x256xf32>
    %6 = vector.broadcast %5 : vector<1x256xf32> to vector<64x256xf32>
    %7 = arith.addf %4, %6 : vector<64x256xf32>
    %cst_7 = arith.constant 0.000000e+00 : f32
    %8 = vector.broadcast %cst_7 : f32 to vector<64x256xf32>
    %9 = arith.maximumf %7, %8 : vector<64x256xf32>
    %10 = arith.truncf %9 : vector<64x256xf32> to vector<64x256xbf16>
    %c0_8 = arith.constant 0 : index
    %c0_9 = arith.constant 0 : index
    %c0_10 = arith.constant 0 : index
    %11 = vector.load %arg4[%c0_8, %c0_9, %c0_10] : memref<1x64x256xbf16, #tpu.memory_space<vmem>>, vector<1x64x256xbf16>
    %12 = vector.shape_cast %11 : vector<1x64x256xbf16> to vector<64x256xbf16>
    %13 = vector.shape_cast %10 : vector<64x256xbf16> to vector<1x64x256xbf16>
    tpu.vector_store %arg4[%c0_8, %c0_9, %c0_10], %13 {strides = array<i32>} : memref<1x64x256xbf16, #tpu.memory_space<vmem>>, vector<1x64x256xbf16>,
    return
  }
  func.func @transform_0(%arg0: i32) -> (i32, i32, i32) {
    %c0_i32 = arith.constant 0 : i32
    %c0_i32_0 = arith.constant 0 : i32
    %c0_i32_1 = arith.constant 0 : i32
    return %arg0, %c0_i32, %c0_i32_0 : i32, i32, i32
  }
  func.func @transform_1(%arg0: i32) -> (i32, i32, i32) {
    %c0_i32 = arith.constant 0 : i32
    %c0_i32_0 = arith.constant 0 : i32
    %c0_i32_1 = arith.constant 0 : i32
    return %arg0, %c0_i32, %c0_i32_0 : i32, i32, i32
  }
  func.func @transform_2(%arg0: i32) -> (i32, i32) {
    %c0_i32 = arith.constant 0 : i32
    %c0_i32_0 = arith.constant 0 : i32
    %c0_i32_1 = arith.constant 0 : i32
    return %c0_i32, %c0_i32_0 : i32, i32
  }
  func.func @transform_3(%arg0: i32) -> (i32, i32, i32) {
    %c0_i32 = arith.constant 0 : i32
    %c0_i32_0 = arith.constant 0 : i32
    %c0_i32_1 = arith.constant 0 : i32
    return %arg0, %c0_i32, %c0_i32_0 : i32, i32, i32
  }
}

module attributes {stable_mosaic.version = 11 : i64} {
  func.func @_mm_bias_kernel(%arg0: i32, %arg1: i32, %arg2: i32, %arg3: memref<128x256xbf16, #tpu.memory_space<vmem>>, %arg4: memref<256x128xbf16, #tpu.memory_space<vmem>>, %arg5: memref<1x128xf32, #tpu.memory_space<vmem>>, %arg6: memref<128x128xbf16, #tpu.memory_space<vmem>>, %arg7: memref<128x128xf32, #tpu.memory_space<vmem>>) attributes {dimension_semantics = [#tpu.dimension_semantics<parallel>, #tpu.dimension_semantics<parallel>, #tpu.dimension_semantics<arbitrary>], iteration_bounds = array<i64: 1, 1, 9>, scalar_prefetch = 0 : i64, scratch_operands = 1 : i64, tpu.core_type = #tpu.core_type<tc>, window_params = [{transform_indices = @transform_0, window_bounds = array<i64: 128, 256>}, {transform_indices = @transform_1, window_bounds = array<i64: 256, 128>}, {transform_indices = @transform_2, window_bounds = array<i64: 1, 128>}, {transform_indices = @transform_3, window_bounds = array<i64: 128, 128>}]} {
    %c0_i32 = arith.constant 0 : i32
    %0 = arith.cmpi eq, %arg2, %c0_i32 : i32
    %1 = arith.extui %0 : i1 to i32
    %c0_i32_0 = arith.constant 0 : i32
    %2 = arith.cmpi ne, %1, %c0_i32_0 : i32
    scf.if %2 {
      %cst_9 = arith.constant 0.000000e+00 : f32
      %12 = vector.broadcast %cst_9 : f32 to vector<128x128xf32>
      %c0_10 = arith.constant 0 : index
      %c0_11 = arith.constant 0 : index
      %13 = vector.load %arg7[%c0_10, %c0_11] : memref<128x128xf32, #tpu.memory_space<vmem>>, vector<128x128xf32>
      tpu.vector_store %arg7[%c0_10, %c0_11], %12 {strides = array<i32>} : memref<128x128xf32, #tpu.memory_space<vmem>>, vector<128x128xf32>,
    } else {
    }
    %c0 = arith.constant 0 : index
    %c0_1 = arith.constant 0 : index
    %3 = vector.load %arg7[%c0, %c0_1] : memref<128x128xf32, #tpu.memory_space<vmem>>, vector<128x128xf32>
    %c0_2 = arith.constant 0 : index
    %c0_3 = arith.constant 0 : index
    %4 = vector.load %arg3[%c0_2, %c0_3] : memref<128x256xbf16, #tpu.memory_space<vmem>>, vector<128x256xbf16>
    %c0_4 = arith.constant 0 : index
    %c0_5 = arith.constant 0 : index
    %5 = vector.load %arg4[%c0_4, %c0_5] : memref<256x128xbf16, #tpu.memory_space<vmem>>, vector<256x128xbf16>
    %cst = arith.constant dense<0.000000e+00> : vector<128x128xf32>
    %6 = tpu.matmul %4, %5, %cst {dimension_numbers = #tpu.dot_dimension_numbers<[1], [0], [0], [1], [0, 0, 1, 1], [], []>} : vector<128x256xbf16>, vector<256x128xbf16>, vector<128x128xf32> -> vector<128x128xf32>
    %7 = arith.addf %3, %6 : vector<128x128xf32>
    %c0_6 = arith.constant 0 : index
    %c0_7 = arith.constant 0 : index
    %8 = vector.load %arg7[%c0_6, %c0_7] : memref<128x128xf32, #tpu.memory_space<vmem>>, vector<128x128xf32>
    tpu.vector_store %arg7[%c0_6, %c0_7], %7 {strides = array<i32>} : memref<128x128xf32, #tpu.memory_space<vmem>>, vector<128x128xf32>,
    %c8_i32 = arith.constant 8 : i32
    %9 = arith.cmpi eq, %arg2, %c8_i32 : i32
    %10 = arith.extui %9 : i1 to i32
    %c0_i32_8 = arith.constant 0 : i32
    %11 = arith.cmpi ne, %10, %c0_i32_8 : i32
    scf.if %11 {
      %c0_9 = arith.constant 0 : index
      %c0_10 = arith.constant 0 : index
      %12 = vector.load %arg7[%c0_9, %c0_10] : memref<128x128xf32, #tpu.memory_space<vmem>>, vector<128x128xf32>
      %c0_11 = arith.constant 0 : index
      %c0_12 = arith.constant 0 : index
      %13 = vector.load %arg5[%c0_11, %c0_12] : memref<1x128xf32, #tpu.memory_space<vmem>>, vector<1x128xf32>
      %14 = vector.broadcast %13 : vector<1x128xf32> to vector<128x128xf32>
      %15 = arith.addf %12, %14 : vector<128x128xf32>
      %cst_13 = arith.constant 0.000000e+00 : f32
      %16 = vector.broadcast %cst_13 : f32 to vector<128x128xf32>
      %17 = arith.maximumf %15, %16 : vector<128x128xf32>
      %18 = arith.truncf %17 : vector<128x128xf32> to vector<128x128xbf16>
      %c0_14 = arith.constant 0 : index
      %c0_15 = arith.constant 0 : index
      %19 = vector.load %arg6[%c0_14, %c0_15] : memref<128x128xbf16, #tpu.memory_space<vmem>>, vector<128x128xbf16>
      tpu.vector_store %arg6[%c0_14, %c0_15], %18 {strides = array<i32>} : memref<128x128xbf16, #tpu.memory_space<vmem>>, vector<128x128xbf16>,
    } else {
    }
    return
  }
  func.func @transform_0(%arg0: i32, %arg1: i32, %arg2: i32) -> (i32, i32) {
    %c0_i32 = arith.constant 0 : i32
    return %arg0, %arg2 : i32, i32
  }
  func.func @transform_1(%arg0: i32, %arg1: i32, %arg2: i32) -> (i32, i32) {
    %c0_i32 = arith.constant 0 : i32
    return %arg2, %arg1 : i32, i32
  }
  func.func @transform_2(%arg0: i32, %arg1: i32, %arg2: i32) -> (i32, i32) {
    %c0_i32 = arith.constant 0 : i32
    %c0_i32_0 = arith.constant 0 : i32
    return %c0_i32, %arg1 : i32, i32
  }
  func.func @transform_3(%arg0: i32, %arg1: i32, %arg2: i32) -> (i32, i32) {
    %c0_i32 = arith.constant 0 : i32
    return %arg0, %arg1 : i32, i32
  }
}

module attributes {stable_mosaic.version = 11 : i64} {
  func.func @_mm_bias_kernel(%arg0: i32, %arg1: i32, %arg2: i32, %arg3: memref<32x128xbf16, #tpu.memory_space<vmem>>, %arg4: memref<128x256xbf16, #tpu.memory_space<vmem>>, %arg5: memref<1x256xf32, #tpu.memory_space<vmem>>, %arg6: memref<32x256xbf16, #tpu.memory_space<vmem>>, %arg7: memref<32x256xf32, #tpu.memory_space<vmem>>) attributes {dimension_semantics = [#tpu.dimension_semantics<parallel>, #tpu.dimension_semantics<parallel>, #tpu.dimension_semantics<arbitrary>], iteration_bounds = array<i64: 1, 1, 9>, scalar_prefetch = 0 : i64, scratch_operands = 1 : i64, tpu.core_type = #tpu.core_type<tc>, window_params = [{transform_indices = @transform_0, window_bounds = array<i64: 32, 128>}, {transform_indices = @transform_1, window_bounds = array<i64: 128, 256>}, {transform_indices = @transform_2, window_bounds = array<i64: 1, 256>}, {transform_indices = @transform_3, window_bounds = array<i64: 32, 256>}]} {
    %c0_i32 = arith.constant 0 : i32
    %0 = arith.cmpi eq, %arg2, %c0_i32 : i32
    %1 = arith.extui %0 : i1 to i32
    %c0_i32_0 = arith.constant 0 : i32
    %2 = arith.cmpi ne, %1, %c0_i32_0 : i32
    scf.if %2 {
      %cst_9 = arith.constant 0.000000e+00 : f32
      %12 = vector.broadcast %cst_9 : f32 to vector<32x256xf32>
      %c0_10 = arith.constant 0 : index
      %c0_11 = arith.constant 0 : index
      %13 = vector.load %arg7[%c0_10, %c0_11] : memref<32x256xf32, #tpu.memory_space<vmem>>, vector<32x256xf32>
      tpu.vector_store %arg7[%c0_10, %c0_11], %12 {strides = array<i32>} : memref<32x256xf32, #tpu.memory_space<vmem>>, vector<32x256xf32>,
    } else {
    }
    %c0 = arith.constant 0 : index
    %c0_1 = arith.constant 0 : index
    %3 = vector.load %arg7[%c0, %c0_1] : memref<32x256xf32, #tpu.memory_space<vmem>>, vector<32x256xf32>
    %c0_2 = arith.constant 0 : index
    %c0_3 = arith.constant 0 : index
    %4 = vector.load %arg3[%c0_2, %c0_3] : memref<32x128xbf16, #tpu.memory_space<vmem>>, vector<32x128xbf16>
    %c0_4 = arith.constant 0 : index
    %c0_5 = arith.constant 0 : index
    %5 = vector.load %arg4[%c0_4, %c0_5] : memref<128x256xbf16, #tpu.memory_space<vmem>>, vector<128x256xbf16>
    %cst = arith.constant dense<0.000000e+00> : vector<32x256xf32>
    %6 = tpu.matmul %4, %5, %cst {dimension_numbers = #tpu.dot_dimension_numbers<[1], [0], [0], [1], [0, 0, 1, 1], [], []>} : vector<32x128xbf16>, vector<128x256xbf16>, vector<32x256xf32> -> vector<32x256xf32>
    %7 = arith.addf %3, %6 : vector<32x256xf32>
    %c0_6 = arith.constant 0 : index
    %c0_7 = arith.constant 0 : index
    %8 = vector.load %arg7[%c0_6, %c0_7] : memref<32x256xf32, #tpu.memory_space<vmem>>, vector<32x256xf32>
    tpu.vector_store %arg7[%c0_6, %c0_7], %7 {strides = array<i32>} : memref<32x256xf32, #tpu.memory_space<vmem>>, vector<32x256xf32>,
    %c8_i32 = arith.constant 8 : i32
    %9 = arith.cmpi eq, %arg2, %c8_i32 : i32
    %10 = arith.extui %9 : i1 to i32
    %c0_i32_8 = arith.constant 0 : i32
    %11 = arith.cmpi ne, %10, %c0_i32_8 : i32
    scf.if %11 {
      %c0_9 = arith.constant 0 : index
      %c0_10 = arith.constant 0 : index
      %12 = vector.load %arg7[%c0_9, %c0_10] : memref<32x256xf32, #tpu.memory_space<vmem>>, vector<32x256xf32>
      %c0_11 = arith.constant 0 : index
      %c0_12 = arith.constant 0 : index
      %13 = vector.load %arg5[%c0_11, %c0_12] : memref<1x256xf32, #tpu.memory_space<vmem>>, vector<1x256xf32>
      %14 = vector.broadcast %13 : vector<1x256xf32> to vector<32x256xf32>
      %15 = arith.addf %12, %14 : vector<32x256xf32>
      %cst_13 = arith.constant 0.000000e+00 : f32
      %16 = vector.broadcast %cst_13 : f32 to vector<32x256xf32>
      %17 = arith.maximumf %15, %16 : vector<32x256xf32>
      %18 = arith.truncf %17 : vector<32x256xf32> to vector<32x256xbf16>
      %c0_14 = arith.constant 0 : index
      %c0_15 = arith.constant 0 : index
      %19 = vector.load %arg6[%c0_14, %c0_15] : memref<32x256xbf16, #tpu.memory_space<vmem>>, vector<32x256xbf16>
      tpu.vector_store %arg6[%c0_14, %c0_15], %18 {strides = array<i32>} : memref<32x256xbf16, #tpu.memory_space<vmem>>, vector<32x256xbf16>,
    } else {
    }
    return
  }
  func.func @transform_0(%arg0: i32, %arg1: i32, %arg2: i32) -> (i32, i32) {
    %c0_i32 = arith.constant 0 : i32
    return %arg0, %arg2 : i32, i32
  }
  func.func @transform_1(%arg0: i32, %arg1: i32, %arg2: i32) -> (i32, i32) {
    %c0_i32 = arith.constant 0 : i32
    return %arg2, %arg1 : i32, i32
  }
  func.func @transform_2(%arg0: i32, %arg1: i32, %arg2: i32) -> (i32, i32) {
    %c0_i32 = arith.constant 0 : i32
    %c0_i32_0 = arith.constant 0 : i32
    return %c0_i32, %arg1 : i32, i32
  }
  func.func @transform_3(%arg0: i32, %arg1: i32, %arg2: i32) -> (i32, i32) {
    %c0_i32 = arith.constant 0 : i32
    return %arg0, %arg1 : i32, i32
  }
}

module attributes {stable_mosaic.version = 11 : i64} {
  func.func @_mm_bias_kernel(%arg0: i32, %arg1: i32, %arg2: i32, %arg3: memref<32x256xbf16, #tpu.memory_space<vmem>>, %arg4: memref<256x256xbf16, #tpu.memory_space<vmem>>, %arg5: memref<1x256xf32, #tpu.memory_space<vmem>>, %arg6: memref<32x256xbf16, #tpu.memory_space<vmem>>, %arg7: memref<32x256xf32, #tpu.memory_space<vmem>>) attributes {dimension_semantics = [#tpu.dimension_semantics<parallel>, #tpu.dimension_semantics<parallel>, #tpu.dimension_semantics<arbitrary>], iteration_bounds = array<i64: 1, 1, 9>, scalar_prefetch = 0 : i64, scratch_operands = 1 : i64, tpu.core_type = #tpu.core_type<tc>, window_params = [{transform_indices = @transform_0, window_bounds = array<i64: 32, 256>}, {transform_indices = @transform_1, window_bounds = array<i64: 256, 256>}, {transform_indices = @transform_2, window_bounds = array<i64: 1, 256>}, {transform_indices = @transform_3, window_bounds = array<i64: 32, 256>}]} {
    %c0_i32 = arith.constant 0 : i32
    %0 = arith.cmpi eq, %arg2, %c0_i32 : i32
    %1 = arith.extui %0 : i1 to i32
    %c0_i32_0 = arith.constant 0 : i32
    %2 = arith.cmpi ne, %1, %c0_i32_0 : i32
    scf.if %2 {
      %cst_9 = arith.constant 0.000000e+00 : f32
      %12 = vector.broadcast %cst_9 : f32 to vector<32x256xf32>
      %c0_10 = arith.constant 0 : index
      %c0_11 = arith.constant 0 : index
      %13 = vector.load %arg7[%c0_10, %c0_11] : memref<32x256xf32, #tpu.memory_space<vmem>>, vector<32x256xf32>
      tpu.vector_store %arg7[%c0_10, %c0_11], %12 {strides = array<i32>} : memref<32x256xf32, #tpu.memory_space<vmem>>, vector<32x256xf32>,
    } else {
    }
    %c0 = arith.constant 0 : index
    %c0_1 = arith.constant 0 : index
    %3 = vector.load %arg7[%c0, %c0_1] : memref<32x256xf32, #tpu.memory_space<vmem>>, vector<32x256xf32>
    %c0_2 = arith.constant 0 : index
    %c0_3 = arith.constant 0 : index
    %4 = vector.load %arg3[%c0_2, %c0_3] : memref<32x256xbf16, #tpu.memory_space<vmem>>, vector<32x256xbf16>
    %c0_4 = arith.constant 0 : index
    %c0_5 = arith.constant 0 : index
    %5 = vector.load %arg4[%c0_4, %c0_5] : memref<256x256xbf16, #tpu.memory_space<vmem>>, vector<256x256xbf16>
    %cst = arith.constant dense<0.000000e+00> : vector<32x256xf32>
    %6 = tpu.matmul %4, %5, %cst {dimension_numbers = #tpu.dot_dimension_numbers<[1], [0], [0], [1], [0, 0, 1, 1], [], []>} : vector<32x256xbf16>, vector<256x256xbf16>, vector<32x256xf32> -> vector<32x256xf32>
    %7 = arith.addf %3, %6 : vector<32x256xf32>
    %c0_6 = arith.constant 0 : index
    %c0_7 = arith.constant 0 : index
    %8 = vector.load %arg7[%c0_6, %c0_7] : memref<32x256xf32, #tpu.memory_space<vmem>>, vector<32x256xf32>
    tpu.vector_store %arg7[%c0_6, %c0_7], %7 {strides = array<i32>} : memref<32x256xf32, #tpu.memory_space<vmem>>, vector<32x256xf32>,
    %c8_i32 = arith.constant 8 : i32
    %9 = arith.cmpi eq, %arg2, %c8_i32 : i32
    %10 = arith.extui %9 : i1 to i32
    %c0_i32_8 = arith.constant 0 : i32
    %11 = arith.cmpi ne, %10, %c0_i32_8 : i32
    scf.if %11 {
      %c0_9 = arith.constant 0 : index
      %c0_10 = arith.constant 0 : index
      %12 = vector.load %arg7[%c0_9, %c0_10] : memref<32x256xf32, #tpu.memory_space<vmem>>, vector<32x256xf32>
      %c0_11 = arith.constant 0 : index
      %c0_12 = arith.constant 0 : index
      %13 = vector.load %arg5[%c0_11, %c0_12] : memref<1x256xf32, #tpu.memory_space<vmem>>, vector<1x256xf32>
      %14 = vector.broadcast %13 : vector<1x256xf32> to vector<32x256xf32>
      %15 = arith.addf %12, %14 : vector<32x256xf32>
      %cst_13 = arith.constant 0.000000e+00 : f32
      %16 = vector.broadcast %cst_13 : f32 to vector<32x256xf32>
      %17 = arith.maximumf %15, %16 : vector<32x256xf32>
      %18 = arith.truncf %17 : vector<32x256xf32> to vector<32x256xbf16>
      %c0_14 = arith.constant 0 : index
      %c0_15 = arith.constant 0 : index
      %19 = vector.load %arg6[%c0_14, %c0_15] : memref<32x256xbf16, #tpu.memory_space<vmem>>, vector<32x256xbf16>
      tpu.vector_store %arg6[%c0_14, %c0_15], %18 {strides = array<i32>} : memref<32x256xbf16, #tpu.memory_space<vmem>>, vector<32x256xbf16>,
    } else {
    }
    return
  }
  func.func @transform_0(%arg0: i32, %arg1: i32, %arg2: i32) -> (i32, i32) {
    %c0_i32 = arith.constant 0 : i32
    return %arg0, %arg2 : i32, i32
  }
  func.func @transform_1(%arg0: i32, %arg1: i32, %arg2: i32) -> (i32, i32) {
    %c0_i32 = arith.constant 0 : i32
    return %arg2, %arg1 : i32, i32
  }
  func.func @transform_2(%arg0: i32, %arg1: i32, %arg2: i32) -> (i32, i32) {
    %c0_i32 = arith.constant 0 : i32
    %c0_i32_0 = arith.constant 0 : i32
    return %c0_i32, %arg1 : i32, i32
  }
  func.func @transform_3(%arg0: i32, %arg1: i32, %arg2: i32) -> (i32, i32) {
    %c0_i32 = arith.constant 0 : i32
    return %arg0, %arg1 : i32, i32
  }
}

module attributes {stable_mosaic.version = 11 : i64} {
  func.func @_mm_bias_kernel(%arg0: i32, %arg1: i32, %arg2: i32, %arg3: memref<32x512xbf16, #tpu.memory_space<vmem>>, %arg4: memref<512x256xbf16, #tpu.memory_space<vmem>>, %arg5: memref<1x256xf32, #tpu.memory_space<vmem>>, %arg6: memref<32x256xbf16, #tpu.memory_space<vmem>>, %arg7: memref<32x256xf32, #tpu.memory_space<vmem>>) attributes {dimension_semantics = [#tpu.dimension_semantics<parallel>, #tpu.dimension_semantics<parallel>, #tpu.dimension_semantics<arbitrary>], iteration_bounds = array<i64: 1, 2, 2>, scalar_prefetch = 0 : i64, scratch_operands = 1 : i64, tpu.core_type = #tpu.core_type<tc>, window_params = [{transform_indices = @transform_0, window_bounds = array<i64: 32, 512>}, {transform_indices = @transform_1, window_bounds = array<i64: 512, 256>}, {transform_indices = @transform_2, window_bounds = array<i64: 1, 256>}, {transform_indices = @transform_3, window_bounds = array<i64: 32, 256>}]} {
    %c0_i32 = arith.constant 0 : i32
    %0 = arith.cmpi eq, %arg2, %c0_i32 : i32
    %1 = arith.extui %0 : i1 to i32
    %c0_i32_0 = arith.constant 0 : i32
    %2 = arith.cmpi ne, %1, %c0_i32_0 : i32
    scf.if %2 {
      %cst_9 = arith.constant 0.000000e+00 : f32
      %12 = vector.broadcast %cst_9 : f32 to vector<32x256xf32>
      %c0_10 = arith.constant 0 : index
      %c0_11 = arith.constant 0 : index
      %13 = vector.load %arg7[%c0_10, %c0_11] : memref<32x256xf32, #tpu.memory_space<vmem>>, vector<32x256xf32>
      tpu.vector_store %arg7[%c0_10, %c0_11], %12 {strides = array<i32>} : memref<32x256xf32, #tpu.memory_space<vmem>>, vector<32x256xf32>,
    } else {
    }
    %c0 = arith.constant 0 : index
    %c0_1 = arith.constant 0 : index
    %3 = vector.load %arg7[%c0, %c0_1] : memref<32x256xf32, #tpu.memory_space<vmem>>, vector<32x256xf32>
    %c0_2 = arith.constant 0 : index
    %c0_3 = arith.constant 0 : index
    %4 = vector.load %arg3[%c0_2, %c0_3] : memref<32x512xbf16, #tpu.memory_space<vmem>>, vector<32x512xbf16>
    %c0_4 = arith.constant 0 : index
    %c0_5 = arith.constant 0 : index
    %5 = vector.load %arg4[%c0_4, %c0_5] : memref<512x256xbf16, #tpu.memory_space<vmem>>, vector<512x256xbf16>
    %cst = arith.constant dense<0.000000e+00> : vector<32x256xf32>
    %6 = tpu.matmul %4, %5, %cst {dimension_numbers = #tpu.dot_dimension_numbers<[1], [0], [0], [1], [0, 0, 1, 1], [], []>} : vector<32x512xbf16>, vector<512x256xbf16>, vector<32x256xf32> -> vector<32x256xf32>
    %7 = arith.addf %3, %6 : vector<32x256xf32>
    %c0_6 = arith.constant 0 : index
    %c0_7 = arith.constant 0 : index
    %8 = vector.load %arg7[%c0_6, %c0_7] : memref<32x256xf32, #tpu.memory_space<vmem>>, vector<32x256xf32>
    tpu.vector_store %arg7[%c0_6, %c0_7], %7 {strides = array<i32>} : memref<32x256xf32, #tpu.memory_space<vmem>>, vector<32x256xf32>,
    %c1_i32 = arith.constant 1 : i32
    %9 = arith.cmpi eq, %arg2, %c1_i32 : i32
    %10 = arith.extui %9 : i1 to i32
    %c0_i32_8 = arith.constant 0 : i32
    %11 = arith.cmpi ne, %10, %c0_i32_8 : i32
    scf.if %11 {
      %c0_9 = arith.constant 0 : index
      %c0_10 = arith.constant 0 : index
      %12 = vector.load %arg7[%c0_9, %c0_10] : memref<32x256xf32, #tpu.memory_space<vmem>>, vector<32x256xf32>
      %c0_11 = arith.constant 0 : index
      %c0_12 = arith.constant 0 : index
      %13 = vector.load %arg5[%c0_11, %c0_12] : memref<1x256xf32, #tpu.memory_space<vmem>>, vector<1x256xf32>
      %14 = vector.broadcast %13 : vector<1x256xf32> to vector<32x256xf32>
      %15 = arith.addf %12, %14 : vector<32x256xf32>
      %cst_13 = arith.constant 0.000000e+00 : f32
      %16 = vector.broadcast %cst_13 : f32 to vector<32x256xf32>
      %17 = arith.maximumf %15, %16 : vector<32x256xf32>
      %18 = arith.truncf %17 : vector<32x256xf32> to vector<32x256xbf16>
      %c0_14 = arith.constant 0 : index
      %c0_15 = arith.constant 0 : index
      %19 = vector.load %arg6[%c0_14, %c0_15] : memref<32x256xbf16, #tpu.memory_space<vmem>>, vector<32x256xbf16>
      tpu.vector_store %arg6[%c0_14, %c0_15], %18 {strides = array<i32>} : memref<32x256xbf16, #tpu.memory_space<vmem>>, vector<32x256xbf16>,
    } else {
    }
    return
  }
  func.func @transform_0(%arg0: i32, %arg1: i32, %arg2: i32) -> (i32, i32) {
    %c0_i32 = arith.constant 0 : i32
    return %arg0, %arg2 : i32, i32
  }
  func.func @transform_1(%arg0: i32, %arg1: i32, %arg2: i32) -> (i32, i32) {
    %c0_i32 = arith.constant 0 : i32
    return %arg2, %arg1 : i32, i32
  }
  func.func @transform_2(%arg0: i32, %arg1: i32, %arg2: i32) -> (i32, i32) {
    %c0_i32 = arith.constant 0 : i32
    %c0_i32_0 = arith.constant 0 : i32
    return %c0_i32, %arg1 : i32, i32
  }
  func.func @transform_3(%arg0: i32, %arg1: i32, %arg2: i32) -> (i32, i32) {
    %c0_i32 = arith.constant 0 : i32
    return %arg0, %arg1 : i32, i32
  }
}

module attributes {stable_mosaic.version = 11 : i64} {
  func.func @_mm_bias_kernel(%arg0: i32, %arg1: i32, %arg2: i32, %arg3: memref<128x128xbf16, #tpu.memory_space<vmem>>, %arg4: memref<128x128xbf16, #tpu.memory_space<vmem>>, %arg5: memref<1x128xf32, #tpu.memory_space<vmem>>, %arg6: memref<128x128xf32, #tpu.memory_space<vmem>>, %arg7: memref<128x128xf32, #tpu.memory_space<vmem>>) attributes {dimension_semantics = [#tpu.dimension_semantics<parallel>, #tpu.dimension_semantics<parallel>, #tpu.dimension_semantics<arbitrary>], iteration_bounds = array<i64: 1, 1, 9>, scalar_prefetch = 0 : i64, scratch_operands = 1 : i64, tpu.core_type = #tpu.core_type<tc>, window_params = [{transform_indices = @transform_0, window_bounds = array<i64: 128, 128>}, {transform_indices = @transform_1, window_bounds = array<i64: 128, 128>}, {transform_indices = @transform_2, window_bounds = array<i64: 1, 128>}, {transform_indices = @transform_3, window_bounds = array<i64: 128, 128>}]} {
    %c0_i32 = arith.constant 0 : i32
    %0 = arith.cmpi eq, %arg2, %c0_i32 : i32
    %1 = arith.extui %0 : i1 to i32
    %c0_i32_0 = arith.constant 0 : i32
    %2 = arith.cmpi ne, %1, %c0_i32_0 : i32
    scf.if %2 {
      %cst_9 = arith.constant 0.000000e+00 : f32
      %12 = vector.broadcast %cst_9 : f32 to vector<128x128xf32>
      %c0_10 = arith.constant 0 : index
      %c0_11 = arith.constant 0 : index
      %13 = vector.load %arg7[%c0_10, %c0_11] : memref<128x128xf32, #tpu.memory_space<vmem>>, vector<128x128xf32>
      tpu.vector_store %arg7[%c0_10, %c0_11], %12 {strides = array<i32>} : memref<128x128xf32, #tpu.memory_space<vmem>>, vector<128x128xf32>,
    } else {
    }
    %c0 = arith.constant 0 : index
    %c0_1 = arith.constant 0 : index
    %3 = vector.load %arg7[%c0, %c0_1] : memref<128x128xf32, #tpu.memory_space<vmem>>, vector<128x128xf32>
    %c0_2 = arith.constant 0 : index
    %c0_3 = arith.constant 0 : index
    %4 = vector.load %arg3[%c0_2, %c0_3] : memref<128x128xbf16, #tpu.memory_space<vmem>>, vector<128x128xbf16>
    %c0_4 = arith.constant 0 : index
    %c0_5 = arith.constant 0 : index
    %5 = vector.load %arg4[%c0_4, %c0_5] : memref<128x128xbf16, #tpu.memory_space<vmem>>, vector<128x128xbf16>
    %cst = arith.constant dense<0.000000e+00> : vector<128x128xf32>
    %6 = tpu.matmul %4, %5, %cst {dimension_numbers = #tpu.dot_dimension_numbers<[1], [0], [0], [1], [0, 0, 1, 1], [], []>} : vector<128x128xbf16>, vector<128x128xbf16>, vector<128x128xf32> -> vector<128x128xf32>
    %7 = arith.addf %3, %6 : vector<128x128xf32>
    %c0_6 = arith.constant 0 : index
    %c0_7 = arith.constant 0 : index
    %8 = vector.load %arg7[%c0_6, %c0_7] : memref<128x128xf32, #tpu.memory_space<vmem>>, vector<128x128xf32>
    tpu.vector_store %arg7[%c0_6, %c0_7], %7 {strides = array<i32>} : memref<128x128xf32, #tpu.memory_space<vmem>>, vector<128x128xf32>,
    %c8_i32 = arith.constant 8 : i32
    %9 = arith.cmpi eq, %arg2, %c8_i32 : i32
    %10 = arith.extui %9 : i1 to i32
    %c0_i32_8 = arith.constant 0 : i32
    %11 = arith.cmpi ne, %10, %c0_i32_8 : i32
    scf.if %11 {
      %c0_9 = arith.constant 0 : index
      %c0_10 = arith.constant 0 : index
      %12 = vector.load %arg7[%c0_9, %c0_10] : memref<128x128xf32, #tpu.memory_space<vmem>>, vector<128x128xf32>
      %c0_11 = arith.constant 0 : index
      %c0_12 = arith.constant 0 : index
      %13 = vector.load %arg5[%c0_11, %c0_12] : memref<1x128xf32, #tpu.memory_space<vmem>>, vector<1x128xf32>
      %14 = vector.broadcast %13 : vector<1x128xf32> to vector<128x128xf32>
      %15 = arith.addf %12, %14 : vector<128x128xf32>
      %c0_13 = arith.constant 0 : index
      %c0_14 = arith.constant 0 : index
      %16 = vector.load %arg6[%c0_13, %c0_14] : memref<128x128xf32, #tpu.memory_space<vmem>>, vector<128x128xf32>
      tpu.vector_store %arg6[%c0_13, %c0_14], %15 {strides = array<i32>} : memref<128x128xf32, #tpu.memory_space<vmem>>, vector<128x128xf32>,
    } else {
    }
    return
  }
  func.func @transform_0(%arg0: i32, %arg1: i32, %arg2: i32) -> (i32, i32) {
    %c0_i32 = arith.constant 0 : i32
    return %arg0, %arg2 : i32, i32
  }
  func.func @transform_1(%arg0: i32, %arg1: i32, %arg2: i32) -> (i32, i32) {
    %c0_i32 = arith.constant 0 : i32
    return %arg2, %arg1 : i32, i32
  }
  func.func @transform_2(%arg0: i32, %arg1: i32, %arg2: i32) -> (i32, i32) {
    %c0_i32 = arith.constant 0 : i32
    %c0_i32_0 = arith.constant 0 : i32
    return %c0_i32, %arg1 : i32, i32
  }
  func.func @transform_3(%arg0: i32, %arg1: i32, %arg2: i32) -> (i32, i32) {
    %c0_i32 = arith.constant 0 : i32
    return %arg0, %arg1 : i32, i32
  }
}

module attributes {stable_mosaic.version = 11 : i64} {
  func.func @_masked_l1_kernel(%arg0: i32, %arg1: memref<1x128xf32, #tpu.memory_space<vmem>>, %arg2: memref<1x128xf32, #tpu.memory_space<vmem>>, %arg3: memref<1x128xf32, #tpu.memory_space<vmem>>, %arg4: memref<1x1xf32, #tpu.memory_space<vmem>>, %arg5: memref<1x1xf32, #tpu.memory_space<vmem>>) attributes {dimension_semantics = [#tpu.dimension_semantics<arbitrary>], iteration_bounds = array<i64: 1>, scalar_prefetch = 0 : i64, scratch_operands = 0 : i64, tpu.core_type = #tpu.core_type<tc>, window_params = [{pipeline_mode = #tpu.pipeline_mode<synchronous>, transform_indices = @transform_0, window_bounds = array<i64: 1, 128>}, {pipeline_mode = #tpu.pipeline_mode<synchronous>, transform_indices = @transform_1, window_bounds = array<i64: 1, 128>}, {pipeline_mode = #tpu.pipeline_mode<synchronous>, transform_indices = @transform_2, window_bounds = array<i64: 1, 128>}, {pipeline_mode = #tpu.pipeline_mode<synchronous>, transform_indices = @transform_3, window_bounds = array<i64: 1, 1>}, {pipeline_mode = #tpu.pipeline_mode<synchronous>, transform_indices = @transform_4, window_bounds = array<i64: 1, 1>}]} {
    %c0 = arith.constant 0 : index
    %c0_0 = arith.constant 0 : index
    %0 = vector.load %arg1[%c0, %c0_0] : memref<1x128xf32, #tpu.memory_space<vmem>>, vector<1x128xf32>
    %c0_1 = arith.constant 0 : index
    %c0_2 = arith.constant 0 : index
    %1 = vector.load %arg2[%c0_1, %c0_2] : memref<1x128xf32, #tpu.memory_space<vmem>>, vector<1x128xf32>
    %2 = arith.subf %0, %1 : vector<1x128xf32>
    %3 = math.absf %2 : vector<1x128xf32>
    %c0_3 = arith.constant 0 : index
    %c0_4 = arith.constant 0 : index
    %4 = vector.load %arg3[%c0_3, %c0_4] : memref<1x128xf32, #tpu.memory_space<vmem>>, vector<1x128xf32>
    %5 = arith.mulf %3, %4 : vector<1x128xf32>
    %6 = vector.shape_cast %5 : vector<1x128xf32> to vector<1x1x128xf32>
    %cst = arith.constant dense<0.000000e+00> : vector<1xf32>
    %7 = vector.multi_reduction <add>, %6, %cst [1, 2] : vector<1x1x128xf32> to vector<1xf32>
    %8 = vector.shape_cast %7 : vector<1xf32> to vector<1x1x1xf32>
    %9 = vector.extract %8[0, 0, 0] : f32 from vector<1x1x1xf32>
    %10 = vector.broadcast %9 : f32 to vector<1x1xf32>
    %c0_5 = arith.constant 0 : index
    %c0_6 = arith.constant 0 : index
    %11 = vector.load %arg4[%c0_5, %c0_6] : memref<1x1xf32, #tpu.memory_space<vmem>>, vector<1x1xf32>
    tpu.vector_store %arg4[%c0_5, %c0_6], %10 {strides = array<i32>} : memref<1x1xf32, #tpu.memory_space<vmem>>, vector<1x1xf32>,
    %c0_7 = arith.constant 0 : index
    %c0_8 = arith.constant 0 : index
    %12 = vector.load %arg3[%c0_7, %c0_8] : memref<1x128xf32, #tpu.memory_space<vmem>>, vector<1x128xf32>
    %13 = vector.shape_cast %12 : vector<1x128xf32> to vector<1x1x128xf32>
    %cst_9 = arith.constant dense<0.000000e+00> : vector<1xf32>
    %14 = vector.multi_reduction <add>, %13, %cst_9 [1, 2] : vector<1x1x128xf32> to vector<1xf32>
    %15 = vector.shape_cast %14 : vector<1xf32> to vector<1x1x1xf32>
    %16 = vector.extract %15[0, 0, 0] : f32 from vector<1x1x1xf32>
    %17 = vector.broadcast %16 : f32 to vector<1x1xf32>
    %c0_10 = arith.constant 0 : index
    %c0_11 = arith.constant 0 : index
    %18 = vector.load %arg5[%c0_10, %c0_11] : memref<1x1xf32, #tpu.memory_space<vmem>>, vector<1x1xf32>
    tpu.vector_store %arg5[%c0_10, %c0_11], %17 {strides = array<i32>} : memref<1x1xf32, #tpu.memory_space<vmem>>, vector<1x1xf32>,
    return
  }
  func.func @transform_0(%arg0: i32) -> (i32, i32) {
    %c0_i32 = arith.constant 0 : i32
    %c0_i32_0 = arith.constant 0 : i32
    %c0_i32_1 = arith.constant 0 : i32
    return %c0_i32, %c0_i32_0 : i32, i32
  }
  func.func @transform_1(%arg0: i32) -> (i32, i32) {
    %c0_i32 = arith.constant 0 : i32
    %c0_i32_0 = arith.constant 0 : i32
    %c0_i32_1 = arith.constant 0 : i32
    return %c0_i32, %c0_i32_0 : i32, i32
  }
  func.func @transform_2(%arg0: i32) -> (i32, i32) {
    %c0_i32 = arith.constant 0 : i32
    %c0_i32_0 = arith.constant 0 : i32
    %c0_i32_1 = arith.constant 0 : i32
    return %c0_i32, %c0_i32_0 : i32, i32
  }
  func.func @transform_3(%arg0: i32) -> (i32, i32) {
    %c0_i32 = arith.constant 0 : i32
    %c0_i32_0 = arith.constant 0 : i32
    %c0_i32_1 = arith.constant 0 : i32
    return %c0_i32, %c0_i32_0 : i32, i32
  }
  func.func @transform_4(%arg0: i32) -> (i32, i32) {
    %c0_i32 = arith.constant 0 : i32
    %c0_i32_0 = arith.constant 0 : i32
    %c0_i32_1 = arith.constant 0 : i32
    return %c0_i32, %c0_i32_0 : i32, i32
  }
}

</mosaic_0001>

<llo_original>
// kernel: scale_estimator_forward.10
$region0: #{scale_estimator_forward.10}
  #allocation0 [shape = 'u32[]', space=smem, size = 0x4, offset = 0x4, fixed_abs, tag = 'smem constant byte address 0x4 - core index']
  #allocation1 [shape = 'u32[72,128]{1,0:T(1,128)}', space=vmem, size = 0x9000, scoped, tag = 'internal scratch']
  %s0 = inlined_call_operand.vmem [shape: bf16[2,64,16], index: 0, kind: input, shape index: {}]
  %s1 = inlined_call_operand.vmem [shape: bf16[2,16,256], index: 1, kind: input, shape index: {}]
  %s2 = inlined_call_operand.vmem [shape: f32[1,256], index: 2, kind: input, shape index: {}]
  %s3 = inlined_call_operand.vmem [shape: bf16[2,64,256], index: 3, kind: output, shape index: {}]
  %s4 = sld [smem:[#allocation0]]
  $region45: #{scale_estimator_forward.10} parent=0
    _
  %s6 = ssub.s32 1, %s4
  %s7 = scalar_select 0, %s6, %s4
  loop: start=0, step=1, limit=4
  $region2: #{scale_estimator_forward.10} parent=0 // loop_pre_header
    _
  $region3: #{scale_estimator_forward.10} parent=0 // loop_header
    %s9 = sphi 0, %s13
    %p10 = scmp.ge.s32.totalorder %s9, 4
    %s19 = sphi 0, %s21
    %s22 = sphi 0, %s19
    %s23 = sphi 0, %s22
    %s39 = sphi 0, %s23
    %s45 = sphi 0, %s47
    %s48 = sphi 0, %s45
    %s49 = sphi 0, %s48
    %s65 = sphi 0, %s49
    %s69 = sphi 0, %s69
    %s71 = sphi 0, %s69
    %s72 = sphi 0, %s71
    %s86 = sphi 0, %s72
    %s92 = sphi 0, %s94
    %s95 = sphi 0, %s92
    %s96 = sphi 0, %s95
    %s112 = sphi 0, %s96
  $region4: #{scale_estimator_forward.10} parent=0 // loop_header_branch
    %12 = sbr.rel (%p10) target = $region8
  $region5: #{scale_estimator_forward.10} parent=0 // loop_body
    %s14 = ssub.s32 %s9, 1
    %s15 = ssub.s32 %s9, 2
    %s16 = sadd.s32 %s9, 1
    %s17 = ssub.s32 %s9, %s16
    %p18 = scmp.eq.s32.totalorder %s17, 0
    %s20 = sadd.s32 %s19, 1
    %s21 = scalar_select %p18, %s19, %s20
    %p24 = pneg %p18
    %p25 = scmp.eq.s32.totalorder %s9, 1
    %p26 = por %p24, %p25
    %p27 = scmp.ne.s32.totalorder %s19, %s22
    %p28 = scmp.eq.s32.totalorder %s9, 0
    %p29 = por %p27, %p28
    %p30 = scmp.ne.s32.totalorder %s19, %s22
    %p31 = scmp.eq.s32.totalorder %s14, 1
    %p32 = por %p30, %p31
    %p33 = scmp.ne.s32.totalorder %s22, %s23
    %p34 = scmp.eq.s32.totalorder %s14, 0
    %p35 = por %p33, %p34
    %p36 = scmp.ne.s32.totalorder %s22, %s23
    %p37 = scmp.eq.s32.totalorder %s15, 1
    %p38 = por %p36, %p37
    %p40 = scmp.ne.s32.totalorder %s23, %s39
    %p41 = scmp.eq.s32.totalorder %s15, 0
    %p42 = por %p40, %p41
    %s43 = ssub.s32 %s9, %s16
    %p44 = scmp.eq.s32.totalorder %s43, 0
    %s46 = sadd.s32 %s45, 1
    %s47 = scalar_select %p44, %s45, %s46
    %p50 = pneg %p44
    %p51 = scmp.eq.s32.totalorder %s9, 1
    %p52 = por %p50, %p51
    %p53 = scmp.ne.s32.totalorder %s45, %s48
    %p54 = scmp.eq.s32.totalorder %s9, 0
    %p55 = por %p53, %p54
    %p56 = scmp.ne.s32.totalorder %s45, %s48
    %p57 = scmp.eq.s32.totalorder %s14, 1
    %p58 = por %p56, %p57
    %p59 = scmp.ne.s32.totalorder %s48, %s49
    %p60 = scmp.eq.s32.totalorder %s14, 0
    %p61 = por %p59, %p60
    %p62 = scmp.ne.s32.totalorder %s48, %s49
    %p63 = scmp.eq.s32.totalorder %s15, 1
    %p64 = por %p62, %p63
    %p66 = scmp.ne.s32.totalorder %s49, %s65
    %p67 = scmp.eq.s32.totalorder %s15, 0
    %p68 = por %p66, %p67
    %s70 = sadd.s32 %s69, 1
    %p73 = scmp.eq.s32.totalorder %s9, 1
    %p74 = scmp.ne.s32.totalorder %s69, %s71
    %p75 = scmp.eq.s32.totalorder %s9, 0
    %p76 = por %p74, %p75
    %p77 = scmp.ne.s32.totalorder %s69, %s71
    %p78 = scmp.eq.s32.totalorder %s14, 1
    %p79 = por %p77, %p78
    %p80 = scmp.ne.s32.totalorder %s71, %s72
    %p81 = scmp.eq.s32.totalorder %s14, 0
    %p82 = por %p80, %p81
    %p83 = scmp.ne.s32.totalorder %s71, %s72
    %p84 = scmp.eq.s32.totalorder %s15, 1
    %p85 = por %p83, %p84
    %p87 = scmp.ne.s32.totalorder %s72, %s86
    %p88 = scmp.eq.s32.totalorder %s15, 0
    %p89 = por %p87, %p88
    %s90 = ssub.s32 %s9, %s16
    %p91 = scmp.eq.s32.totalorder %s90, 0
    %s93 = sadd.s32 %s92, 1
    %s94 = scalar_select %p91, %s92, %s93
    %p97 = pneg %p91
    %p98 = scmp.eq.s32.totalorder %s9, 1
    %p99 = por %p97, %p98
    %p100 = scmp.ne.s32.totalorder %s92, %s95
    %p101 = scmp.eq.s32.totalorder %s9, 0
    %p102 = por %p100, %p101
    %p103 = scmp.ne.s32.totalorder %s92, %s95
    %p104 = scmp.eq.s32.totalorder %s14, 1
    %p105 = por %p103, %p104
    %p106 = scmp.ne.s32.totalorder %s95, %s96
    %p107 = scmp.eq.s32.totalorder %s14, 0
    %p108 = por %p106, %p107
    %p109 = scmp.ne.s32.totalorder %s95, %s96
    %p110 = scmp.eq.s32.totalorder %s15, 1
    %p111 = por %p109, %p110
    %p113 = scmp.ne.s32.totalorder %s96, %s112
    %p114 = scmp.eq.s32.totalorder %s15, 0
    %p115 = por %p113, %p114
    %p116 = scmp.le.s32.totalorder 1, %s9
    %p117 = scmp.lt.s32.totalorder %s9, 3
    %p118 = pnand %p116, %p117
    %p119 = pneg %p118
    // Predicated region
    $region9: #{scale_estimator_forward.10} parent=5 // pred_check
      _
    $region10: #{scale_estimator_forward.10} parent=5 // pred_check_branch
      %121 = sbr.rel (%p118) target = $region12
    $region11: #{scale_estimator_forward.10} parent=5 // pred_region
      %s122 = ssub.s32 %s9, 1
      // Predicated region
      $region13: #{scale_estimator_forward.10} parent=11 // pred_check
        %p123 = pneg %p82
      $region14: #{scale_estimator_forward.10} parent=11 // pred_check_branch
        %125 = sbr.rel (%p123) target = $region16
      $region15: #{scale_estimator_forward.10} parent=11 // pred_region
        _
      $region16: #{scale_estimator_forward.10} parent=11 // pred_fallthru
        _
    $region12: #{scale_estimator_forward.10} parent=5 // pred_fallthru
      _
    %p126 = scmp.lt.s32.totalorder %s9, 2
    // Predicated region
    $region17: #{scale_estimator_forward.10} parent=5 // pred_check
      %p127 = pneg %p126
    $region18: #{scale_estimator_forward.10} parent=5 // pred_check_branch
      %129 = sbr.rel (%p127) target = $region20
    $region19: #{scale_estimator_forward.10} parent=5 // pred_region
      // Predicated region
      $region21: #{scale_estimator_forward.10} parent=19 // pred_check
        %p130 = pneg %p29
      $region22: #{scale_estimator_forward.10} parent=19 // pred_check_branch
        %132 = sbr.rel (%p130) target = $region24
      $region23: #{scale_estimator_forward.10} parent=19 // pred_region
        %p133 = scmp.lt.s32.totalorder %s9, 1
        %s134 = scalar_select %p133, %s9, 1
        %s135 = smul.addr %s134, 8
        %s136 = smul.addr %s135, 4
        %s137 = scalar_lea.vmem %s0, %s136
      $region24: #{scale_estimator_forward.10} parent=19 // pred_fallthru
        _
      // Predicated region
      $region25: #{scale_estimator_forward.10} parent=19 // pred_check
        %p138 = pneg %p55
      $region26: #{scale_estimator_forward.10} parent=19 // pred_check_branch
        %140 = sbr.rel (%p138) target = $region28
      $region27: #{scale_estimator_forward.10} parent=19 // pred_region
        %p141 = scmp.lt.s32.totalorder %s9, 1
        %s142 = scalar_select %p141, %s9, 1
        %s143 = smul.addr %s142, 4
        %s144 = smul.addr %s143, 4
        %s145 = scalar_lea.vmem %s1, %s144
      $region28: #{scale_estimator_forward.10} parent=19 // pred_fallthru
        _
    $region20: #{scale_estimator_forward.10} parent=5 // pred_fallthru
      _
    %p146 = scmp.le.s32.totalorder 1, %s9
    %p147 = scmp.lt.s32.totalorder %s9, 3
    %p148 = pnand %p146, %p147
    %p149 = pneg %p148
    // Predicated region
    $region29: #{scale_estimator_forward.10} parent=5 // pred_check
      _
    $region30: #{scale_estimator_forward.10} parent=5 // pred_check_branch
      %151 = sbr.rel (%p148) target = $region32
    $region31: #{scale_estimator_forward.10} parent=5 // pred_region
      %s152 = ssub.s32 %s9, 1
      %p153 = scmp.lt.s32.totalorder %s14, 1
      %s154 = scalar_select %p153, %s14, 1
      %s155 = smul.addr %s154, 8
      %s156 = smul.addr %s155, 4
      %s157 = scalar_lea.vmem %s0, %s156
      %p158 = pneg %p35
      %p159 = pneg %p32
      %p160 = scmp.lt.s32.totalorder %s14, 1
      %s161 = scalar_select %p160, %s14, 1
      %s162 = smul.addr %s161, 4
      %s163 = smul.addr %s162, 4
      %s164 = scalar_lea.vmem %s1, %s163
      %p165 = pneg %p61
      %p166 = pneg %p58
      %p167 = pneg %p82
      %p168 = pneg %p79
      %p169 = pneg %p108
      %p170 = pneg %p105
      %p171 = scmp.lt.s32.totalorder %s14, 1
      %s172 = scalar_select %p171, %s14, 1
      %s173 = smul.addr %s172, 16
      %s174 = smul.addr %s173, 4
      %s175 = scalar_lea.vmem %s3, %s174
      %p176 = scmp.lt.s32.totalorder %s14, 1
      %s177 = scalar_select %p176, %s14, 1
      %s178 = smul.addr %s177, 8
      %s179 = smul.addr %s178, 4
      %s180 = scalar_lea.vmem %s0, %s179
      %p181 = scmp.lt.s32.totalorder %s14, 1
      %s182 = scalar_select %p181, %s14, 1
      %s183 = smul.addr %s182, 4
      %s184 = smul.addr %s183, 4
      %s185 = scalar_lea.vmem %s1, %s184
      %p186 = scmp.lt.s32.totalorder %s14, 1
      %s187 = scalar_select %p186, %s14, 1
      %s188 = smul.addr %s187, 16
      %s189 = smul.addr %s188, 4
      %s190 = scalar_lea.vmem %s3, %s189
      %v192 = vld [vmem:[%s180] sm:$0xf]
      %v193 = vld [vmem:[%s180 + $0x4] sm:$0xf]
      %v194 = vld [vmem:[%s180 + $0x8] sm:$0xf]
      %v195 = vld [vmem:[%s180 + $0xc] sm:$0xf]
      %v196 = vld [vmem:[%s180 + $0x10] sm:$0xf]
      %v197 = vld [vmem:[%s180 + $0x14] sm:$0xf]
      %v198 = vld [vmem:[%s180 + $0x18] sm:$0xf]
      %v199 = vld [vmem:[%s180 + $0x1c] sm:$0xf]
      %v200 = vld [vmem:[%s185] sm:$0xff]
      %v201 = vld [vmem:[%s185 + $0x8] sm:$0xff]
      %v202 = vld [vmem:[%s2] sm:$0x3]
      %v204 = vperm.slane %v202, 0
      %v205 = vperm.slane %v202, 1
      %v216 = vunpack.c.l.b16 %v192
      %v217 = vunpack.c.l.b16 %v193
      %v218 = vunpack.c.l.b16 %v194
      %v219 = vunpack.c.l.b16 %v195
      %v220 = vunpack.c.l.b16 %v196
      %v221 = vunpack.c.l.b16 %v197
      %v222 = vunpack.c.l.b16 %v198
      %v223 = vunpack.c.l.b16 %v199
      %v224 = vpack.c.b16 %v217, %v216
      %v225 = vpack.c.b16 %v219, %v218
      %v226 = vpack.c.b16 %v221, %v220
      %v227 = vpack.c.b16 %v223, %v222
      %v230 = vunpack.c.l.b16 %v200
      %v231 = vunpack.c.h.b16 %v200
      %v232 = vunpack.c.l.b16 %v201
      %v233 = vunpack.c.h.b16 %v201
      %v234 = vpack.c.b16 %v232, %v230
      %v235 = vpack.c.b16 %v233, %v231
      %vm238 = vcmask 130048
      %v240 = vsel %vm238, %v224, 0
      %v243 = vsel %vm238, %v225, 0
      %v246 = vsel %vm238, %v226, 0
      %v249 = vsel %vm238, %v227, 0
      %251 = vmatpush.bf16.msra.mxu0 0
      %252 = vmatpush.bf16.msra.mxu0 0
      %253 = vmatpush.bf16.msra.mxu0 0
      %254 = vmatpush.bf16.msra.mxu0 0
      %255 = vmatpush.bf16.msra.mxu0 0
      %256 = vmatpush.bf16.msra.mxu0 0
      %257 = vmatpush.bf16.msra.mxu0 0
      %258 = vmatpush.bf16.msra.mxu0 %v234
      %259 = vmatmul.bf16.gmra.mxu0 %v240
      %v260 = vpop.f32.mrf.mxu0
      %v261 = vadd.f32 %v204, %v260
      %v262 = vpop.f32.mrf.mxu0
      %v263 = vadd.f32 %v204, %v262
      %264 = vmatmul.bf16.gmra.mxu0 %v243
      %v265 = vpop.f32.mrf.mxu0
      %v266 = vadd.f32 %v204, %v265
      %v267 = vpop.f32.mrf.mxu0
      %v268 = vadd.f32 %v204, %v267
      %269 = vmatmul.bf16.gmra.mxu0 %v246
      %v270 = vpop.f32.mrf.mxu0
      %v271 = vadd.f32 %v204, %v270
      %v272 = vpop.f32.mrf.mxu0
      %v273 = vadd.f32 %v204, %v272
      %274 = vmatmul.bf16.gmra.mxu0 %v249
      %v275 = vpop.f32.mrf.mxu0
      %v276 = vadd.f32 %v204, %v275
      %v277 = vpop.f32.mrf.mxu0
      %v278 = vadd.f32 %v204, %v277
      %279 = vdwg.mxu0
      %280 = vmatpush.bf16.msra.mxu0 0
      %281 = vmatpush.bf16.msra.mxu0 0
      %282 = vmatpush.bf16.msra.mxu0 0
      %283 = vmatpush.bf16.msra.mxu0 0
      %284 = vmatpush.bf16.msra.mxu0 0
      %285 = vmatpush.bf16.msra.mxu0 0
      %286 = vmatpush.bf16.msra.mxu0 0
      %287 = vmatpush.bf16.msra.mxu0 %v235
      %288 = vmatmul.bf16.gmra.mxu0 %v240
      %v289 = vpop.f32.mrf.mxu0
      %v290 = vadd.f32 %v205, %v289
      %v291 = vpop.f32.mrf.mxu0
      %v292 = vadd.f32 %v205, %v291
      %293 = vmatmul.bf16.gmra.mxu0 %v243
      %v294 = vpop.f32.mrf.mxu0
      %v295 = vadd.f32 %v205, %v294
      %v296 = vpop.f32.mrf.mxu0
      %v297 = vadd.f32 %v205, %v296
      %298 = vmatmul.bf16.gmra.mxu0 %v246
      %v299 = vpop.f32.mrf.mxu0
      %v300 = vadd.f32 %v205, %v299
      %v301 = vpop.f32.mrf.mxu0
      %v302 = vadd.f32 %v205, %v301
      %303 = vmatmul.bf16.gmra.mxu0 %v249
      %v304 = vpop.f32.mrf.mxu0
      %v305 = vadd.f32 %v205, %v304
      %v306 = vpop.f32.mrf.mxu0
      %v307 = vadd.f32 %v205, %v306
      %308 = vdwg.mxu0
      %v309 = vmax.f32 %v261, 0.0
      %v310 = vmax.f32 %v290, 0.0
      %v311 = vmax.f32 %v263, 0.0
      %v312 = vmax.f32 %v292, 0.0
      %v313 = vmax.f32 %v266, 0.0
      %v314 = vmax.f32 %v295, 0.0
      %v315 = vmax.f32 %v268, 0.0
      %v316 = vmax.f32 %v297, 0.0
      %v317 = vmax.f32 %v271, 0.0
      %v318 = vmax.f32 %v300, 0.0
      %v319 = vmax.f32 %v273, 0.0
      %v320 = vmax.f32 %v302, 0.0
      %v321 = vmax.f32 %v276, 0.0
      %v322 = vmax.f32 %v305, 0.0
      %v323 = vmax.f32 %v278, 0.0
      %v324 = vmax.f32 %v307, 0.0
      %v325 = vpack.c.bf16 %v310, %v309
      %v326 = vpack.c.bf16 %v312, %v311
      %v327 = vpack.c.bf16 %v314, %v313
      %v328 = vpack.c.bf16 %v316, %v315
      %v329 = vpack.c.bf16 %v318, %v317
      %v330 = vpack.c.bf16 %v320, %v319
      %v331 = vpack.c.bf16 %v322, %v321
      %v332 = vpack.c.bf16 %v324, %v323
      %333 = vst [vmem:[%s190] sm:$0xff] %v325
      %334 = vst [vmem:[%s190 + $0x8] sm:$0xff] %v326
      %335 = vst [vmem:[%s190 + $0x10] sm:$0xff] %v327
      %336 = vst [vmem:[%s190 + $0x18] sm:$0xff] %v328
      %337 = vst [vmem:[%s190 + $0x20] sm:$0xff] %v329
      %338 = vst [vmem:[%s190 + $0x28] sm:$0xff] %v330
      %339 = vst [vmem:[%s190 + $0x30] sm:$0xff] %v331
      %340 = vst [vmem:[%s190 + $0x38] sm:$0xff] %v332
      %p341 = scmp.lt.s32.totalorder %s14, 1
      %s342 = scalar_select %p341, %s14, 1
      %s343 = smul.addr %s342, 16
      %s344 = smul.addr %s343, 4
      %s345 = scalar_lea.vmem %s3, %s344
      // Predicated region
      $region33: #{scale_estimator_forward.10} parent=31 // pred_check
        %p346 = pneg %p105
      $region34: #{scale_estimator_forward.10} parent=31 // pred_check_branch
        %348 = sbr.rel (%p346) target = $region36
      $region35: #{scale_estimator_forward.10} parent=31 // pred_region
        _
      $region36: #{scale_estimator_forward.10} parent=31 // pred_fallthru
        _
    $region32: #{scale_estimator_forward.10} parent=5 // pred_fallthru
      _
    %p349 = scmp.le.s32.totalorder 2, %s9
    // Predicated region
    $region37: #{scale_estimator_forward.10} parent=5 // pred_check
      %p350 = pneg %p349
    $region38: #{scale_estimator_forward.10} parent=5 // pred_check_branch
      %352 = sbr.rel (%p350) target = $region40
    $region39: #{scale_estimator_forward.10} parent=5 // pred_region
      %s353 = ssub.s32 %s9, 2
      // Predicated region
      $region41: #{scale_estimator_forward.10} parent=39 // pred_check
        %p354 = pneg %p111
      $region42: #{scale_estimator_forward.10} parent=39 // pred_check_branch
        %356 = sbr.rel (%p354) target = $region44
      $region43: #{scale_estimator_forward.10} parent=39 // pred_region
        %p357 = scmp.lt.s32.totalorder %s15, 1
        %s358 = scalar_select %p357, %s15, 1
        %s359 = smul.addr %s358, 16
        %s360 = smul.addr %s359, 4
        %s361 = scalar_lea.vmem %s3, %s360
      $region44: #{scale_estimator_forward.10} parent=39 // pred_fallthru
        _
    $region40: #{scale_estimator_forward.10} parent=5 // pred_fallthru
      _
  $region6: #{scale_estimator_forward.10} parent=0 // loop_footer
    %s13 = sadd.s32 1, %s9
  $region7: #{scale_estimator_forward.10} parent=0 // loop_footer_branch
    %8 = sbr.rel target = $region3
  $region8: #{scale_estimator_forward.10} parent=0 // loop_exit
    _

// kernel: scale_estimator_forward.9
$region0: #{scale_estimator_forward.9}
  #allocation0 [shape = 'u32[]', space=smem, size = 0x4, offset = 0x4, fixed_abs, tag = 'smem constant byte address 0x4 - core index']
  #allocation1 [shape = 'u32[72,128]{1,0:T(1,128)}', space=vmem, size = 0x9000, scoped, tag = 'internal scratch']
  #allocation2 [shape = 'f32[32,256]{1,0:T(8,128)}', space=vmem, size = 0x8000, scoped, tag = 'scratch operand']
  %s0 = inlined_call_operand.vmem [shape: bf16[32,4096], index: 0, kind: input, shape index: {}]
  %s1 = inlined_call_operand.vmem [shape: bf16[4096,256], index: 1, kind: input, shape index: {}]
  %s2 = inlined_call_operand.vmem [shape: f32[1,256], index: 2, kind: input, shape index: {}]
  %s3 = inlined_call_operand.vmem [shape: bf16[32,256], index: 3, kind: output, shape index: {}]
  %s4 = sld [smem:[#allocation0]]
  $region76: #{scale_estimator_forward.9} parent=0
    _
  %s6 = ssub.s32 1, %s4
  %s7 = scalar_select 0, %s6, %s4
  $region1: #{scale_estimator_forward.9} parent=0
    #allocation3 [shape = 'u8[65536]{0}', space=vmem, size = 0x10000, scoped, tag = 'input window, operand 0']
    loop: start=0, step=1, limit=10
    $region2: #{scale_estimator_forward.9} parent=1 // loop_pre_header
      _
    $region3: #{scale_estimator_forward.9} parent=1 // loop_header
      %s9 = sphi 0, %s13
      %p10 = scmp.ge.s32.totalorder %s9, 10
      %s16 = sphi 0, %s35
      %s17 = sphi 0, %s31
      %s18 = sphi 0, %s27
      %s19 = sphi 0, %s16
      %s20 = sphi 0, %s17
      %s21 = sphi 0, %s18
      %s22 = sphi 0, %s19
      %s23 = sphi 0, %s20
      %s24 = sphi 0, %s21
      %s40 = sphi 0, %s42
      %s43 = sphi 0, %s40
      %s44 = sphi 0, %s43
      %s60 = sphi 0, %s44
      %s68 = sphi 0, %s70
      %s71 = sphi 0, %s68
      %s72 = sphi 0, %s71
      %s88 = sphi 0, %s72
      %s94 = sphi 0, %s96
      %s97 = sphi 0, %s94
      %s98 = sphi 0, %s97
      %s114 = sphi 0, %s98
      %s122 = sphi 0, %s124
      %s125 = sphi 0, %s122
      %s126 = sphi 0, %s125
      %s142 = sphi 0, %s126
    $region4: #{scale_estimator_forward.9} parent=1 // loop_header_branch
      %12 = sbr.rel (%p10) target = $region8
    $region5: #{scale_estimator_forward.9} parent=1 // loop_body
      %s14 = ssub.s32 %s9, 1
      %s15 = ssub.s32 %s9, 2
      %s25 = sadd.s32 1, %s18
      %p26 = scmp.ge.s32.totalorder %s25, 8
      %s27 = scalar_select %p26, 0, %s25
      %s28 = sadd.s32 1, %s17
      %s29 = scalar_select %p26, %s28, %s17
      %p30 = scmp.ge.s32.totalorder %s29, 1
      %s31 = scalar_select %p30, 0, %s29
      %s32 = sadd.s32 1, %s16
      %s33 = scalar_select %p30, %s32, %s16
      %p34 = scmp.ge.s32.totalorder %s33, 1
      %s35 = scalar_select %p34, 0, %s33
      %s36 = ssub.s32 %s16, %s35
      %s37 = ssub.s32 %s18, %s27
      %s38 = sor.u32 %s36, %s37
      %p39 = scmp.eq.s32.totalorder %s38, 0
      %s41 = sadd.s32 %s40, 1
      %s42 = scalar_select %p39, %s40, %s41
      %p45 = pneg %p39
      %p46 = scmp.eq.s32.totalorder %s9, 7
      %p47 = por %p45, %p46
      %p48 = scmp.ne.s32.totalorder %s40, %s43
      %p49 = scmp.eq.s32.totalorder %s9, 0
      %p50 = por %p48, %p49
      %p51 = scmp.ne.s32.totalorder %s40, %s43
      %p52 = scmp.eq.s32.totalorder %s14, 7
      %p53 = por %p51, %p52
      %p54 = scmp.ne.s32.totalorder %s43, %s44
      %p55 = scmp.eq.s32.totalorder %s14, 0
      %p56 = por %p54, %p55
      %p57 = scmp.ne.s32.totalorder %s43, %s44
      %p58 = scmp.eq.s32.totalorder %s15, 7
      %p59 = por %p57, %p58
      %p61 = scmp.ne.s32.totalorder %s44, %s60
      %p62 = scmp.eq.s32.totalorder %s15, 0
      %p63 = por %p61, %p62
      %s64 = ssub.s32 %s18, %s27
      %s65 = ssub.s32 %s17, %s31
      %s66 = sor.u32 %s64, %s65
      %p67 = scmp.eq.s32.totalorder %s66, 0
      %s69 = sadd.s32 %s68, 1
      %s70 = scalar_select %p67, %s68, %s69
      %p73 = pneg %p67
      %p74 = scmp.eq.s32.totalorder %s9, 7
      %p75 = por %p73, %p74
      %p76 = scmp.ne.s32.totalorder %s68, %s71
      %p77 = scmp.eq.s32.totalorder %s9, 0
      %p78 = por %p76, %p77
      %p79 = scmp.ne.s32.totalorder %s68, %s71
      %p80 = scmp.eq.s32.totalorder %s14, 7
      %p81 = por %p79, %p80
      %p82 = scmp.ne.s32.totalorder %s71, %s72
      %p83 = scmp.eq.s32.totalorder %s14, 0
      %p84 = por %p82, %p83
      %p85 = scmp.ne.s32.totalorder %s71, %s72
      %p86 = scmp.eq.s32.totalorder %s15, 7
      %p87 = por %p85, %p86
      %p89 = scmp.ne.s32.totalorder %s72, %s88
      %p90 = scmp.eq.s32.totalorder %s15, 0
      %p91 = por %p89, %p90
      %s92 = ssub.s32 %s17, %s31
      %p93 = scmp.eq.s32.totalorder %s92, 0
      %s95 = sadd.s32 %s94, 1
      %s96 = scalar_select %p93, %s94, %s95
      %p99 = pneg %p93
      %p100 = scmp.eq.s32.totalorder %s9, 7
      %p101 = por %p99, %p100
      %p102 = scmp.ne.s32.totalorder %s94, %s97
      %p103 = scmp.eq.s32.totalorder %s9, 0
      %p104 = por %p102, %p103
      %p105 = scmp.ne.s32.totalorder %s94, %s97
      %p106 = scmp.eq.s32.totalorder %s14, 7
      %p107 = por %p105, %p106
      %p108 = scmp.ne.s32.totalorder %s97, %s98
      %p109 = scmp.eq.s32.totalorder %s14, 0
      %p110 = por %p108, %p109
      %p111 = scmp.ne.s32.totalorder %s97, %s98
      %p112 = scmp.eq.s32.totalorder %s15, 7
      %p113 = por %p111, %p112
      %p115 = scmp.ne.s32.totalorder %s98, %s114
      %p116 = scmp.eq.s32.totalorder %s15, 0
      %p117 = por %p115, %p116
      %s118 = ssub.s32 %s16, %s35
      %s119 = ssub.s32 %s17, %s31
      %s120 = sor.u32 %s118, %s119
      %p121 = scmp.eq.s32.totalorder %s120, 0
      %s123 = sadd.s32 %s122, 1
      %s124 = scalar_select %p121, %s122, %s123
      %p127 = pneg %p121
      %p128 = scmp.eq.s32.totalorder %s9, 7
      %p129 = por %p127, %p128
      %p130 = scmp.ne.s32.totalorder %s122, %s125
      %p131 = scmp.eq.s32.totalorder %s9, 0
      %p132 = por %p130, %p131
      %p133 = scmp.ne.s32.totalorder %s122, %s125
      %p134 = scmp.eq.s32.totalorder %s14, 7
      %p135 = por %p133, %p134
      %p136 = scmp.ne.s32.totalorder %s125, %s126
      %p137 = scmp.eq.s32.totalorder %s14, 0
      %p138 = por %p136, %p137
      %p139 = scmp.ne.s32.totalorder %s125, %s126
      %p140 = scmp.eq.s32.totalorder %s15, 7
      %p141 = por %p139, %p140
      %p143 = scmp.ne.s32.totalorder %s126, %s142
      %p144 = scmp.eq.s32.totalorder %s15, 0
      %p145 = por %p143, %p144
      %p146 = scmp.le.s32.totalorder 1, %s9
      %p147 = scmp.lt.s32.totalorder %s9, 9
      %p148 = pnand %p146, %p147
      %p149 = pneg %p148
      // Predicated region
      $region9: #{scale_estimator_forward.9} parent=5 // pred_check
        _
      $region10: #{scale_estimator_forward.9} parent=5 // pred_check_branch
        %151 = sbr.rel (%p148) target = $region12
      $region11: #{scale_estimator_forward.9} parent=5 // pred_region
        %s152 = ssub.s32 %s9, 1
        // Predicated region
        $region13: #{scale_estimator_forward.9} parent=11 // pred_check
          %p153 = pneg %p110
        $region14: #{scale_estimator_forward.9} parent=11 // pred_check_branch
          %155 = sbr.rel (%p153) target = $region16
        $region15: #{scale_estimator_forward.9} parent=11 // pred_region
          %s156 = smul.u32 2, %s20
          %p157 = scmp.lt.s32.totalorder %s156, 1
          %s158 = scalar_select %p157, %s156, 1
          %s159 = scalar_lea.vmem %s2, %s158
          %s160 = smul.u32 2, %s20
        $region16: #{scale_estimator_forward.9} parent=11 // pred_fallthru
          _
      $region12: #{scale_estimator_forward.9} parent=5 // pred_fallthru
        _
      %p161 = scmp.lt.s32.totalorder %s9, 8
      // Predicated region
      $region17: #{scale_estimator_forward.9} parent=5 // pred_check
        %p162 = pneg %p161
      $region18: #{scale_estimator_forward.9} parent=5 // pred_check_branch
        %164 = sbr.rel (%p162) target = $region20
      $region19: #{scale_estimator_forward.9} parent=5 // pred_region
        // Predicated region
        $region21: #{scale_estimator_forward.9} parent=19 // pred_check
          %p165 = pneg %p50
        $region22: #{scale_estimator_forward.9} parent=19 // pred_check_branch
          %167 = sbr.rel (%p165) target = $region24
        $region23: #{scale_estimator_forward.9} parent=19 // pred_region
          %s168 = sand.u32 %s40, 1
          %s169 = sand.u32 %s40, 1
          %s170 = smul.addr %s169, 64
          %s171 = scalar_lea.vmem [#allocation3], %s170
          %s172 = smul.u32 4, %s16
          %s173 = smul.u32 4, %s18
          %s174 = smul.addr %s172, 32
          %s175 = sadd.s32 %s173, %s174
          %s176 = smul.addr %s175, 4
          %s177 = scalar_lea.vmem %s0, %s176
          // Predicated region
          $region25: #{scale_estimator_forward.9} parent=23 // pred_check
            _
          $region26: #{scale_estimator_forward.9} parent=23 // pred_check_branch
            %179 = sbr.rel (0) target = $region28
          $region27: #{scale_estimator_forward.9} parent=23 // pred_region
            // Predicated region
            $region29: #{scale_estimator_forward.9} parent=27 // pred_check
              _
            $region30: #{scale_estimator_forward.9} parent=27 // pred_check_branch
              %181 = sbr.rel (0) target = $region32
            $region31: #{scale_estimator_forward.9} parent=27 // pred_region
              loop: start=0, step=1, limit=1
              $region33: #{scale_estimator_forward.9} parent=31 // loop_pre_header
                _
              $region34: #{scale_estimator_forward.9} parent=31 // loop_header
                %s183 = sphi 0, %s187
                %p184 = scmp.ge.s32.totalorder %s183, 1
                %s188 = sphi %s177, %s177
                %s189 = sphi %s171, %s171
              $region35: #{scale_estimator_forward.9} parent=31 // loop_header_branch
                %186 = sbr.rel (%p184) target = $region39
              $region36: #{scale_estimator_forward.9} parent=31 // loop_body
                %v190 = vld [vmem:[%s188] sm:$0xff]
                %191 = vst [vmem:[%s189] sm:$0xff] %v190
                %v192 = vld [vmem:[%s188 + $0x8] sm:$0xff]
                %193 = vst [vmem:[%s189 + $0x8] sm:$0xff] %v192
                %v194 = vld [vmem:[%s188 + $0x80] sm:$0xff]
                %195 = vst [vmem:[%s189 + $0x10] sm:$0xff] %v194
                %v196 = vld [vmem:[%s188 + $0x88] sm:$0xff]
                %197 = vst [vmem:[%s189 + $0x18] sm:$0xff] %v196
                %v198 = vld [vmem:[%s188 + $0x100] sm:$0xff]
                %199 = vst [vmem:[%s189 + $0x20] sm:$0xff] %v198
                %v200 = vld [vmem:[%s188 + $0x108] sm:$0xff]
                %201 = vst [vmem:[%s189 + $0x28] sm:$0xff] %v200
                %v202 = vld [vmem:[%s188 + $0x180] sm:$0xff]
                %203 = vst [vmem:[%s189 + $0x30] sm:$0xff] %v202
                %v204 = vld [vmem:[%s188 + $0x188] sm:$0xff]
                %205 = vst [vmem:[%s189 + $0x38] sm:$0xff] %v204
              $region37: #{scale_estimator_forward.9} parent=31 // loop_footer
                %s187 = sadd.s32 1, %s183
              $region38: #{scale_estimator_forward.9} parent=31 // loop_footer_branch
                %182 = sbr.rel target = $region34
              $region39: #{scale_estimator_forward.9} parent=31 // loop_exit
                _
            $region32: #{scale_estimator_forward.9} parent=27 // pred_fallthru
              _
            // Predicated region
            $region40: #{scale_estimator_forward.9} parent=27 // pred_check
              _
            $region41: #{scale_estimator_forward.9} parent=27 // pred_check_branch
              %207 = sbr.rel target = $region43
            $region42: #{scale_estimator_forward.9} parent=27 // pred_region
              _
            $region43: #{scale_estimator_forward.9} parent=27 // pred_fallthru
              _
          $region28: #{scale_estimator_forward.9} parent=23 // pred_fallthru
            _
          %208 = vnop
        $region24: #{scale_estimator_forward.9} parent=19 // pred_fallthru
          _
        // Predicated region
        $region44: #{scale_estimator_forward.9} parent=19 // pred_check
          %p209 = pneg %p78
        $region45: #{scale_estimator_forward.9} parent=19 // pred_check_branch
          %211 = sbr.rel (%p209) target = $region47
        $region46: #{scale_estimator_forward.9} parent=19 // pred_region
          %s212 = smul.u32 64, %s18
          %s213 = smul.u32 2, %s17
          %p214 = scmp.lt.s32.totalorder %s212, 511
          %s215 = scalar_select %p214, %s212, 511
          %p216 = scmp.lt.s32.totalorder %s213, 1
          %s217 = scalar_select %p216, %s213, 1
          %s218 = smul.addr %s215, 2
          %s219 = sadd.s32 %s217, %s218
          %s220 = smul.addr %s219, 4
          %s221 = scalar_lea.vmem %s1, %s220
          %s222 = smul.u32 64, %s18
          %s223 = smul.u32 2, %s17
        $region47: #{scale_estimator_forward.9} parent=19 // pred_fallthru
          _
      $region20: #{scale_estimator_forward.9} parent=5 // pred_fallthru
        _
      %p224 = scmp.le.s32.totalorder 1, %s9
      %p225 = scmp.lt.s32.totalorder %s9, 9
      %p226 = pnand %p224, %p225
      %p227 = pneg %p226
      // Predicated region
      $region48: #{scale_estimator_forward.9} parent=5 // pred_check
        _
      $region49: #{scale_estimator_forward.9} parent=5 // pred_check_branch
        %229 = sbr.rel (%p226) target = $region51
      $region50: #{scale_estimator_forward.9} parent=5 // pred_region
        %s230 = ssub.s32 %s9, 1
        %s231 = sand.u32 %s43, 1
        %s232 = sand.u32 %s43, 1
        %s233 = smul.addr %s232, 64
        %s234 = scalar_lea.vmem [#allocation3], %s233
        // Predicated region
        $region52: #{scale_estimator_forward.9} parent=50 // pred_check
          %p235 = pneg %p56
        $region53: #{scale_estimator_forward.9} parent=50 // pred_check_branch
          %237 = sbr.rel (%p235) target = $region55
        $region54: #{scale_estimator_forward.9} parent=50 // pred_region
          _
        $region55: #{scale_estimator_forward.9} parent=50 // pred_fallthru
          _
        %s238 = sand.u32 %s43, 1
        %s239 = sand.u32 %s43, 1
        %s240 = smul.addr %s239, 64
        %s241 = scalar_lea.vmem [#allocation3], %s240
        %p242 = pneg %p56
        %p243 = pneg %p53
        %s244 = smul.u32 64, %s21
        %s245 = smul.u32 2, %s20
        %p246 = scmp.lt.s32.totalorder %s244, 511
        %s247 = scalar_select %p246, %s244, 511
        %p248 = scmp.lt.s32.totalorder %s245, 1
        %s249 = scalar_select %p248, %s245, 1
        %s250 = smul.addr %s247, 2
        %s251 = sadd.s32 %s249, %s250
        %s252 = smul.addr %s251, 4
        %s253 = scalar_lea.vmem %s1, %s252
        %p254 = pneg %p84
        %p255 = pneg %p81
        %s256 = smul.u32 2, %s20
        %p257 = scmp.lt.s32.totalorder %s256, 1
        %s258 = scalar_select %p257, %s256, 1
        %s259 = scalar_lea.vmem %s2, %s258
        %p260 = pneg %p110
        %p261 = pneg %p107
        %p262 = pneg %p138
        %p263 = pneg %p135
        %s264 = smul.u32 4, %s19
        %s265 = smul.u32 2, %s20
        %p266 = scmp.lt.s32.totalorder %s264, 3
        %s267 = scalar_select %p266, %s264, 3
        %p268 = scmp.lt.s32.totalorder %s265, 1
        %s269 = scalar_select %p268, %s265, 1
        %s270 = smul.addr %s267, 2
        %s271 = sadd.s32 %s269, %s270
        %s272 = smul.addr %s271, 4
        %s273 = scalar_lea.vmem %s3, %s272
        %s274 = smul.u32 4, %s19
        %s275 = smul.u32 4, %s21
        %s276 = smul.u32 64, %s21
        %s277 = smul.u32 2, %s20
        %p278 = scmp.lt.s32.totalorder %s276, 511
        %s279 = scalar_select %p278, %s276, 511
        %p280 = scmp.lt.s32.totalorder %s277, 1
        %s281 = scalar_select %p280, %s277, 1
        %s282 = smul.addr %s279, 2
        %s283 = sadd.s32 %s281, %s282
        %s284 = smul.addr %s283, 4
        %s285 = scalar_lea.vmem %s1, %s284
        %s286 = smul.u32 64, %s21
        %s287 = smul.u32 2, %s20
        %s288 = smul.u32 2, %s20
        %p289 = scmp.lt.s32.totalorder %s288, 1
        %s290 = scalar_select %p289, %s288, 1
        %s291 = scalar_lea.vmem %s2, %s290
        %s292 = smul.u32 2, %s20
        %s293 = smul.u32 4, %s19
        %s294 = smul.u32 2, %s20
        %p295 = scmp.lt.s32.totalorder %s293, 3
        %s296 = scalar_select %p295, %s293, 3
        %p297 = scmp.lt.s32.totalorder %s294, 1
        %s298 = scalar_select %p297, %s294, 1
        %s299 = smul.addr %s296, 2
        %s300 = sadd.s32 %s298, %s299
        %s301 = smul.addr %s300, 4
        %s302 = scalar_lea.vmem %s3, %s301
        %s303 = smul.u32 4, %s19
        %s304 = smul.u32 2, %s20
        %p305 = scmp.eq.s32.totalorder %s21, 0
        // Predicated region
        $region56: #{scale_estimator_forward.9} parent=50 // pred_check
          %p306 = pneg %p305
        $region57: #{scale_estimator_forward.9} parent=50 // pred_check_branch
          %308 = sbr.rel (%p306) target = $region59
        $region58: #{scale_estimator_forward.9} parent=50 // pred_region
          %309 = vst [vmem:[#allocation2] sm:$0xff] 0.0
          %310 = vst [vmem:[#allocation2 + $0x8] sm:$0xff] 0.0
          %311 = vst [vmem:[#allocation2 + $0x10] sm:$0xff] 0.0
          %312 = vst [vmem:[#allocation2 + $0x18] sm:$0xff] 0.0
          %313 = vst [vmem:[#allocation2 + $0x20] sm:$0xff] 0.0
          %314 = vst [vmem:[#allocation2 + $0x28] sm:$0xff] 0.0
          %315 = vst [vmem:[#allocation2 + $0x30] sm:$0xff] 0.0
          %316 = vst [vmem:[#allocation2 + $0x38] sm:$0xff] 0.0
        $region59: #{scale_estimator_forward.9} parent=50 // pred_fallthru
          _
        %v317 = vld [vmem:[#allocation2] sm:$0xff]
        %v318 = vld [vmem:[#allocation2 + $0x8] sm:$0xff]
        %v319 = vld [vmem:[#allocation2 + $0x10] sm:$0xff]
        %v320 = vld [vmem:[#allocation2 + $0x18] sm:$0xff]
        %v321 = vld [vmem:[#allocation2 + $0x20] sm:$0xff]
        %v322 = vld [vmem:[#allocation2 + $0x28] sm:$0xff]
        %v323 = vld [vmem:[#allocation2 + $0x30] sm:$0xff]
        %v324 = vld [vmem:[#allocation2 + $0x38] sm:$0xff]
        %v325 = vld [vmem:[%s234] sm:$0xff]
        %v326 = vld [vmem:[%s234 + $0x8] sm:$0xff]
        %v327 = vld [vmem:[%s234 + $0x10] sm:$0xff]
        %v328 = vld [vmem:[%s234 + $0x18] sm:$0xff]
        %v329 = vld [vmem:[%s234 + $0x20] sm:$0xff]
        %v330 = vld [vmem:[%s234 + $0x28] sm:$0xff]
        %v331 = vld [vmem:[%s234 + $0x30] sm:$0xff]
        %v332 = vld [vmem:[%s234 + $0x38] sm:$0xff]
        %v333 = vld [vmem:[%s285] sm:$0xff]
        %v334 = vld [vmem:[%s285 + $0x8] sm:$0xff]
        %v335 = vld [vmem:[%s285 + $0x10] sm:$0xff]
        %v336 = vld [vmem:[%s285 + $0x18] sm:$0xff]
        %v337 = vld [vmem:[%s285 + $0x20] sm:$0xff]
        %v338 = vld [vmem:[%s285 + $0x28] sm:$0xff]
        %v339 = vld [vmem:[%s285 + $0x30] sm:$0xff]
        %v340 = vld [vmem:[%s285 + $0x38] sm:$0xff]
        %v341 = vld [vmem:[%s285 + $0x40] sm:$0xff]
        %v342 = vld [vmem:[%s285 + $0x48] sm:$0xff]
        %v343 = vld [vmem:[%s285 + $0x50] sm:$0xff]
        %v344 = vld [vmem:[%s285 + $0x58] sm:$0xff]
        %v345 = vld [vmem:[%s285 + $0x60] sm:$0xff]
        %v346 = vld [vmem:[%s285 + $0x68] sm:$0xff]
        %v347 = vld [vmem:[%s285 + $0x70] sm:$0xff]
        %v348 = vld [vmem:[%s285 + $0x78] sm:$0xff]
        %v349 = vld [vmem:[%s285 + $0x80] sm:$0xff]
        %v350 = vld [vmem:[%s285 + $0x88] sm:$0xff]
        %v351 = vld [vmem:[%s285 + $0x90] sm:$0xff]
        %v352 = vld [vmem:[%s285 + $0x98] sm:$0xff]
        %v353 = vld [vmem:[%s285 + $0xa0] sm:$0xff]
        %v354 = vld [vmem:[%s285 + $0xa8] sm:$0xff]
        %v355 = vld [vmem:[%s285 + $0xb0] sm:$0xff]
        %v356 = vld [vmem:[%s285 + $0xb8] sm:$0xff]
        %v357 = vld [vmem:[%s285 + $0xc0] sm:$0xff]
        %v358 = vld [vmem:[%s285 + $0xc8] sm:$0xff]
        %v359 = vld [vmem:[%s285 + $0xd0] sm:$0xff]
        %v360 = vld [vmem:[%s285 + $0xd8] sm:$0xff]
        %v361 = vld [vmem:[%s285 + $0xe0] sm:$0xff]
        %v362 = vld [vmem:[%s285 + $0xe8] sm:$0xff]
        %v363 = vld [vmem:[%s285 + $0xf0] sm:$0xff]
        %v364 = vld [vmem:[%s285 + $0xf8] sm:$0xff]
        %v365 = vld [vmem:[%s285 + $0x100] sm:$0xff]
        %v366 = vld [vmem:[%s285 + $0x108] sm:$0xff]
        %v367 = vld [vmem:[%s285 + $0x110] sm:$0xff]
        %v368 = vld [vmem:[%s285 + $0x118] sm:$0xff]
        %v369 = vld [vmem:[%s285 + $0x120] sm:$0xff]
        %v370 = vld [vmem:[%s285 + $0x128] sm:$0xff]
        %v371 = vld [vmem:[%s285 + $0x130] sm:$0xff]
        %v372 = vld [vmem:[%s285 + $0x138] sm:$0xff]
        %v373 = vld [vmem:[%s285 + $0x140] sm:$0xff]
        %v374 = vld [vmem:[%s285 + $0x148] sm:$0xff]
        %v375 = vld [vmem:[%s285 + $0x150] sm:$0xff]
        %v376 = vld [vmem:[%s285 + $0x158] sm:$0xff]
        %v377 = vld [vmem:[%s285 + $0x160] sm:$0xff]
        %v378 = vld [vmem:[%s285 + $0x168] sm:$0xff]
        %v379 = vld [vmem:[%s285 + $0x170] sm:$0xff]
        %v380 = vld [vmem:[%s285 + $0x178] sm:$0xff]
        %v381 = vld [vmem:[%s285 + $0x180] sm:$0xff]
        %v382 = vld [vmem:[%s285 + $0x188] sm:$0xff]
        %v383 = vld [vmem:[%s285 + $0x190] sm:$0xff]
        %v384 = vld [vmem:[%s285 + $0x198] sm:$0xff]
        %v385 = vld [vmem:[%s285 + $0x1a0] sm:$0xff]
        %v386 = vld [vmem:[%s285 + $0x1a8] sm:$0xff]
        %v387 = vld [vmem:[%s285 + $0x1b0] sm:$0xff]
        %v388 = vld [vmem:[%s285 + $0x1b8] sm:$0xff]
        %v389 = vld [vmem:[%s285 + $0x1c0] sm:$0xff]
        %v390 = vld [vmem:[%s285 + $0x1c8] sm:$0xff]
        %v391 = vld [vmem:[%s285 + $0x1d0] sm:$0xff]
        %v392 = vld [vmem:[%s285 + $0x1d8] sm:$0xff]
        %v393 = vld [vmem:[%s285 + $0x1e0] sm:$0xff]
        %v394 = vld [vmem:[%s285 + $0x1e8] sm:$0xff]
        %v395 = vld [vmem:[%s285 + $0x1f0] sm:$0xff]
        %v396 = vld [vmem:[%s285 + $0x1f8] sm:$0xff]
        %v405 = vunpack.c.l.b16 %v325
        %v406 = vunpack.c.h.b16 %v325
        %v407 = vunpack.c.l.b16 %v326
        %v408 = vunpack.c.h.b16 %v326
        %v409 = vunpack.c.l.b16 %v327
        %v410 = vunpack.c.h.b16 %v327
        %v411 = vunpack.c.l.b16 %v328
        %v412 = vunpack.c.h.b16 %v328
        %v413 = vunpack.c.l.b16 %v329
        %v414 = vunpack.c.h.b16 %v329
        %v415 = vunpack.c.l.b16 %v330
        %v416 = vunpack.c.h.b16 %v330
        %v417 = vunpack.c.l.b16 %v331
        %v418 = vunpack.c.h.b16 %v331
        %v419 = vunpack.c.l.b16 %v332
        %v420 = vunpack.c.h.b16 %v332
        %v421 = vpack.c.b16 %v409, %v405
        %v422 = vpack.c.b16 %v410, %v406
        %v423 = vpack.c.b16 %v411, %v407
        %v424 = vpack.c.b16 %v412, %v408
        %v425 = vpack.c.b16 %v417, %v413
        %v426 = vpack.c.b16 %v418, %v414
        %v427 = vpack.c.b16 %v419, %v415
        %v428 = vpack.c.b16 %v420, %v416
        %v501 = vunpack.c.l.b16 %v333
        %v502 = vunpack.c.h.b16 %v333
        %v503 = vunpack.c.l.b16 %v334
        %v504 = vunpack.c.h.b16 %v334
        %v505 = vunpack.c.l.b16 %v335
        %v506 = vunpack.c.h.b16 %v335
        %v507 = vunpack.c.l.b16 %v336
        %v508 = vunpack.c.h.b16 %v336
        %v509 = vunpack.c.l.b16 %v337
        %v510 = vunpack.c.h.b16 %v337
        %v511 = vunpack.c.l.b16 %v338
        %v512 = vunpack.c.h.b16 %v338
        %v513 = vunpack.c.l.b16 %v339
        %v514 = vunpack.c.h.b16 %v339
        %v515 = vunpack.c.l.b16 %v340
        %v516 = vunpack.c.h.b16 %v340
        %v517 = vunpack.c.l.b16 %v341
        %v518 = vunpack.c.h.b16 %v341
        %v519 = vunpack.c.l.b16 %v342
        %v520 = vunpack.c.h.b16 %v342
        %v521 = vunpack.c.l.b16 %v343
        %v522 = vunpack.c.h.b16 %v343
        %v523 = vunpack.c.l.b16 %v344
        %v524 = vunpack.c.h.b16 %v344
        %v525 = vunpack.c.l.b16 %v345
        %v526 = vunpack.c.h.b16 %v345
        %v527 = vunpack.c.l.b16 %v346
        %v528 = vunpack.c.h.b16 %v346
        %v529 = vunpack.c.l.b16 %v347
        %v530 = vunpack.c.h.b16 %v347
        %v531 = vunpack.c.l.b16 %v348
        %v532 = vunpack.c.h.b16 %v348
        %v533 = vunpack.c.l.b16 %v349
        %v534 = vunpack.c.h.b16 %v349
        %v535 = vunpack.c.l.b16 %v350
        %v536 = vunpack.c.h.b16 %v350
        %v537 = vunpack.c.l.b16 %v351
        %v538 = vunpack.c.h.b16 %v351
        %v539 = vunpack.c.l.b16 %v352
        %v540 = vunpack.c.h.b16 %v352
        %v541 = vunpack.c.l.b16 %v353
        %v542 = vunpack.c.h.b16 %v353
        %v543 = vunpack.c.l.b16 %v354
        %v544 = vunpack.c.h.b16 %v354
        %v545 = vunpack.c.l.b16 %v355
        %v546 = vunpack.c.h.b16 %v355
        %v547 = vunpack.c.l.b16 %v356
        %v548 = vunpack.c.h.b16 %v356
        %v549 = vunpack.c.l.b16 %v357
        %v550 = vunpack.c.h.b16 %v357
        %v551 = vunpack.c.l.b16 %v358
        %v552 = vunpack.c.h.b16 %v358
        %v553 = vunpack.c.l.b16 %v359
        %v554 = vunpack.c.h.b16 %v359
        %v555 = vunpack.c.l.b16 %v360
        %v556 = vunpack.c.h.b16 %v360
        %v557 = vunpack.c.l.b16 %v361
        %v558 = vunpack.c.h.b16 %v361
        %v559 = vunpack.c.l.b16 %v362
        %v560 = vunpack.c.h.b16 %v362
        %v561 = vunpack.c.l.b16 %v363
        %v562 = vunpack.c.h.b16 %v363
        %v563 = vunpack.c.l.b16 %v364
        %v564 = vunpack.c.h.b16 %v364
        %v565 = vunpack.c.l.b16 %v365
        %v566 = vunpack.c.h.b16 %v365
        %v567 = vunpack.c.l.b16 %v366
        %v568 = vunpack.c.h.b16 %v366
        %v569 = vunpack.c.l.b16 %v367
        %v570 = vunpack.c.h.b16 %v367
        %v571 = vunpack.c.l.b16 %v368
        %v572 = vunpack.c.h.b16 %v368
        %v573 = vunpack.c.l.b16 %v369
        %v574 = vunpack.c.h.b16 %v369
        %v575 = vunpack.c.l.b16 %v370
        %v576 = vunpack.c.h.b16 %v370
        %v577 = vunpack.c.l.b16 %v371
        %v578 = vunpack.c.h.b16 %v371
        %v579 = vunpack.c.l.b16 %v372
        %v580 = vunpack.c.h.b16 %v372
        %v581 = vunpack.c.l.b16 %v373
        %v582 = vunpack.c.h.b16 %v373
        %v583 = vunpack.c.l.b16 %v374
        %v584 = vunpack.c.h.b16 %v374
        %v585 = vunpack.c.l.b16 %v375
        %v586 = vunpack.c.h.b16 %v375
        %v587 = vunpack.c.l.b16 %v376
        %v588 = vunpack.c.h.b16 %v376
        %v589 = vunpack.c.l.b16 %v377
        %v590 = vunpack.c.h.b16 %v377
        %v591 = vunpack.c.l.b16 %v378
        %v592 = vunpack.c.h.b16 %v378
        %v593 = vunpack.c.l.b16 %v379
        %v594 = vunpack.c.h.b16 %v379
        %v595 = vunpack.c.l.b16 %v380
        %v596 = vunpack.c.h.b16 %v380
        %v597 = vunpack.c.l.b16 %v381
        %v598 = vunpack.c.h.b16 %v381
        %v599 = vunpack.c.l.b16 %v382
        %v600 = vunpack.c.h.b16 %v382
        %v601 = vunpack.c.l.b16 %v383
        %v602 = vunpack.c.h.b16 %v383
        %v603 = vunpack.c.l.b16 %v384
        %v604 = vunpack.c.h.b16 %v384
        %v605 = vunpack.c.l.b16 %v385
        %v606 = vunpack.c.h.b16 %v385
        %v607 = vunpack.c.l.b16 %v386
        %v608 = vunpack.c.h.b16 %v386
        %v609 = vunpack.c.l.b16 %v387
        %v610 = vunpack.c.h.b16 %v387
        %v611 = vunpack.c.l.b16 %v388
        %v612 = vunpack.c.h.b16 %v388
        %v613 = vunpack.c.l.b16 %v389
        %v614 = vunpack.c.h.b16 %v389
        %v615 = vunpack.c.l.b16 %v390
        %v616 = vunpack.c.h.b16 %v390
        %v617 = vunpack.c.l.b16 %v391
        %v618 = vunpack.c.h.b16 %v391
        %v619 = vunpack.c.l.b16 %v392
        %v620 = vunpack.c.h.b16 %v392
        %v621 = vunpack.c.l.b16 %v393
        %v622 = vunpack.c.h.b16 %v393
        %v623 = vunpack.c.l.b16 %v394
        %v624 = vunpack.c.h.b16 %v394
        %v625 = vunpack.c.l.b16 %v395
        %v626 = vunpack.c.h.b16 %v395
        %v627 = vunpack.c.l.b16 %v396
        %v628 = vunpack.c.h.b16 %v396
        %v629 = vpack.c.b16 %v503, %v501
        %v630 = vpack.c.b16 %v504, %v502
        %v631 = vpack.c.b16 %v507, %v505
        %v632 = vpack.c.b16 %v508, %v506
        %v633 = vpack.c.b16 %v511, %v509
        %v634 = vpack.c.b16 %v512, %v510
        %v635 = vpack.c.b16 %v515, %v513
        %v636 = vpack.c.b16 %v516, %v514
        %v637 = vpack.c.b16 %v519, %v517
        %v638 = vpack.c.b16 %v520, %v518
        %v639 = vpack.c.b16 %v523, %v521
        %v640 = vpack.c.b16 %v524, %v522
        %v641 = vpack.c.b16 %v527, %v525
        %v642 = vpack.c.b16 %v528, %v526
        %v643 = vpack.c.b16 %v531, %v529
        %v644 = vpack.c.b16 %v532, %v530
        %v645 = vpack.c.b16 %v535, %v533
        %v646 = vpack.c.b16 %v536, %v534
        %v647 = vpack.c.b16 %v539, %v537
        %v648 = vpack.c.b16 %v540, %v538
        %v649 = vpack.c.b16 %v543, %v541
        %v650 = vpack.c.b16 %v544, %v542
        %v651 = vpack.c.b16 %v547, %v545
        %v652 = vpack.c.b16 %v548, %v546
        %v653 = vpack.c.b16 %v551, %v549
        %v654 = vpack.c.b16 %v552, %v550
        %v655 = vpack.c.b16 %v555, %v553
        %v656 = vpack.c.b16 %v556, %v554
        %v657 = vpack.c.b16 %v559, %v557
        %v658 = vpack.c.b16 %v560, %v558
        %v659 = vpack.c.b16 %v563, %v561
        %v660 = vpack.c.b16 %v564, %v562
        %v661 = vpack.c.b16 %v567, %v565
        %v662 = vpack.c.b16 %v568, %v566
        %v663 = vpack.c.b16 %v571, %v569
        %v664 = vpack.c.b16 %v572, %v570
        %v665 = vpack.c.b16 %v575, %v573
        %v666 = vpack.c.b16 %v576, %v574
        %v667 = vpack.c.b16 %v579, %v577
        %v668 = vpack.c.b16 %v580, %v578
        %v669 = vpack.c.b16 %v583, %v581
        %v670 = vpack.c.b16 %v584, %v582
        %v671 = vpack.c.b16 %v587, %v585
        %v672 = vpack.c.b16 %v588, %v586
        %v673 = vpack.c.b16 %v591, %v589
        %v674 = vpack.c.b16 %v592, %v590
        %v675 = vpack.c.b16 %v595, %v593
        %v676 = vpack.c.b16 %v596, %v594
        %v677 = vpack.c.b16 %v599, %v597
        %v678 = vpack.c.b16 %v600, %v598
        %v679 = vpack.c.b16 %v603, %v601
        %v680 = vpack.c.b16 %v604, %v602
        %v681 = vpack.c.b16 %v607, %v605
        %v682 = vpack.c.b16 %v608, %v606
        %v683 = vpack.c.b16 %v611, %v609
        %v684 = vpack.c.b16 %v612, %v610
        %v685 = vpack.c.b16 %v615, %v613
        %v686 = vpack.c.b16 %v616, %v614
        %v687 = vpack.c.b16 %v619, %v617
        %v688 = vpack.c.b16 %v620, %v618
        %v689 = vpack.c.b16 %v623, %v621
        %v690 = vpack.c.b16 %v624, %v622
        %v691 = vpack.c.b16 %v627, %v625
        %v692 = vpack.c.b16 %v628, %v626
        %757 = vmatpush.bf16.msra.mxu0 %v643
        %758 = vmatpush.bf16.msra.mxu0 %v641
        %759 = vmatpush.bf16.msra.mxu0 %v639
        %760 = vmatpush.bf16.msra.mxu0 %v637
        %761 = vmatpush.bf16.msra.mxu0 %v635
        %762 = vmatpush.bf16.msra.mxu0 %v633
        %763 = vmatpush.bf16.msra.mxu0 %v631
        %764 = vmatpush.bf16.msra.mxu0 %v629
        %765 = vmatmul.bf16.gmra.mxu0 %v421
        %v766 = vpop.f32.mrf.mxu0
        %v767 = vadd.f32 0.0, %v766
        %v768 = vpop.f32.mrf.mxu0
        %v769 = vadd.f32 0.0, %v768
        %770 = vmatmul.bf16.gmra.mxu0 %v425
        %v771 = vpop.f32.mrf.mxu0
        %v772 = vadd.f32 0.0, %v771
        %v773 = vpop.f32.mrf.mxu0
        %v774 = vadd.f32 0.0, %v773
        %775 = vdwg.mxu0
        %776 = vmatpush.bf16.msra.mxu0 %v659
        %777 = vmatpush.bf16.msra.mxu0 %v657
        %778 = vmatpush.bf16.msra.mxu0 %v655
        %779 = vmatpush.bf16.msra.mxu0 %v653
        %780 = vmatpush.bf16.msra.mxu0 %v651
        %781 = vmatpush.bf16.msra.mxu0 %v649
        %782 = vmatpush.bf16.msra.mxu0 %v647
        %783 = vmatpush.bf16.msra.mxu0 %v645
        %784 = vmatmul.bf16.gmra.mxu0 %v422
        %v785 = vpop.f32.mrf.mxu0
        %v786 = vadd.f32 %v767, %v785
        %v787 = vpop.f32.mrf.mxu0
        %v788 = vadd.f32 %v769, %v787
        %789 = vmatmul.bf16.gmra.mxu0 %v426
        %v790 = vpop.f32.mrf.mxu0
        %v791 = vadd.f32 %v772, %v790
        %v792 = vpop.f32.mrf.mxu0
        %v793 = vadd.f32 %v774, %v792
        %794 = vdwg.mxu0
        %795 = vmatpush.bf16.msra.mxu0 %v675
        %796 = vmatpush.bf16.msra.mxu0 %v673
        %797 = vmatpush.bf16.msra.mxu0 %v671
        %798 = vmatpush.bf16.msra.mxu0 %v669
        %799 = vmatpush.bf16.msra.mxu0 %v667
        %800 = vmatpush.bf16.msra.mxu0 %v665
        %801 = vmatpush.bf16.msra.mxu0 %v663
        %802 = vmatpush.bf16.msra.mxu0 %v661
        %803 = vmatmul.bf16.gmra.mxu0 %v423
        %v804 = vpop.f32.mrf.mxu0
        %v805 = vadd.f32 %v786, %v804
        %v806 = vpop.f32.mrf.mxu0
        %v807 = vadd.f32 %v788, %v806
        %808 = vmatmul.bf16.gmra.mxu0 %v427
        %v809 = vpop.f32.mrf.mxu0
        %v810 = vadd.f32 %v791, %v809
        %v811 = vpop.f32.mrf.mxu0
        %v812 = vadd.f32 %v793, %v811
        %813 = vdwg.mxu0
        %814 = vmatpush.bf16.msra.mxu0 %v691
        %815 = vmatpush.bf16.msra.mxu0 %v689
        %816 = vmatpush.bf16.msra.mxu0 %v687
        %817 = vmatpush.bf16.msra.mxu0 %v685
        %818 = vmatpush.bf16.msra.mxu0 %v683
        %819 = vmatpush.bf16.msra.mxu0 %v681
        %820 = vmatpush.bf16.msra.mxu0 %v679
        %821 = vmatpush.bf16.msra.mxu0 %v677
        %822 = vmatmul.bf16.gmra.mxu0 %v424
        %v823 = vpop.f32.mrf.mxu0
        %v824 = vadd.f32 %v805, %v823
        %v825 = vpop.f32.mrf.mxu0
        %v826 = vadd.f32 %v807, %v825
        %827 = vmatmul.bf16.gmra.mxu0 %v428
        %v828 = vpop.f32.mrf.mxu0
        %v829 = vadd.f32 %v810, %v828
        %v830 = vpop.f32.mrf.mxu0
        %v831 = vadd.f32 %v812, %v830
        %832 = vdwg.mxu0
        %833 = vmatpush.bf16.msra.mxu0 %v644
        %834 = vmatpush.bf16.msra.mxu0 %v642
        %835 = vmatpush.bf16.msra.mxu0 %v640
        %836 = vmatpush.bf16.msra.mxu0 %v638
        %837 = vmatpush.bf16.msra.mxu0 %v636
        %838 = vmatpush.bf16.msra.mxu0 %v634
        %839 = vmatpush.bf16.msra.mxu0 %v632
        %840 = vmatpush.bf16.msra.mxu0 %v630
        %841 = vmatmul.bf16.gmra.mxu0 %v421
        %v842 = vpop.f32.mrf.mxu0
        %v843 = vadd.f32 0.0, %v842
        %v844 = vpop.f32.mrf.mxu0
        %v845 = vadd.f32 0.0, %v844
        %846 = vmatmul.bf16.gmra.mxu0 %v425
        %v847 = vpop.f32.mrf.mxu0
        %v848 = vadd.f32 0.0, %v847
        %v849 = vpop.f32.mrf.mxu0
        %v850 = vadd.f32 0.0, %v849
        %851 = vdwg.mxu0
        %852 = vmatpush.bf16.msra.mxu0 %v660
        %853 = vmatpush.bf16.msra.mxu0 %v658
        %854 = vmatpush.bf16.msra.mxu0 %v656
        %855 = vmatpush.bf16.msra.mxu0 %v654
        %856 = vmatpush.bf16.msra.mxu0 %v652
        %857 = vmatpush.bf16.msra.mxu0 %v650
        %858 = vmatpush.bf16.msra.mxu0 %v648
        %859 = vmatpush.bf16.msra.mxu0 %v646
        %860 = vmatmul.bf16.gmra.mxu0 %v422
        %v861 = vpop.f32.mrf.mxu0
        %v862 = vadd.f32 %v843, %v861
        %v863 = vpop.f32.mrf.mxu0
        %v864 = vadd.f32 %v845, %v863
        %865 = vmatmul.bf16.gmra.mxu0 %v426
        %v866 = vpop.f32.mrf.mxu0
        %v867 = vadd.f32 %v848, %v866
        %v868 = vpop.f32.mrf.mxu0
        %v869 = vadd.f32 %v850, %v868
        %870 = vdwg.mxu0
        %871 = vmatpush.bf16.msra.mxu0 %v676
        %872 = vmatpush.bf16.msra.mxu0 %v674
        %873 = vmatpush.bf16.msra.mxu0 %v672
        %874 = vmatpush.bf16.msra.mxu0 %v670
        %875 = vmatpush.bf16.msra.mxu0 %v668
        %876 = vmatpush.bf16.msra.mxu0 %v666
        %877 = vmatpush.bf16.msra.mxu0 %v664
        %878 = vmatpush.bf16.msra.mxu0 %v662
        %879 = vmatmul.bf16.gmra.mxu0 %v423
        %v880 = vpop.f32.mrf.mxu0
        %v881 = vadd.f32 %v862, %v880
        %v882 = vpop.f32.mrf.mxu0
        %v883 = vadd.f32 %v864, %v882
        %884 = vmatmul.bf16.gmra.mxu0 %v427
        %v885 = vpop.f32.mrf.mxu0
        %v886 = vadd.f32 %v867, %v885
        %v887 = vpop.f32.mrf.mxu0
        %v888 = vadd.f32 %v869, %v887
        %889 = vdwg.mxu0
        %890 = vmatpush.bf16.msra.mxu0 %v692
        %891 = vmatpush.bf16.msra.mxu0 %v690
        %892 = vmatpush.bf16.msra.mxu0 %v688
        %893 = vmatpush.bf16.msra.mxu0 %v686
        %894 = vmatpush.bf16.msra.mxu0 %v684
        %895 = vmatpush.bf16.msra.mxu0 %v682
        %896 = vmatpush.bf16.msra.mxu0 %v680
        %897 = vmatpush.bf16.msra.mxu0 %v678
        %898 = vmatmul.bf16.gmra.mxu0 %v424
        %v899 = vpop.f32.mrf.mxu0
        %v900 = vadd.f32 %v881, %v899
        %v901 = vpop.f32.mrf.mxu0
        %v902 = vadd.f32 %v883, %v901
        %903 = vmatmul.bf16.gmra.mxu0 %v428
        %v904 = vpop.f32.mrf.mxu0
        %v905 = vadd.f32 %v886, %v904
        %v906 = vpop.f32.mrf.mxu0
        %v907 = vadd.f32 %v888, %v906
        %908 = vdwg.mxu0
        %v909 = vadd.f32 %v317, %v824
        %v910 = vadd.f32 %v318, %v900
        %v911 = vadd.f32 %v319, %v826
        %v912 = vadd.f32 %v320, %v902
        %v913 = vadd.f32 %v321, %v829
        %v914 = vadd.f32 %v322, %v905
        %v915 = vadd.f32 %v323, %v831
        %v916 = vadd.f32 %v324, %v907
        %917 = vst [vmem:[#allocation2] sm:$0xff] %v909
        %918 = vst [vmem:[#allocation2 + $0x8] sm:$0xff] %v910
        %919 = vst [vmem:[#allocation2 + $0x10] sm:$0xff] %v911
        %920 = vst [vmem:[#allocation2 + $0x18] sm:$0xff] %v912
        %921 = vst [vmem:[#allocation2 + $0x20] sm:$0xff] %v913
        %922 = vst [vmem:[#allocation2 + $0x28] sm:$0xff] %v914
        %923 = vst [vmem:[#allocation2 + $0x30] sm:$0xff] %v915
        %924 = vst [vmem:[#allocation2 + $0x38] sm:$0xff] %v916
        %p925 = scmp.eq.s32.totalorder %s21, 7
        // Predicated region
        $region60: #{scale_estimator_forward.9} parent=50 // pred_check
          %p926 = pneg %p925
        $region61: #{scale_estimator_forward.9} parent=50 // pred_check_branch
          %928 = sbr.rel (%p926) target = $region63
        $region62: #{scale_estimator_forward.9} parent=50 // pred_region
          %v929 = vld [vmem:[#allocation2] sm:$0xff]
          %v930 = vld [vmem:[#allocation2 + $0x8] sm:$0xff]
          %v931 = vld [vmem:[#allocation2 + $0x10] sm:$0xff]
          %v932 = vld [vmem:[#allocation2 + $0x18] sm:$0xff]
          %v933 = vld [vmem:[#allocation2 + $0x20] sm:$0xff]
          %v934 = vld [vmem:[#allocation2 + $0x28] sm:$0xff]
          %v935 = vld [vmem:[#allocation2 + $0x30] sm:$0xff]
          %v936 = vld [vmem:[#allocation2 + $0x38] sm:$0xff]
          %v937 = vld [vmem:[%s291] sm:$0x3]
          %v939 = vperm.slane %v937, 0
          %v940 = vperm.slane %v937, 1
          %v943 = vadd.f32 %v929, %v939
          %v944 = vadd.f32 %v930, %v940
          %v945 = vadd.f32 %v931, %v939
          %v946 = vadd.f32 %v932, %v940
          %v947 = vadd.f32 %v933, %v939
          %v948 = vadd.f32 %v934, %v940
          %v949 = vadd.f32 %v935, %v939
          %v950 = vadd.f32 %v936, %v940
          %v951 = vpack.c.bf16 %v944, %v943
          %v952 = vpack.c.bf16 %v946, %v945
          %v953 = vpack.c.bf16 %v948, %v947
          %v954 = vpack.c.bf16 %v950, %v949
          %955 = vst [vmem:[%s302] sm:$0xff] %v951
          %956 = vst [vmem:[%s302 + $0x8] sm:$0xff] %v952
          %957 = vst [vmem:[%s302 + $0x10] sm:$0xff] %v953
          %958 = vst [vmem:[%s302 + $0x18] sm:$0xff] %v954
        $region63: #{scale_estimator_forward.9} parent=50 // pred_fallthru
          _
        %s959 = smul.u32 4, %s19
        %s960 = smul.u32 2, %s20
        %p961 = scmp.lt.s32.totalorder %s959, 3
        %s962 = scalar_select %p961, %s959, 3
        %p963 = scmp.lt.s32.totalorder %s960, 1
        %s964 = scalar_select %p963, %s960, 1
        %s965 = smul.addr %s962, 2
        %s966 = sadd.s32 %s964, %s965
        %s967 = smul.addr %s966, 4
        %s968 = scalar_lea.vmem %s3, %s967
        // Predicated region
        $region64: #{scale_estimator_forward.9} parent=50 // pred_check
          %p969 = pneg %p135
        $region65: #{scale_estimator_forward.9} parent=50 // pred_check_branch
          %971 = sbr.rel (%p969) target = $region67
        $region66: #{scale_estimator_forward.9} parent=50 // pred_region
          %s972 = smul.u32 4, %s19
          %s973 = smul.u32 2, %s20
        $region67: #{scale_estimator_forward.9} parent=50 // pred_fallthru
          _
        // Predicated region
        $region68: #{scale_estimator_forward.9} parent=50 // pred_check
          %p974 = pneg %p135
        $region69: #{scale_estimator_forward.9} parent=50 // pred_check_branch
          %976 = sbr.rel (%p974) target = $region71
        $region70: #{scale_estimator_forward.9} parent=50 // pred_region
          %s977 = smul.u32 4, %s19
          %s978 = smul.u32 2, %s20
          %p979 = scmp.lt.s32.totalorder %s977, 3
          %s980 = scalar_select %p979, %s977, 3
          %p981 = scmp.lt.s32.totalorder %s978, 1
          %s982 = scalar_select %p981, %s978, 1
          %s983 = smul.addr %s980, 2
          %s984 = sadd.s32 %s982, %s983
          %s985 = smul.addr %s984, 4
          %s986 = scalar_lea.vmem %s3, %s985
        $region71: #{scale_estimator_forward.9} parent=50 // pred_fallthru
          _
      $region51: #{scale_estimator_forward.9} parent=5 // pred_fallthru
        _
      %p987 = scmp.le.s32.totalorder 2, %s9
      // Predicated region
      $region72: #{scale_estimator_forward.9} parent=5 // pred_check
        %p988 = pneg %p987
      $region73: #{scale_estimator_forward.9} parent=5 // pred_check_branch
        %990 = sbr.rel (%p988) target = $region75
      $region74: #{scale_estimator_forward.9} parent=5 // pred_region
        %s991 = ssub.s32 %s9, 2
      $region75: #{scale_estimator_forward.9} parent=5 // pred_fallthru
        _
    $region6: #{scale_estimator_forward.9} parent=1 // loop_footer
      %s13 = sadd.s32 1, %s9
    $region7: #{scale_estimator_forward.9} parent=1 // loop_footer_branch
      %8 = sbr.rel target = $region3
    $region8: #{scale_estimator_forward.9} parent=1 // loop_exit
      _

// kernel: scale_estimator_forward.11
$region0: #{scale_estimator_forward.11}
  #allocation0 [shape = 'u32[]', space=smem, size = 0x4, offset = 0x4, fixed_abs, tag = 'smem constant byte address 0x4 - core index']
  #allocation1 [shape = 'u32[72,128]{1,0:T(1,128)}', space=vmem, size = 0x9000, scoped, tag = 'internal scratch']
  #allocation2 [shape = 'f32[128,128]{1,0:T(8,128)}', space=vmem, size = 0x10000, scoped, tag = 'scratch operand']
  %s0 = inlined_call_operand.vmem [shape: bf16[128,2304], index: 0, kind: input, shape index: {}]
  %s1 = inlined_call_operand.vmem [shape: bf16[2304,128], index: 1, kind: input, shape index: {}]
  %s2 = inlined_call_operand.vmem [shape: f32[1,128], index: 2, kind: input, shape index: {}]
  %s3 = inlined_call_operand.vmem [shape: bf16[128,128], index: 3, kind: output, shape index: {}]
  %s4 = sld [smem:[#allocation0]]
  $region91: #{scale_estimator_forward.11} parent=0
    _
  %s6 = ssub.s32 1, %s4
  %s7 = scalar_select 0, %s6, %s4
  $region1: #{scale_estimator_forward.11} parent=0
    #allocation3 [shape = 'u8[131072]{0}', space=vmem, size = 0x20000, scoped, tag = 'input window, operand 0']
    loop: start=0, step=1, limit=11
    $region2: #{scale_estimator_forward.11} parent=1 // loop_pre_header
      _
    $region3: #{scale_estimator_forward.11} parent=1 // loop_header
      %s9 = sphi 0, %s13
      %p10 = scmp.ge.s32.totalorder %s9, 11
      %s16 = sphi 0, %s35
      %s17 = sphi 0, %s31
      %s18 = sphi 0, %s27
      %s19 = sphi 0, %s16
      %s20 = sphi 0, %s17
      %s21 = sphi 0, %s18
      %s22 = sphi 0, %s19
      %s23 = sphi 0, %s20
      %s24 = sphi 0, %s21
      %s40 = sphi 0, %s42
      %s43 = sphi 0, %s40
      %s44 = sphi 0, %s43
      %s60 = sphi 0, %s44
      %s68 = sphi 0, %s70
      %s71 = sphi 0, %s68
      %s72 = sphi 0, %s71
      %s88 = sphi 0, %s72
      %s94 = sphi 0, %s96
      %s97 = sphi 0, %s94
      %s98 = sphi 0, %s97
      %s114 = sphi 0, %s98
      %s122 = sphi 0, %s124
      %s125 = sphi 0, %s122
      %s126 = sphi 0, %s125
      %s142 = sphi 0, %s126
    $region4: #{scale_estimator_forward.11} parent=1 // loop_header_branch
      %12 = sbr.rel (%p10) target = $region8
    $region5: #{scale_estimator_forward.11} parent=1 // loop_body
      %s14 = ssub.s32 %s9, 1
      %s15 = ssub.s32 %s9, 2
      %s25 = sadd.s32 1, %s18
      %p26 = scmp.ge.s32.totalorder %s25, 9
      %s27 = scalar_select %p26, 0, %s25
      %s28 = sadd.s32 1, %s17
      %s29 = scalar_select %p26, %s28, %s17
      %p30 = scmp.ge.s32.totalorder %s29, 1
      %s31 = scalar_select %p30, 0, %s29
      %s32 = sadd.s32 1, %s16
      %s33 = scalar_select %p30, %s32, %s16
      %p34 = scmp.ge.s32.totalorder %s33, 1
      %s35 = scalar_select %p34, 0, %s33
      %s36 = ssub.s32 %s16, %s35
      %s37 = ssub.s32 %s18, %s27
      %s38 = sor.u32 %s36, %s37
      %p39 = scmp.eq.s32.totalorder %s38, 0
      %s41 = sadd.s32 %s40, 1
      %s42 = scalar_select %p39, %s40, %s41
      %p45 = pneg %p39
      %p46 = scmp.eq.s32.totalorder %s9, 8
      %p47 = por %p45, %p46
      %p48 = scmp.ne.s32.totalorder %s40, %s43
      %p49 = scmp.eq.s32.totalorder %s9, 0
      %p50 = por %p48, %p49
      %p51 = scmp.ne.s32.totalorder %s40, %s43
      %p52 = scmp.eq.s32.totalorder %s14, 8
      %p53 = por %p51, %p52
      %p54 = scmp.ne.s32.totalorder %s43, %s44
      %p55 = scmp.eq.s32.totalorder %s14, 0
      %p56 = por %p54, %p55
      %p57 = scmp.ne.s32.totalorder %s43, %s44
      %p58 = scmp.eq.s32.totalorder %s15, 8
      %p59 = por %p57, %p58
      %p61 = scmp.ne.s32.totalorder %s44, %s60
      %p62 = scmp.eq.s32.totalorder %s15, 0
      %p63 = por %p61, %p62
      %s64 = ssub.s32 %s18, %s27
      %s65 = ssub.s32 %s17, %s31
      %s66 = sor.u32 %s64, %s65
      %p67 = scmp.eq.s32.totalorder %s66, 0
      %s69 = sadd.s32 %s68, 1
      %s70 = scalar_select %p67, %s68, %s69
      %p73 = pneg %p67
      %p74 = scmp.eq.s32.totalorder %s9, 8
      %p75 = por %p73, %p74
      %p76 = scmp.ne.s32.totalorder %s68, %s71
      %p77 = scmp.eq.s32.totalorder %s9, 0
      %p78 = por %p76, %p77
      %p79 = scmp.ne.s32.totalorder %s68, %s71
      %p80 = scmp.eq.s32.totalorder %s14, 8
      %p81 = por %p79, %p80
      %p82 = scmp.ne.s32.totalorder %s71, %s72
      %p83 = scmp.eq.s32.totalorder %s14, 0
      %p84 = por %p82, %p83
      %p85 = scmp.ne.s32.totalorder %s71, %s72
      %p86 = scmp.eq.s32.totalorder %s15, 8
      %p87 = por %p85, %p86
      %p89 = scmp.ne.s32.totalorder %s72, %s88
      %p90 = scmp.eq.s32.totalorder %s15, 0
      %p91 = por %p89, %p90
      %s92 = ssub.s32 %s17, %s31
      %p93 = scmp.eq.s32.totalorder %s92, 0
      %s95 = sadd.s32 %s94, 1
      %s96 = scalar_select %p93, %s94, %s95
      %p99 = pneg %p93
      %p100 = scmp.eq.s32.totalorder %s9, 8
      %p101 = por %p99, %p100
      %p102 = scmp.ne.s32.totalorder %s94, %s97
      %p103 = scmp.eq.s32.totalorder %s9, 0
      %p104 = por %p102, %p103
      %p105 = scmp.ne.s32.totalorder %s94, %s97
      %p106 = scmp.eq.s32.totalorder %s14, 8
      %p107 = por %p105, %p106
      %p108 = scmp.ne.s32.totalorder %s97, %s98
      %p109 = scmp.eq.s32.totalorder %s14, 0
      %p110 = por %p108, %p109
      %p111 = scmp.ne.s32.totalorder %s97, %s98
      %p112 = scmp.eq.s32.totalorder %s15, 8
      %p113 = por %p111, %p112
      %p115 = scmp.ne.s32.totalorder %s98, %s114
      %p116 = scmp.eq.s32.totalorder %s15, 0
      %p117 = por %p115, %p116
      %s118 = ssub.s32 %s16, %s35
      %s119 = ssub.s32 %s17, %s31
      %s120 = sor.u32 %s118, %s119
      %p121 = scmp.eq.s32.totalorder %s120, 0
      %s123 = sadd.s32 %s122, 1
      %s124 = scalar_select %p121, %s122, %s123
      %p127 = pneg %p121
      %p128 = scmp.eq.s32.totalorder %s9, 8
      %p129 = por %p127, %p128
      %p130 = scmp.ne.s32.totalorder %s122, %s125
      %p131 = scmp.eq.s32.totalorder %s9, 0
      %p132 = por %p130, %p131
      %p133 = scmp.ne.s32.totalorder %s122, %s125
      %p134 = scmp.eq.s32.totalorder %s14, 8
      %p135 = por %p133, %p134
      %p136 = scmp.ne.s32.totalorder %s125, %s126
      %p137 = scmp.eq.s32.totalorder %s14, 0
      %p138 = por %p136, %p137
      %p139 = scmp.ne.s32.totalorder %s125, %s126
      %p140 = scmp.eq.s32.totalorder %s15, 8
      %p141 = por %p139, %p140
      %p143 = scmp.ne.s32.totalorder %s126, %s142
      %p144 = scmp.eq.s32.totalorder %s15, 0
      %p145 = por %p143, %p144
      %p146 = scmp.le.s32.totalorder 1, %s9
      %p147 = scmp.lt.s32.totalorder %s9, 10
      %p148 = pnand %p146, %p147
      %p149 = pneg %p148
      // Predicated region
      $region9: #{scale_estimator_forward.11} parent=5 // pred_check
        _
      $region10: #{scale_estimator_forward.11} parent=5 // pred_check_branch
        %151 = sbr.rel (%p148) target = $region12
      $region11: #{scale_estimator_forward.11} parent=5 // pred_region
        %s152 = ssub.s32 %s9, 1
        // Predicated region
        $region13: #{scale_estimator_forward.11} parent=11 // pred_check
          %p153 = pneg %p110
        $region14: #{scale_estimator_forward.11} parent=11 // pred_check_branch
          %155 = sbr.rel (%p153) target = $region16
        $region15: #{scale_estimator_forward.11} parent=11 // pred_region
          %p156 = scmp.lt.s32.totalorder %s20, 0
          %s157 = scalar_select %p156, %s20, 0
          %s158 = scalar_lea.vmem %s2, %s157
        $region16: #{scale_estimator_forward.11} parent=11 // pred_fallthru
          _
      $region12: #{scale_estimator_forward.11} parent=5 // pred_fallthru
        _
      %p159 = scmp.lt.s32.totalorder %s9, 9
      // Predicated region
      $region17: #{scale_estimator_forward.11} parent=5 // pred_check
        %p160 = pneg %p159
      $region18: #{scale_estimator_forward.11} parent=5 // pred_check_branch
        %162 = sbr.rel (%p160) target = $region20
      $region19: #{scale_estimator_forward.11} parent=5 // pred_region
        // Predicated region
        $region21: #{scale_estimator_forward.11} parent=19 // pred_check
          %p163 = pneg %p50
        $region22: #{scale_estimator_forward.11} parent=19 // pred_check_branch
          %165 = sbr.rel (%p163) target = $region24
        $region23: #{scale_estimator_forward.11} parent=19 // pred_region
          %s166 = sand.u32 %s40, 1
          %s167 = sand.u32 %s40, 1
          %s168 = smul.addr %s167, 128
          %s169 = scalar_lea.vmem [#allocation3], %s168
          %s170 = smul.u32 16, %s16
          %s171 = smul.u32 2, %s18
          %s172 = smul.addr %s170, 18
          %s173 = sadd.s32 %s171, %s172
          %s174 = smul.addr %s173, 4
          %s175 = scalar_lea.vmem %s0, %s174
          // Predicated region
          $region25: #{scale_estimator_forward.11} parent=23 // pred_check
            _
          $region26: #{scale_estimator_forward.11} parent=23 // pred_check_branch
            %177 = sbr.rel (0) target = $region28
          $region27: #{scale_estimator_forward.11} parent=23 // pred_region
            // Predicated region
            $region29: #{scale_estimator_forward.11} parent=27 // pred_check
              _
            $region30: #{scale_estimator_forward.11} parent=27 // pred_check_branch
              %179 = sbr.rel (0) target = $region32
            $region31: #{scale_estimator_forward.11} parent=27 // pred_region
              // Predicated region
              $region44: #{scale_estimator_forward.11} parent=31 // pred_check
                _
              $region45: #{scale_estimator_forward.11} parent=31 // pred_check_branch
                %225 = sbr.rel (0) target = $region47
              $region46: #{scale_estimator_forward.11} parent=31 // pred_region
                loop: start=0, step=1, limit=1
                $region48: #{scale_estimator_forward.11} parent=46 // loop_pre_header
                  _
                $region49: #{scale_estimator_forward.11} parent=46 // loop_header
                  %s227 = sphi 0, %s231
                  %p228 = scmp.ge.s32.totalorder %s227, 1
                  %s232 = sphi %s175, %s175
                  %s233 = sphi %s169, %s169
                $region50: #{scale_estimator_forward.11} parent=46 // loop_header_branch
                  %230 = sbr.rel (%p228) target = $region54
                $region51: #{scale_estimator_forward.11} parent=46 // loop_body
                  %v234 = vld [vmem:[%s232] sm:$0xff]
                  %235 = vst [vmem:[%s233] sm:$0xff] %v234
                  %v236 = vld [vmem:[%s232 + $0x48] sm:$0xff]
                  %237 = vst [vmem:[%s233 + $0x8] sm:$0xff] %v236
                  %v238 = vld [vmem:[%s232 + $0x90] sm:$0xff]
                  %239 = vst [vmem:[%s233 + $0x10] sm:$0xff] %v238
                  %v240 = vld [vmem:[%s232 + $0xd8] sm:$0xff]
                  %241 = vst [vmem:[%s233 + $0x18] sm:$0xff] %v240
                  %v242 = vld [vmem:[%s232 + $0x120] sm:$0xff]
                  %243 = vst [vmem:[%s233 + $0x20] sm:$0xff] %v242
                  %v244 = vld [vmem:[%s232 + $0x168] sm:$0xff]
                  %245 = vst [vmem:[%s233 + $0x28] sm:$0xff] %v244
                  %v246 = vld [vmem:[%s232 + $0x1b0] sm:$0xff]
                  %247 = vst [vmem:[%s233 + $0x30] sm:$0xff] %v246
                  %v248 = vld [vmem:[%s232 + $0x1f8] sm:$0xff]
                  %249 = vst [vmem:[%s233 + $0x38] sm:$0xff] %v248
                  %v250 = vld [vmem:[%s232 + $0x240] sm:$0xff]
                  %251 = vst [vmem:[%s233 + $0x40] sm:$0xff] %v250
                  %v252 = vld [vmem:[%s232 + $0x288] sm:$0xff]
                  %253 = vst [vmem:[%s233 + $0x48] sm:$0xff] %v252
                  %v254 = vld [vmem:[%s232 + $0x2d0] sm:$0xff]
                  %255 = vst [vmem:[%s233 + $0x50] sm:$0xff] %v254
                  %v256 = vld [vmem:[%s232 + $0x318] sm:$0xff]
                  %257 = vst [vmem:[%s233 + $0x58] sm:$0xff] %v256
                  %v258 = vld [vmem:[%s232 + $0x360] sm:$0xff]
                  %259 = vst [vmem:[%s233 + $0x60] sm:$0xff] %v258
                  %v260 = vld [vmem:[%s232 + $0x3a8] sm:$0xff]
                  %261 = vst [vmem:[%s233 + $0x68] sm:$0xff] %v260
                  %v262 = vld [vmem:[%s232 + $0x3f0] sm:$0xff]
                  %263 = vst [vmem:[%s233 + $0x70] sm:$0xff] %v262
                  %v264 = vld [vmem:[%s232 + $0x438] sm:$0xff]
                  %265 = vst [vmem:[%s233 + $0x78] sm:$0xff] %v264
                $region52: #{scale_estimator_forward.11} parent=46 // loop_footer
                  %s231 = sadd.s32 1, %s227
                $region53: #{scale_estimator_forward.11} parent=46 // loop_footer_branch
                  %226 = sbr.rel target = $region49
                $region54: #{scale_estimator_forward.11} parent=46 // loop_exit
                  _
              $region47: #{scale_estimator_forward.11} parent=31 // pred_fallthru
                _
              // Predicated region
              $region55: #{scale_estimator_forward.11} parent=31 // pred_check
                _
              $region56: #{scale_estimator_forward.11} parent=31 // pred_check_branch
                %267 = sbr.rel target = $region58
              $region57: #{scale_estimator_forward.11} parent=31 // pred_region
                _
              $region58: #{scale_estimator_forward.11} parent=31 // pred_fallthru
                _
            $region32: #{scale_estimator_forward.11} parent=27 // pred_fallthru
              _
            // Predicated region
            $region33: #{scale_estimator_forward.11} parent=27 // pred_check
              _
            $region34: #{scale_estimator_forward.11} parent=27 // pred_check_branch
              %181 = sbr.rel target = $region36
            $region35: #{scale_estimator_forward.11} parent=27 // pred_region
              %s183 = ssub.s32 256, 1
              loop: start=0, step=1, limit=1
              $region37: #{scale_estimator_forward.11} parent=35 // loop_pre_header
                _
              $region38: #{scale_estimator_forward.11} parent=35 // loop_header
                %s185 = sphi 0, %s189
                %p186 = scmp.ge.s32.totalorder %s185, 1
                %s190 = sphi %s175, %s175
                %s191 = sphi %s169, %s169
              $region39: #{scale_estimator_forward.11} parent=35 // loop_header_branch
                %188 = sbr.rel (%p186) target = $region43
              $region40: #{scale_estimator_forward.11} parent=35 // loop_body
                %v192 = vld [vmem:[%s190] sm:%s183]
                %193 = vst [vmem:[%s191] sm:%s183] %v192
                %v194 = vld [vmem:[%s190 + $0x48] sm:%s183]
                %195 = vst [vmem:[%s191 + $0x8] sm:%s183] %v194
                %v196 = vld [vmem:[%s190 + $0x90] sm:%s183]
                %197 = vst [vmem:[%s191 + $0x10] sm:%s183] %v196
                %v198 = vld [vmem:[%s190 + $0xd8] sm:%s183]
                %199 = vst [vmem:[%s191 + $0x18] sm:%s183] %v198
                %v200 = vld [vmem:[%s190 + $0x120] sm:%s183]
                %201 = vst [vmem:[%s191 + $0x20] sm:%s183] %v200
                %v202 = vld [vmem:[%s190 + $0x168] sm:%s183]
                %203 = vst [vmem:[%s191 + $0x28] sm:%s183] %v202
                %v204 = vld [vmem:[%s190 + $0x1b0] sm:%s183]
                %205 = vst [vmem:[%s191 + $0x30] sm:%s183] %v204
                %v206 = vld [vmem:[%s190 + $0x1f8] sm:%s183]
                %207 = vst [vmem:[%s191 + $0x38] sm:%s183] %v206
                %v208 = vld [vmem:[%s190 + $0x240] sm:%s183]
                %209 = vst [vmem:[%s191 + $0x40] sm:%s183] %v208
                %v210 = vld [vmem:[%s190 + $0x288] sm:%s183]
                %211 = vst [vmem:[%s191 + $0x48] sm:%s183] %v210
                %v212 = vld [vmem:[%s190 + $0x2d0] sm:%s183]
                %213 = vst [vmem:[%s191 + $0x50] sm:%s183] %v212
                %v214 = vld [vmem:[%s190 + $0x318] sm:%s183]
                %215 = vst [vmem:[%s191 + $0x58] sm:%s183] %v214
                %v216 = vld [vmem:[%s190 + $0x360] sm:%s183]
                %217 = vst [vmem:[%s191 + $0x60] sm:%s183] %v216
                %v218 = vld [vmem:[%s190 + $0x3a8] sm:%s183]
                %219 = vst [vmem:[%s191 + $0x68] sm:%s183] %v218
                %v220 = vld [vmem:[%s190 + $0x3f0] sm:%s183]
                %221 = vst [vmem:[%s191 + $0x70] sm:%s183] %v220
                %v222 = vld [vmem:[%s190 + $0x438] sm:%s183]
                %223 = vst [vmem:[%s191 + $0x78] sm:%s183] %v222
              $region41: #{scale_estimator_forward.11} parent=35 // loop_footer
                %s189 = sadd.s32 1, %s185
              $region42: #{scale_estimator_forward.11} parent=35 // loop_footer_branch
                %184 = sbr.rel target = $region38
              $region43: #{scale_estimator_forward.11} parent=35 // loop_exit
                _
            $region36: #{scale_estimator_forward.11} parent=27 // pred_fallthru
              _
          $region28: #{scale_estimator_forward.11} parent=23 // pred_fallthru
            _
          %268 = vnop
        $region24: #{scale_estimator_forward.11} parent=19 // pred_fallthru
          _
        // Predicated region
        $region59: #{scale_estimator_forward.11} parent=19 // pred_check
          %p269 = pneg %p78
        $region60: #{scale_estimator_forward.11} parent=19 // pred_check_branch
          %271 = sbr.rel (%p269) target = $region62
        $region61: #{scale_estimator_forward.11} parent=19 // pred_region
          %s272 = smul.u32 32, %s18
          %p273 = scmp.lt.s32.totalorder %s272, 287
          %s274 = scalar_select %p273, %s272, 287
          %p275 = scmp.lt.s32.totalorder %s17, 0
          %s276 = scalar_select %p275, %s17, 0
          %s277 = sadd.s32 %s276, %s274
          %s278 = smul.addr %s277, 4
          %s279 = scalar_lea.vmem %s1, %s278
          %s280 = smul.u32 32, %s18
        $region62: #{scale_estimator_forward.11} parent=19 // pred_fallthru
          _
      $region20: #{scale_estimator_forward.11} parent=5 // pred_fallthru
        _
      %p281 = scmp.le.s32.totalorder 1, %s9
      %p282 = scmp.lt.s32.totalorder %s9, 10
      %p283 = pnand %p281, %p282
      %p284 = pneg %p283
      // Predicated region
      $region63: #{scale_estimator_forward.11} parent=5 // pred_check
        _
      $region64: #{scale_estimator_forward.11} parent=5 // pred_check_branch
        %286 = sbr.rel (%p283) target = $region66
      $region65: #{scale_estimator_forward.11} parent=5 // pred_region
        %s287 = ssub.s32 %s9, 1
        %s288 = sand.u32 %s43, 1
        %s289 = sand.u32 %s43, 1
        %s290 = smul.addr %s289, 128
        %s291 = scalar_lea.vmem [#allocation3], %s290
        // Predicated region
        $region67: #{scale_estimator_forward.11} parent=65 // pred_check
          %p292 = pneg %p56
        $region68: #{scale_estimator_forward.11} parent=65 // pred_check_branch
          %294 = sbr.rel (%p292) target = $region70
        $region69: #{scale_estimator_forward.11} parent=65 // pred_region
          _
        $region70: #{scale_estimator_forward.11} parent=65 // pred_fallthru
          _
        %s295 = sand.u32 %s43, 1
        %s296 = sand.u32 %s43, 1
        %s297 = smul.addr %s296, 128
        %s298 = scalar_lea.vmem [#allocation3], %s297
        %p299 = pneg %p56
        %p300 = pneg %p53
        %s301 = smul.u32 32, %s21
        %p302 = scmp.lt.s32.totalorder %s301, 287
        %s303 = scalar_select %p302, %s301, 287
        %p304 = scmp.lt.s32.totalorder %s20, 0
        %s305 = scalar_select %p304, %s20, 0
        %s306 = sadd.s32 %s305, %s303
        %s307 = smul.addr %s306, 4
        %s308 = scalar_lea.vmem %s1, %s307
        %p309 = pneg %p84
        %p310 = pneg %p81
        %p311 = scmp.lt.s32.totalorder %s20, 0
        %s312 = scalar_select %p311, %s20, 0
        %s313 = scalar_lea.vmem %s2, %s312
        %p314 = pneg %p110
        %p315 = pneg %p107
        %p316 = pneg %p138
        %p317 = pneg %p135
        %s318 = smul.u32 16, %s19
        %p319 = scmp.lt.s32.totalorder %s318, 15
        %s320 = scalar_select %p319, %s318, 15
        %p321 = scmp.lt.s32.totalorder %s20, 0
        %s322 = scalar_select %p321, %s20, 0
        %s323 = sadd.s32 %s322, %s320
        %s324 = smul.addr %s323, 4
        %s325 = scalar_lea.vmem %s3, %s324
        %s326 = smul.u32 16, %s19
        %s327 = smul.u32 2, %s21
        %s328 = smul.u32 32, %s21
        %p329 = scmp.lt.s32.totalorder %s328, 287
        %s330 = scalar_select %p329, %s328, 287
        %p331 = scmp.lt.s32.totalorder %s20, 0
        %s332 = scalar_select %p331, %s20, 0
        %s333 = sadd.s32 %s332, %s330
        %s334 = smul.addr %s333, 4
        %s335 = scalar_lea.vmem %s1, %s334
        %s336 = smul.u32 32, %s21
        %p337 = scmp.lt.s32.totalorder %s20, 0
        %s338 = scalar_select %p337, %s20, 0
        %s339 = scalar_lea.vmem %s2, %s338
        %s340 = smul.u32 16, %s19
        %p341 = scmp.lt.s32.totalorder %s340, 15
        %s342 = scalar_select %p341, %s340, 15
        %p343 = scmp.lt.s32.totalorder %s20, 0
        %s344 = scalar_select %p343, %s20, 0
        %s345 = sadd.s32 %s344, %s342
        %s346 = smul.addr %s345, 4
        %s347 = scalar_lea.vmem %s3, %s346
        %s348 = smul.u32 16, %s19
        %p349 = scmp.eq.s32.totalorder %s21, 0
        // Predicated region
        $region71: #{scale_estimator_forward.11} parent=65 // pred_check
          %p350 = pneg %p349
        $region72: #{scale_estimator_forward.11} parent=65 // pred_check_branch
          %352 = sbr.rel (%p350) target = $region74
        $region73: #{scale_estimator_forward.11} parent=65 // pred_region
          %353 = vst [vmem:[#allocation2] sm:$0xff] 0.0
          %354 = vst [vmem:[#allocation2 + $0x8] sm:$0xff] 0.0
          %355 = vst [vmem:[#allocation2 + $0x10] sm:$0xff] 0.0
          %356 = vst [vmem:[#allocation2 + $0x18] sm:$0xff] 0.0
          %357 = vst [vmem:[#allocation2 + $0x20] sm:$0xff] 0.0
          %358 = vst [vmem:[#allocation2 + $0x28] sm:$0xff] 0.0
          %359 = vst [vmem:[#allocation2 + $0x30] sm:$0xff] 0.0
          %360 = vst [vmem:[#allocation2 + $0x38] sm:$0xff] 0.0
          %361 = vst [vmem:[#allocation2 + $0x40] sm:$0xff] 0.0
          %362 = vst [vmem:[#allocation2 + $0x48] sm:$0xff] 0.0
          %363 = vst [vmem:[#allocation2 + $0x50] sm:$0xff] 0.0
          %364 = vst [vmem:[#allocation2 + $0x58] sm:$0xff] 0.0
          %365 = vst [vmem:[#allocation2 + $0x60] sm:$0xff] 0.0
          %366 = vst [vmem:[#allocation2 + $0x68] sm:$0xff] 0.0
          %367 = vst [vmem:[#allocation2 + $0x70] sm:$0xff] 0.0
          %368 = vst [vmem:[#allocation2 + $0x78] sm:$0xff] 0.0
        $region74: #{scale_estimator_forward.11} parent=65 // pred_fallthru
          _
        %v369 = vld [vmem:[#allocation2] sm:$0xff]
        %v370 = vld [vmem:[#allocation2 + $0x8] sm:$0xff]
        %v371 = vld [vmem:[#allocation2 + $0x10] sm:$0xff]
        %v372 = vld [vmem:[#allocation2 + $0x18] sm:$0xff]
        %v373 = vld [vmem:[#allocation2 + $0x20] sm:$0xff]
        %v374 = vld [vmem:[#allocation2 + $0x28] sm:$0xff]
        %v375 = vld [vmem:[#allocation2 + $0x30] sm:$0xff]
        %v376 = vld [vmem:[#allocation2 + $0x38] sm:$0xff]
        %v377 = vld [vmem:[#allocation2 + $0x40] sm:$0xff]
        %v378 = vld [vmem:[#allocation2 + $0x48] sm:$0xff]
        %v379 = vld [vmem:[#allocation2 + $0x50] sm:$0xff]
        %v380 = vld [vmem:[#allocation2 + $0x58] sm:$0xff]
        %v381 = vld [vmem:[#allocation2 + $0x60] sm:$0xff]
        %v382 = vld [vmem:[#allocation2 + $0x68] sm:$0xff]
        %v383 = vld [vmem:[#allocation2 + $0x70] sm:$0xff]
        %v384 = vld [vmem:[#allocation2 + $0x78] sm:$0xff]
        %v385 = vld [vmem:[%s291] sm:$0xff]
        %v386 = vld [vmem:[%s291 + $0x8] sm:$0xff]
        %v387 = vld [vmem:[%s291 + $0x10] sm:$0xff]
        %v388 = vld [vmem:[%s291 + $0x18] sm:$0xff]
        %v389 = vld [vmem:[%s291 + $0x20] sm:$0xff]
        %v390 = vld [vmem:[%s291 + $0x28] sm:$0xff]
        %v391 = vld [vmem:[%s291 + $0x30] sm:$0xff]
        %v392 = vld [vmem:[%s291 + $0x38] sm:$0xff]
        %v393 = vld [vmem:[%s291 + $0x40] sm:$0xff]
        %v394 = vld [vmem:[%s291 + $0x48] sm:$0xff]
        %v395 = vld [vmem:[%s291 + $0x50] sm:$0xff]
        %v396 = vld [vmem:[%s291 + $0x58] sm:$0xff]
        %v397 = vld [vmem:[%s291 + $0x60] sm:$0xff]
        %v398 = vld [vmem:[%s291 + $0x68] sm:$0xff]
        %v399 = vld [vmem:[%s291 + $0x70] sm:$0xff]
        %v400 = vld [vmem:[%s291 + $0x78] sm:$0xff]
        %v401 = vld [vmem:[%s335] sm:$0xf]
        %v402 = vld [vmem:[%s335 + $0x4] sm:$0xf]
        %v403 = vld [vmem:[%s335 + $0x8] sm:$0xf]
        %v404 = vld [vmem:[%s335 + $0xc] sm:$0xf]
        %v405 = vld [vmem:[%s335 + $0x10] sm:$0xf]
        %v406 = vld [vmem:[%s335 + $0x14] sm:$0xf]
        %v407 = vld [vmem:[%s335 + $0x18] sm:$0xf]
        %v408 = vld [vmem:[%s335 + $0x1c] sm:$0xf]
        %v409 = vld [vmem:[%s335 + $0x20] sm:$0xf]
        %v410 = vld [vmem:[%s335 + $0x24] sm:$0xf]
        %v411 = vld [vmem:[%s335 + $0x28] sm:$0xf]
        %v412 = vld [vmem:[%s335 + $0x2c] sm:$0xf]
        %v413 = vld [vmem:[%s335 + $0x30] sm:$0xf]
        %v414 = vld [vmem:[%s335 + $0x34] sm:$0xf]
        %v415 = vld [vmem:[%s335 + $0x38] sm:$0xf]
        %v416 = vld [vmem:[%s335 + $0x3c] sm:$0xf]
        %v417 = vld [vmem:[%s335 + $0x40] sm:$0xf]
        %v418 = vld [vmem:[%s335 + $0x44] sm:$0xf]
        %v419 = vld [vmem:[%s335 + $0x48] sm:$0xf]
        %v420 = vld [vmem:[%s335 + $0x4c] sm:$0xf]
        %v421 = vld [vmem:[%s335 + $0x50] sm:$0xf]
        %v422 = vld [vmem:[%s335 + $0x54] sm:$0xf]
        %v423 = vld [vmem:[%s335 + $0x58] sm:$0xf]
        %v424 = vld [vmem:[%s335 + $0x5c] sm:$0xf]
        %v425 = vld [vmem:[%s335 + $0x60] sm:$0xf]
        %v426 = vld [vmem:[%s335 + $0x64] sm:$0xf]
        %v427 = vld [vmem:[%s335 + $0x68] sm:$0xf]
        %v428 = vld [vmem:[%s335 + $0x6c] sm:$0xf]
        %v429 = vld [vmem:[%s335 + $0x70] sm:$0xf]
        %v430 = vld [vmem:[%s335 + $0x74] sm:$0xf]
        %v431 = vld [vmem:[%s335 + $0x78] sm:$0xf]
        %v432 = vld [vmem:[%s335 + $0x7c] sm:$0xf]
        %v449 = vunpack.c.l.b16 %v385
        %v450 = vunpack.c.h.b16 %v385
        %v451 = vunpack.c.l.b16 %v386
        %v452 = vunpack.c.h.b16 %v386
        %v453 = vunpack.c.l.b16 %v387
        %v454 = vunpack.c.h.b16 %v387
        %v455 = vunpack.c.l.b16 %v388
        %v456 = vunpack.c.h.b16 %v388
        %v457 = vunpack.c.l.b16 %v389
        %v458 = vunpack.c.h.b16 %v389
        %v459 = vunpack.c.l.b16 %v390
        %v460 = vunpack.c.h.b16 %v390
        %v461 = vunpack.c.l.b16 %v391
        %v462 = vunpack.c.h.b16 %v391
        %v463 = vunpack.c.l.b16 %v392
        %v464 = vunpack.c.h.b16 %v392
        %v465 = vunpack.c.l.b16 %v393
        %v466 = vunpack.c.h.b16 %v393
        %v467 = vunpack.c.l.b16 %v394
        %v468 = vunpack.c.h.b16 %v394
        %v469 = vunpack.c.l.b16 %v395
        %v470 = vunpack.c.h.b16 %v395
        %v471 = vunpack.c.l.b16 %v396
        %v472 = vunpack.c.h.b16 %v396
        %v473 = vunpack.c.l.b16 %v397
        %v474 = vunpack.c.h.b16 %v397
        %v475 = vunpack.c.l.b16 %v398
        %v476 = vunpack.c.h.b16 %v398
        %v477 = vunpack.c.l.b16 %v399
        %v478 = vunpack.c.h.b16 %v399
        %v479 = vunpack.c.l.b16 %v400
        %v480 = vunpack.c.h.b16 %v400
        %v481 = vpack.c.b16 %v451, %v449
        %v482 = vpack.c.b16 %v452, %v450
        %v483 = vpack.c.b16 %v455, %v453
        %v484 = vpack.c.b16 %v456, %v454
        %v485 = vpack.c.b16 %v459, %v457
        %v486 = vpack.c.b16 %v460, %v458
        %v487 = vpack.c.b16 %v463, %v461
        %v488 = vpack.c.b16 %v464, %v462
        %v489 = vpack.c.b16 %v467, %v465
        %v490 = vpack.c.b16 %v468, %v466
        %v491 = vpack.c.b16 %v471, %v469
        %v492 = vpack.c.b16 %v472, %v470
        %v493 = vpack.c.b16 %v475, %v473
        %v494 = vpack.c.b16 %v476, %v474
        %v495 = vpack.c.b16 %v479, %v477
        %v496 = vpack.c.b16 %v480, %v478
        %v545 = vunpack.c.l.b16 %v401
        %v546 = vunpack.c.l.b16 %v402
        %v547 = vunpack.c.l.b16 %v403
        %v548 = vunpack.c.l.b16 %v404
        %v549 = vunpack.c.l.b16 %v405
        %v550 = vunpack.c.l.b16 %v406
        %v551 = vunpack.c.l.b16 %v407
        %v552 = vunpack.c.l.b16 %v408
        %v553 = vunpack.c.l.b16 %v409
        %v554 = vunpack.c.l.b16 %v410
        %v555 = vunpack.c.l.b16 %v411
        %v556 = vunpack.c.l.b16 %v412
        %v557 = vunpack.c.l.b16 %v413
        %v558 = vunpack.c.l.b16 %v414
        %v559 = vunpack.c.l.b16 %v415
        %v560 = vunpack.c.l.b16 %v416
        %v561 = vunpack.c.l.b16 %v417
        %v562 = vunpack.c.l.b16 %v418
        %v563 = vunpack.c.l.b16 %v419
        %v564 = vunpack.c.l.b16 %v420
        %v565 = vunpack.c.l.b16 %v421
        %v566 = vunpack.c.l.b16 %v422
        %v567 = vunpack.c.l.b16 %v423
        %v568 = vunpack.c.l.b16 %v424
        %v569 = vunpack.c.l.b16 %v425
        %v570 = vunpack.c.l.b16 %v426
        %v571 = vunpack.c.l.b16 %v427
        %v572 = vunpack.c.l.b16 %v428
        %v573 = vunpack.c.l.b16 %v429
        %v574 = vunpack.c.l.b16 %v430
        %v575 = vunpack.c.l.b16 %v431
        %v576 = vunpack.c.l.b16 %v432
        %v577 = vpack.c.b16 %v546, %v545
        %v578 = vpack.c.b16 %v548, %v547
        %v579 = vpack.c.b16 %v550, %v549
        %v580 = vpack.c.b16 %v552, %v551
        %v581 = vpack.c.b16 %v554, %v553
        %v582 = vpack.c.b16 %v556, %v555
        %v583 = vpack.c.b16 %v558, %v557
        %v584 = vpack.c.b16 %v560, %v559
        %v585 = vpack.c.b16 %v562, %v561
        %v586 = vpack.c.b16 %v564, %v563
        %v587 = vpack.c.b16 %v566, %v565
        %v588 = vpack.c.b16 %v568, %v567
        %v589 = vpack.c.b16 %v570, %v569
        %v590 = vpack.c.b16 %v572, %v571
        %v591 = vpack.c.b16 %v574, %v573
        %v592 = vpack.c.b16 %v576, %v575
        %609 = vmatpush.bf16.msra.mxu0 %v584
        %610 = vmatpush.bf16.msra.mxu0 %v583
        %611 = vmatpush.bf16.msra.mxu0 %v582
        %612 = vmatpush.bf16.msra.mxu0 %v581
        %613 = vmatpush.bf16.msra.mxu0 %v580
        %614 = vmatpush.bf16.msra.mxu0 %v579
        %615 = vmatpush.bf16.msra.mxu0 %v578
        %616 = vmatpush.bf16.msra.mxu0 %v577
        %617 = vmatmul.bf16.gmra.mxu0 %v481
        %v618 = vpop.f32.mrf.mxu0
        %v619 = vadd.f32 0.0, %v618
        %v620 = vpop.f32.mrf.mxu0
        %v621 = vadd.f32 0.0, %v620
        %622 = vmatmul.bf16.gmra.mxu0 %v483
        %v623 = vpop.f32.mrf.mxu0
        %v624 = vadd.f32 0.0, %v623
        %v625 = vpop.f32.mrf.mxu0
        %v626 = vadd.f32 0.0, %v625
        %627 = vmatmul.bf16.gmra.mxu0 %v485
        %v628 = vpop.f32.mrf.mxu0
        %v629 = vadd.f32 0.0, %v628
        %v630 = vpop.f32.mrf.mxu0
        %v631 = vadd.f32 0.0, %v630
        %632 = vmatmul.bf16.gmra.mxu0 %v487
        %v633 = vpop.f32.mrf.mxu0
        %v634 = vadd.f32 0.0, %v633
        %v635 = vpop.f32.mrf.mxu0
        %v636 = vadd.f32 0.0, %v635
        %637 = vmatmul.bf16.gmra.mxu0 %v489
        %v638 = vpop.f32.mrf.mxu0
        %v639 = vadd.f32 0.0, %v638
        %v640 = vpop.f32.mrf.mxu0
        %v641 = vadd.f32 0.0, %v640
        %642 = vmatmul.bf16.gmra.mxu0 %v491
        %v643 = vpop.f32.mrf.mxu0
        %v644 = vadd.f32 0.0, %v643
        %v645 = vpop.f32.mrf.mxu0
        %v646 = vadd.f32 0.0, %v645
        %647 = vmatmul.bf16.gmra.mxu0 %v493
        %v648 = vpop.f32.mrf.mxu0
        %v649 = vadd.f32 0.0, %v648
        %v650 = vpop.f32.mrf.mxu0
        %v651 = vadd.f32 0.0, %v650
        %652 = vmatmul.bf16.gmra.mxu0 %v495
        %v653 = vpop.f32.mrf.mxu0
        %v654 = vadd.f32 0.0, %v653
        %v655 = vpop.f32.mrf.mxu0
        %v656 = vadd.f32 0.0, %v655
        %657 = vdwg.mxu0
        %658 = vmatpush.bf16.msra.mxu0 %v592
        %659 = vmatpush.bf16.msra.mxu0 %v591
        %660 = vmatpush.bf16.msra.mxu0 %v590
        %661 = vmatpush.bf16.msra.mxu0 %v589
        %662 = vmatpush.bf16.msra.mxu0 %v588
        %663 = vmatpush.bf16.msra.mxu0 %v587
        %664 = vmatpush.bf16.msra.mxu0 %v586
        %665 = vmatpush.bf16.msra.mxu0 %v585
        %666 = vmatmul.bf16.gmra.mxu0 %v482
        %v667 = vpop.f32.mrf.mxu0
        %v668 = vadd.f32 %v619, %v667
        %v669 = vpop.f32.mrf.mxu0
        %v670 = vadd.f32 %v621, %v669
        %671 = vmatmul.bf16.gmra.mxu0 %v484
        %v672 = vpop.f32.mrf.mxu0
        %v673 = vadd.f32 %v624, %v672
        %v674 = vpop.f32.mrf.mxu0
        %v675 = vadd.f32 %v626, %v674
        %676 = vmatmul.bf16.gmra.mxu0 %v486
        %v677 = vpop.f32.mrf.mxu0
        %v678 = vadd.f32 %v629, %v677
        %v679 = vpop.f32.mrf.mxu0
        %v680 = vadd.f32 %v631, %v679
        %681 = vmatmul.bf16.gmra.mxu0 %v488
        %v682 = vpop.f32.mrf.mxu0
        %v683 = vadd.f32 %v634, %v682
        %v684 = vpop.f32.mrf.mxu0
        %v685 = vadd.f32 %v636, %v684
        %686 = vmatmul.bf16.gmra.mxu0 %v490
        %v687 = vpop.f32.mrf.mxu0
        %v688 = vadd.f32 %v639, %v687
        %v689 = vpop.f32.mrf.mxu0
        %v690 = vadd.f32 %v641, %v689
        %691 = vmatmul.bf16.gmra.mxu0 %v492
        %v692 = vpop.f32.mrf.mxu0
        %v693 = vadd.f32 %v644, %v692
        %v694 = vpop.f32.mrf.mxu0
        %v695 = vadd.f32 %v646, %v694
        %696 = vmatmul.bf16.gmra.mxu0 %v494
        %v697 = vpop.f32.mrf.mxu0
        %v698 = vadd.f32 %v649, %v697
        %v699 = vpop.f32.mrf.mxu0
        %v700 = vadd.f32 %v651, %v699
        %701 = vmatmul.bf16.gmra.mxu0 %v496
        %v702 = vpop.f32.mrf.mxu0
        %v703 = vadd.f32 %v654, %v702
        %v704 = vpop.f32.mrf.mxu0
        %v705 = vadd.f32 %v656, %v704
        %706 = vdwg.mxu0
        %v707 = vadd.f32 %v369, %v668
        %v708 = vadd.f32 %v370, %v670
        %v709 = vadd.f32 %v371, %v673
        %v710 = vadd.f32 %v372, %v675
        %v711 = vadd.f32 %v373, %v678
        %v712 = vadd.f32 %v374, %v680
        %v713 = vadd.f32 %v375, %v683
        %v714 = vadd.f32 %v376, %v685
        %v715 = vadd.f32 %v377, %v688
        %v716 = vadd.f32 %v378, %v690
        %v717 = vadd.f32 %v379, %v693
        %v718 = vadd.f32 %v380, %v695
        %v719 = vadd.f32 %v381, %v698
        %v720 = vadd.f32 %v382, %v700
        %v721 = vadd.f32 %v383, %v703
        %v722 = vadd.f32 %v384, %v705
        %723 = vst [vmem:[#allocation2] sm:$0xff] %v707
        %724 = vst [vmem:[#allocation2 + $0x8] sm:$0xff] %v708
        %725 = vst [vmem:[#allocation2 + $0x10] sm:$0xff] %v709
        %726 = vst [vmem:[#allocation2 + $0x18] sm:$0xff] %v710
        %727 = vst [vmem:[#allocation2 + $0x20] sm:$0xff] %v711
        %728 = vst [vmem:[#allocation2 + $0x28] sm:$0xff] %v712
        %729 = vst [vmem:[#allocation2 + $0x30] sm:$0xff] %v713
        %730 = vst [vmem:[#allocation2 + $0x38] sm:$0xff] %v714
        %731 = vst [vmem:[#allocation2 + $0x40] sm:$0xff] %v715
        %732 = vst [vmem:[#allocation2 + $0x48] sm:$0xff] %v716
        %733 = vst [vmem:[#allocation2 + $0x50] sm:$0xff] %v717
        %734 = vst [vmem:[#allocation2 + $0x58] sm:$0xff] %v718
        %735 = vst [vmem:[#allocation2 + $0x60] sm:$0xff] %v719
        %736 = vst [vmem:[#allocation2 + $0x68] sm:$0xff] %v720
        %737 = vst [vmem:[#allocation2 + $0x70] sm:$0xff] %v721
        %738 = vst [vmem:[#allocation2 + $0x78] sm:$0xff] %v722
        %p739 = scmp.eq.s32.totalorder %s21, 8
        // Predicated region
        $region75: #{scale_estimator_forward.11} parent=65 // pred_check
          %p740 = pneg %p739
        $region76: #{scale_estimator_forward.11} parent=65 // pred_check_branch
          %742 = sbr.rel (%p740) target = $region78
        $region77: #{scale_estimator_forward.11} parent=65 // pred_region
          %v743 = vld [vmem:[#allocation2] sm:$0xff]
          %v744 = vld [vmem:[#allocation2 + $0x8] sm:$0xff]
          %v745 = vld [vmem:[#allocation2 + $0x10] sm:$0xff]
          %v746 = vld [vmem:[#allocation2 + $0x18] sm:$0xff]
          %v747 = vld [vmem:[#allocation2 + $0x20] sm:$0xff]
          %v748 = vld [vmem:[#allocation2 + $0x28] sm:$0xff]
          %v749 = vld [vmem:[#allocation2 + $0x30] sm:$0xff]
          %v750 = vld [vmem:[#allocation2 + $0x38] sm:$0xff]
          %v751 = vld [vmem:[#allocation2 + $0x40] sm:$0xff]
          %v752 = vld [vmem:[#allocation2 + $0x48] sm:$0xff]
          %v753 = vld [vmem:[#allocation2 + $0x50] sm:$0xff]
          %v754 = vld [vmem:[#allocation2 + $0x58] sm:$0xff]
          %v755 = vld [vmem:[#allocation2 + $0x60] sm:$0xff]
          %v756 = vld [vmem:[#allocation2 + $0x68] sm:$0xff]
          %v757 = vld [vmem:[#allocation2 + $0x70] sm:$0xff]
          %v758 = vld [vmem:[#allocation2 + $0x78] sm:$0xff]
          %v759 = vld [vmem:[%s339] sm:$0x1]
          %v761 = vperm.slane %v759, 0
          %v763 = vadd.f32 %v743, %v761
          %v764 = vadd.f32 %v744, %v761
          %v765 = vadd.f32 %v745, %v761
          %v766 = vadd.f32 %v746, %v761
          %v767 = vadd.f32 %v747, %v761
          %v768 = vadd.f32 %v748, %v761
          %v769 = vadd.f32 %v749, %v761
          %v770 = vadd.f32 %v750, %v761
          %v771 = vadd.f32 %v751, %v761
          %v772 = vadd.f32 %v752, %v761
          %v773 = vadd.f32 %v753, %v761
          %v774 = vadd.f32 %v754, %v761
          %v775 = vadd.f32 %v755, %v761
          %v776 = vadd.f32 %v756, %v761
          %v777 = vadd.f32 %v757, %v761
          %v778 = vadd.f32 %v758, %v761
          %v779 = vmax.f32 %v763, 0.0
          %v780 = vmax.f32 %v764, 0.0
          %v781 = vmax.f32 %v765, 0.0
          %v782 = vmax.f32 %v766, 0.0
          %v783 = vmax.f32 %v767, 0.0
          %v784 = vmax.f32 %v768, 0.0
          %v785 = vmax.f32 %v769, 0.0
          %v786 = vmax.f32 %v770, 0.0
          %v787 = vmax.f32 %v771, 0.0
          %v788 = vmax.f32 %v772, 0.0
          %v789 = vmax.f32 %v773, 0.0
          %v790 = vmax.f32 %v774, 0.0
          %v791 = vmax.f32 %v775, 0.0
          %v792 = vmax.f32 %v776, 0.0
          %v793 = vmax.f32 %v777, 0.0
          %v794 = vmax.f32 %v778, 0.0
          %v795 = vpack.c.bf16 %v779, %v779
          %v796 = vpack.c.bf16 %v780, %v780
          %v797 = vpack.c.bf16 %v781, %v781
          %v798 = vpack.c.bf16 %v782, %v782
          %v799 = vpack.c.bf16 %v783, %v783
          %v800 = vpack.c.bf16 %v784, %v784
          %v801 = vpack.c.bf16 %v785, %v785
          %v802 = vpack.c.bf16 %v786, %v786
          %v803 = vpack.c.bf16 %v787, %v787
          %v804 = vpack.c.bf16 %v788, %v788
          %v805 = vpack.c.bf16 %v789, %v789
          %v806 = vpack.c.bf16 %v790, %v790
          %v807 = vpack.c.bf16 %v791, %v791
          %v808 = vpack.c.bf16 %v792, %v792
          %v809 = vpack.c.bf16 %v793, %v793
          %v810 = vpack.c.bf16 %v794, %v794
          %811 = vst [vmem:[%s347] sm:$0xf] %v795
          %812 = vst [vmem:[%s347 + $0x4] sm:$0xf] %v796
          %813 = vst [vmem:[%s347 + $0x8] sm:$0xf] %v797
          %814 = vst [vmem:[%s347 + $0xc] sm:$0xf] %v798
          %815 = vst [vmem:[%s347 + $0x10] sm:$0xf] %v799
          %816 = vst [vmem:[%s347 + $0x14] sm:$0xf] %v800
          %817 = vst [vmem:[%s347 + $0x18] sm:$0xf] %v801
          %818 = vst [vmem:[%s347 + $0x1c] sm:$0xf] %v802
          %819 = vst [vmem:[%s347 + $0x20] sm:$0xf] %v803
          %820 = vst [vmem:[%s347 + $0x24] sm:$0xf] %v804
          %821 = vst [vmem:[%s347 + $0x28] sm:$0xf] %v805
          %822 = vst [vmem:[%s347 + $0x2c] sm:$0xf] %v806
          %823 = vst [vmem:[%s347 + $0x30] sm:$0xf] %v807
          %824 = vst [vmem:[%s347 + $0x34] sm:$0xf] %v808
          %825 = vst [vmem:[%s347 + $0x38] sm:$0xf] %v809
          %826 = vst [vmem:[%s347 + $0x3c] sm:$0xf] %v810
        $region78: #{scale_estimator_forward.11} parent=65 // pred_fallthru
          _
        %s827 = smul.u32 16, %s19
        %p828 = scmp.lt.s32.totalorder %s827, 15
        %s829 = scalar_select %p828, %s827, 15
        %p830 = scmp.lt.s32.totalorder %s20, 0
        %s831 = scalar_select %p830, %s20, 0
        %s832 = sadd.s32 %s831, %s829
        %s833 = smul.addr %s832, 4
        %s834 = scalar_lea.vmem %s3, %s833
        // Predicated region
        $region79: #{scale_estimator_forward.11} parent=65 // pred_check
          %p835 = pneg %p135
        $region80: #{scale_estimator_forward.11} parent=65 // pred_check_branch
          %837 = sbr.rel (%p835) target = $region82
        $region81: #{scale_estimator_forward.11} parent=65 // pred_region
          %s838 = smul.u32 16, %s19
        $region82: #{scale_estimator_forward.11} parent=65 // pred_fallthru
          _
        // Predicated region
        $region83: #{scale_estimator_forward.11} parent=65 // pred_check
          %p839 = pneg %p135
        $region84: #{scale_estimator_forward.11} parent=65 // pred_check_branch
          %841 = sbr.rel (%p839) target = $region86
        $region85: #{scale_estimator_forward.11} parent=65 // pred_region
          %s842 = smul.u32 16, %s19
          %p843 = scmp.lt.s32.totalorder %s842, 15
          %s844 = scalar_select %p843, %s842, 15
          %p845 = scmp.lt.s32.totalorder %s20, 0
          %s846 = scalar_select %p845, %s20, 0
          %s847 = sadd.s32 %s846, %s844
          %s848 = smul.addr %s847, 4
          %s849 = scalar_lea.vmem %s3, %s848
        $region86: #{scale_estimator_forward.11} parent=65 // pred_fallthru
          _
      $region66: #{scale_estimator_forward.11} parent=5 // pred_fallthru
        _
      %p850 = scmp.le.s32.totalorder 2, %s9
      // Predicated region
      $region87: #{scale_estimator_forward.11} parent=5 // pred_check
        %p851 = pneg %p850
      $region88: #{scale_estimator_forward.11} parent=5 // pred_check_branch
        %853 = sbr.rel (%p851) target = $region90
      $region89: #{scale_estimator_forward.11} parent=5 // pred_region
        %s854 = ssub.s32 %s9, 2
      $region90: #{scale_estimator_forward.11} parent=5 // pred_fallthru
        _
    $region6: #{scale_estimator_forward.11} parent=1 // loop_footer
      %s13 = sadd.s32 1, %s9
    $region7: #{scale_estimator_forward.11} parent=1 // loop_footer_branch
      %8 = sbr.rel target = $region3
    $region8: #{scale_estimator_forward.11} parent=1 // loop_exit
      _

// kernel: scale_estimator_forward.12
$region0: #{scale_estimator_forward.12}
  #allocation0 [shape = 'u32[]', space=smem, size = 0x4, offset = 0x4, fixed_abs, tag = 'smem constant byte address 0x4 - core index']
  #allocation1 [shape = 'u32[72,128]{1,0:T(1,128)}', space=vmem, size = 0x9000, scoped, tag = 'internal scratch']
  #allocation2 [shape = 'f32[32,256]{1,0:T(8,128)}', space=vmem, size = 0x8000, scoped, tag = 'scratch operand']
  %s0 = inlined_call_operand.vmem [shape: bf16[32,1152], index: 0, kind: input, shape index: {}]
  %s1 = inlined_call_operand.vmem [shape: bf16[1152,256], index: 1, kind: input, shape index: {}]
  %s2 = inlined_call_operand.vmem [shape: f32[1,256], index: 2, kind: input, shape index: {}]
  %s3 = inlined_call_operand.vmem [shape: bf16[32,256], index: 3, kind: output, shape index: {}]
  %s4 = sld [smem:[#allocation0]]
  $region94: #{scale_estimator_forward.12} parent=0
    _
  %s6 = ssub.s32 1, %s4
  %s7 = scalar_select 0, %s6, %s4
  $region1: #{scale_estimator_forward.12} parent=0
    #allocation3 [shape = 'u8[16384]{0}', space=vmem, size = 0x4000, scoped, tag = 'input window, operand 0']
    loop: start=0, step=1, limit=11
    $region2: #{scale_estimator_forward.12} parent=1 // loop_pre_header
      _
    $region3: #{scale_estimator_forward.12} parent=1 // loop_header
      %s9 = sphi 0, %s13
      %p10 = scmp.ge.s32.totalorder %s9, 11
      %s16 = sphi 0, %s35
      %s17 = sphi 0, %s31
      %s18 = sphi 0, %s27
      %s19 = sphi 0, %s16
      %s20 = sphi 0, %s17
      %s21 = sphi 0, %s18
      %s22 = sphi 0, %s19
      %s23 = sphi 0, %s20
      %s24 = sphi 0, %s21
      %s40 = sphi 0, %s42
      %s43 = sphi 0, %s40
      %s44 = sphi 0, %s43
      %s60 = sphi 0, %s44
      %s68 = sphi 0, %s70
      %s71 = sphi 0, %s68
      %s72 = sphi 0, %s71
      %s88 = sphi 0, %s72
      %s94 = sphi 0, %s96
      %s97 = sphi 0, %s94
      %s98 = sphi 0, %s97
      %s114 = sphi 0, %s98
      %s122 = sphi 0, %s124
      %s125 = sphi 0, %s122
      %s126 = sphi 0, %s125
      %s142 = sphi 0, %s126
    $region4: #{scale_estimator_forward.12} parent=1 // loop_header_branch
      %12 = sbr.rel (%p10) target = $region8
    $region5: #{scale_estimator_forward.12} parent=1 // loop_body
      %s14 = ssub.s32 %s9, 1
      %s15 = ssub.s32 %s9, 2
      %s25 = sadd.s32 1, %s18
      %p26 = scmp.ge.s32.totalorder %s25, 9
      %s27 = scalar_select %p26, 0, %s25
      %s28 = sadd.s32 1, %s17
      %s29 = scalar_select %p26, %s28, %s17
      %p30 = scmp.ge.s32.totalorder %s29, 1
      %s31 = scalar_select %p30, 0, %s29
      %s32 = sadd.s32 1, %s16
      %s33 = scalar_select %p30, %s32, %s16
      %p34 = scmp.ge.s32.totalorder %s33, 1
      %s35 = scalar_select %p34, 0, %s33
      %s36 = ssub.s32 %s16, %s35
      %s37 = ssub.s32 %s18, %s27
      %s38 = sor.u32 %s36, %s37
      %p39 = scmp.eq.s32.totalorder %s38, 0
      %s41 = sadd.s32 %s40, 1
      %s42 = scalar_select %p39, %s40, %s41
      %p45 = pneg %p39
      %p46 = scmp.eq.s32.totalorder %s9, 8
      %p47 = por %p45, %p46
      %p48 = scmp.ne.s32.totalorder %s40, %s43
      %p49 = scmp.eq.s32.totalorder %s9, 0
      %p50 = por %p48, %p49
      %p51 = scmp.ne.s32.totalorder %s40, %s43
      %p52 = scmp.eq.s32.totalorder %s14, 8
      %p53 = por %p51, %p52
      %p54 = scmp.ne.s32.totalorder %s43, %s44
      %p55 = scmp.eq.s32.totalorder %s14, 0
      %p56 = por %p54, %p55
      %p57 = scmp.ne.s32.totalorder %s43, %s44
      %p58 = scmp.eq.s32.totalorder %s15, 8
      %p59 = por %p57, %p58
      %p61 = scmp.ne.s32.totalorder %s44, %s60
      %p62 = scmp.eq.s32.totalorder %s15, 0
      %p63 = por %p61, %p62
      %s64 = ssub.s32 %s18, %s27
      %s65 = ssub.s32 %s17, %s31
      %s66 = sor.u32 %s64, %s65
      %p67 = scmp.eq.s32.totalorder %s66, 0
      %s69 = sadd.s32 %s68, 1
      %s70 = scalar_select %p67, %s68, %s69
      %p73 = pneg %p67
      %p74 = scmp.eq.s32.totalorder %s9, 8
      %p75 = por %p73, %p74
      %p76 = scmp.ne.s32.totalorder %s68, %s71
      %p77 = scmp.eq.s32.totalorder %s9, 0
      %p78 = por %p76, %p77
      %p79 = scmp.ne.s32.totalorder %s68, %s71
      %p80 = scmp.eq.s32.totalorder %s14, 8
      %p81 = por %p79, %p80
      %p82 = scmp.ne.s32.totalorder %s71, %s72
      %p83 = scmp.eq.s32.totalorder %s14, 0
      %p84 = por %p82, %p83
      %p85 = scmp.ne.s32.totalorder %s71, %s72
      %p86 = scmp.eq.s32.totalorder %s15, 8
      %p87 = por %p85, %p86
      %p89 = scmp.ne.s32.totalorder %s72, %s88
      %p90 = scmp.eq.s32.totalorder %s15, 0
      %p91 = por %p89, %p90
      %s92 = ssub.s32 %s17, %s31
      %p93 = scmp.eq.s32.totalorder %s92, 0
      %s95 = sadd.s32 %s94, 1
      %s96 = scalar_select %p93, %s94, %s95
      %p99 = pneg %p93
      %p100 = scmp.eq.s32.totalorder %s9, 8
      %p101 = por %p99, %p100
      %p102 = scmp.ne.s32.totalorder %s94, %s97
      %p103 = scmp.eq.s32.totalorder %s9, 0
      %p104 = por %p102, %p103
      %p105 = scmp.ne.s32.totalorder %s94, %s97
      %p106 = scmp.eq.s32.totalorder %s14, 8
      %p107 = por %p105, %p106
      %p108 = scmp.ne.s32.totalorder %s97, %s98
      %p109 = scmp.eq.s32.totalorder %s14, 0
      %p110 = por %p108, %p109
      %p111 = scmp.ne.s32.totalorder %s97, %s98
      %p112 = scmp.eq.s32.totalorder %s15, 8
      %p113 = por %p111, %p112
      %p115 = scmp.ne.s32.totalorder %s98, %s114
      %p116 = scmp.eq.s32.totalorder %s15, 0
      %p117 = por %p115, %p116
      %s118 = ssub.s32 %s16, %s35
      %s119 = ssub.s32 %s17, %s31
      %s120 = sor.u32 %s118, %s119
      %p121 = scmp.eq.s32.totalorder %s120, 0
      %s123 = sadd.s32 %s122, 1
      %s124 = scalar_select %p121, %s122, %s123
      %p127 = pneg %p121
      %p128 = scmp.eq.s32.totalorder %s9, 8
      %p129 = por %p127, %p128
      %p130 = scmp.ne.s32.totalorder %s122, %s125
      %p131 = scmp.eq.s32.totalorder %s9, 0
      %p132 = por %p130, %p131
      %p133 = scmp.ne.s32.totalorder %s122, %s125
      %p134 = scmp.eq.s32.totalorder %s14, 8
      %p135 = por %p133, %p134
      %p136 = scmp.ne.s32.totalorder %s125, %s126
      %p137 = scmp.eq.s32.totalorder %s14, 0
      %p138 = por %p136, %p137
      %p139 = scmp.ne.s32.totalorder %s125, %s126
      %p140 = scmp.eq.s32.totalorder %s15, 8
      %p141 = por %p139, %p140
      %p143 = scmp.ne.s32.totalorder %s126, %s142
      %p144 = scmp.eq.s32.totalorder %s15, 0
      %p145 = por %p143, %p144
      %p146 = scmp.le.s32.totalorder 1, %s9
      %p147 = scmp.lt.s32.totalorder %s9, 10
      %p148 = pnand %p146, %p147
      %p149 = pneg %p148
      // Predicated region
      $region9: #{scale_estimator_forward.12} parent=5 // pred_check
        _
      $region10: #{scale_estimator_forward.12} parent=5 // pred_check_branch
        %151 = sbr.rel (%p148) target = $region12
      $region11: #{scale_estimator_forward.12} parent=5 // pred_region
        %s152 = ssub.s32 %s9, 1
        // Predicated region
        $region13: #{scale_estimator_forward.12} parent=11 // pred_check
          %p153 = pneg %p110
        $region14: #{scale_estimator_forward.12} parent=11 // pred_check_branch
          %155 = sbr.rel (%p153) target = $region16
        $region15: #{scale_estimator_forward.12} parent=11 // pred_region
          %s156 = smul.u32 2, %s20
          %p157 = scmp.lt.s32.totalorder %s156, 1
          %s158 = scalar_select %p157, %s156, 1
          %s159 = scalar_lea.vmem %s2, %s158
          %s160 = smul.u32 2, %s20
        $region16: #{scale_estimator_forward.12} parent=11 // pred_fallthru
          _
      $region12: #{scale_estimator_forward.12} parent=5 // pred_fallthru
        _
      %p161 = scmp.lt.s32.totalorder %s9, 9
      // Predicated region
      $region17: #{scale_estimator_forward.12} parent=5 // pred_check
        %p162 = pneg %p161
      $region18: #{scale_estimator_forward.12} parent=5 // pred_check_branch
        %164 = sbr.rel (%p162) target = $region20
      $region19: #{scale_estimator_forward.12} parent=5 // pred_region
        // Predicated region
        $region21: #{scale_estimator_forward.12} parent=19 // pred_check
          %p165 = pneg %p50
        $region22: #{scale_estimator_forward.12} parent=19 // pred_check_branch
          %167 = sbr.rel (%p165) target = $region24
        $region23: #{scale_estimator_forward.12} parent=19 // pred_region
          %s168 = sand.u32 %s40, 1
          %s169 = sand.u32 %s40, 1
          %s170 = smul.addr %s169, 16
          %s171 = scalar_lea.vmem [#allocation3], %s170
          %s172 = smul.u32 4, %s16
          %s173 = smul.addr %s172, 9
          %s174 = sadd.s32 %s18, %s173
          %s175 = smul.addr %s174, 4
          %s176 = scalar_lea.vmem %s0, %s175
          // Predicated region
          $region25: #{scale_estimator_forward.12} parent=23 // pred_check
            _
          $region26: #{scale_estimator_forward.12} parent=23 // pred_check_branch
            %178 = sbr.rel (0) target = $region28
          $region27: #{scale_estimator_forward.12} parent=23 // pred_region
            // Predicated region
            $region29: #{scale_estimator_forward.12} parent=27 // pred_check
              _
            $region30: #{scale_estimator_forward.12} parent=27 // pred_check_branch
              %180 = sbr.rel target = $region32
            $region31: #{scale_estimator_forward.12} parent=27 // pred_region
              // Predicated region
              $region44: #{scale_estimator_forward.12} parent=31 // pred_check
                _
              $region45: #{scale_estimator_forward.12} parent=31 // pred_check_branch
                %202 = sbr.rel (0) target = $region47
              $region46: #{scale_estimator_forward.12} parent=31 // pred_region
                loop: start=0, step=1, limit=1
                $region48: #{scale_estimator_forward.12} parent=46 // loop_pre_header
                  _
                $region49: #{scale_estimator_forward.12} parent=46 // loop_header
                  %s204 = sphi 0, %s208
                  %p205 = scmp.ge.s32.totalorder %s204, 1
                  %s209 = sphi %s176, %s176
                  %s210 = sphi %s171, %s171
                $region50: #{scale_estimator_forward.12} parent=46 // loop_header_branch
                  %207 = sbr.rel (%p205) target = $region54
                $region51: #{scale_estimator_forward.12} parent=46 // loop_body
                  _
                $region52: #{scale_estimator_forward.12} parent=46 // loop_footer
                  %s208 = sadd.s32 1, %s204
                $region53: #{scale_estimator_forward.12} parent=46 // loop_footer_branch
                  %203 = sbr.rel target = $region49
                $region54: #{scale_estimator_forward.12} parent=46 // loop_exit
                  _
                %s212 = ssub.s32 16, 1
                loop: start=0, step=1, limit=1
                $region55: #{scale_estimator_forward.12} parent=46 // loop_pre_header
                  _
                $region56: #{scale_estimator_forward.12} parent=46 // loop_header
                  %s214 = sphi 0, %s218
                  %p215 = scmp.ge.s32.totalorder %s214, 1
                  %s219 = sphi %s176, %s176
                  %s220 = sphi %s171, %s171
                $region57: #{scale_estimator_forward.12} parent=46 // loop_header_branch
                  %217 = sbr.rel (%p215) target = $region61
                $region58: #{scale_estimator_forward.12} parent=46 // loop_body
                  %v221 = vld [vmem:[%s219] sm:%s212]
                  %222 = vst [vmem:[%s220] sm:%s212] %v221
                  %v223 = vld [vmem:[%s219 + $0x24] sm:%s212]
                  %224 = vst [vmem:[%s220 + $0x4] sm:%s212] %v223
                  %v225 = vld [vmem:[%s219 + $0x48] sm:%s212]
                  %226 = vst [vmem:[%s220 + $0x8] sm:%s212] %v225
                  %v227 = vld [vmem:[%s219 + $0x6c] sm:%s212]
                  %228 = vst [vmem:[%s220 + $0xc] sm:%s212] %v227
                $region59: #{scale_estimator_forward.12} parent=46 // loop_footer
                  %s218 = sadd.s32 1, %s214
                $region60: #{scale_estimator_forward.12} parent=46 // loop_footer_branch
                  %213 = sbr.rel target = $region56
                $region61: #{scale_estimator_forward.12} parent=46 // loop_exit
                  _
              $region47: #{scale_estimator_forward.12} parent=31 // pred_fallthru
                _
            $region32: #{scale_estimator_forward.12} parent=27 // pred_fallthru
              _
            // Predicated region
            $region33: #{scale_estimator_forward.12} parent=27 // pred_check
              _
            $region34: #{scale_estimator_forward.12} parent=27 // pred_check_branch
              %182 = sbr.rel (0) target = $region36
            $region35: #{scale_estimator_forward.12} parent=27 // pred_region
              %s184 = ssub.s32 16, 1
              loop: start=0, step=1, limit=1
              $region37: #{scale_estimator_forward.12} parent=35 // loop_pre_header
                _
              $region38: #{scale_estimator_forward.12} parent=35 // loop_header
                %s186 = sphi 0, %s190
                %p187 = scmp.ge.s32.totalorder %s186, 1
                %s191 = sphi %s176, %s176
                %s192 = sphi %s171, %s171
              $region39: #{scale_estimator_forward.12} parent=35 // loop_header_branch
                %189 = sbr.rel (%p187) target = $region43
              $region40: #{scale_estimator_forward.12} parent=35 // loop_body
                %v193 = vld [vmem:[%s191] sm:%s184]
                %194 = vst [vmem:[%s192] sm:%s184] %v193
                %v195 = vld [vmem:[%s191 + $0x24] sm:%s184]
                %196 = vst [vmem:[%s192 + $0x4] sm:%s184] %v195
                %v197 = vld [vmem:[%s191 + $0x48] sm:%s184]
                %198 = vst [vmem:[%s192 + $0x8] sm:%s184] %v197
                %v199 = vld [vmem:[%s191 + $0x6c] sm:%s184]
                %200 = vst [vmem:[%s192 + $0xc] sm:%s184] %v199
              $region41: #{scale_estimator_forward.12} parent=35 // loop_footer
                %s190 = sadd.s32 1, %s186
              $region42: #{scale_estimator_forward.12} parent=35 // loop_footer_branch
                %185 = sbr.rel target = $region38
              $region43: #{scale_estimator_forward.12} parent=35 // loop_exit
                _
            $region36: #{scale_estimator_forward.12} parent=27 // pred_fallthru
              _
          $region28: #{scale_estimator_forward.12} parent=23 // pred_fallthru
            _
          %229 = vnop
        $region24: #{scale_estimator_forward.12} parent=19 // pred_fallthru
          _
        // Predicated region
        $region62: #{scale_estimator_forward.12} parent=19 // pred_check
          %p230 = pneg %p78
        $region63: #{scale_estimator_forward.12} parent=19 // pred_check_branch
          %232 = sbr.rel (%p230) target = $region65
        $region64: #{scale_estimator_forward.12} parent=19 // pred_region
          %s233 = smul.u32 16, %s18
          %s234 = smul.u32 2, %s17
          %p235 = scmp.lt.s32.totalorder %s233, 143
          %s236 = scalar_select %p235, %s233, 143
          %p237 = scmp.lt.s32.totalorder %s234, 1
          %s238 = scalar_select %p237, %s234, 1
          %s239 = smul.addr %s236, 2
          %s240 = sadd.s32 %s238, %s239
          %s241 = smul.addr %s240, 4
          %s242 = scalar_lea.vmem %s1, %s241
          %s243 = smul.u32 16, %s18
          %s244 = smul.u32 2, %s17
        $region65: #{scale_estimator_forward.12} parent=19 // pred_fallthru
          _
      $region20: #{scale_estimator_forward.12} parent=5 // pred_fallthru
        _
      %p245 = scmp.le.s32.totalorder 1, %s9
      %p246 = scmp.lt.s32.totalorder %s9, 10
      %p247 = pnand %p245, %p246
      %p248 = pneg %p247
      // Predicated region
      $region66: #{scale_estimator_forward.12} parent=5 // pred_check
        _
      $region67: #{scale_estimator_forward.12} parent=5 // pred_check_branch
        %250 = sbr.rel (%p247) target = $region69
      $region68: #{scale_estimator_forward.12} parent=5 // pred_region
        %s251 = ssub.s32 %s9, 1
        %s252 = sand.u32 %s43, 1
        %s253 = sand.u32 %s43, 1
        %s254 = smul.addr %s253, 16
        %s255 = scalar_lea.vmem [#allocation3], %s254
        // Predicated region
        $region70: #{scale_estimator_forward.12} parent=68 // pred_check
          %p256 = pneg %p56
        $region71: #{scale_estimator_forward.12} parent=68 // pred_check_branch
          %258 = sbr.rel (%p256) target = $region73
        $region72: #{scale_estimator_forward.12} parent=68 // pred_region
          _
        $region73: #{scale_estimator_forward.12} parent=68 // pred_fallthru
          _
        %s259 = sand.u32 %s43, 1
        %s260 = sand.u32 %s43, 1
        %s261 = smul.addr %s260, 16
        %s262 = scalar_lea.vmem [#allocation3], %s261
        %p263 = pneg %p56
        %p264 = pneg %p53
        %s265 = smul.u32 16, %s21
        %s266 = smul.u32 2, %s20
        %p267 = scmp.lt.s32.totalorder %s265, 143
        %s268 = scalar_select %p267, %s265, 143
        %p269 = scmp.lt.s32.totalorder %s266, 1
        %s270 = scalar_select %p269, %s266, 1
        %s271 = smul.addr %s268, 2
        %s272 = sadd.s32 %s270, %s271
        %s273 = smul.addr %s272, 4
        %s274 = scalar_lea.vmem %s1, %s273
        %p275 = pneg %p84
        %p276 = pneg %p81
        %s277 = smul.u32 2, %s20
        %p278 = scmp.lt.s32.totalorder %s277, 1
        %s279 = scalar_select %p278, %s277, 1
        %s280 = scalar_lea.vmem %s2, %s279
        %p281 = pneg %p110
        %p282 = pneg %p107
        %p283 = pneg %p138
        %p284 = pneg %p135
        %s285 = smul.u32 4, %s19
        %s286 = smul.u32 2, %s20
        %p287 = scmp.lt.s32.totalorder %s285, 3
        %s288 = scalar_select %p287, %s285, 3
        %p289 = scmp.lt.s32.totalorder %s286, 1
        %s290 = scalar_select %p289, %s286, 1
        %s291 = smul.addr %s288, 2
        %s292 = sadd.s32 %s290, %s291
        %s293 = smul.addr %s292, 4
        %s294 = scalar_lea.vmem %s3, %s293
        %s295 = smul.u32 4, %s19
        %s296 = smul.u32 16, %s21
        %s297 = smul.u32 2, %s20
        %p298 = scmp.lt.s32.totalorder %s296, 143
        %s299 = scalar_select %p298, %s296, 143
        %p300 = scmp.lt.s32.totalorder %s297, 1
        %s301 = scalar_select %p300, %s297, 1
        %s302 = smul.addr %s299, 2
        %s303 = sadd.s32 %s301, %s302
        %s304 = smul.addr %s303, 4
        %s305 = scalar_lea.vmem %s1, %s304
        %s306 = smul.u32 16, %s21
        %s307 = smul.u32 2, %s20
        %s308 = smul.u32 2, %s20
        %p309 = scmp.lt.s32.totalorder %s308, 1
        %s310 = scalar_select %p309, %s308, 1
        %s311 = scalar_lea.vmem %s2, %s310
        %s312 = smul.u32 2, %s20
        %s313 = smul.u32 4, %s19
        %s314 = smul.u32 2, %s20
        %p315 = scmp.lt.s32.totalorder %s313, 3
        %s316 = scalar_select %p315, %s313, 3
        %p317 = scmp.lt.s32.totalorder %s314, 1
        %s318 = scalar_select %p317, %s314, 1
        %s319 = smul.addr %s316, 2
        %s320 = sadd.s32 %s318, %s319
        %s321 = smul.addr %s320, 4
        %s322 = scalar_lea.vmem %s3, %s321
        %s323 = smul.u32 4, %s19
        %s324 = smul.u32 2, %s20
        %p325 = scmp.eq.s32.totalorder %s21, 0
        // Predicated region
        $region74: #{scale_estimator_forward.12} parent=68 // pred_check
          %p326 = pneg %p325
        $region75: #{scale_estimator_forward.12} parent=68 // pred_check_branch
          %328 = sbr.rel (%p326) target = $region77
        $region76: #{scale_estimator_forward.12} parent=68 // pred_region
          %329 = vst [vmem:[#allocation2] sm:$0xff] 0.0
          %330 = vst [vmem:[#allocation2 + $0x8] sm:$0xff] 0.0
          %331 = vst [vmem:[#allocation2 + $0x10] sm:$0xff] 0.0
          %332 = vst [vmem:[#allocation2 + $0x18] sm:$0xff] 0.0
          %333 = vst [vmem:[#allocation2 + $0x20] sm:$0xff] 0.0
          %334 = vst [vmem:[#allocation2 + $0x28] sm:$0xff] 0.0
          %335 = vst [vmem:[#allocation2 + $0x30] sm:$0xff] 0.0
          %336 = vst [vmem:[#allocation2 + $0x38] sm:$0xff] 0.0
        $region77: #{scale_estimator_forward.12} parent=68 // pred_fallthru
          _
        %v337 = vld [vmem:[#allocation2] sm:$0xff]
        %v338 = vld [vmem:[#allocation2 + $0x8] sm:$0xff]
        %v339 = vld [vmem:[#allocation2 + $0x10] sm:$0xff]
        %v340 = vld [vmem:[#allocation2 + $0x18] sm:$0xff]
        %v341 = vld [vmem:[#allocation2 + $0x20] sm:$0xff]
        %v342 = vld [vmem:[#allocation2 + $0x28] sm:$0xff]
        %v343 = vld [vmem:[#allocation2 + $0x30] sm:$0xff]
        %v344 = vld [vmem:[#allocation2 + $0x38] sm:$0xff]
        %v345 = vld [vmem:[%s255] sm:$0xf]
        %v346 = vld [vmem:[%s255 + $0x4] sm:$0xf]
        %v347 = vld [vmem:[%s255 + $0x8] sm:$0xf]
        %v348 = vld [vmem:[%s255 + $0xc] sm:$0xf]
        %v349 = vld [vmem:[%s305] sm:$0xff]
        %v350 = vld [vmem:[%s305 + $0x8] sm:$0xff]
        %v351 = vld [vmem:[%s305 + $0x10] sm:$0xff]
        %v352 = vld [vmem:[%s305 + $0x18] sm:$0xff]
        %v353 = vld [vmem:[%s305 + $0x20] sm:$0xff]
        %v354 = vld [vmem:[%s305 + $0x28] sm:$0xff]
        %v355 = vld [vmem:[%s305 + $0x30] sm:$0xff]
        %v356 = vld [vmem:[%s305 + $0x38] sm:$0xff]
        %v357 = vld [vmem:[%s305 + $0x40] sm:$0xff]
        %v358 = vld [vmem:[%s305 + $0x48] sm:$0xff]
        %v359 = vld [vmem:[%s305 + $0x50] sm:$0xff]
        %v360 = vld [vmem:[%s305 + $0x58] sm:$0xff]
        %v361 = vld [vmem:[%s305 + $0x60] sm:$0xff]
        %v362 = vld [vmem:[%s305 + $0x68] sm:$0xff]
        %v363 = vld [vmem:[%s305 + $0x70] sm:$0xff]
        %v364 = vld [vmem:[%s305 + $0x78] sm:$0xff]
        %v369 = vunpack.c.l.b16 %v345
        %v370 = vunpack.c.l.b16 %v346
        %v371 = vunpack.c.l.b16 %v347
        %v372 = vunpack.c.l.b16 %v348
        %v373 = vpack.c.b16 %v370, %v369
        %v374 = vpack.c.b16 %v372, %v371
        %v393 = vunpack.c.l.b16 %v349
        %v394 = vunpack.c.h.b16 %v349
        %v395 = vunpack.c.l.b16 %v350
        %v396 = vunpack.c.h.b16 %v350
        %v397 = vunpack.c.l.b16 %v351
        %v398 = vunpack.c.h.b16 %v351
        %v399 = vunpack.c.l.b16 %v352
        %v400 = vunpack.c.h.b16 %v352
        %v401 = vunpack.c.l.b16 %v353
        %v402 = vunpack.c.h.b16 %v353
        %v403 = vunpack.c.l.b16 %v354
        %v404 = vunpack.c.h.b16 %v354
        %v405 = vunpack.c.l.b16 %v355
        %v406 = vunpack.c.h.b16 %v355
        %v407 = vunpack.c.l.b16 %v356
        %v408 = vunpack.c.h.b16 %v356
        %v409 = vunpack.c.l.b16 %v357
        %v410 = vunpack.c.h.b16 %v357
        %v411 = vunpack.c.l.b16 %v358
        %v412 = vunpack.c.h.b16 %v358
        %v413 = vunpack.c.l.b16 %v359
        %v414 = vunpack.c.h.b16 %v359
        %v415 = vunpack.c.l.b16 %v360
        %v416 = vunpack.c.h.b16 %v360
        %v417 = vunpack.c.l.b16 %v361
        %v418 = vunpack.c.h.b16 %v361
        %v419 = vunpack.c.l.b16 %v362
        %v420 = vunpack.c.h.b16 %v362
        %v421 = vunpack.c.l.b16 %v363
        %v422 = vunpack.c.h.b16 %v363
        %v423 = vunpack.c.l.b16 %v364
        %v424 = vunpack.c.h.b16 %v364
        %v425 = vpack.c.b16 %v395, %v393
        %v426 = vpack.c.b16 %v396, %v394
        %v427 = vpack.c.b16 %v399, %v397
        %v428 = vpack.c.b16 %v400, %v398
        %v429 = vpack.c.b16 %v403, %v401
        %v430 = vpack.c.b16 %v404, %v402
        %v431 = vpack.c.b16 %v407, %v405
        %v432 = vpack.c.b16 %v408, %v406
        %v433 = vpack.c.b16 %v411, %v409
        %v434 = vpack.c.b16 %v412, %v410
        %v435 = vpack.c.b16 %v415, %v413
        %v436 = vpack.c.b16 %v416, %v414
        %v437 = vpack.c.b16 %v419, %v417
        %v438 = vpack.c.b16 %v420, %v418
        %v439 = vpack.c.b16 %v423, %v421
        %v440 = vpack.c.b16 %v424, %v422
        %457 = vmatpush.bf16.msra.mxu0 %v439
        %458 = vmatpush.bf16.msra.mxu0 %v437
        %459 = vmatpush.bf16.msra.mxu0 %v435
        %460 = vmatpush.bf16.msra.mxu0 %v433
        %461 = vmatpush.bf16.msra.mxu0 %v431
        %462 = vmatpush.bf16.msra.mxu0 %v429
        %463 = vmatpush.bf16.msra.mxu0 %v427
        %464 = vmatpush.bf16.msra.mxu0 %v425
        %465 = vmatmul.bf16.gmra.mxu0 %v373
        %v466 = vpop.f32.mrf.mxu0
        %v467 = vadd.f32 0.0, %v466
        %v468 = vpop.f32.mrf.mxu0
        %v469 = vadd.f32 0.0, %v468
        %470 = vmatmul.bf16.gmra.mxu0 %v374
        %v471 = vpop.f32.mrf.mxu0
        %v472 = vadd.f32 0.0, %v471
        %v473 = vpop.f32.mrf.mxu0
        %v474 = vadd.f32 0.0, %v473
        %475 = vdwg.mxu0
        %476 = vmatpush.bf16.msra.mxu0 %v440
        %477 = vmatpush.bf16.msra.mxu0 %v438
        %478 = vmatpush.bf16.msra.mxu0 %v436
        %479 = vmatpush.bf16.msra.mxu0 %v434
        %480 = vmatpush.bf16.msra.mxu0 %v432
        %481 = vmatpush.bf16.msra.mxu0 %v430
        %482 = vmatpush.bf16.msra.mxu0 %v428
        %483 = vmatpush.bf16.msra.mxu0 %v426
        %484 = vmatmul.bf16.gmra.mxu0 %v373
        %v485 = vpop.f32.mrf.mxu0
        %v486 = vadd.f32 0.0, %v485
        %v487 = vpop.f32.mrf.mxu0
        %v488 = vadd.f32 0.0, %v487
        %489 = vmatmul.bf16.gmra.mxu0 %v374
        %v490 = vpop.f32.mrf.mxu0
        %v491 = vadd.f32 0.0, %v490
        %v492 = vpop.f32.mrf.mxu0
        %v493 = vadd.f32 0.0, %v492
        %494 = vdwg.mxu0
        %v495 = vadd.f32 %v337, %v467
        %v496 = vadd.f32 %v338, %v486
        %v497 = vadd.f32 %v339, %v469
        %v498 = vadd.f32 %v340, %v488
        %v499 = vadd.f32 %v341, %v472
        %v500 = vadd.f32 %v342, %v491
        %v501 = vadd.f32 %v343, %v474
        %v502 = vadd.f32 %v344, %v493
        %503 = vst [vmem:[#allocation2] sm:$0xff] %v495
        %504 = vst [vmem:[#allocation2 + $0x8] sm:$0xff] %v496
        %505 = vst [vmem:[#allocation2 + $0x10] sm:$0xff] %v497
        %506 = vst [vmem:[#allocation2 + $0x18] sm:$0xff] %v498
        %507 = vst [vmem:[#allocation2 + $0x20] sm:$0xff] %v499
        %508 = vst [vmem:[#allocation2 + $0x28] sm:$0xff] %v500
        %509 = vst [vmem:[#allocation2 + $0x30] sm:$0xff] %v501
        %510 = vst [vmem:[#allocation2 + $0x38] sm:$0xff] %v502
        %p511 = scmp.eq.s32.totalorder %s21, 8
        // Predicated region
        $region78: #{scale_estimator_forward.12} parent=68 // pred_check
          %p512 = pneg %p511
        $region79: #{scale_estimator_forward.12} parent=68 // pred_check_branch
          %514 = sbr.rel (%p512) target = $region81
        $region80: #{scale_estimator_forward.12} parent=68 // pred_region
          %v515 = vld [vmem:[#allocation2] sm:$0xff]
          %v516 = vld [vmem:[#allocation2 + $0x8] sm:$0xff]
          %v517 = vld [vmem:[#allocation2 + $0x10] sm:$0xff]
          %v518 = vld [vmem:[#allocation2 + $0x18] sm:$0xff]
          %v519 = vld [vmem:[#allocation2 + $0x20] sm:$0xff]
          %v520 = vld [vmem:[#allocation2 + $0x28] sm:$0xff]
          %v521 = vld [vmem:[#allocation2 + $0x30] sm:$0xff]
          %v522 = vld [vmem:[#allocation2 + $0x38] sm:$0xff]
          %v523 = vld [vmem:[%s311] sm:$0x3]
          %v525 = vperm.slane %v523, 0
          %v526 = vperm.slane %v523, 1
          %v529 = vadd.f32 %v515, %v525
          %v530 = vadd.f32 %v516, %v526
          %v531 = vadd.f32 %v517, %v525
          %v532 = vadd.f32 %v518, %v526
          %v533 = vadd.f32 %v519, %v525
          %v534 = vadd.f32 %v520, %v526
          %v535 = vadd.f32 %v521, %v525
          %v536 = vadd.f32 %v522, %v526
          %v537 = vmax.f32 %v529, 0.0
          %v538 = vmax.f32 %v530, 0.0
          %v539 = vmax.f32 %v531, 0.0
          %v540 = vmax.f32 %v532, 0.0
          %v541 = vmax.f32 %v533, 0.0
          %v542 = vmax.f32 %v534, 0.0
          %v543 = vmax.f32 %v535, 0.0
          %v544 = vmax.f32 %v536, 0.0
          %v545 = vpack.c.bf16 %v538, %v537
          %v546 = vpack.c.bf16 %v540, %v539
          %v547 = vpack.c.bf16 %v542, %v541
          %v548 = vpack.c.bf16 %v544, %v543
          %549 = vst [vmem:[%s322] sm:$0xff] %v545
          %550 = vst [vmem:[%s322 + $0x8] sm:$0xff] %v546
          %551 = vst [vmem:[%s322 + $0x10] sm:$0xff] %v547
          %552 = vst [vmem:[%s322 + $0x18] sm:$0xff] %v548
        $region81: #{scale_estimator_forward.12} parent=68 // pred_fallthru
          _
        %s553 = smul.u32 4, %s19
        %s554 = smul.u32 2, %s20
        %p555 = scmp.lt.s32.totalorder %s553, 3
        %s556 = scalar_select %p555, %s553, 3
        %p557 = scmp.lt.s32.totalorder %s554, 1
        %s558 = scalar_select %p557, %s554, 1
        %s559 = smul.addr %s556, 2
        %s560 = sadd.s32 %s558, %s559
        %s561 = smul.addr %s560, 4
        %s562 = scalar_lea.vmem %s3, %s561
        // Predicated region
        $region82: #{scale_estimator_forward.12} parent=68 // pred_check
          %p563 = pneg %p135
        $region83: #{scale_estimator_forward.12} parent=68 // pred_check_branch
          %565 = sbr.rel (%p563) target = $region85
        $region84: #{scale_estimator_forward.12} parent=68 // pred_region
          %s566 = smul.u32 4, %s19
          %s567 = smul.u32 2, %s20
        $region85: #{scale_estimator_forward.12} parent=68 // pred_fallthru
          _
        // Predicated region
        $region86: #{scale_estimator_forward.12} parent=68 // pred_check
          %p568 = pneg %p135
        $region87: #{scale_estimator_forward.12} parent=68 // pred_check_branch
          %570 = sbr.rel (%p568) target = $region89
        $region88: #{scale_estimator_forward.12} parent=68 // pred_region
          %s571 = smul.u32 4, %s19
          %s572 = smul.u32 2, %s20
          %p573 = scmp.lt.s32.totalorder %s571, 3
          %s574 = scalar_select %p573, %s571, 3
          %p575 = scmp.lt.s32.totalorder %s572, 1
          %s576 = scalar_select %p575, %s572, 1
          %s577 = smul.addr %s574, 2
          %s578 = sadd.s32 %s576, %s577
          %s579 = smul.addr %s578, 4
          %s580 = scalar_lea.vmem %s3, %s579
        $region89: #{scale_estimator_forward.12} parent=68 // pred_fallthru
          _
      $region69: #{scale_estimator_forward.12} parent=5 // pred_fallthru
        _
      %p581 = scmp.le.s32.totalorder 2, %s9
      // Predicated region
      $region90: #{scale_estimator_forward.12} parent=5 // pred_check
        %p582 = pneg %p581
      $region91: #{scale_estimator_forward.12} parent=5 // pred_check_branch
        %584 = sbr.rel (%p582) target = $region93
      $region92: #{scale_estimator_forward.12} parent=5 // pred_region
        %s585 = ssub.s32 %s9, 2
      $region93: #{scale_estimator_forward.12} parent=5 // pred_fallthru
        _
    $region6: #{scale_estimator_forward.12} parent=1 // loop_footer
      %s13 = sadd.s32 1, %s9
    $region7: #{scale_estimator_forward.12} parent=1 // loop_footer_branch
      %8 = sbr.rel target = $region3
    $region8: #{scale_estimator_forward.12} parent=1 // loop_exit
      _

// kernel: scale_estimator_forward.13
$region0: #{scale_estimator_forward.13}
  #allocation0 [shape = 'u32[]', space=smem, size = 0x4, offset = 0x4, fixed_abs, tag = 'smem constant byte address 0x4 - core index']
  #allocation1 [shape = 'u32[72,128]{1,0:T(1,128)}', space=vmem, size = 0x9000, scoped, tag = 'internal scratch']
  #allocation2 [shape = 'f32[32,256]{1,0:T(8,128)}', space=vmem, size = 0x8000, scoped, tag = 'scratch operand']
  %s0 = inlined_call_operand.vmem [shape: bf16[32,2304], index: 0, kind: input, shape index: {}]
  %s1 = inlined_call_operand.vmem [shape: bf16[2304,256], index: 1, kind: input, shape index: {}]
  %s2 = inlined_call_operand.vmem [shape: f32[1,256], index: 2, kind: input, shape index: {}]
  %s3 = inlined_call_operand.vmem [shape: bf16[32,256], index: 3, kind: output, shape index: {}]
  %s4 = sld [smem:[#allocation0]]
  $region91: #{scale_estimator_forward.13} parent=0
    _
  %s6 = ssub.s32 1, %s4
  %s7 = scalar_select 0, %s6, %s4
  $region1: #{scale_estimator_forward.13} parent=0
    #allocation3 [shape = 'u8[32768]{0}', space=vmem, size = 0x8000, scoped, tag = 'input window, operand 0']
    loop: start=0, step=1, limit=11
    $region2: #{scale_estimator_forward.13} parent=1 // loop_pre_header
      _
    $region3: #{scale_estimator_forward.13} parent=1 // loop_header
      %s9 = sphi 0, %s13
      %p10 = scmp.ge.s32.totalorder %s9, 11
      %s16 = sphi 0, %s35
      %s17 = sphi 0, %s31
      %s18 = sphi 0, %s27
      %s19 = sphi 0, %s16
      %s20 = sphi 0, %s17
      %s21 = sphi 0, %s18
      %s22 = sphi 0, %s19
      %s23 = sphi 0, %s20
      %s24 = sphi 0, %s21
      %s40 = sphi 0, %s42
      %s43 = sphi 0, %s40
      %s44 = sphi 0, %s43
      %s60 = sphi 0, %s44
      %s68 = sphi 0, %s70
      %s71 = sphi 0, %s68
      %s72 = sphi 0, %s71
      %s88 = sphi 0, %s72
      %s94 = sphi 0, %s96
      %s97 = sphi 0, %s94
      %s98 = sphi 0, %s97
      %s114 = sphi 0, %s98
      %s122 = sphi 0, %s124
      %s125 = sphi 0, %s122
      %s126 = sphi 0, %s125
      %s142 = sphi 0, %s126
    $region4: #{scale_estimator_forward.13} parent=1 // loop_header_branch
      %12 = sbr.rel (%p10) target = $region8
    $region5: #{scale_estimator_forward.13} parent=1 // loop_body
      %s14 = ssub.s32 %s9, 1
      %s15 = ssub.s32 %s9, 2
      %s25 = sadd.s32 1, %s18
      %p26 = scmp.ge.s32.totalorder %s25, 9
      %s27 = scalar_select %p26, 0, %s25
      %s28 = sadd.s32 1, %s17
      %s29 = scalar_select %p26, %s28, %s17
      %p30 = scmp.ge.s32.totalorder %s29, 1
      %s31 = scalar_select %p30, 0, %s29
      %s32 = sadd.s32 1, %s16
      %s33 = scalar_select %p30, %s32, %s16
      %p34 = scmp.ge.s32.totalorder %s33, 1
      %s35 = scalar_select %p34, 0, %s33
      %s36 = ssub.s32 %s16, %s35
      %s37 = ssub.s32 %s18, %s27
      %s38 = sor.u32 %s36, %s37
      %p39 = scmp.eq.s32.totalorder %s38, 0
      %s41 = sadd.s32 %s40, 1
      %s42 = scalar_select %p39, %s40, %s41
      %p45 = pneg %p39
      %p46 = scmp.eq.s32.totalorder %s9, 8
      %p47 = por %p45, %p46
      %p48 = scmp.ne.s32.totalorder %s40, %s43
      %p49 = scmp.eq.s32.totalorder %s9, 0
      %p50 = por %p48, %p49
      %p51 = scmp.ne.s32.totalorder %s40, %s43
      %p52 = scmp.eq.s32.totalorder %s14, 8
      %p53 = por %p51, %p52
      %p54 = scmp.ne.s32.totalorder %s43, %s44
      %p55 = scmp.eq.s32.totalorder %s14, 0
      %p56 = por %p54, %p55
      %p57 = scmp.ne.s32.totalorder %s43, %s44
      %p58 = scmp.eq.s32.totalorder %s15, 8
      %p59 = por %p57, %p58
      %p61 = scmp.ne.s32.totalorder %s44, %s60
      %p62 = scmp.eq.s32.totalorder %s15, 0
      %p63 = por %p61, %p62
      %s64 = ssub.s32 %s18, %s27
      %s65 = ssub.s32 %s17, %s31
      %s66 = sor.u32 %s64, %s65
      %p67 = scmp.eq.s32.totalorder %s66, 0
      %s69 = sadd.s32 %s68, 1
      %s70 = scalar_select %p67, %s68, %s69
      %p73 = pneg %p67
      %p74 = scmp.eq.s32.totalorder %s9, 8
      %p75 = por %p73, %p74
      %p76 = scmp.ne.s32.totalorder %s68, %s71
      %p77 = scmp.eq.s32.totalorder %s9, 0
      %p78 = por %p76, %p77
      %p79 = scmp.ne.s32.totalorder %s68, %s71
      %p80 = scmp.eq.s32.totalorder %s14, 8
      %p81 = por %p79, %p80
      %p82 = scmp.ne.s32.totalorder %s71, %s72
      %p83 = scmp.eq.s32.totalorder %s14, 0
      %p84 = por %p82, %p83
      %p85 = scmp.ne.s32.totalorder %s71, %s72
      %p86 = scmp.eq.s32.totalorder %s15, 8
      %p87 = por %p85, %p86
      %p89 = scmp.ne.s32.totalorder %s72, %s88
      %p90 = scmp.eq.s32.totalorder %s15, 0
      %p91 = por %p89, %p90
      %s92 = ssub.s32 %s17, %s31
      %p93 = scmp.eq.s32.totalorder %s92, 0
      %s95 = sadd.s32 %s94, 1
      %s96 = scalar_select %p93, %s94, %s95
      %p99 = pneg %p93
      %p100 = scmp.eq.s32.totalorder %s9, 8
      %p101 = por %p99, %p100
      %p102 = scmp.ne.s32.totalorder %s94, %s97
      %p103 = scmp.eq.s32.totalorder %s9, 0
      %p104 = por %p102, %p103
      %p105 = scmp.ne.s32.totalorder %s94, %s97
      %p106 = scmp.eq.s32.totalorder %s14, 8
      %p107 = por %p105, %p106
      %p108 = scmp.ne.s32.totalorder %s97, %s98
      %p109 = scmp.eq.s32.totalorder %s14, 0
      %p110 = por %p108, %p109
      %p111 = scmp.ne.s32.totalorder %s97, %s98
      %p112 = scmp.eq.s32.totalorder %s15, 8
      %p113 = por %p111, %p112
      %p115 = scmp.ne.s32.totalorder %s98, %s114
      %p116 = scmp.eq.s32.totalorder %s15, 0
      %p117 = por %p115, %p116
      %s118 = ssub.s32 %s16, %s35
      %s119 = ssub.s32 %s17, %s31
      %s120 = sor.u32 %s118, %s119
      %p121 = scmp.eq.s32.totalorder %s120, 0
      %s123 = sadd.s32 %s122, 1
      %s124 = scalar_select %p121, %s122, %s123
      %p127 = pneg %p121
      %p128 = scmp.eq.s32.totalorder %s9, 8
      %p129 = por %p127, %p128
      %p130 = scmp.ne.s32.totalorder %s122, %s125
      %p131 = scmp.eq.s32.totalorder %s9, 0
      %p132 = por %p130, %p131
      %p133 = scmp.ne.s32.totalorder %s122, %s125
      %p134 = scmp.eq.s32.totalorder %s14, 8
      %p135 = por %p133, %p134
      %p136 = scmp.ne.s32.totalorder %s125, %s126
      %p137 = scmp.eq.s32.totalorder %s14, 0
      %p138 = por %p136, %p137
      %p139 = scmp.ne.s32.totalorder %s125, %s126
      %p140 = scmp.eq.s32.totalorder %s15, 8
      %p141 = por %p139, %p140
      %p143 = scmp.ne.s32.totalorder %s126, %s142
      %p144 = scmp.eq.s32.totalorder %s15, 0
      %p145 = por %p143, %p144
      %p146 = scmp.le.s32.totalorder 1, %s9
      %p147 = scmp.lt.s32.totalorder %s9, 10
      %p148 = pnand %p146, %p147
      %p149 = pneg %p148
      // Predicated region
      $region9: #{scale_estimator_forward.13} parent=5 // pred_check
        _
      $region10: #{scale_estimator_forward.13} parent=5 // pred_check_branch
        %151 = sbr.rel (%p148) target = $region12
      $region11: #{scale_estimator_forward.13} parent=5 // pred_region
        %s152 = ssub.s32 %s9, 1
        // Predicated region
        $region13: #{scale_estimator_forward.13} parent=11 // pred_check
          %p153 = pneg %p110
        $region14: #{scale_estimator_forward.13} parent=11 // pred_check_branch
          %155 = sbr.rel (%p153) target = $region16
        $region15: #{scale_estimator_forward.13} parent=11 // pred_region
          %s156 = smul.u32 2, %s20
          %p157 = scmp.lt.s32.totalorder %s156, 1
          %s158 = scalar_select %p157, %s156, 1
          %s159 = scalar_lea.vmem %s2, %s158
          %s160 = smul.u32 2, %s20
        $region16: #{scale_estimator_forward.13} parent=11 // pred_fallthru
          _
      $region12: #{scale_estimator_forward.13} parent=5 // pred_fallthru
        _
      %p161 = scmp.lt.s32.totalorder %s9, 9
      // Predicated region
      $region17: #{scale_estimator_forward.13} parent=5 // pred_check
        %p162 = pneg %p161
      $region18: #{scale_estimator_forward.13} parent=5 // pred_check_branch
        %164 = sbr.rel (%p162) target = $region20
      $region19: #{scale_estimator_forward.13} parent=5 // pred_region
        // Predicated region
        $region21: #{scale_estimator_forward.13} parent=19 // pred_check
          %p165 = pneg %p50
        $region22: #{scale_estimator_forward.13} parent=19 // pred_check_branch
          %167 = sbr.rel (%p165) target = $region24
        $region23: #{scale_estimator_forward.13} parent=19 // pred_region
          %s168 = sand.u32 %s40, 1
          %s169 = sand.u32 %s40, 1
          %s170 = smul.addr %s169, 32
          %s171 = scalar_lea.vmem [#allocation3], %s170
          %s172 = smul.u32 4, %s16
          %s173 = smul.u32 2, %s18
          %s174 = smul.addr %s172, 18
          %s175 = sadd.s32 %s173, %s174
          %s176 = smul.addr %s175, 4
          %s177 = scalar_lea.vmem %s0, %s176
          // Predicated region
          $region25: #{scale_estimator_forward.13} parent=23 // pred_check
            _
          $region26: #{scale_estimator_forward.13} parent=23 // pred_check_branch
            %179 = sbr.rel (0) target = $region28
          $region27: #{scale_estimator_forward.13} parent=23 // pred_region
            // Predicated region
            $region29: #{scale_estimator_forward.13} parent=27 // pred_check
              _
            $region30: #{scale_estimator_forward.13} parent=27 // pred_check_branch
              %181 = sbr.rel (0) target = $region32
            $region31: #{scale_estimator_forward.13} parent=27 // pred_region
              // Predicated region
              $region44: #{scale_estimator_forward.13} parent=31 // pred_check
                _
              $region45: #{scale_estimator_forward.13} parent=31 // pred_check_branch
                %203 = sbr.rel (0) target = $region47
              $region46: #{scale_estimator_forward.13} parent=31 // pred_region
                loop: start=0, step=1, limit=1
                $region48: #{scale_estimator_forward.13} parent=46 // loop_pre_header
                  _
                $region49: #{scale_estimator_forward.13} parent=46 // loop_header
                  %s205 = sphi 0, %s209
                  %p206 = scmp.ge.s32.totalorder %s205, 1
                  %s210 = sphi %s177, %s177
                  %s211 = sphi %s171, %s171
                $region50: #{scale_estimator_forward.13} parent=46 // loop_header_branch
                  %208 = sbr.rel (%p206) target = $region54
                $region51: #{scale_estimator_forward.13} parent=46 // loop_body
                  %v212 = vld [vmem:[%s210] sm:$0xff]
                  %213 = vst [vmem:[%s211] sm:$0xff] %v212
                  %v214 = vld [vmem:[%s210 + $0x48] sm:$0xff]
                  %215 = vst [vmem:[%s211 + $0x8] sm:$0xff] %v214
                  %v216 = vld [vmem:[%s210 + $0x90] sm:$0xff]
                  %217 = vst [vmem:[%s211 + $0x10] sm:$0xff] %v216
                  %v218 = vld [vmem:[%s210 + $0xd8] sm:$0xff]
                  %219 = vst [vmem:[%s211 + $0x18] sm:$0xff] %v218
                $region52: #{scale_estimator_forward.13} parent=46 // loop_footer
                  %s209 = sadd.s32 1, %s205
                $region53: #{scale_estimator_forward.13} parent=46 // loop_footer_branch
                  %204 = sbr.rel target = $region49
                $region54: #{scale_estimator_forward.13} parent=46 // loop_exit
                  _
              $region47: #{scale_estimator_forward.13} parent=31 // pred_fallthru
                _
              // Predicated region
              $region55: #{scale_estimator_forward.13} parent=31 // pred_check
                _
              $region56: #{scale_estimator_forward.13} parent=31 // pred_check_branch
                %221 = sbr.rel target = $region58
              $region57: #{scale_estimator_forward.13} parent=31 // pred_region
                _
              $region58: #{scale_estimator_forward.13} parent=31 // pred_fallthru
                _
            $region32: #{scale_estimator_forward.13} parent=27 // pred_fallthru
              _
            // Predicated region
            $region33: #{scale_estimator_forward.13} parent=27 // pred_check
              _
            $region34: #{scale_estimator_forward.13} parent=27 // pred_check_branch
              %183 = sbr.rel target = $region36
            $region35: #{scale_estimator_forward.13} parent=27 // pred_region
              %s185 = ssub.s32 256, 1
              loop: start=0, step=1, limit=1
              $region37: #{scale_estimator_forward.13} parent=35 // loop_pre_header
                _
              $region38: #{scale_estimator_forward.13} parent=35 // loop_header
                %s187 = sphi 0, %s191
                %p188 = scmp.ge.s32.totalorder %s187, 1
                %s192 = sphi %s177, %s177
                %s193 = sphi %s171, %s171
              $region39: #{scale_estimator_forward.13} parent=35 // loop_header_branch
                %190 = sbr.rel (%p188) target = $region43
              $region40: #{scale_estimator_forward.13} parent=35 // loop_body
                %v194 = vld [vmem:[%s192] sm:%s185]
                %195 = vst [vmem:[%s193] sm:%s185] %v194
                %v196 = vld [vmem:[%s192 + $0x48] sm:%s185]
                %197 = vst [vmem:[%s193 + $0x8] sm:%s185] %v196
                %v198 = vld [vmem:[%s192 + $0x90] sm:%s185]
                %199 = vst [vmem:[%s193 + $0x10] sm:%s185] %v198
                %v200 = vld [vmem:[%s192 + $0xd8] sm:%s185]
                %201 = vst [vmem:[%s193 + $0x18] sm:%s185] %v200
              $region41: #{scale_estimator_forward.13} parent=35 // loop_footer
                %s191 = sadd.s32 1, %s187
              $region42: #{scale_estimator_forward.13} parent=35 // loop_footer_branch
                %186 = sbr.rel target = $region38
              $region43: #{scale_estimator_forward.13} parent=35 // loop_exit
                _
            $region36: #{scale_estimator_forward.13} parent=27 // pred_fallthru
              _
          $region28: #{scale_estimator_forward.13} parent=23 // pred_fallthru
            _
          %222 = vnop
        $region24: #{scale_estimator_forward.13} parent=19 // pred_fallthru
          _
        // Predicated region
        $region59: #{scale_estimator_forward.13} parent=19 // pred_check
          %p223 = pneg %p78
        $region60: #{scale_estimator_forward.13} parent=19 // pred_check_branch
          %225 = sbr.rel (%p223) target = $region62
        $region61: #{scale_estimator_forward.13} parent=19 // pred_region
          %s226 = smul.u32 32, %s18
          %s227 = smul.u32 2, %s17
          %p228 = scmp.lt.s32.totalorder %s226, 287
          %s229 = scalar_select %p228, %s226, 287
          %p230 = scmp.lt.s32.totalorder %s227, 1
          %s231 = scalar_select %p230, %s227, 1
          %s232 = smul.addr %s229, 2
          %s233 = sadd.s32 %s231, %s232
          %s234 = smul.addr %s233, 4
          %s235 = scalar_lea.vmem %s1, %s234
          %s236 = smul.u32 32, %s18
          %s237 = smul.u32 2, %s17
        $region62: #{scale_estimator_forward.13} parent=19 // pred_fallthru
          _
      $region20: #{scale_estimator_forward.13} parent=5 // pred_fallthru
        _
      %p238 = scmp.le.s32.totalorder 1, %s9
      %p239 = scmp.lt.s32.totalorder %s9, 10
      %p240 = pnand %p238, %p239
      %p241 = pneg %p240
      // Predicated region
      $region63: #{scale_estimator_forward.13} parent=5 // pred_check
        _
      $region64: #{scale_estimator_forward.13} parent=5 // pred_check_branch
        %243 = sbr.rel (%p240) target = $region66
      $region65: #{scale_estimator_forward.13} parent=5 // pred_region
        %s244 = ssub.s32 %s9, 1
        %s245 = sand.u32 %s43, 1
        %s246 = sand.u32 %s43, 1
        %s247 = smul.addr %s246, 32
        %s248 = scalar_lea.vmem [#allocation3], %s247
        // Predicated region
        $region67: #{scale_estimator_forward.13} parent=65 // pred_check
          %p249 = pneg %p56
        $region68: #{scale_estimator_forward.13} parent=65 // pred_check_branch
          %251 = sbr.rel (%p249) target = $region70
        $region69: #{scale_estimator_forward.13} parent=65 // pred_region
          _
        $region70: #{scale_estimator_forward.13} parent=65 // pred_fallthru
          _
        %s252 = sand.u32 %s43, 1
        %s253 = sand.u32 %s43, 1
        %s254 = smul.addr %s253, 32
        %s255 = scalar_lea.vmem [#allocation3], %s254
        %p256 = pneg %p56
        %p257 = pneg %p53
        %s258 = smul.u32 32, %s21
        %s259 = smul.u32 2, %s20
        %p260 = scmp.lt.s32.totalorder %s258, 287
        %s261 = scalar_select %p260, %s258, 287
        %p262 = scmp.lt.s32.totalorder %s259, 1
        %s263 = scalar_select %p262, %s259, 1
        %s264 = smul.addr %s261, 2
        %s265 = sadd.s32 %s263, %s264
        %s266 = smul.addr %s265, 4
        %s267 = scalar_lea.vmem %s1, %s266
        %p268 = pneg %p84
        %p269 = pneg %p81
        %s270 = smul.u32 2, %s20
        %p271 = scmp.lt.s32.totalorder %s270, 1
        %s272 = scalar_select %p271, %s270, 1
        %s273 = scalar_lea.vmem %s2, %s272
        %p274 = pneg %p110
        %p275 = pneg %p107
        %p276 = pneg %p138
        %p277 = pneg %p135
        %s278 = smul.u32 4, %s19
        %s279 = smul.u32 2, %s20
        %p280 = scmp.lt.s32.totalorder %s278, 3
        %s281 = scalar_select %p280, %s278, 3
        %p282 = scmp.lt.s32.totalorder %s279, 1
        %s283 = scalar_select %p282, %s279, 1
        %s284 = smul.addr %s281, 2
        %s285 = sadd.s32 %s283, %s284
        %s286 = smul.addr %s285, 4
        %s287 = scalar_lea.vmem %s3, %s286
        %s288 = smul.u32 4, %s19
        %s289 = smul.u32 2, %s21
        %s290 = smul.u32 32, %s21
        %s291 = smul.u32 2, %s20
        %p292 = scmp.lt.s32.totalorder %s290, 287
        %s293 = scalar_select %p292, %s290, 287
        %p294 = scmp.lt.s32.totalorder %s291, 1
        %s295 = scalar_select %p294, %s291, 1
        %s296 = smul.addr %s293, 2
        %s297 = sadd.s32 %s295, %s296
        %s298 = smul.addr %s297, 4
        %s299 = scalar_lea.vmem %s1, %s298
        %s300 = smul.u32 32, %s21
        %s301 = smul.u32 2, %s20
        %s302 = smul.u32 2, %s20
        %p303 = scmp.lt.s32.totalorder %s302, 1
        %s304 = scalar_select %p303, %s302, 1
        %s305 = scalar_lea.vmem %s2, %s304
        %s306 = smul.u32 2, %s20
        %s307 = smul.u32 4, %s19
        %s308 = smul.u32 2, %s20
        %p309 = scmp.lt.s32.totalorder %s307, 3
        %s310 = scalar_select %p309, %s307, 3
        %p311 = scmp.lt.s32.totalorder %s308, 1
        %s312 = scalar_select %p311, %s308, 1
        %s313 = smul.addr %s310, 2
        %s314 = sadd.s32 %s312, %s313
        %s315 = smul.addr %s314, 4
        %s316 = scalar_lea.vmem %s3, %s315
        %s317 = smul.u32 4, %s19
        %s318 = smul.u32 2, %s20
        %p319 = scmp.eq.s32.totalorder %s21, 0
        // Predicated region
        $region71: #{scale_estimator_forward.13} parent=65 // pred_check
          %p320 = pneg %p319
        $region72: #{scale_estimator_forward.13} parent=65 // pred_check_branch
          %322 = sbr.rel (%p320) target = $region74
        $region73: #{scale_estimator_forward.13} parent=65 // pred_region
          %323 = vst [vmem:[#allocation2] sm:$0xff] 0.0
          %324 = vst [vmem:[#allocation2 + $0x8] sm:$0xff] 0.0
          %325 = vst [vmem:[#allocation2 + $0x10] sm:$0xff] 0.0
          %326 = vst [vmem:[#allocation2 + $0x18] sm:$0xff] 0.0
          %327 = vst [vmem:[#allocation2 + $0x20] sm:$0xff] 0.0
          %328 = vst [vmem:[#allocation2 + $0x28] sm:$0xff] 0.0
          %329 = vst [vmem:[#allocation2 + $0x30] sm:$0xff] 0.0
          %330 = vst [vmem:[#allocation2 + $0x38] sm:$0xff] 0.0
        $region74: #{scale_estimator_forward.13} parent=65 // pred_fallthru
          _
        %v331 = vld [vmem:[#allocation2] sm:$0xff]
        %v332 = vld [vmem:[#allocation2 + $0x8] sm:$0xff]
        %v333 = vld [vmem:[#allocation2 + $0x10] sm:$0xff]
        %v334 = vld [vmem:[#allocation2 + $0x18] sm:$0xff]
        %v335 = vld [vmem:[#allocation2 + $0x20] sm:$0xff]
        %v336 = vld [vmem:[#allocation2 + $0x28] sm:$0xff]
        %v337 = vld [vmem:[#allocation2 + $0x30] sm:$0xff]
        %v338 = vld [vmem:[#allocation2 + $0x38] sm:$0xff]
        %v339 = vld [vmem:[%s248] sm:$0xff]
        %v340 = vld [vmem:[%s248 + $0x8] sm:$0xff]
        %v341 = vld [vmem:[%s248 + $0x10] sm:$0xff]
        %v342 = vld [vmem:[%s248 + $0x18] sm:$0xff]
        %v343 = vld [vmem:[%s299] sm:$0xff]
        %v344 = vld [vmem:[%s299 + $0x8] sm:$0xff]
        %v345 = vld [vmem:[%s299 + $0x10] sm:$0xff]
        %v346 = vld [vmem:[%s299 + $0x18] sm:$0xff]
        %v347 = vld [vmem:[%s299 + $0x20] sm:$0xff]
        %v348 = vld [vmem:[%s299 + $0x28] sm:$0xff]
        %v349 = vld [vmem:[%s299 + $0x30] sm:$0xff]
        %v350 = vld [vmem:[%s299 + $0x38] sm:$0xff]
        %v351 = vld [vmem:[%s299 + $0x40] sm:$0xff]
        %v352 = vld [vmem:[%s299 + $0x48] sm:$0xff]
        %v353 = vld [vmem:[%s299 + $0x50] sm:$0xff]
        %v354 = vld [vmem:[%s299 + $0x58] sm:$0xff]
        %v355 = vld [vmem:[%s299 + $0x60] sm:$0xff]
        %v356 = vld [vmem:[%s299 + $0x68] sm:$0xff]
        %v357 = vld [vmem:[%s299 + $0x70] sm:$0xff]
        %v358 = vld [vmem:[%s299 + $0x78] sm:$0xff]
        %v359 = vld [vmem:[%s299 + $0x80] sm:$0xff]
        %v360 = vld [vmem:[%s299 + $0x88] sm:$0xff]
        %v361 = vld [vmem:[%s299 + $0x90] sm:$0xff]
        %v362 = vld [vmem:[%s299 + $0x98] sm:$0xff]
        %v363 = vld [vmem:[%s299 + $0xa0] sm:$0xff]
        %v364 = vld [vmem:[%s299 + $0xa8] sm:$0xff]
        %v365 = vld [vmem:[%s299 + $0xb0] sm:$0xff]
        %v366 = vld [vmem:[%s299 + $0xb8] sm:$0xff]
        %v367 = vld [vmem:[%s299 + $0xc0] sm:$0xff]
        %v368 = vld [vmem:[%s299 + $0xc8] sm:$0xff]
        %v369 = vld [vmem:[%s299 + $0xd0] sm:$0xff]
        %v370 = vld [vmem:[%s299 + $0xd8] sm:$0xff]
        %v371 = vld [vmem:[%s299 + $0xe0] sm:$0xff]
        %v372 = vld [vmem:[%s299 + $0xe8] sm:$0xff]
        %v373 = vld [vmem:[%s299 + $0xf0] sm:$0xff]
        %v374 = vld [vmem:[%s299 + $0xf8] sm:$0xff]
        %v379 = vunpack.c.l.b16 %v339
        %v380 = vunpack.c.h.b16 %v339
        %v381 = vunpack.c.l.b16 %v340
        %v382 = vunpack.c.h.b16 %v340
        %v383 = vunpack.c.l.b16 %v341
        %v384 = vunpack.c.h.b16 %v341
        %v385 = vunpack.c.l.b16 %v342
        %v386 = vunpack.c.h.b16 %v342
        %v387 = vpack.c.b16 %v381, %v379
        %v388 = vpack.c.b16 %v382, %v380
        %v389 = vpack.c.b16 %v385, %v383
        %v390 = vpack.c.b16 %v386, %v384
        %v427 = vunpack.c.l.b16 %v343
        %v428 = vunpack.c.h.b16 %v343
        %v429 = vunpack.c.l.b16 %v344
        %v430 = vunpack.c.h.b16 %v344
        %v431 = vunpack.c.l.b16 %v345
        %v432 = vunpack.c.h.b16 %v345
        %v433 = vunpack.c.l.b16 %v346
        %v434 = vunpack.c.h.b16 %v346
        %v435 = vunpack.c.l.b16 %v347
        %v436 = vunpack.c.h.b16 %v347
        %v437 = vunpack.c.l.b16 %v348
        %v438 = vunpack.c.h.b16 %v348
        %v439 = vunpack.c.l.b16 %v349
        %v440 = vunpack.c.h.b16 %v349
        %v441 = vunpack.c.l.b16 %v350
        %v442 = vunpack.c.h.b16 %v350
        %v443 = vunpack.c.l.b16 %v351
        %v444 = vunpack.c.h.b16 %v351
        %v445 = vunpack.c.l.b16 %v352
        %v446 = vunpack.c.h.b16 %v352
        %v447 = vunpack.c.l.b16 %v353
        %v448 = vunpack.c.h.b16 %v353
        %v449 = vunpack.c.l.b16 %v354
        %v450 = vunpack.c.h.b16 %v354
        %v451 = vunpack.c.l.b16 %v355
        %v452 = vunpack.c.h.b16 %v355
        %v453 = vunpack.c.l.b16 %v356
        %v454 = vunpack.c.h.b16 %v356
        %v455 = vunpack.c.l.b16 %v357
        %v456 = vunpack.c.h.b16 %v357
        %v457 = vunpack.c.l.b16 %v358
        %v458 = vunpack.c.h.b16 %v358
        %v459 = vunpack.c.l.b16 %v359
        %v460 = vunpack.c.h.b16 %v359
        %v461 = vunpack.c.l.b16 %v360
        %v462 = vunpack.c.h.b16 %v360
        %v463 = vunpack.c.l.b16 %v361
        %v464 = vunpack.c.h.b16 %v361
        %v465 = vunpack.c.l.b16 %v362
        %v466 = vunpack.c.h.b16 %v362
        %v467 = vunpack.c.l.b16 %v363
        %v468 = vunpack.c.h.b16 %v363
        %v469 = vunpack.c.l.b16 %v364
        %v470 = vunpack.c.h.b16 %v364
        %v471 = vunpack.c.l.b16 %v365
        %v472 = vunpack.c.h.b16 %v365
        %v473 = vunpack.c.l.b16 %v366
        %v474 = vunpack.c.h.b16 %v366
        %v475 = vunpack.c.l.b16 %v367
        %v476 = vunpack.c.h.b16 %v367
        %v477 = vunpack.c.l.b16 %v368
        %v478 = vunpack.c.h.b16 %v368
        %v479 = vunpack.c.l.b16 %v369
        %v480 = vunpack.c.h.b16 %v369
        %v481 = vunpack.c.l.b16 %v370
        %v482 = vunpack.c.h.b16 %v370
        %v483 = vunpack.c.l.b16 %v371
        %v484 = vunpack.c.h.b16 %v371
        %v485 = vunpack.c.l.b16 %v372
        %v486 = vunpack.c.h.b16 %v372
        %v487 = vunpack.c.l.b16 %v373
        %v488 = vunpack.c.h.b16 %v373
        %v489 = vunpack.c.l.b16 %v374
        %v490 = vunpack.c.h.b16 %v374
        %v491 = vpack.c.b16 %v429, %v427
        %v492 = vpack.c.b16 %v430, %v428
        %v493 = vpack.c.b16 %v433, %v431
        %v494 = vpack.c.b16 %v434, %v432
        %v495 = vpack.c.b16 %v437, %v435
        %v496 = vpack.c.b16 %v438, %v436
        %v497 = vpack.c.b16 %v441, %v439
        %v498 = vpack.c.b16 %v442, %v440
        %v499 = vpack.c.b16 %v445, %v443
        %v500 = vpack.c.b16 %v446, %v444
        %v501 = vpack.c.b16 %v449, %v447
        %v502 = vpack.c.b16 %v450, %v448
        %v503 = vpack.c.b16 %v453, %v451
        %v504 = vpack.c.b16 %v454, %v452
        %v505 = vpack.c.b16 %v457, %v455
        %v506 = vpack.c.b16 %v458, %v456
        %v507 = vpack.c.b16 %v461, %v459
        %v508 = vpack.c.b16 %v462, %v460
        %v509 = vpack.c.b16 %v465, %v463
        %v510 = vpack.c.b16 %v466, %v464
        %v511 = vpack.c.b16 %v469, %v467
        %v512 = vpack.c.b16 %v470, %v468
        %v513 = vpack.c.b16 %v473, %v471
        %v514 = vpack.c.b16 %v474, %v472
        %v515 = vpack.c.b16 %v477, %v475
        %v516 = vpack.c.b16 %v478, %v476
        %v517 = vpack.c.b16 %v481, %v479
        %v518 = vpack.c.b16 %v482, %v480
        %v519 = vpack.c.b16 %v485, %v483
        %v520 = vpack.c.b16 %v486, %v484
        %v521 = vpack.c.b16 %v489, %v487
        %v522 = vpack.c.b16 %v490, %v488
        %555 = vmatpush.bf16.msra.mxu0 %v505
        %556 = vmatpush.bf16.msra.mxu0 %v503
        %557 = vmatpush.bf16.msra.mxu0 %v501
        %558 = vmatpush.bf16.msra.mxu0 %v499
        %559 = vmatpush.bf16.msra.mxu0 %v497
        %560 = vmatpush.bf16.msra.mxu0 %v495
        %561 = vmatpush.bf16.msra.mxu0 %v493
        %562 = vmatpush.bf16.msra.mxu0 %v491
        %563 = vmatmul.bf16.gmra.mxu0 %v387
        %v564 = vpop.f32.mrf.mxu0
        %v565 = vadd.f32 0.0, %v564
        %v566 = vpop.f32.mrf.mxu0
        %v567 = vadd.f32 0.0, %v566
        %568 = vmatmul.bf16.gmra.mxu0 %v389
        %v569 = vpop.f32.mrf.mxu0
        %v570 = vadd.f32 0.0, %v569
        %v571 = vpop.f32.mrf.mxu0
        %v572 = vadd.f32 0.0, %v571
        %573 = vdwg.mxu0
        %574 = vmatpush.bf16.msra.mxu0 %v521
        %575 = vmatpush.bf16.msra.mxu0 %v519
        %576 = vmatpush.bf16.msra.mxu0 %v517
        %577 = vmatpush.bf16.msra.mxu0 %v515
        %578 = vmatpush.bf16.msra.mxu0 %v513
        %579 = vmatpush.bf16.msra.mxu0 %v511
        %580 = vmatpush.bf16.msra.mxu0 %v509
        %581 = vmatpush.bf16.msra.mxu0 %v507
        %582 = vmatmul.bf16.gmra.mxu0 %v388
        %v583 = vpop.f32.mrf.mxu0
        %v584 = vadd.f32 %v565, %v583
        %v585 = vpop.f32.mrf.mxu0
        %v586 = vadd.f32 %v567, %v585
        %587 = vmatmul.bf16.gmra.mxu0 %v390
        %v588 = vpop.f32.mrf.mxu0
        %v589 = vadd.f32 %v570, %v588
        %v590 = vpop.f32.mrf.mxu0
        %v591 = vadd.f32 %v572, %v590
        %592 = vdwg.mxu0
        %593 = vmatpush.bf16.msra.mxu0 %v506
        %594 = vmatpush.bf16.msra.mxu0 %v504
        %595 = vmatpush.bf16.msra.mxu0 %v502
        %596 = vmatpush.bf16.msra.mxu0 %v500
        %597 = vmatpush.bf16.msra.mxu0 %v498
        %598 = vmatpush.bf16.msra.mxu0 %v496
        %599 = vmatpush.bf16.msra.mxu0 %v494
        %600 = vmatpush.bf16.msra.mxu0 %v492
        %601 = vmatmul.bf16.gmra.mxu0 %v387
        %v602 = vpop.f32.mrf.mxu0
        %v603 = vadd.f32 0.0, %v602
        %v604 = vpop.f32.mrf.mxu0
        %v605 = vadd.f32 0.0, %v604
        %606 = vmatmul.bf16.gmra.mxu0 %v389
        %v607 = vpop.f32.mrf.mxu0
        %v608 = vadd.f32 0.0, %v607
        %v609 = vpop.f32.mrf.mxu0
        %v610 = vadd.f32 0.0, %v609
        %611 = vdwg.mxu0
        %612 = vmatpush.bf16.msra.mxu0 %v522
        %613 = vmatpush.bf16.msra.mxu0 %v520
        %614 = vmatpush.bf16.msra.mxu0 %v518
        %615 = vmatpush.bf16.msra.mxu0 %v516
        %616 = vmatpush.bf16.msra.mxu0 %v514
        %617 = vmatpush.bf16.msra.mxu0 %v512
        %618 = vmatpush.bf16.msra.mxu0 %v510
        %619 = vmatpush.bf16.msra.mxu0 %v508
        %620 = vmatmul.bf16.gmra.mxu0 %v388
        %v621 = vpop.f32.mrf.mxu0
        %v622 = vadd.f32 %v603, %v621
        %v623 = vpop.f32.mrf.mxu0
        %v624 = vadd.f32 %v605, %v623
        %625 = vmatmul.bf16.gmra.mxu0 %v390
        %v626 = vpop.f32.mrf.mxu0
        %v627 = vadd.f32 %v608, %v626
        %v628 = vpop.f32.mrf.mxu0
        %v629 = vadd.f32 %v610, %v628
        %630 = vdwg.mxu0
        %v631 = vadd.f32 %v331, %v584
        %v632 = vadd.f32 %v332, %v622
        %v633 = vadd.f32 %v333, %v586
        %v634 = vadd.f32 %v334, %v624
        %v635 = vadd.f32 %v335, %v589
        %v636 = vadd.f32 %v336, %v627
        %v637 = vadd.f32 %v337, %v591
        %v638 = vadd.f32 %v338, %v629
        %639 = vst [vmem:[#allocation2] sm:$0xff] %v631
        %640 = vst [vmem:[#allocation2 + $0x8] sm:$0xff] %v632
        %641 = vst [vmem:[#allocation2 + $0x10] sm:$0xff] %v633
        %642 = vst [vmem:[#allocation2 + $0x18] sm:$0xff] %v634
        %643 = vst [vmem:[#allocation2 + $0x20] sm:$0xff] %v635
        %644 = vst [vmem:[#allocation2 + $0x28] sm:$0xff] %v636
        %645 = vst [vmem:[#allocation2 + $0x30] sm:$0xff] %v637
        %646 = vst [vmem:[#allocation2 + $0x38] sm:$0xff] %v638
        %p647 = scmp.eq.s32.totalorder %s21, 8
        // Predicated region
        $region75: #{scale_estimator_forward.13} parent=65 // pred_check
          %p648 = pneg %p647
        $region76: #{scale_estimator_forward.13} parent=65 // pred_check_branch
          %650 = sbr.rel (%p648) target = $region78
        $region77: #{scale_estimator_forward.13} parent=65 // pred_region
          %v651 = vld [vmem:[#allocation2] sm:$0xff]
          %v652 = vld [vmem:[#allocation2 + $0x8] sm:$0xff]
          %v653 = vld [vmem:[#allocation2 + $0x10] sm:$0xff]
          %v654 = vld [vmem:[#allocation2 + $0x18] sm:$0xff]
          %v655 = vld [vmem:[#allocation2 + $0x20] sm:$0xff]
          %v656 = vld [vmem:[#allocation2 + $0x28] sm:$0xff]
          %v657 = vld [vmem:[#allocation2 + $0x30] sm:$0xff]
          %v658 = vld [vmem:[#allocation2 + $0x38] sm:$0xff]
          %v659 = vld [vmem:[%s305] sm:$0x3]
          %v661 = vperm.slane %v659, 0
          %v662 = vperm.slane %v659, 1
          %v665 = vadd.f32 %v651, %v661
          %v666 = vadd.f32 %v652, %v662
          %v667 = vadd.f32 %v653, %v661
          %v668 = vadd.f32 %v654, %v662
          %v669 = vadd.f32 %v655, %v661
          %v670 = vadd.f32 %v656, %v662
          %v671 = vadd.f32 %v657, %v661
          %v672 = vadd.f32 %v658, %v662
          %v673 = vmax.f32 %v665, 0.0
          %v674 = vmax.f32 %v666, 0.0
          %v675 = vmax.f32 %v667, 0.0
          %v676 = vmax.f32 %v668, 0.0
          %v677 = vmax.f32 %v669, 0.0
          %v678 = vmax.f32 %v670, 0.0
          %v679 = vmax.f32 %v671, 0.0
          %v680 = vmax.f32 %v672, 0.0
          %v681 = vpack.c.bf16 %v674, %v673
          %v682 = vpack.c.bf16 %v676, %v675
          %v683 = vpack.c.bf16 %v678, %v677
          %v684 = vpack.c.bf16 %v680, %v679
          %685 = vst [vmem:[%s316] sm:$0xff] %v681
          %686 = vst [vmem:[%s316 + $0x8] sm:$0xff] %v682
          %687 = vst [vmem:[%s316 + $0x10] sm:$0xff] %v683
          %688 = vst [vmem:[%s316 + $0x18] sm:$0xff] %v684
        $region78: #{scale_estimator_forward.13} parent=65 // pred_fallthru
          _
        %s689 = smul.u32 4, %s19
        %s690 = smul.u32 2, %s20
        %p691 = scmp.lt.s32.totalorder %s689, 3
        %s692 = scalar_select %p691, %s689, 3
        %p693 = scmp.lt.s32.totalorder %s690, 1
        %s694 = scalar_select %p693, %s690, 1
        %s695 = smul.addr %s692, 2
        %s696 = sadd.s32 %s694, %s695
        %s697 = smul.addr %s696, 4
        %s698 = scalar_lea.vmem %s3, %s697
        // Predicated region
        $region79: #{scale_estimator_forward.13} parent=65 // pred_check
          %p699 = pneg %p135
        $region80: #{scale_estimator_forward.13} parent=65 // pred_check_branch
          %701 = sbr.rel (%p699) target = $region82
        $region81: #{scale_estimator_forward.13} parent=65 // pred_region
          %s702 = smul.u32 4, %s19
          %s703 = smul.u32 2, %s20
        $region82: #{scale_estimator_forward.13} parent=65 // pred_fallthru
          _
        // Predicated region
        $region83: #{scale_estimator_forward.13} parent=65 // pred_check
          %p704 = pneg %p135
        $region84: #{scale_estimator_forward.13} parent=65 // pred_check_branch
          %706 = sbr.rel (%p704) target = $region86
        $region85: #{scale_estimator_forward.13} parent=65 // pred_region
          %s707 = smul.u32 4, %s19
          %s708 = smul.u32 2, %s20
          %p709 = scmp.lt.s32.totalorder %s707, 3
          %s710 = scalar_select %p709, %s707, 3
          %p711 = scmp.lt.s32.totalorder %s708, 1
          %s712 = scalar_select %p711, %s708, 1
          %s713 = smul.addr %s710, 2
          %s714 = sadd.s32 %s712, %s713
          %s715 = smul.addr %s714, 4
          %s716 = scalar_lea.vmem %s3, %s715
        $region86: #{scale_estimator_forward.13} parent=65 // pred_fallthru
          _
      $region66: #{scale_estimator_forward.13} parent=5 // pred_fallthru
        _
      %p717 = scmp.le.s32.totalorder 2, %s9
      // Predicated region
      $region87: #{scale_estimator_forward.13} parent=5 // pred_check
        %p718 = pneg %p717
      $region88: #{scale_estimator_forward.13} parent=5 // pred_check_branch
        %720 = sbr.rel (%p718) target = $region90
      $region89: #{scale_estimator_forward.13} parent=5 // pred_region
        %s721 = ssub.s32 %s9, 2
      $region90: #{scale_estimator_forward.13} parent=5 // pred_fallthru
        _
    $region6: #{scale_estimator_forward.13} parent=1 // loop_footer
      %s13 = sadd.s32 1, %s9
    $region7: #{scale_estimator_forward.13} parent=1 // loop_footer_branch
      %8 = sbr.rel target = $region3
    $region8: #{scale_estimator_forward.13} parent=1 // loop_exit
      _

// kernel: scale_estimator_forward.14
$region0: #{scale_estimator_forward.14}
  #allocation0 [shape = 'u32[]', space=smem, size = 0x4, offset = 0x4, fixed_abs, tag = 'smem constant byte address 0x4 - core index']
  #allocation1 [shape = 'u32[72,128]{1,0:T(1,128)}', space=vmem, size = 0x9000, scoped, tag = 'internal scratch']
  #allocation2 [shape = 'f32[32,256]{1,0:T(8,128)}', space=vmem, size = 0x8000, scoped, tag = 'scratch operand']
  %s0 = inlined_call_operand.vmem [shape: bf16[32,1024], index: 0, kind: input, shape index: {}]
  %s1 = inlined_call_operand.vmem [shape: bf16[1024,512], index: 1, kind: input, shape index: {}]
  %s2 = inlined_call_operand.vmem [shape: f32[1,512], index: 2, kind: input, shape index: {}]
  %s3 = inlined_call_operand.vmem [shape: bf16[32,512], index: 3, kind: output, shape index: {}]
  %s4 = sld [smem:[#allocation0]]
  $region148: #{scale_estimator_forward.14} parent=0
    _
  %s6 = ssub.s32 1, %s4
  %s7 = scalar_select 0, %s6, %s4
  $region1: #{scale_estimator_forward.14} parent=0
    #allocation3 [shape = 'u8[65536]{0}', space=vmem, size = 0x10000, scoped, tag = 'input window, operand 0']
    #allocation4 [shape = 'u8[524288]{0}', space=vmem, size = 0x80000, scoped, tag = 'input window, operand 1']
    #allocation5 [shape = 'u8[32768]{0}', space=vmem, size = 0x8000, scoped, tag = 'output window, operand 0']
    loop: start=0, step=1, limit=6
    $region2: #{scale_estimator_forward.14} parent=1 // loop_pre_header
      _
    $region3: #{scale_estimator_forward.14} parent=1 // loop_header
      %s9 = sphi 0, %s13
      %p10 = scmp.ge.s32.totalorder %s9, 6
      %s16 = sphi 0, %s35
      %s17 = sphi 0, %s31
      %s18 = sphi 0, %s27
      %s19 = sphi 0, %s16
      %s20 = sphi 0, %s17
      %s21 = sphi 0, %s18
      %s22 = sphi 0, %s19
      %s23 = sphi 0, %s20
      %s24 = sphi 0, %s21
      %s40 = sphi 0, %s42
      %s43 = sphi 0, %s40
      %s44 = sphi 0, %s43
      %s60 = sphi 0, %s44
      %s68 = sphi 0, %s70
      %s71 = sphi 0, %s68
      %s72 = sphi 0, %s71
      %s88 = sphi 0, %s72
      %s94 = sphi 0, %s96
      %s97 = sphi 0, %s94
      %s98 = sphi 0, %s97
      %s114 = sphi 0, %s98
      %s122 = sphi 0, %s124
      %s125 = sphi 0, %s122
      %s126 = sphi 0, %s125
      %s142 = sphi 0, %s126
    $region4: #{scale_estimator_forward.14} parent=1 // loop_header_branch
      %12 = sbr.rel (%p10) target = $region8
    $region5: #{scale_estimator_forward.14} parent=1 // loop_body
      %s14 = ssub.s32 %s9, 1
      %s15 = ssub.s32 %s9, 2
      %s25 = sadd.s32 1, %s18
      %p26 = scmp.ge.s32.totalorder %s25, 2
      %s27 = scalar_select %p26, 0, %s25
      %s28 = sadd.s32 1, %s17
      %s29 = scalar_select %p26, %s28, %s17
      %p30 = scmp.ge.s32.totalorder %s29, 2
      %s31 = scalar_select %p30, 0, %s29
      %s32 = sadd.s32 1, %s16
      %s33 = scalar_select %p30, %s32, %s16
      %p34 = scmp.ge.s32.totalorder %s33, 1
      %s35 = scalar_select %p34, 0, %s33
      %s36 = ssub.s32 %s16, %s35
      %s37 = ssub.s32 %s18, %s27
      %s38 = sor.u32 %s36, %s37
      %p39 = scmp.eq.s32.totalorder %s38, 0
      %s41 = sadd.s32 %s40, 1
      %s42 = scalar_select %p39, %s40, %s41
      %p45 = pneg %p39
      %p46 = scmp.eq.s32.totalorder %s9, 3
      %p47 = por %p45, %p46
      %p48 = scmp.ne.s32.totalorder %s40, %s43
      %p49 = scmp.eq.s32.totalorder %s9, 0
      %p50 = por %p48, %p49
      %p51 = scmp.ne.s32.totalorder %s40, %s43
      %p52 = scmp.eq.s32.totalorder %s14, 3
      %p53 = por %p51, %p52
      %p54 = scmp.ne.s32.totalorder %s43, %s44
      %p55 = scmp.eq.s32.totalorder %s14, 0
      %p56 = por %p54, %p55
      %p57 = scmp.ne.s32.totalorder %s43, %s44
      %p58 = scmp.eq.s32.totalorder %s15, 3
      %p59 = por %p57, %p58
      %p61 = scmp.ne.s32.totalorder %s44, %s60
      %p62 = scmp.eq.s32.totalorder %s15, 0
      %p63 = por %p61, %p62
      %s64 = ssub.s32 %s18, %s27
      %s65 = ssub.s32 %s17, %s31
      %s66 = sor.u32 %s64, %s65
      %p67 = scmp.eq.s32.totalorder %s66, 0
      %s69 = sadd.s32 %s68, 1
      %s70 = scalar_select %p67, %s68, %s69
      %p73 = pneg %p67
      %p74 = scmp.eq.s32.totalorder %s9, 3
      %p75 = por %p73, %p74
      %p76 = scmp.ne.s32.totalorder %s68, %s71
      %p77 = scmp.eq.s32.totalorder %s9, 0
      %p78 = por %p76, %p77
      %p79 = scmp.ne.s32.totalorder %s68, %s71
      %p80 = scmp.eq.s32.totalorder %s14, 3
      %p81 = por %p79, %p80
      %p82 = scmp.ne.s32.totalorder %s71, %s72
      %p83 = scmp.eq.s32.totalorder %s14, 0
      %p84 = por %p82, %p83
      %p85 = scmp.ne.s32.totalorder %s71, %s72
      %p86 = scmp.eq.s32.totalorder %s15, 3
      %p87 = por %p85, %p86
      %p89 = scmp.ne.s32.totalorder %s72, %s88
      %p90 = scmp.eq.s32.totalorder %s15, 0
      %p91 = por %p89, %p90
      %s92 = ssub.s32 %s17, %s31
      %p93 = scmp.eq.s32.totalorder %s92, 0
      %s95 = sadd.s32 %s94, 1
      %s96 = scalar_select %p93, %s94, %s95
      %p99 = pneg %p93
      %p100 = scmp.eq.s32.totalorder %s9, 3
      %p101 = por %p99, %p100
      %p102 = scmp.ne.s32.totalorder %s94, %s97
      %p103 = scmp.eq.s32.totalorder %s9, 0
      %p104 = por %p102, %p103
      %p105 = scmp.ne.s32.totalorder %s94, %s97
      %p106 = scmp.eq.s32.totalorder %s14, 3
      %p107 = por %p105, %p106
      %p108 = scmp.ne.s32.totalorder %s97, %s98
      %p109 = scmp.eq.s32.totalorder %s14, 0
      %p110 = por %p108, %p109
      %p111 = scmp.ne.s32.totalorder %s97, %s98
      %p112 = scmp.eq.s32.totalorder %s15, 3
      %p113 = por %p111, %p112
      %p115 = scmp.ne.s32.totalorder %s98, %s114
      %p116 = scmp.eq.s32.totalorder %s15, 0
      %p117 = por %p115, %p116
      %s118 = ssub.s32 %s16, %s35
      %s119 = ssub.s32 %s17, %s31
      %s120 = sor.u32 %s118, %s119
      %p121 = scmp.eq.s32.totalorder %s120, 0
      %s123 = sadd.s32 %s122, 1
      %s124 = scalar_select %p121, %s122, %s123
      %p127 = pneg %p121
      %p128 = scmp.eq.s32.totalorder %s9, 3
      %p129 = por %p127, %p128
      %p130 = scmp.ne.s32.totalorder %s122, %s125
      %p131 = scmp.eq.s32.totalorder %s9, 0
      %p132 = por %p130, %p131
      %p133 = scmp.ne.s32.totalorder %s122, %s125
      %p134 = scmp.eq.s32.totalorder %s14, 3
      %p135 = por %p133, %p134
      %p136 = scmp.ne.s32.totalorder %s125, %s126
      %p137 = scmp.eq.s32.totalorder %s14, 0
      %p138 = por %p136, %p137
      %p139 = scmp.ne.s32.totalorder %s125, %s126
      %p140 = scmp.eq.s32.totalorder %s15, 3
      %p141 = por %p139, %p140
      %p143 = scmp.ne.s32.totalorder %s126, %s142
      %p144 = scmp.eq.s32.totalorder %s15, 0
      %p145 = por %p143, %p144
      %p146 = scmp.le.s32.totalorder 1, %s9
      %p147 = scmp.lt.s32.totalorder %s9, 5
      %p148 = pnand %p146, %p147
      %p149 = pneg %p148
      // Predicated region
      $region9: #{scale_estimator_forward.14} parent=5 // pred_check
        _
      $region10: #{scale_estimator_forward.14} parent=5 // pred_check_branch
        %151 = sbr.rel (%p148) target = $region12
      $region11: #{scale_estimator_forward.14} parent=5 // pred_region
        %s152 = ssub.s32 %s9, 1
      $region12: #{scale_estimator_forward.14} parent=5 // pred_fallthru
        _
      %p153 = scmp.lt.s32.totalorder %s9, 4
      // Predicated region
      $region13: #{scale_estimator_forward.14} parent=5 // pred_check
        %p154 = pneg %p153
      $region14: #{scale_estimator_forward.14} parent=5 // pred_check_branch
        %156 = sbr.rel (%p154) target = $region16
      $region15: #{scale_estimator_forward.14} parent=5 // pred_region
        // Predicated region
        $region17: #{scale_estimator_forward.14} parent=15 // pred_check
          %p157 = pneg %p50
        $region18: #{scale_estimator_forward.14} parent=15 // pred_check_branch
          %159 = sbr.rel (%p157) target = $region20
        $region19: #{scale_estimator_forward.14} parent=15 // pred_region
          %s160 = sand.u32 %s40, 1
          %s161 = sand.u32 %s40, 1
          %s162 = smul.addr %s161, 64
          %s163 = scalar_lea.vmem [#allocation3], %s162
          %s164 = smul.u32 4, %s16
          %s165 = smul.u32 4, %s18
          %s166 = smul.addr %s164, 8
          %s167 = sadd.s32 %s165, %s166
          %s168 = smul.addr %s167, 4
          %s169 = scalar_lea.vmem %s0, %s168
          // Predicated region
          $region21: #{scale_estimator_forward.14} parent=19 // pred_check
            _
          $region22: #{scale_estimator_forward.14} parent=19 // pred_check_branch
            %171 = sbr.rel (0) target = $region24
          $region23: #{scale_estimator_forward.14} parent=19 // pred_region
            // Predicated region
            $region25: #{scale_estimator_forward.14} parent=23 // pred_check
              _
            $region26: #{scale_estimator_forward.14} parent=23 // pred_check_branch
              %173 = sbr.rel (0) target = $region28
            $region27: #{scale_estimator_forward.14} parent=23 // pred_region
              loop: start=0, step=1, limit=1
              $region29: #{scale_estimator_forward.14} parent=27 // loop_pre_header
                _
              $region30: #{scale_estimator_forward.14} parent=27 // loop_header
                %s175 = sphi 0, %s179
                %p176 = scmp.ge.s32.totalorder %s175, 1
                %s180 = sphi %s169, %s169
                %s181 = sphi %s163, %s163
              $region31: #{scale_estimator_forward.14} parent=27 // loop_header_branch
                %178 = sbr.rel (%p176) target = $region35
              $region32: #{scale_estimator_forward.14} parent=27 // loop_body
                %v182 = vld [vmem:[%s180] sm:$0xff]
                %183 = vst [vmem:[%s181] sm:$0xff] %v182
                %v184 = vld [vmem:[%s180 + $0x8] sm:$0xff]
                %185 = vst [vmem:[%s181 + $0x8] sm:$0xff] %v184
                %v186 = vld [vmem:[%s180 + $0x20] sm:$0xff]
                %187 = vst [vmem:[%s181 + $0x10] sm:$0xff] %v186
                %v188 = vld [vmem:[%s180 + $0x28] sm:$0xff]
                %189 = vst [vmem:[%s181 + $0x18] sm:$0xff] %v188
                %v190 = vld [vmem:[%s180 + $0x40] sm:$0xff]
                %191 = vst [vmem:[%s181 + $0x20] sm:$0xff] %v190
                %v192 = vld [vmem:[%s180 + $0x48] sm:$0xff]
                %193 = vst [vmem:[%s181 + $0x28] sm:$0xff] %v192
                %v194 = vld [vmem:[%s180 + $0x60] sm:$0xff]
                %195 = vst [vmem:[%s181 + $0x30] sm:$0xff] %v194
                %v196 = vld [vmem:[%s180 + $0x68] sm:$0xff]
                %197 = vst [vmem:[%s181 + $0x38] sm:$0xff] %v196
              $region33: #{scale_estimator_forward.14} parent=27 // loop_footer
                %s179 = sadd.s32 1, %s175
              $region34: #{scale_estimator_forward.14} parent=27 // loop_footer_branch
                %174 = sbr.rel target = $region30
              $region35: #{scale_estimator_forward.14} parent=27 // loop_exit
                _
            $region28: #{scale_estimator_forward.14} parent=23 // pred_fallthru
              _
            // Predicated region
            $region36: #{scale_estimator_forward.14} parent=23 // pred_check
              _
            $region37: #{scale_estimator_forward.14} parent=23 // pred_check_branch
              %199 = sbr.rel target = $region39
            $region38: #{scale_estimator_forward.14} parent=23 // pred_region
              _
            $region39: #{scale_estimator_forward.14} parent=23 // pred_fallthru
              _
          $region24: #{scale_estimator_forward.14} parent=19 // pred_fallthru
            _
          %200 = vnop
        $region20: #{scale_estimator_forward.14} parent=15 // pred_fallthru
          _
        // Predicated region
        $region40: #{scale_estimator_forward.14} parent=15 // pred_check
          %p201 = pneg %p78
        $region41: #{scale_estimator_forward.14} parent=15 // pred_check_branch
          %203 = sbr.rel (%p201) target = $region43
        $region42: #{scale_estimator_forward.14} parent=15 // pred_region
          %s204 = sand.u32 %s68, 1
          %s205 = sand.u32 %s68, 1
          %s206 = smul.addr %s205, 512
          %s207 = scalar_lea.vmem [#allocation4], %s206
          %s208 = smul.u32 64, %s18
          %s209 = smul.u32 2, %s17
          %s210 = smul.addr %s208, 4
          %s211 = sadd.s32 %s209, %s210
          %s212 = smul.addr %s211, 4
          %s213 = scalar_lea.vmem %s1, %s212
          // Predicated region
          $region44: #{scale_estimator_forward.14} parent=42 // pred_check
            _
          $region45: #{scale_estimator_forward.14} parent=42 // pred_check_branch
            %215 = sbr.rel (0) target = $region47
          $region46: #{scale_estimator_forward.14} parent=42 // pred_region
            // Predicated region
            $region48: #{scale_estimator_forward.14} parent=46 // pred_check
              _
            $region49: #{scale_estimator_forward.14} parent=46 // pred_check_branch
              %217 = sbr.rel (0) target = $region51
            $region50: #{scale_estimator_forward.14} parent=46 // pred_region
              // Predicated region
              $region63: #{scale_estimator_forward.14} parent=50 // pred_check
                _
              $region64: #{scale_estimator_forward.14} parent=50 // pred_check_branch
                %359 = sbr.rel (0) target = $region66
              $region65: #{scale_estimator_forward.14} parent=50 // pred_region
                loop: start=0, step=1, limit=1
                $region67: #{scale_estimator_forward.14} parent=65 // loop_pre_header
                  _
                $region68: #{scale_estimator_forward.14} parent=65 // loop_header
                  %s361 = sphi 0, %s365
                  %p362 = scmp.ge.s32.totalorder %s361, 1
                  %s366 = sphi %s213, %s213
                  %s367 = sphi %s207, %s207
                $region69: #{scale_estimator_forward.14} parent=65 // loop_header_branch
                  %364 = sbr.rel (%p362) target = $region73
                $region70: #{scale_estimator_forward.14} parent=65 // loop_body
                  %v368 = vld [vmem:[%s366] sm:$0xff]
                  %369 = vst [vmem:[%s367] sm:$0xff] %v368
                  %v370 = vld [vmem:[%s366 + $0x10] sm:$0xff]
                  %371 = vst [vmem:[%s367 + $0x8] sm:$0xff] %v370
                  %v372 = vld [vmem:[%s366 + $0x20] sm:$0xff]
                  %373 = vst [vmem:[%s367 + $0x10] sm:$0xff] %v372
                  %v374 = vld [vmem:[%s366 + $0x30] sm:$0xff]
                  %375 = vst [vmem:[%s367 + $0x18] sm:$0xff] %v374
                  %v376 = vld [vmem:[%s366 + $0x40] sm:$0xff]
                  %377 = vst [vmem:[%s367 + $0x20] sm:$0xff] %v376
                  %v378 = vld [vmem:[%s366 + $0x50] sm:$0xff]
                  %379 = vst [vmem:[%s367 + $0x28] sm:$0xff] %v378
                  %v380 = vld [vmem:[%s366 + $0x60] sm:$0xff]
                  %381 = vst [vmem:[%s367 + $0x30] sm:$0xff] %v380
                  %v382 = vld [vmem:[%s366 + $0x70] sm:$0xff]
                  %383 = vst [vmem:[%s367 + $0x38] sm:$0xff] %v382
                  %v384 = vld [vmem:[%s366 + $0x80] sm:$0xff]
                  %385 = vst [vmem:[%s367 + $0x40] sm:$0xff] %v384
                  %v386 = vld [vmem:[%s366 + $0x90] sm:$0xff]
                  %387 = vst [vmem:[%s367 + $0x48] sm:$0xff] %v386
                  %v388 = vld [vmem:[%s366 + $0xa0] sm:$0xff]
                  %389 = vst [vmem:[%s367 + $0x50] sm:$0xff] %v388
                  %v390 = vld [vmem:[%s366 + $0xb0] sm:$0xff]
                  %391 = vst [vmem:[%s367 + $0x58] sm:$0xff] %v390
                  %v392 = vld [vmem:[%s366 + $0xc0] sm:$0xff]
                  %393 = vst [vmem:[%s367 + $0x60] sm:$0xff] %v392
                  %v394 = vld [vmem:[%s366 + $0xd0] sm:$0xff]
                  %395 = vst [vmem:[%s367 + $0x68] sm:$0xff] %v394
                  %v396 = vld [vmem:[%s366 + $0xe0] sm:$0xff]
                  %397 = vst [vmem:[%s367 + $0x70] sm:$0xff] %v396
                  %v398 = vld [vmem:[%s366 + $0xf0] sm:$0xff]
                  %399 = vst [vmem:[%s367 + $0x78] sm:$0xff] %v398
                  %v400 = vld [vmem:[%s366 + $0x100] sm:$0xff]
                  %401 = vst [vmem:[%s367 + $0x80] sm:$0xff] %v400
                  %v402 = vld [vmem:[%s366 + $0x110] sm:$0xff]
                  %403 = vst [vmem:[%s367 + $0x88] sm:$0xff] %v402
                  %v404 = vld [vmem:[%s366 + $0x120] sm:$0xff]
                  %405 = vst [vmem:[%s367 + $0x90] sm:$0xff] %v404
                  %v406 = vld [vmem:[%s366 + $0x130] sm:$0xff]
                  %407 = vst [vmem:[%s367 + $0x98] sm:$0xff] %v406
                  %v408 = vld [vmem:[%s366 + $0x140] sm:$0xff]
                  %409 = vst [vmem:[%s367 + $0xa0] sm:$0xff] %v408
                  %v410 = vld [vmem:[%s366 + $0x150] sm:$0xff]
                  %411 = vst [vmem:[%s367 + $0xa8] sm:$0xff] %v410
                  %v412 = vld [vmem:[%s366 + $0x160] sm:$0xff]
                  %413 = vst [vmem:[%s367 + $0xb0] sm:$0xff] %v412
                  %v414 = vld [vmem:[%s366 + $0x170] sm:$0xff]
                  %415 = vst [vmem:[%s367 + $0xb8] sm:$0xff] %v414
                  %v416 = vld [vmem:[%s366 + $0x180] sm:$0xff]
                  %417 = vst [vmem:[%s367 + $0xc0] sm:$0xff] %v416
                  %v418 = vld [vmem:[%s366 + $0x190] sm:$0xff]
                  %419 = vst [vmem:[%s367 + $0xc8] sm:$0xff] %v418
                  %v420 = vld [vmem:[%s366 + $0x1a0] sm:$0xff]
                  %421 = vst [vmem:[%s367 + $0xd0] sm:$0xff] %v420
                  %v422 = vld [vmem:[%s366 + $0x1b0] sm:$0xff]
                  %423 = vst [vmem:[%s367 + $0xd8] sm:$0xff] %v422
                  %v424 = vld [vmem:[%s366 + $0x1c0] sm:$0xff]
                  %425 = vst [vmem:[%s367 + $0xe0] sm:$0xff] %v424
                  %v426 = vld [vmem:[%s366 + $0x1d0] sm:$0xff]
                  %427 = vst [vmem:[%s367 + $0xe8] sm:$0xff] %v426
                  %v428 = vld [vmem:[%s366 + $0x1e0] sm:$0xff]
                  %429 = vst [vmem:[%s367 + $0xf0] sm:$0xff] %v428
                  %v430 = vld [vmem:[%s366 + $0x1f0] sm:$0xff]
                  %431 = vst [vmem:[%s367 + $0xf8] sm:$0xff] %v430
                  %v432 = vld [vmem:[%s366 + $0x200] sm:$0xff]
                  %433 = vst [vmem:[%s367 + $0x100] sm:$0xff] %v432
                  %v434 = vld [vmem:[%s366 + $0x210] sm:$0xff]
                  %435 = vst [vmem:[%s367 + $0x108] sm:$0xff] %v434
                  %v436 = vld [vmem:[%s366 + $0x220] sm:$0xff]
                  %437 = vst [vmem:[%s367 + $0x110] sm:$0xff] %v436
                  %v438 = vld [vmem:[%s366 + $0x230] sm:$0xff]
                  %439 = vst [vmem:[%s367 + $0x118] sm:$0xff] %v438
                  %v440 = vld [vmem:[%s366 + $0x240] sm:$0xff]
                  %441 = vst [vmem:[%s367 + $0x120] sm:$0xff] %v440
                  %v442 = vld [vmem:[%s366 + $0x250] sm:$0xff]
                  %443 = vst [vmem:[%s367 + $0x128] sm:$0xff] %v442
                  %v444 = vld [vmem:[%s366 + $0x260] sm:$0xff]
                  %445 = vst [vmem:[%s367 + $0x130] sm:$0xff] %v444
                  %v446 = vld [vmem:[%s366 + $0x270] sm:$0xff]
                  %447 = vst [vmem:[%s367 + $0x138] sm:$0xff] %v446
                  %v448 = vld [vmem:[%s366 + $0x280] sm:$0xff]
                  %449 = vst [vmem:[%s367 + $0x140] sm:$0xff] %v448
                  %v450 = vld [vmem:[%s366 + $0x290] sm:$0xff]
                  %451 = vst [vmem:[%s367 + $0x148] sm:$0xff] %v450
                  %v452 = vld [vmem:[%s366 + $0x2a0] sm:$0xff]
                  %453 = vst [vmem:[%s367 + $0x150] sm:$0xff] %v452
                  %v454 = vld [vmem:[%s366 + $0x2b0] sm:$0xff]
                  %455 = vst [vmem:[%s367 + $0x158] sm:$0xff] %v454
                  %v456 = vld [vmem:[%s366 + $0x2c0] sm:$0xff]
                  %457 = vst [vmem:[%s367 + $0x160] sm:$0xff] %v456
                  %v458 = vld [vmem:[%s366 + $0x2d0] sm:$0xff]
                  %459 = vst [vmem:[%s367 + $0x168] sm:$0xff] %v458
                  %v460 = vld [vmem:[%s366 + $0x2e0] sm:$0xff]
                  %461 = vst [vmem:[%s367 + $0x170] sm:$0xff] %v460
                  %v462 = vld [vmem:[%s366 + $0x2f0] sm:$0xff]
                  %463 = vst [vmem:[%s367 + $0x178] sm:$0xff] %v462
                  %v464 = vld [vmem:[%s366 + $0x300] sm:$0xff]
                  %465 = vst [vmem:[%s367 + $0x180] sm:$0xff] %v464
                  %v466 = vld [vmem:[%s366 + $0x310] sm:$0xff]
                  %467 = vst [vmem:[%s367 + $0x188] sm:$0xff] %v466
                  %v468 = vld [vmem:[%s366 + $0x320] sm:$0xff]
                  %469 = vst [vmem:[%s367 + $0x190] sm:$0xff] %v468
                  %v470 = vld [vmem:[%s366 + $0x330] sm:$0xff]
                  %471 = vst [vmem:[%s367 + $0x198] sm:$0xff] %v470
                  %v472 = vld [vmem:[%s366 + $0x340] sm:$0xff]
                  %473 = vst [vmem:[%s367 + $0x1a0] sm:$0xff] %v472
                  %v474 = vld [vmem:[%s366 + $0x350] sm:$0xff]
                  %475 = vst [vmem:[%s367 + $0x1a8] sm:$0xff] %v474
                  %v476 = vld [vmem:[%s366 + $0x360] sm:$0xff]
                  %477 = vst [vmem:[%s367 + $0x1b0] sm:$0xff] %v476
                  %v478 = vld [vmem:[%s366 + $0x370] sm:$0xff]
                  %479 = vst [vmem:[%s367 + $0x1b8] sm:$0xff] %v478
                  %v480 = vld [vmem:[%s366 + $0x380] sm:$0xff]
                  %481 = vst [vmem:[%s367 + $0x1c0] sm:$0xff] %v480
                  %v482 = vld [vmem:[%s366 + $0x390] sm:$0xff]
                  %483 = vst [vmem:[%s367 + $0x1c8] sm:$0xff] %v482
                  %v484 = vld [vmem:[%s366 + $0x3a0] sm:$0xff]
                  %485 = vst [vmem:[%s367 + $0x1d0] sm:$0xff] %v484
                  %v486 = vld [vmem:[%s366 + $0x3b0] sm:$0xff]
                  %487 = vst [vmem:[%s367 + $0x1d8] sm:$0xff] %v486
                  %v488 = vld [vmem:[%s366 + $0x3c0] sm:$0xff]
                  %489 = vst [vmem:[%s367 + $0x1e0] sm:$0xff] %v488
                  %v490 = vld [vmem:[%s366 + $0x3d0] sm:$0xff]
                  %491 = vst [vmem:[%s367 + $0x1e8] sm:$0xff] %v490
                  %v492 = vld [vmem:[%s366 + $0x3e0] sm:$0xff]
                  %493 = vst [vmem:[%s367 + $0x1f0] sm:$0xff] %v492
                  %v494 = vld [vmem:[%s366 + $0x3f0] sm:$0xff]
                  %495 = vst [vmem:[%s367 + $0x1f8] sm:$0xff] %v494
                $region71: #{scale_estimator_forward.14} parent=65 // loop_footer
                  %s365 = sadd.s32 1, %s361
                $region72: #{scale_estimator_forward.14} parent=65 // loop_footer_branch
                  %360 = sbr.rel target = $region68
                $region73: #{scale_estimator_forward.14} parent=65 // loop_exit
                  _
              $region66: #{scale_estimator_forward.14} parent=50 // pred_fallthru
                _
              // Predicated region
              $region74: #{scale_estimator_forward.14} parent=50 // pred_check
                _
              $region75: #{scale_estimator_forward.14} parent=50 // pred_check_branch
                %497 = sbr.rel target = $region77
              $region76: #{scale_estimator_forward.14} parent=50 // pred_region
                _
              $region77: #{scale_estimator_forward.14} parent=50 // pred_fallthru
                _
            $region51: #{scale_estimator_forward.14} parent=46 // pred_fallthru
              _
            // Predicated region
            $region52: #{scale_estimator_forward.14} parent=46 // pred_check
              _
            $region53: #{scale_estimator_forward.14} parent=46 // pred_check_branch
              %219 = sbr.rel target = $region55
            $region54: #{scale_estimator_forward.14} parent=46 // pred_region
              %s221 = ssub.s32 256, 1
              loop: start=0, step=1, limit=1
              $region56: #{scale_estimator_forward.14} parent=54 // loop_pre_header
                _
              $region57: #{scale_estimator_forward.14} parent=54 // loop_header
                %s223 = sphi 0, %s227
                %p224 = scmp.ge.s32.totalorder %s223, 1
                %s228 = sphi %s213, %s213
                %s229 = sphi %s207, %s207
              $region58: #{scale_estimator_forward.14} parent=54 // loop_header_branch
                %226 = sbr.rel (%p224) target = $region62
              $region59: #{scale_estimator_forward.14} parent=54 // loop_body
                %v230 = vld [vmem:[%s228] sm:%s221]
                %231 = vst [vmem:[%s229] sm:%s221] %v230
                %v232 = vld [vmem:[%s228 + $0x10] sm:%s221]
                %233 = vst [vmem:[%s229 + $0x8] sm:%s221] %v232
                %v234 = vld [vmem:[%s228 + $0x20] sm:%s221]
                %235 = vst [vmem:[%s229 + $0x10] sm:%s221] %v234
                %v236 = vld [vmem:[%s228 + $0x30] sm:%s221]
                %237 = vst [vmem:[%s229 + $0x18] sm:%s221] %v236
                %v238 = vld [vmem:[%s228 + $0x40] sm:%s221]
                %239 = vst [vmem:[%s229 + $0x20] sm:%s221] %v238
                %v240 = vld [vmem:[%s228 + $0x50] sm:%s221]
                %241 = vst [vmem:[%s229 + $0x28] sm:%s221] %v240
                %v242 = vld [vmem:[%s228 + $0x60] sm:%s221]
                %243 = vst [vmem:[%s229 + $0x30] sm:%s221] %v242
                %v244 = vld [vmem:[%s228 + $0x70] sm:%s221]
                %245 = vst [vmem:[%s229 + $0x38] sm:%s221] %v244
                %v246 = vld [vmem:[%s228 + $0x80] sm:%s221]
                %247 = vst [vmem:[%s229 + $0x40] sm:%s221] %v246
                %v248 = vld [vmem:[%s228 + $0x90] sm:%s221]
                %249 = vst [vmem:[%s229 + $0x48] sm:%s221] %v248
                %v250 = vld [vmem:[%s228 + $0xa0] sm:%s221]
                %251 = vst [vmem:[%s229 + $0x50] sm:%s221] %v250
                %v252 = vld [vmem:[%s228 + $0xb0] sm:%s221]
                %253 = vst [vmem:[%s229 + $0x58] sm:%s221] %v252
                %v254 = vld [vmem:[%s228 + $0xc0] sm:%s221]
                %255 = vst [vmem:[%s229 + $0x60] sm:%s221] %v254
                %v256 = vld [vmem:[%s228 + $0xd0] sm:%s221]
                %257 = vst [vmem:[%s229 + $0x68] sm:%s221] %v256
                %v258 = vld [vmem:[%s228 + $0xe0] sm:%s221]
                %259 = vst [vmem:[%s229 + $0x70] sm:%s221] %v258
                %v260 = vld [vmem:[%s228 + $0xf0] sm:%s221]
                %261 = vst [vmem:[%s229 + $0x78] sm:%s221] %v260
                %v262 = vld [vmem:[%s228 + $0x100] sm:%s221]
                %263 = vst [vmem:[%s229 + $0x80] sm:%s221] %v262
                %v264 = vld [vmem:[%s228 + $0x110] sm:%s221]
                %265 = vst [vmem:[%s229 + $0x88] sm:%s221] %v264
                %v266 = vld [vmem:[%s228 + $0x120] sm:%s221]
                %267 = vst [vmem:[%s229 + $0x90] sm:%s221] %v266
                %v268 = vld [vmem:[%s228 + $0x130] sm:%s221]
                %269 = vst [vmem:[%s229 + $0x98] sm:%s221] %v268
                %v270 = vld [vmem:[%s228 + $0x140] sm:%s221]
                %271 = vst [vmem:[%s229 + $0xa0] sm:%s221] %v270
                %v272 = vld [vmem:[%s228 + $0x150] sm:%s221]
                %273 = vst [vmem:[%s229 + $0xa8] sm:%s221] %v272
                %v274 = vld [vmem:[%s228 + $0x160] sm:%s221]
                %275 = vst [vmem:[%s229 + $0xb0] sm:%s221] %v274
                %v276 = vld [vmem:[%s228 + $0x170] sm:%s221]
                %277 = vst [vmem:[%s229 + $0xb8] sm:%s221] %v276
                %v278 = vld [vmem:[%s228 + $0x180] sm:%s221]
                %279 = vst [vmem:[%s229 + $0xc0] sm:%s221] %v278
                %v280 = vld [vmem:[%s228 + $0x190] sm:%s221]
                %281 = vst [vmem:[%s229 + $0xc8] sm:%s221] %v280
                %v282 = vld [vmem:[%s228 + $0x1a0] sm:%s221]
                %283 = vst [vmem:[%s229 + $0xd0] sm:%s221] %v282
                %v284 = vld [vmem:[%s228 + $0x1b0] sm:%s221]
                %285 = vst [vmem:[%s229 + $0xd8] sm:%s221] %v284
                %v286 = vld [vmem:[%s228 + $0x1c0] sm:%s221]
                %287 = vst [vmem:[%s229 + $0xe0] sm:%s221] %v286
                %v288 = vld [vmem:[%s228 + $0x1d0] sm:%s221]
                %289 = vst [vmem:[%s229 + $0xe8] sm:%s221] %v288
                %v290 = vld [vmem:[%s228 + $0x1e0] sm:%s221]
                %291 = vst [vmem:[%s229 + $0xf0] sm:%s221] %v290
                %v292 = vld [vmem:[%s228 + $0x1f0] sm:%s221]
                %293 = vst [vmem:[%s229 + $0xf8] sm:%s221] %v292
                %v294 = vld [vmem:[%s228 + $0x200] sm:%s221]
                %295 = vst [vmem:[%s229 + $0x100] sm:%s221] %v294
                %v296 = vld [vmem:[%s228 + $0x210] sm:%s221]
                %297 = vst [vmem:[%s229 + $0x108] sm:%s221] %v296
                %v298 = vld [vmem:[%s228 + $0x220] sm:%s221]
                %299 = vst [vmem:[%s229 + $0x110] sm:%s221] %v298
                %v300 = vld [vmem:[%s228 + $0x230] sm:%s221]
                %301 = vst [vmem:[%s229 + $0x118] sm:%s221] %v300
                %v302 = vld [vmem:[%s228 + $0x240] sm:%s221]
                %303 = vst [vmem:[%s229 + $0x120] sm:%s221] %v302
                %v304 = vld [vmem:[%s228 + $0x250] sm:%s221]
                %305 = vst [vmem:[%s229 + $0x128] sm:%s221] %v304
                %v306 = vld [vmem:[%s228 + $0x260] sm:%s221]
                %307 = vst [vmem:[%s229 + $0x130] sm:%s221] %v306
                %v308 = vld [vmem:[%s228 + $0x270] sm:%s221]
                %309 = vst [vmem:[%s229 + $0x138] sm:%s221] %v308
                %v310 = vld [vmem:[%s228 + $0x280] sm:%s221]
                %311 = vst [vmem:[%s229 + $0x140] sm:%s221] %v310
                %v312 = vld [vmem:[%s228 + $0x290] sm:%s221]
                %313 = vst [vmem:[%s229 + $0x148] sm:%s221] %v312
                %v314 = vld [vmem:[%s228 + $0x2a0] sm:%s221]
                %315 = vst [vmem:[%s229 + $0x150] sm:%s221] %v314
                %v316 = vld [vmem:[%s228 + $0x2b0] sm:%s221]
                %317 = vst [vmem:[%s229 + $0x158] sm:%s221] %v316
                %v318 = vld [vmem:[%s228 + $0x2c0] sm:%s221]
                %319 = vst [vmem:[%s229 + $0x160] sm:%s221] %v318
                %v320 = vld [vmem:[%s228 + $0x2d0] sm:%s221]
                %321 = vst [vmem:[%s229 + $0x168] sm:%s221] %v320
                %v322 = vld [vmem:[%s228 + $0x2e0] sm:%s221]
                %323 = vst [vmem:[%s229 + $0x170] sm:%s221] %v322
                %v324 = vld [vmem:[%s228 + $0x2f0] sm:%s221]
                %325 = vst [vmem:[%s229 + $0x178] sm:%s221] %v324
                %v326 = vld [vmem:[%s228 + $0x300] sm:%s221]
                %327 = vst [vmem:[%s229 + $0x180] sm:%s221] %v326
                %v328 = vld [vmem:[%s228 + $0x310] sm:%s221]
                %329 = vst [vmem:[%s229 + $0x188] sm:%s221] %v328
                %v330 = vld [vmem:[%s228 + $0x320] sm:%s221]
                %331 = vst [vmem:[%s229 + $0x190] sm:%s221] %v330
                %v332 = vld [vmem:[%s228 + $0x330] sm:%s221]
                %333 = vst [vmem:[%s229 + $0x198] sm:%s221] %v332
                %v334 = vld [vmem:[%s228 + $0x340] sm:%s221]
                %335 = vst [vmem:[%s229 + $0x1a0] sm:%s221] %v334
                %v336 = vld [vmem:[%s228 + $0x350] sm:%s221]
                %337 = vst [vmem:[%s229 + $0x1a8] sm:%s221] %v336
                %v338 = vld [vmem:[%s228 + $0x360] sm:%s221]
                %339 = vst [vmem:[%s229 + $0x1b0] sm:%s221] %v338
                %v340 = vld [vmem:[%s228 + $0x370] sm:%s221]
                %341 = vst [vmem:[%s229 + $0x1b8] sm:%s221] %v340
                %v342 = vld [vmem:[%s228 + $0x380] sm:%s221]
                %343 = vst [vmem:[%s229 + $0x1c0] sm:%s221] %v342
                %v344 = vld [vmem:[%s228 + $0x390] sm:%s221]
                %345 = vst [vmem:[%s229 + $0x1c8] sm:%s221] %v344
                %v346 = vld [vmem:[%s228 + $0x3a0] sm:%s221]
                %347 = vst [vmem:[%s229 + $0x1d0] sm:%s221] %v346
                %v348 = vld [vmem:[%s228 + $0x3b0] sm:%s221]
                %349 = vst [vmem:[%s229 + $0x1d8] sm:%s221] %v348
                %v350 = vld [vmem:[%s228 + $0x3c0] sm:%s221]
                %351 = vst [vmem:[%s229 + $0x1e0] sm:%s221] %v350
                %v352 = vld [vmem:[%s228 + $0x3d0] sm:%s221]
                %353 = vst [vmem:[%s229 + $0x1e8] sm:%s221] %v352
                %v354 = vld [vmem:[%s228 + $0x3e0] sm:%s221]
                %355 = vst [vmem:[%s229 + $0x1f0] sm:%s221] %v354
                %v356 = vld [vmem:[%s228 + $0x3f0] sm:%s221]
                %357 = vst [vmem:[%s229 + $0x1f8] sm:%s221] %v356
              $region60: #{scale_estimator_forward.14} parent=54 // loop_footer
                %s227 = sadd.s32 1, %s223
              $region61: #{scale_estimator_forward.14} parent=54 // loop_footer_branch
                %222 = sbr.rel target = $region57
              $region62: #{scale_estimator_forward.14} parent=54 // loop_exit
                _
            $region55: #{scale_estimator_forward.14} parent=46 // pred_fallthru
              _
          $region47: #{scale_estimator_forward.14} parent=42 // pred_fallthru
            _
          %498 = vnop
        $region43: #{scale_estimator_forward.14} parent=15 // pred_fallthru
          _
        // Predicated region
        $region78: #{scale_estimator_forward.14} parent=15 // pred_check
          %p499 = pneg %p104
        $region79: #{scale_estimator_forward.14} parent=15 // pred_check_branch
          %501 = sbr.rel (%p499) target = $region81
        $region80: #{scale_estimator_forward.14} parent=15 // pred_region
          %s502 = smul.u32 2, %s17
          %p503 = scmp.lt.s32.totalorder %s502, 3
          %s504 = scalar_select %p503, %s502, 3
          %s505 = scalar_lea.vmem %s2, %s504
          %s506 = smul.u32 2, %s17
        $region81: #{scale_estimator_forward.14} parent=15 // pred_fallthru
          _
      $region16: #{scale_estimator_forward.14} parent=5 // pred_fallthru
        _
      %p507 = scmp.le.s32.totalorder 1, %s9
      %p508 = scmp.lt.s32.totalorder %s9, 5
      %p509 = pnand %p507, %p508
      %p510 = pneg %p509
      // Predicated region
      $region82: #{scale_estimator_forward.14} parent=5 // pred_check
        _
      $region83: #{scale_estimator_forward.14} parent=5 // pred_check_branch
        %512 = sbr.rel (%p509) target = $region85
      $region84: #{scale_estimator_forward.14} parent=5 // pred_region
        %s513 = ssub.s32 %s9, 1
        %s514 = sand.u32 %s43, 1
        %s515 = sand.u32 %s43, 1
        %s516 = smul.addr %s515, 64
        %s517 = scalar_lea.vmem [#allocation3], %s516
        // Predicated region
        $region86: #{scale_estimator_forward.14} parent=84 // pred_check
          %p518 = pneg %p56
        $region87: #{scale_estimator_forward.14} parent=84 // pred_check_branch
          %520 = sbr.rel (%p518) target = $region89
        $region88: #{scale_estimator_forward.14} parent=84 // pred_region
          _
        $region89: #{scale_estimator_forward.14} parent=84 // pred_fallthru
          _
        %s521 = sand.u32 %s71, 1
        %s522 = sand.u32 %s71, 1
        %s523 = smul.addr %s522, 512
        %s524 = scalar_lea.vmem [#allocation4], %s523
        // Predicated region
        $region90: #{scale_estimator_forward.14} parent=84 // pred_check
          %p525 = pneg %p84
        $region91: #{scale_estimator_forward.14} parent=84 // pred_check_branch
          %527 = sbr.rel (%p525) target = $region93
        $region92: #{scale_estimator_forward.14} parent=84 // pred_region
          _
        $region93: #{scale_estimator_forward.14} parent=84 // pred_fallthru
          _
        %s528 = sand.u32 %s43, 1
        %s529 = sand.u32 %s43, 1
        %s530 = smul.addr %s529, 64
        %s531 = scalar_lea.vmem [#allocation3], %s530
        %p532 = pneg %p56
        %p533 = pneg %p53
        %s534 = sand.u32 %s71, 1
        %s535 = sand.u32 %s71, 1
        %s536 = smul.addr %s535, 512
        %s537 = scalar_lea.vmem [#allocation4], %s536
        %p538 = pneg %p84
        %p539 = pneg %p81
        %s540 = smul.u32 2, %s20
        %p541 = scmp.lt.s32.totalorder %s540, 3
        %s542 = scalar_select %p541, %s540, 3
        %s543 = scalar_lea.vmem %s2, %s542
        %p544 = pneg %p110
        %p545 = pneg %p107
        %p546 = pneg %p138
        %p547 = pneg %p135
        %s548 = sand.u32 %s125, 1
        %s549 = sand.u32 %s125, 1
        %s550 = smul.addr %s549, 32
        %s551 = scalar_lea.vmem [#allocation5], %s550
        %s552 = smul.u32 4, %s19
        %s553 = smul.u32 4, %s21
        %s554 = smul.u32 64, %s21
        %s555 = smul.u32 2, %s20
        %s556 = smul.u32 2, %s20
        %p557 = scmp.lt.s32.totalorder %s556, 3
        %s558 = scalar_select %p557, %s556, 3
        %s559 = scalar_lea.vmem %s2, %s558
        %s560 = smul.u32 2, %s20
        %s561 = smul.u32 4, %s19
        %s562 = smul.u32 2, %s20
        %p563 = scmp.eq.s32.totalorder %s21, 0
        // Predicated region
        $region94: #{scale_estimator_forward.14} parent=84 // pred_check
          %p564 = pneg %p563
        $region95: #{scale_estimator_forward.14} parent=84 // pred_check_branch
          %566 = sbr.rel (%p564) target = $region97
        $region96: #{scale_estimator_forward.14} parent=84 // pred_region
          %567 = vst [vmem:[#allocation2] sm:$0xff] 0.0
          %568 = vst [vmem:[#allocation2 + $0x8] sm:$0xff] 0.0
          %569 = vst [vmem:[#allocation2 + $0x10] sm:$0xff] 0.0
          %570 = vst [vmem:[#allocation2 + $0x18] sm:$0xff] 0.0
          %571 = vst [vmem:[#allocation2 + $0x20] sm:$0xff] 0.0
          %572 = vst [vmem:[#allocation2 + $0x28] sm:$0xff] 0.0
          %573 = vst [vmem:[#allocation2 + $0x30] sm:$0xff] 0.0
          %574 = vst [vmem:[#allocation2 + $0x38] sm:$0xff] 0.0
        $region97: #{scale_estimator_forward.14} parent=84 // pred_fallthru
          _
        %v575 = vld [vmem:[#allocation2] sm:$0xff]
        %v576 = vld [vmem:[#allocation2 + $0x8] sm:$0xff]
        %v577 = vld [vmem:[#allocation2 + $0x10] sm:$0xff]
        %v578 = vld [vmem:[#allocation2 + $0x18] sm:$0xff]
        %v579 = vld [vmem:[#allocation2 + $0x20] sm:$0xff]
        %v580 = vld [vmem:[#allocation2 + $0x28] sm:$0xff]
        %v581 = vld [vmem:[#allocation2 + $0x30] sm:$0xff]
        %v582 = vld [vmem:[#allocation2 + $0x38] sm:$0xff]
        %v583 = vld [vmem:[%s517] sm:$0xff]
        %v584 = vld [vmem:[%s517 + $0x8] sm:$0xff]
        %v585 = vld [vmem:[%s517 + $0x10] sm:$0xff]
        %v586 = vld [vmem:[%s517 + $0x18] sm:$0xff]
        %v587 = vld [vmem:[%s517 + $0x20] sm:$0xff]
        %v588 = vld [vmem:[%s517 + $0x28] sm:$0xff]
        %v589 = vld [vmem:[%s517 + $0x30] sm:$0xff]
        %v590 = vld [vmem:[%s517 + $0x38] sm:$0xff]
        %v591 = vld [vmem:[%s524] sm:$0xff]
        %v592 = vld [vmem:[%s524 + $0x8] sm:$0xff]
        %v593 = vld [vmem:[%s524 + $0x10] sm:$0xff]
        %v594 = vld [vmem:[%s524 + $0x18] sm:$0xff]
        %v595 = vld [vmem:[%s524 + $0x20] sm:$0xff]
        %v596 = vld [vmem:[%s524 + $0x28] sm:$0xff]
        %v597 = vld [vmem:[%s524 + $0x30] sm:$0xff]
        %v598 = vld [vmem:[%s524 + $0x38] sm:$0xff]
        %v599 = vld [vmem:[%s524 + $0x40] sm:$0xff]
        %v600 = vld [vmem:[%s524 + $0x48] sm:$0xff]
        %v601 = vld [vmem:[%s524 + $0x50] sm:$0xff]
        %v602 = vld [vmem:[%s524 + $0x58] sm:$0xff]
        %v603 = vld [vmem:[%s524 + $0x60] sm:$0xff]
        %v604 = vld [vmem:[%s524 + $0x68] sm:$0xff]
        %v605 = vld [vmem:[%s524 + $0x70] sm:$0xff]
        %v606 = vld [vmem:[%s524 + $0x78] sm:$0xff]
        %v607 = vld [vmem:[%s524 + $0x80] sm:$0xff]
        %v608 = vld [vmem:[%s524 + $0x88] sm:$0xff]
        %v609 = vld [vmem:[%s524 + $0x90] sm:$0xff]
        %v610 = vld [vmem:[%s524 + $0x98] sm:$0xff]
        %v611 = vld [vmem:[%s524 + $0xa0] sm:$0xff]
        %v612 = vld [vmem:[%s524 + $0xa8] sm:$0xff]
        %v613 = vld [vmem:[%s524 + $0xb0] sm:$0xff]
        %v614 = vld [vmem:[%s524 + $0xb8] sm:$0xff]
        %v615 = vld [vmem:[%s524 + $0xc0] sm:$0xff]
        %v616 = vld [vmem:[%s524 + $0xc8] sm:$0xff]
        %v617 = vld [vmem:[%s524 + $0xd0] sm:$0xff]
        %v618 = vld [vmem:[%s524 + $0xd8] sm:$0xff]
        %v619 = vld [vmem:[%s524 + $0xe0] sm:$0xff]
        %v620 = vld [vmem:[%s524 + $0xe8] sm:$0xff]
        %v621 = vld [vmem:[%s524 + $0xf0] sm:$0xff]
        %v622 = vld [vmem:[%s524 + $0xf8] sm:$0xff]
        %v623 = vld [vmem:[%s524 + $0x100] sm:$0xff]
        %v624 = vld [vmem:[%s524 + $0x108] sm:$0xff]
        %v625 = vld [vmem:[%s524 + $0x110] sm:$0xff]
        %v626 = vld [vmem:[%s524 + $0x118] sm:$0xff]
        %v627 = vld [vmem:[%s524 + $0x120] sm:$0xff]
        %v628 = vld [vmem:[%s524 + $0x128] sm:$0xff]
        %v629 = vld [vmem:[%s524 + $0x130] sm:$0xff]
        %v630 = vld [vmem:[%s524 + $0x138] sm:$0xff]
        %v631 = vld [vmem:[%s524 + $0x140] sm:$0xff]
        %v632 = vld [vmem:[%s524 + $0x148] sm:$0xff]
        %v633 = vld [vmem:[%s524 + $0x150] sm:$0xff]
        %v634 = vld [vmem:[%s524 + $0x158] sm:$0xff]
        %v635 = vld [vmem:[%s524 + $0x160] sm:$0xff]
        %v636 = vld [vmem:[%s524 + $0x168] sm:$0xff]
        %v637 = vld [vmem:[%s524 + $0x170] sm:$0xff]
        %v638 = vld [vmem:[%s524 + $0x178] sm:$0xff]
        %v639 = vld [vmem:[%s524 + $0x180] sm:$0xff]
        %v640 = vld [vmem:[%s524 + $0x188] sm:$0xff]
        %v641 = vld [vmem:[%s524 + $0x190] sm:$0xff]
        %v642 = vld [vmem:[%s524 + $0x198] sm:$0xff]
        %v643 = vld [vmem:[%s524 + $0x1a0] sm:$0xff]
        %v644 = vld [vmem:[%s524 + $0x1a8] sm:$0xff]
        %v645 = vld [vmem:[%s524 + $0x1b0] sm:$0xff]
        %v646 = vld [vmem:[%s524 + $0x1b8] sm:$0xff]
        %v647 = vld [vmem:[%s524 + $0x1c0] sm:$0xff]
        %v648 = vld [vmem:[%s524 + $0x1c8] sm:$0xff]
        %v649 = vld [vmem:[%s524 + $0x1d0] sm:$0xff]
        %v650 = vld [vmem:[%s524 + $0x1d8] sm:$0xff]
        %v651 = vld [vmem:[%s524 + $0x1e0] sm:$0xff]
        %v652 = vld [vmem:[%s524 + $0x1e8] sm:$0xff]
        %v653 = vld [vmem:[%s524 + $0x1f0] sm:$0xff]
        %v654 = vld [vmem:[%s524 + $0x1f8] sm:$0xff]
        %v663 = vunpack.c.l.b16 %v583
        %v664 = vunpack.c.h.b16 %v583
        %v665 = vunpack.c.l.b16 %v584
        %v666 = vunpack.c.h.b16 %v584
        %v667 = vunpack.c.l.b16 %v585
        %v668 = vunpack.c.h.b16 %v585
        %v669 = vunpack.c.l.b16 %v586
        %v670 = vunpack.c.h.b16 %v586
        %v671 = vunpack.c.l.b16 %v587
        %v672 = vunpack.c.h.b16 %v587
        %v673 = vunpack.c.l.b16 %v588
        %v674 = vunpack.c.h.b16 %v588
        %v675 = vunpack.c.l.b16 %v589
        %v676 = vunpack.c.h.b16 %v589
        %v677 = vunpack.c.l.b16 %v590
        %v678 = vunpack.c.h.b16 %v590
        %v679 = vpack.c.b16 %v667, %v663
        %v680 = vpack.c.b16 %v668, %v664
        %v681 = vpack.c.b16 %v669, %v665
        %v682 = vpack.c.b16 %v670, %v666
        %v683 = vpack.c.b16 %v675, %v671
        %v684 = vpack.c.b16 %v676, %v672
        %v685 = vpack.c.b16 %v677, %v673
        %v686 = vpack.c.b16 %v678, %v674
        %v759 = vunpack.c.l.b16 %v591
        %v760 = vunpack.c.h.b16 %v591
        %v761 = vunpack.c.l.b16 %v592
        %v762 = vunpack.c.h.b16 %v592
        %v763 = vunpack.c.l.b16 %v593
        %v764 = vunpack.c.h.b16 %v593
        %v765 = vunpack.c.l.b16 %v594
        %v766 = vunpack.c.h.b16 %v594
        %v767 = vunpack.c.l.b16 %v595
        %v768 = vunpack.c.h.b16 %v595
        %v769 = vunpack.c.l.b16 %v596
        %v770 = vunpack.c.h.b16 %v596
        %v771 = vunpack.c.l.b16 %v597
        %v772 = vunpack.c.h.b16 %v597
        %v773 = vunpack.c.l.b16 %v598
        %v774 = vunpack.c.h.b16 %v598
        %v775 = vunpack.c.l.b16 %v599
        %v776 = vunpack.c.h.b16 %v599
        %v777 = vunpack.c.l.b16 %v600
        %v778 = vunpack.c.h.b16 %v600
        %v779 = vunpack.c.l.b16 %v601
        %v780 = vunpack.c.h.b16 %v601
        %v781 = vunpack.c.l.b16 %v602
        %v782 = vunpack.c.h.b16 %v602
        %v783 = vunpack.c.l.b16 %v603
        %v784 = vunpack.c.h.b16 %v603
        %v785 = vunpack.c.l.b16 %v604
        %v786 = vunpack.c.h.b16 %v604
        %v787 = vunpack.c.l.b16 %v605
        %v788 = vunpack.c.h.b16 %v605
        %v789 = vunpack.c.l.b16 %v606
        %v790 = vunpack.c.h.b16 %v606
        %v791 = vunpack.c.l.b16 %v607
        %v792 = vunpack.c.h.b16 %v607
        %v793 = vunpack.c.l.b16 %v608
        %v794 = vunpack.c.h.b16 %v608
        %v795 = vunpack.c.l.b16 %v609
        %v796 = vunpack.c.h.b16 %v609
        %v797 = vunpack.c.l.b16 %v610
        %v798 = vunpack.c.h.b16 %v610
        %v799 = vunpack.c.l.b16 %v611
        %v800 = vunpack.c.h.b16 %v611
        %v801 = vunpack.c.l.b16 %v612
        %v802 = vunpack.c.h.b16 %v612
        %v803 = vunpack.c.l.b16 %v613
        %v804 = vunpack.c.h.b16 %v613
        %v805 = vunpack.c.l.b16 %v614
        %v806 = vunpack.c.h.b16 %v614
        %v807 = vunpack.c.l.b16 %v615
        %v808 = vunpack.c.h.b16 %v615
        %v809 = vunpack.c.l.b16 %v616
        %v810 = vunpack.c.h.b16 %v616
        %v811 = vunpack.c.l.b16 %v617
        %v812 = vunpack.c.h.b16 %v617
        %v813 = vunpack.c.l.b16 %v618
        %v814 = vunpack.c.h.b16 %v618
        %v815 = vunpack.c.l.b16 %v619
        %v816 = vunpack.c.h.b16 %v619
        %v817 = vunpack.c.l.b16 %v620
        %v818 = vunpack.c.h.b16 %v620
        %v819 = vunpack.c.l.b16 %v621
        %v820 = vunpack.c.h.b16 %v621
        %v821 = vunpack.c.l.b16 %v622
        %v822 = vunpack.c.h.b16 %v622
        %v823 = vunpack.c.l.b16 %v623
        %v824 = vunpack.c.h.b16 %v623
        %v825 = vunpack.c.l.b16 %v624
        %v826 = vunpack.c.h.b16 %v624
        %v827 = vunpack.c.l.b16 %v625
        %v828 = vunpack.c.h.b16 %v625
        %v829 = vunpack.c.l.b16 %v626
        %v830 = vunpack.c.h.b16 %v626
        %v831 = vunpack.c.l.b16 %v627
        %v832 = vunpack.c.h.b16 %v627
        %v833 = vunpack.c.l.b16 %v628
        %v834 = vunpack.c.h.b16 %v628
        %v835 = vunpack.c.l.b16 %v629
        %v836 = vunpack.c.h.b16 %v629
        %v837 = vunpack.c.l.b16 %v630
        %v838 = vunpack.c.h.b16 %v630
        %v839 = vunpack.c.l.b16 %v631
        %v840 = vunpack.c.h.b16 %v631
        %v841 = vunpack.c.l.b16 %v632
        %v842 = vunpack.c.h.b16 %v632
        %v843 = vunpack.c.l.b16 %v633
        %v844 = vunpack.c.h.b16 %v633
        %v845 = vunpack.c.l.b16 %v634
        %v846 = vunpack.c.h.b16 %v634
        %v847 = vunpack.c.l.b16 %v635
        %v848 = vunpack.c.h.b16 %v635
        %v849 = vunpack.c.l.b16 %v636
        %v850 = vunpack.c.h.b16 %v636
        %v851 = vunpack.c.l.b16 %v637
        %v852 = vunpack.c.h.b16 %v637
        %v853 = vunpack.c.l.b16 %v638
        %v854 = vunpack.c.h.b16 %v638
        %v855 = vunpack.c.l.b16 %v639
        %v856 = vunpack.c.h.b16 %v639
        %v857 = vunpack.c.l.b16 %v640
        %v858 = vunpack.c.h.b16 %v640
        %v859 = vunpack.c.l.b16 %v641
        %v860 = vunpack.c.h.b16 %v641
        %v861 = vunpack.c.l.b16 %v642
        %v862 = vunpack.c.h.b16 %v642
        %v863 = vunpack.c.l.b16 %v643
        %v864 = vunpack.c.h.b16 %v643
        %v865 = vunpack.c.l.b16 %v644
        %v866 = vunpack.c.h.b16 %v644
        %v867 = vunpack.c.l.b16 %v645
        %v868 = vunpack.c.h.b16 %v645
        %v869 = vunpack.c.l.b16 %v646
        %v870 = vunpack.c.h.b16 %v646
        %v871 = vunpack.c.l.b16 %v647
        %v872 = vunpack.c.h.b16 %v647
        %v873 = vunpack.c.l.b16 %v648
        %v874 = vunpack.c.h.b16 %v648
        %v875 = vunpack.c.l.b16 %v649
        %v876 = vunpack.c.h.b16 %v649
        %v877 = vunpack.c.l.b16 %v650
        %v878 = vunpack.c.h.b16 %v650
        %v879 = vunpack.c.l.b16 %v651
        %v880 = vunpack.c.h.b16 %v651
        %v881 = vunpack.c.l.b16 %v652
        %v882 = vunpack.c.h.b16 %v652
        %v883 = vunpack.c.l.b16 %v653
        %v884 = vunpack.c.h.b16 %v653
        %v885 = vunpack.c.l.b16 %v654
        %v886 = vunpack.c.h.b16 %v654
        %v887 = vpack.c.b16 %v761, %v759
        %v888 = vpack.c.b16 %v762, %v760
        %v889 = vpack.c.b16 %v765, %v763
        %v890 = vpack.c.b16 %v766, %v764
        %v891 = vpack.c.b16 %v769, %v767
        %v892 = vpack.c.b16 %v770, %v768
        %v893 = vpack.c.b16 %v773, %v771
        %v894 = vpack.c.b16 %v774, %v772
        %v895 = vpack.c.b16 %v777, %v775
        %v896 = vpack.c.b16 %v778, %v776
        %v897 = vpack.c.b16 %v781, %v779
        %v898 = vpack.c.b16 %v782, %v780
        %v899 = vpack.c.b16 %v785, %v783
        %v900 = vpack.c.b16 %v786, %v784
        %v901 = vpack.c.b16 %v789, %v787
        %v902 = vpack.c.b16 %v790, %v788
        %v903 = vpack.c.b16 %v793, %v791
        %v904 = vpack.c.b16 %v794, %v792
        %v905 = vpack.c.b16 %v797, %v795
        %v906 = vpack.c.b16 %v798, %v796
        %v907 = vpack.c.b16 %v801, %v799
        %v908 = vpack.c.b16 %v802, %v800
        %v909 = vpack.c.b16 %v805, %v803
        %v910 = vpack.c.b16 %v806, %v804
        %v911 = vpack.c.b16 %v809, %v807
        %v912 = vpack.c.b16 %v810, %v808
        %v913 = vpack.c.b16 %v813, %v811
        %v914 = vpack.c.b16 %v814, %v812
        %v915 = vpack.c.b16 %v817, %v815
        %v916 = vpack.c.b16 %v818, %v816
        %v917 = vpack.c.b16 %v821, %v819
        %v918 = vpack.c.b16 %v822, %v820
        %v919 = vpack.c.b16 %v825, %v823
        %v920 = vpack.c.b16 %v826, %v824
        %v921 = vpack.c.b16 %v829, %v827
        %v922 = vpack.c.b16 %v830, %v828
        %v923 = vpack.c.b16 %v833, %v831
        %v924 = vpack.c.b16 %v834, %v832
        %v925 = vpack.c.b16 %v837, %v835
        %v926 = vpack.c.b16 %v838, %v836
        %v927 = vpack.c.b16 %v841, %v839
        %v928 = vpack.c.b16 %v842, %v840
        %v929 = vpack.c.b16 %v845, %v843
        %v930 = vpack.c.b16 %v846, %v844
        %v931 = vpack.c.b16 %v849, %v847
        %v932 = vpack.c.b16 %v850, %v848
        %v933 = vpack.c.b16 %v853, %v851
        %v934 = vpack.c.b16 %v854, %v852
        %v935 = vpack.c.b16 %v857, %v855
        %v936 = vpack.c.b16 %v858, %v856
        %v937 = vpack.c.b16 %v861, %v859
        %v938 = vpack.c.b16 %v862, %v860
        %v939 = vpack.c.b16 %v865, %v863
        %v940 = vpack.c.b16 %v866, %v864
        %v941 = vpack.c.b16 %v869, %v867
        %v942 = vpack.c.b16 %v870, %v868
        %v943 = vpack.c.b16 %v873, %v871
        %v944 = vpack.c.b16 %v874, %v872
        %v945 = vpack.c.b16 %v877, %v875
        %v946 = vpack.c.b16 %v878, %v876
        %v947 = vpack.c.b16 %v881, %v879
        %v948 = vpack.c.b16 %v882, %v880
        %v949 = vpack.c.b16 %v885, %v883
        %v950 = vpack.c.b16 %v886, %v884
        %1015 = vmatpush.bf16.msra.mxu0 %v901
        %1016 = vmatpush.bf16.msra.mxu0 %v899
        %1017 = vmatpush.bf16.msra.mxu0 %v897
        %1018 = vmatpush.bf16.msra.mxu0 %v895
        %1019 = vmatpush.bf16.msra.mxu0 %v893
        %1020 = vmatpush.bf16.msra.mxu0 %v891
        %1021 = vmatpush.bf16.msra.mxu0 %v889
        %1022 = vmatpush.bf16.msra.mxu0 %v887
        %1023 = vmatmul.bf16.gmra.mxu0 %v679
        %v1024 = vpop.f32.mrf.mxu0
        %v1025 = vadd.f32 0.0, %v1024
        %v1026 = vpop.f32.mrf.mxu0
        %v1027 = vadd.f32 0.0, %v1026
        %1028 = vmatmul.bf16.gmra.mxu0 %v683
        %v1029 = vpop.f32.mrf.mxu0
        %v1030 = vadd.f32 0.0, %v1029
        %v1031 = vpop.f32.mrf.mxu0
        %v1032 = vadd.f32 0.0, %v1031
        %1033 = vdwg.mxu0
        %1034 = vmatpush.bf16.msra.mxu0 %v917
        %1035 = vmatpush.bf16.msra.mxu0 %v915
        %1036 = vmatpush.bf16.msra.mxu0 %v913
        %1037 = vmatpush.bf16.msra.mxu0 %v911
        %1038 = vmatpush.bf16.msra.mxu0 %v909
        %1039 = vmatpush.bf16.msra.mxu0 %v907
        %1040 = vmatpush.bf16.msra.mxu0 %v905
        %1041 = vmatpush.bf16.msra.mxu0 %v903
        %1042 = vmatmul.bf16.gmra.mxu0 %v680
        %v1043 = vpop.f32.mrf.mxu0
        %v1044 = vadd.f32 %v1025, %v1043
        %v1045 = vpop.f32.mrf.mxu0
        %v1046 = vadd.f32 %v1027, %v1045
        %1047 = vmatmul.bf16.gmra.mxu0 %v684
        %v1048 = vpop.f32.mrf.mxu0
        %v1049 = vadd.f32 %v1030, %v1048
        %v1050 = vpop.f32.mrf.mxu0
        %v1051 = vadd.f32 %v1032, %v1050
        %1052 = vdwg.mxu0
        %1053 = vmatpush.bf16.msra.mxu0 %v933
        %1054 = vmatpush.bf16.msra.mxu0 %v931
        %1055 = vmatpush.bf16.msra.mxu0 %v929
        %1056 = vmatpush.bf16.msra.mxu0 %v927
        %1057 = vmatpush.bf16.msra.mxu0 %v925
        %1058 = vmatpush.bf16.msra.mxu0 %v923
        %1059 = vmatpush.bf16.msra.mxu0 %v921
        %1060 = vmatpush.bf16.msra.mxu0 %v919
        %1061 = vmatmul.bf16.gmra.mxu0 %v681
        %v1062 = vpop.f32.mrf.mxu0
        %v1063 = vadd.f32 %v1044, %v1062
        %v1064 = vpop.f32.mrf.mxu0
        %v1065 = vadd.f32 %v1046, %v1064
        %1066 = vmatmul.bf16.gmra.mxu0 %v685
        %v1067 = vpop.f32.mrf.mxu0
        %v1068 = vadd.f32 %v1049, %v1067
        %v1069 = vpop.f32.mrf.mxu0
        %v1070 = vadd.f32 %v1051, %v1069
        %1071 = vdwg.mxu0
        %1072 = vmatpush.bf16.msra.mxu0 %v949
        %1073 = vmatpush.bf16.msra.mxu0 %v947
        %1074 = vmatpush.bf16.msra.mxu0 %v945
        %1075 = vmatpush.bf16.msra.mxu0 %v943
        %1076 = vmatpush.bf16.msra.mxu0 %v941
        %1077 = vmatpush.bf16.msra.mxu0 %v939
        %1078 = vmatpush.bf16.msra.mxu0 %v937
        %1079 = vmatpush.bf16.msra.mxu0 %v935
        %1080 = vmatmul.bf16.gmra.mxu0 %v682
        %v1081 = vpop.f32.mrf.mxu0
        %v1082 = vadd.f32 %v1063, %v1081
        %v1083 = vpop.f32.mrf.mxu0
        %v1084 = vadd.f32 %v1065, %v1083
        %1085 = vmatmul.bf16.gmra.mxu0 %v686
        %v1086 = vpop.f32.mrf.mxu0
        %v1087 = vadd.f32 %v1068, %v1086
        %v1088 = vpop.f32.mrf.mxu0
        %v1089 = vadd.f32 %v1070, %v1088
        %1090 = vdwg.mxu0
        %1091 = vmatpush.bf16.msra.mxu0 %v902
        %1092 = vmatpush.bf16.msra.mxu0 %v900
        %1093 = vmatpush.bf16.msra.mxu0 %v898
        %1094 = vmatpush.bf16.msra.mxu0 %v896
        %1095 = vmatpush.bf16.msra.mxu0 %v894
        %1096 = vmatpush.bf16.msra.mxu0 %v892
        %1097 = vmatpush.bf16.msra.mxu0 %v890
        %1098 = vmatpush.bf16.msra.mxu0 %v888
        %1099 = vmatmul.bf16.gmra.mxu0 %v679
        %v1100 = vpop.f32.mrf.mxu0
        %v1101 = vadd.f32 0.0, %v1100
        %v1102 = vpop.f32.mrf.mxu0
        %v1103 = vadd.f32 0.0, %v1102
        %1104 = vmatmul.bf16.gmra.mxu0 %v683
        %v1105 = vpop.f32.mrf.mxu0
        %v1106 = vadd.f32 0.0, %v1105
        %v1107 = vpop.f32.mrf.mxu0
        %v1108 = vadd.f32 0.0, %v1107
        %1109 = vdwg.mxu0
        %1110 = vmatpush.bf16.msra.mxu0 %v918
        %1111 = vmatpush.bf16.msra.mxu0 %v916
        %1112 = vmatpush.bf16.msra.mxu0 %v914
        %1113 = vmatpush.bf16.msra.mxu0 %v912
        %1114 = vmatpush.bf16.msra.mxu0 %v910
        %1115 = vmatpush.bf16.msra.mxu0 %v908
        %1116 = vmatpush.bf16.msra.mxu0 %v906
        %1117 = vmatpush.bf16.msra.mxu0 %v904
        %1118 = vmatmul.bf16.gmra.mxu0 %v680
        %v1119 = vpop.f32.mrf.mxu0
        %v1120 = vadd.f32 %v1101, %v1119
        %v1121 = vpop.f32.mrf.mxu0
        %v1122 = vadd.f32 %v1103, %v1121
        %1123 = vmatmul.bf16.gmra.mxu0 %v684
        %v1124 = vpop.f32.mrf.mxu0
        %v1125 = vadd.f32 %v1106, %v1124
        %v1126 = vpop.f32.mrf.mxu0
        %v1127 = vadd.f32 %v1108, %v1126
        %1128 = vdwg.mxu0
        %1129 = vmatpush.bf16.msra.mxu0 %v934
        %1130 = vmatpush.bf16.msra.mxu0 %v932
        %1131 = vmatpush.bf16.msra.mxu0 %v930
        %1132 = vmatpush.bf16.msra.mxu0 %v928
        %1133 = vmatpush.bf16.msra.mxu0 %v926
        %1134 = vmatpush.bf16.msra.mxu0 %v924
        %1135 = vmatpush.bf16.msra.mxu0 %v922
        %1136 = vmatpush.bf16.msra.mxu0 %v920
        %1137 = vmatmul.bf16.gmra.mxu0 %v681
        %v1138 = vpop.f32.mrf.mxu0
        %v1139 = vadd.f32 %v1120, %v1138
        %v1140 = vpop.f32.mrf.mxu0
        %v1141 = vadd.f32 %v1122, %v1140
        %1142 = vmatmul.bf16.gmra.mxu0 %v685
        %v1143 = vpop.f32.mrf.mxu0
        %v1144 = vadd.f32 %v1125, %v1143
        %v1145 = vpop.f32.mrf.mxu0
        %v1146 = vadd.f32 %v1127, %v1145
        %1147 = vdwg.mxu0
        %1148 = vmatpush.bf16.msra.mxu0 %v950
        %1149 = vmatpush.bf16.msra.mxu0 %v948
        %1150 = vmatpush.bf16.msra.mxu0 %v946
        %1151 = vmatpush.bf16.msra.mxu0 %v944
        %1152 = vmatpush.bf16.msra.mxu0 %v942
        %1153 = vmatpush.bf16.msra.mxu0 %v940
        %1154 = vmatpush.bf16.msra.mxu0 %v938
        %1155 = vmatpush.bf16.msra.mxu0 %v936
        %1156 = vmatmul.bf16.gmra.mxu0 %v682
        %v1157 = vpop.f32.mrf.mxu0
        %v1158 = vadd.f32 %v1139, %v1157
        %v1159 = vpop.f32.mrf.mxu0
        %v1160 = vadd.f32 %v1141, %v1159
        %1161 = vmatmul.bf16.gmra.mxu0 %v686
        %v1162 = vpop.f32.mrf.mxu0
        %v1163 = vadd.f32 %v1144, %v1162
        %v1164 = vpop.f32.mrf.mxu0
        %v1165 = vadd.f32 %v1146, %v1164
        %1166 = vdwg.mxu0
        %v1167 = vadd.f32 %v575, %v1082
        %v1168 = vadd.f32 %v576, %v1158
        %v1169 = vadd.f32 %v577, %v1084
        %v1170 = vadd.f32 %v578, %v1160
        %v1171 = vadd.f32 %v579, %v1087
        %v1172 = vadd.f32 %v580, %v1163
        %v1173 = vadd.f32 %v581, %v1089
        %v1174 = vadd.f32 %v582, %v1165
        %1175 = vst [vmem:[#allocation2] sm:$0xff] %v1167
        %1176 = vst [vmem:[#allocation2 + $0x8] sm:$0xff] %v1168
        %1177 = vst [vmem:[#allocation2 + $0x10] sm:$0xff] %v1169
        %1178 = vst [vmem:[#allocation2 + $0x18] sm:$0xff] %v1170
        %1179 = vst [vmem:[#allocation2 + $0x20] sm:$0xff] %v1171
        %1180 = vst [vmem:[#allocation2 + $0x28] sm:$0xff] %v1172
        %1181 = vst [vmem:[#allocation2 + $0x30] sm:$0xff] %v1173
        %1182 = vst [vmem:[#allocation2 + $0x38] sm:$0xff] %v1174
        %p1183 = scmp.eq.s32.totalorder %s21, 1
        // Predicated region
        $region98: #{scale_estimator_forward.14} parent=84 // pred_check
          %p1184 = pneg %p1183
        $region99: #{scale_estimator_forward.14} parent=84 // pred_check_branch
          %1186 = sbr.rel (%p1184) target = $region101
        $region100: #{scale_estimator_forward.14} parent=84 // pred_region
          %v1187 = vld [vmem:[#allocation2] sm:$0xff]
          %v1188 = vld [vmem:[#allocation2 + $0x8] sm:$0xff]
          %v1189 = vld [vmem:[#allocation2 + $0x10] sm:$0xff]
          %v1190 = vld [vmem:[#allocation2 + $0x18] sm:$0xff]
          %v1191 = vld [vmem:[#allocation2 + $0x20] sm:$0xff]
          %v1192 = vld [vmem:[#allocation2 + $0x28] sm:$0xff]
          %v1193 = vld [vmem:[#allocation2 + $0x30] sm:$0xff]
          %v1194 = vld [vmem:[#allocation2 + $0x38] sm:$0xff]
          %v1195 = vld [vmem:[%s559] sm:$0x3]
          %v1197 = vperm.slane %v1195, 0
          %v1198 = vperm.slane %v1195, 1
          %v1201 = vadd.f32 %v1187, %v1197
          %v1202 = vadd.f32 %v1188, %v1198
          %v1203 = vadd.f32 %v1189, %v1197
          %v1204 = vadd.f32 %v1190, %v1198
          %v1205 = vadd.f32 %v1191, %v1197
          %v1206 = vadd.f32 %v1192, %v1198
          %v1207 = vadd.f32 %v1193, %v1197
          %v1208 = vadd.f32 %v1194, %v1198
          %v1209 = vmax.f32 %v1201, 0.0
          %v1210 = vmax.f32 %v1202, 0.0
          %v1211 = vmax.f32 %v1203, 0.0
          %v1212 = vmax.f32 %v1204, 0.0
          %v1213 = vmax.f32 %v1205, 0.0
          %v1214 = vmax.f32 %v1206, 0.0
          %v1215 = vmax.f32 %v1207, 0.0
          %v1216 = vmax.f32 %v1208, 0.0
          %v1217 = vpack.c.bf16 %v1210, %v1209
          %v1218 = vpack.c.bf16 %v1212, %v1211
          %v1219 = vpack.c.bf16 %v1214, %v1213
          %v1220 = vpack.c.bf16 %v1216, %v1215
          %1221 = vst [vmem:[%s551] sm:$0xff] %v1217
          %1222 = vst [vmem:[%s551 + $0x8] sm:$0xff] %v1218
          %1223 = vst [vmem:[%s551 + $0x10] sm:$0xff] %v1219
          %1224 = vst [vmem:[%s551 + $0x18] sm:$0xff] %v1220
        $region101: #{scale_estimator_forward.14} parent=84 // pred_fallthru
          _
        %s1225 = sand.u32 %s125, 1
        %s1226 = sand.u32 %s125, 1
        %s1227 = smul.addr %s1226, 32
        %s1228 = scalar_lea.vmem [#allocation5], %s1227
        // Predicated region
        $region102: #{scale_estimator_forward.14} parent=84 // pred_check
          %p1229 = pneg %p135
        $region103: #{scale_estimator_forward.14} parent=84 // pred_check_branch
          %1231 = sbr.rel (%p1229) target = $region105
        $region104: #{scale_estimator_forward.14} parent=84 // pred_region
          %s1232 = smul.u32 4, %s19
          %s1233 = smul.u32 2, %s20
          %s1234 = smul.addr %s1232, 4
          %s1235 = sadd.s32 %s1233, %s1234
          %s1236 = smul.addr %s1235, 4
          %s1237 = scalar_lea.vmem %s3, %s1236
          // Predicated region
          $region106: #{scale_estimator_forward.14} parent=104 // pred_check
            _
          $region107: #{scale_estimator_forward.14} parent=104 // pred_check_branch
            %1239 = sbr.rel (0) target = $region109
          $region108: #{scale_estimator_forward.14} parent=104 // pred_region
            // Predicated region
            $region110: #{scale_estimator_forward.14} parent=108 // pred_check
              _
            $region111: #{scale_estimator_forward.14} parent=108 // pred_check_branch
              %1241 = sbr.rel (0) target = $region113
            $region112: #{scale_estimator_forward.14} parent=108 // pred_region
              // Predicated region
              $region125: #{scale_estimator_forward.14} parent=112 // pred_check
                _
              $region126: #{scale_estimator_forward.14} parent=112 // pred_check_branch
                %1263 = sbr.rel (0) target = $region128
              $region127: #{scale_estimator_forward.14} parent=112 // pred_region
                loop: start=0, step=1, limit=1
                $region129: #{scale_estimator_forward.14} parent=127 // loop_pre_header
                  _
                $region130: #{scale_estimator_forward.14} parent=127 // loop_header
                  %s1265 = sphi 0, %s1269
                  %p1266 = scmp.ge.s32.totalorder %s1265, 1
                  %s1270 = sphi %s1228, %s1228
                  %s1271 = sphi %s1237, %s1237
                $region131: #{scale_estimator_forward.14} parent=127 // loop_header_branch
                  %1268 = sbr.rel (%p1266) target = $region135
                $region132: #{scale_estimator_forward.14} parent=127 // loop_body
                  %v1272 = vld [vmem:[%s1270] sm:$0xff]
                  %1273 = vst [vmem:[%s1271] sm:$0xff] %v1272
                  %v1274 = vld [vmem:[%s1270 + $0x8] sm:$0xff]
                  %1275 = vst [vmem:[%s1271 + $0x10] sm:$0xff] %v1274
                  %v1276 = vld [vmem:[%s1270 + $0x10] sm:$0xff]
                  %1277 = vst [vmem:[%s1271 + $0x20] sm:$0xff] %v1276
                  %v1278 = vld [vmem:[%s1270 + $0x18] sm:$0xff]
                  %1279 = vst [vmem:[%s1271 + $0x30] sm:$0xff] %v1278
                $region133: #{scale_estimator_forward.14} parent=127 // loop_footer
                  %s1269 = sadd.s32 1, %s1265
                $region134: #{scale_estimator_forward.14} parent=127 // loop_footer_branch
                  %1264 = sbr.rel target = $region130
                $region135: #{scale_estimator_forward.14} parent=127 // loop_exit
                  _
              $region128: #{scale_estimator_forward.14} parent=112 // pred_fallthru
                _
              // Predicated region
              $region136: #{scale_estimator_forward.14} parent=112 // pred_check
                _
              $region137: #{scale_estimator_forward.14} parent=112 // pred_check_branch
                %1281 = sbr.rel target = $region139
              $region138: #{scale_estimator_forward.14} parent=112 // pred_region
                _
              $region139: #{scale_estimator_forward.14} parent=112 // pred_fallthru
                _
            $region113: #{scale_estimator_forward.14} parent=108 // pred_fallthru
              _
            // Predicated region
            $region114: #{scale_estimator_forward.14} parent=108 // pred_check
              _
            $region115: #{scale_estimator_forward.14} parent=108 // pred_check_branch
              %1243 = sbr.rel target = $region117
            $region116: #{scale_estimator_forward.14} parent=108 // pred_region
              %s1245 = ssub.s32 256, 1
              loop: start=0, step=1, limit=1
              $region118: #{scale_estimator_forward.14} parent=116 // loop_pre_header
                _
              $region119: #{scale_estimator_forward.14} parent=116 // loop_header
                %s1247 = sphi 0, %s1251
                %p1248 = scmp.ge.s32.totalorder %s1247, 1
                %s1252 = sphi %s1228, %s1228
                %s1253 = sphi %s1237, %s1237
              $region120: #{scale_estimator_forward.14} parent=116 // loop_header_branch
                %1250 = sbr.rel (%p1248) target = $region124
              $region121: #{scale_estimator_forward.14} parent=116 // loop_body
                %v1254 = vld [vmem:[%s1252] sm:%s1245]
                %1255 = vst [vmem:[%s1253] sm:%s1245] %v1254
                %v1256 = vld [vmem:[%s1252 + $0x8] sm:%s1245]
                %1257 = vst [vmem:[%s1253 + $0x10] sm:%s1245] %v1256
                %v1258 = vld [vmem:[%s1252 + $0x10] sm:%s1245]
                %1259 = vst [vmem:[%s1253 + $0x20] sm:%s1245] %v1258
                %v1260 = vld [vmem:[%s1252 + $0x18] sm:%s1245]
                %1261 = vst [vmem:[%s1253 + $0x30] sm:%s1245] %v1260
              $region122: #{scale_estimator_forward.14} parent=116 // loop_footer
                %s1251 = sadd.s32 1, %s1247
              $region123: #{scale_estimator_forward.14} parent=116 // loop_footer_branch
                %1246 = sbr.rel target = $region119
              $region124: #{scale_estimator_forward.14} parent=116 // loop_exit
                _
            $region117: #{scale_estimator_forward.14} parent=108 // pred_fallthru
              _
          $region109: #{scale_estimator_forward.14} parent=104 // pred_fallthru
            _
          %1282 = vnop
        $region105: #{scale_estimator_forward.14} parent=84 // pred_fallthru
          _
      $region85: #{scale_estimator_forward.14} parent=5 // pred_fallthru
        _
      %p1283 = scmp.le.s32.totalorder 2, %s9
      // Predicated region
      $region140: #{scale_estimator_forward.14} parent=5 // pred_check
        %p1284 = pneg %p1283
      $region141: #{scale_estimator_forward.14} parent=5 // pred_check_branch
        %1286 = sbr.rel (%p1284) target = $region143
      $region142: #{scale_estimator_forward.14} parent=5 // pred_region
        %s1287 = ssub.s32 %s9, 2
        // Predicated region
        $region144: #{scale_estimator_forward.14} parent=142 // pred_check
          %p1288 = pneg %p141
        $region145: #{scale_estimator_forward.14} parent=142 // pred_check_branch
          %1290 = sbr.rel (%p1288) target = $region147
        $region146: #{scale_estimator_forward.14} parent=142 // pred_region
          %s1291 = sand.u32 %s126, 1
          %s1292 = sand.u32 %s126, 1
          %s1293 = smul.addr %s1292, 32
          %s1294 = scalar_lea.vmem [#allocation5], %s1293
        $region147: #{scale_estimator_forward.14} parent=142 // pred_fallthru
          _
      $region143: #{scale_estimator_forward.14} parent=5 // pred_fallthru
        _
    $region6: #{scale_estimator_forward.14} parent=1 // loop_footer
      %s13 = sadd.s32 1, %s9
    $region7: #{scale_estimator_forward.14} parent=1 // loop_footer_branch
      %8 = sbr.rel target = $region3
    $region8: #{scale_estimator_forward.14} parent=1 // loop_exit
      _

// kernel: scale_estimator_forward.16
$region0: #{scale_estimator_forward.16}
  #allocation0 [shape = 'u32[]', space=smem, size = 0x4, offset = 0x4, fixed_abs, tag = 'smem constant byte address 0x4 - core index']
  #allocation1 [shape = 'u32[72,128]{1,0:T(1,128)}', space=vmem, size = 0x9000, scoped, tag = 'internal scratch']
  #allocation2 [shape = 'f32[128,128]{1,0:T(8,128)}', space=vmem, size = 0x10000, scoped, tag = 'scratch operand']
  %s0 = inlined_call_operand.vmem [shape: bf16[128,1152], index: 0, kind: input, shape index: {}]
  %s1 = inlined_call_operand.vmem [shape: bf16[1152,128], index: 1, kind: input, shape index: {}]
  %s2 = inlined_call_operand.vmem [shape: f32[1,128], index: 2, kind: input, shape index: {}]
  %s3 = inlined_call_operand.vmem [shape: f32[128,128], index: 3, kind: output, shape index: {}]
  %s4 = sld [smem:[#allocation0]]
  $region94: #{scale_estimator_forward.16} parent=0
    _
  %s6 = ssub.s32 1, %s4
  %s7 = scalar_select 0, %s6, %s4
  $region1: #{scale_estimator_forward.16} parent=0
    #allocation3 [shape = 'u8[65536]{0}', space=vmem, size = 0x10000, scoped, tag = 'input window, operand 0']
    loop: start=0, step=1, limit=11
    $region2: #{scale_estimator_forward.16} parent=1 // loop_pre_header
      _
    $region3: #{scale_estimator_forward.16} parent=1 // loop_header
      %s9 = sphi 0, %s13
      %p10 = scmp.ge.s32.totalorder %s9, 11
      %s16 = sphi 0, %s35
      %s17 = sphi 0, %s31
      %s18 = sphi 0, %s27
      %s19 = sphi 0, %s16
      %s20 = sphi 0, %s17
      %s21 = sphi 0, %s18
      %s22 = sphi 0, %s19
      %s23 = sphi 0, %s20
      %s24 = sphi 0, %s21
      %s40 = sphi 0, %s42
      %s43 = sphi 0, %s40
      %s44 = sphi 0, %s43
      %s60 = sphi 0, %s44
      %s68 = sphi 0, %s70
      %s71 = sphi 0, %s68
      %s72 = sphi 0, %s71
      %s88 = sphi 0, %s72
      %s94 = sphi 0, %s96
      %s97 = sphi 0, %s94
      %s98 = sphi 0, %s97
      %s114 = sphi 0, %s98
      %s122 = sphi 0, %s124
      %s125 = sphi 0, %s122
      %s126 = sphi 0, %s125
      %s142 = sphi 0, %s126
    $region4: #{scale_estimator_forward.16} parent=1 // loop_header_branch
      %12 = sbr.rel (%p10) target = $region8
    $region5: #{scale_estimator_forward.16} parent=1 // loop_body
      %s14 = ssub.s32 %s9, 1
      %s15 = ssub.s32 %s9, 2
      %s25 = sadd.s32 1, %s18
      %p26 = scmp.ge.s32.totalorder %s25, 9
      %s27 = scalar_select %p26, 0, %s25
      %s28 = sadd.s32 1, %s17
      %s29 = scalar_select %p26, %s28, %s17
      %p30 = scmp.ge.s32.totalorder %s29, 1
      %s31 = scalar_select %p30, 0, %s29
      %s32 = sadd.s32 1, %s16
      %s33 = scalar_select %p30, %s32, %s16
      %p34 = scmp.ge.s32.totalorder %s33, 1
      %s35 = scalar_select %p34, 0, %s33
      %s36 = ssub.s32 %s16, %s35
      %s37 = ssub.s32 %s18, %s27
      %s38 = sor.u32 %s36, %s37
      %p39 = scmp.eq.s32.totalorder %s38, 0
      %s41 = sadd.s32 %s40, 1
      %s42 = scalar_select %p39, %s40, %s41
      %p45 = pneg %p39
      %p46 = scmp.eq.s32.totalorder %s9, 8
      %p47 = por %p45, %p46
      %p48 = scmp.ne.s32.totalorder %s40, %s43
      %p49 = scmp.eq.s32.totalorder %s9, 0
      %p50 = por %p48, %p49
      %p51 = scmp.ne.s32.totalorder %s40, %s43
      %p52 = scmp.eq.s32.totalorder %s14, 8
      %p53 = por %p51, %p52
      %p54 = scmp.ne.s32.totalorder %s43, %s44
      %p55 = scmp.eq.s32.totalorder %s14, 0
      %p56 = por %p54, %p55
      %p57 = scmp.ne.s32.totalorder %s43, %s44
      %p58 = scmp.eq.s32.totalorder %s15, 8
      %p59 = por %p57, %p58
      %p61 = scmp.ne.s32.totalorder %s44, %s60
      %p62 = scmp.eq.s32.totalorder %s15, 0
      %p63 = por %p61, %p62
      %s64 = ssub.s32 %s18, %s27
      %s65 = ssub.s32 %s17, %s31
      %s66 = sor.u32 %s64, %s65
      %p67 = scmp.eq.s32.totalorder %s66, 0
      %s69 = sadd.s32 %s68, 1
      %s70 = scalar_select %p67, %s68, %s69
      %p73 = pneg %p67
      %p74 = scmp.eq.s32.totalorder %s9, 8
      %p75 = por %p73, %p74
      %p76 = scmp.ne.s32.totalorder %s68, %s71
      %p77 = scmp.eq.s32.totalorder %s9, 0
      %p78 = por %p76, %p77
      %p79 = scmp.ne.s32.totalorder %s68, %s71
      %p80 = scmp.eq.s32.totalorder %s14, 8
      %p81 = por %p79, %p80
      %p82 = scmp.ne.s32.totalorder %s71, %s72
      %p83 = scmp.eq.s32.totalorder %s14, 0
      %p84 = por %p82, %p83
      %p85 = scmp.ne.s32.totalorder %s71, %s72
      %p86 = scmp.eq.s32.totalorder %s15, 8
      %p87 = por %p85, %p86
      %p89 = scmp.ne.s32.totalorder %s72, %s88
      %p90 = scmp.eq.s32.totalorder %s15, 0
      %p91 = por %p89, %p90
      %s92 = ssub.s32 %s17, %s31
      %p93 = scmp.eq.s32.totalorder %s92, 0
      %s95 = sadd.s32 %s94, 1
      %s96 = scalar_select %p93, %s94, %s95
      %p99 = pneg %p93
      %p100 = scmp.eq.s32.totalorder %s9, 8
      %p101 = por %p99, %p100
      %p102 = scmp.ne.s32.totalorder %s94, %s97
      %p103 = scmp.eq.s32.totalorder %s9, 0
      %p104 = por %p102, %p103
      %p105 = scmp.ne.s32.totalorder %s94, %s97
      %p106 = scmp.eq.s32.totalorder %s14, 8
      %p107 = por %p105, %p106
      %p108 = scmp.ne.s32.totalorder %s97, %s98
      %p109 = scmp.eq.s32.totalorder %s14, 0
      %p110 = por %p108, %p109
      %p111 = scmp.ne.s32.totalorder %s97, %s98
      %p112 = scmp.eq.s32.totalorder %s15, 8
      %p113 = por %p111, %p112
      %p115 = scmp.ne.s32.totalorder %s98, %s114
      %p116 = scmp.eq.s32.totalorder %s15, 0
      %p117 = por %p115, %p116
      %s118 = ssub.s32 %s16, %s35
      %s119 = ssub.s32 %s17, %s31
      %s120 = sor.u32 %s118, %s119
      %p121 = scmp.eq.s32.totalorder %s120, 0
      %s123 = sadd.s32 %s122, 1
      %s124 = scalar_select %p121, %s122, %s123
      %p127 = pneg %p121
      %p128 = scmp.eq.s32.totalorder %s9, 8
      %p129 = por %p127, %p128
      %p130 = scmp.ne.s32.totalorder %s122, %s125
      %p131 = scmp.eq.s32.totalorder %s9, 0
      %p132 = por %p130, %p131
      %p133 = scmp.ne.s32.totalorder %s122, %s125
      %p134 = scmp.eq.s32.totalorder %s14, 8
      %p135 = por %p133, %p134
      %p136 = scmp.ne.s32.totalorder %s125, %s126
      %p137 = scmp.eq.s32.totalorder %s14, 0
      %p138 = por %p136, %p137
      %p139 = scmp.ne.s32.totalorder %s125, %s126
      %p140 = scmp.eq.s32.totalorder %s15, 8
      %p141 = por %p139, %p140
      %p143 = scmp.ne.s32.totalorder %s126, %s142
      %p144 = scmp.eq.s32.totalorder %s15, 0
      %p145 = por %p143, %p144
      %p146 = scmp.le.s32.totalorder 1, %s9
      %p147 = scmp.lt.s32.totalorder %s9, 10
      %p148 = pnand %p146, %p147
      %p149 = pneg %p148
      // Predicated region
      $region9: #{scale_estimator_forward.16} parent=5 // pred_check
        _
      $region10: #{scale_estimator_forward.16} parent=5 // pred_check_branch
        %151 = sbr.rel (%p148) target = $region12
      $region11: #{scale_estimator_forward.16} parent=5 // pred_region
        %s152 = ssub.s32 %s9, 1
        // Predicated region
        $region13: #{scale_estimator_forward.16} parent=11 // pred_check
          %p153 = pneg %p110
        $region14: #{scale_estimator_forward.16} parent=11 // pred_check_branch
          %155 = sbr.rel (%p153) target = $region16
        $region15: #{scale_estimator_forward.16} parent=11 // pred_region
          %p156 = scmp.lt.s32.totalorder %s20, 0
          %s157 = scalar_select %p156, %s20, 0
          %s158 = scalar_lea.vmem %s2, %s157
        $region16: #{scale_estimator_forward.16} parent=11 // pred_fallthru
          _
      $region12: #{scale_estimator_forward.16} parent=5 // pred_fallthru
        _
      %p159 = scmp.lt.s32.totalorder %s9, 9
      // Predicated region
      $region17: #{scale_estimator_forward.16} parent=5 // pred_check
        %p160 = pneg %p159
      $region18: #{scale_estimator_forward.16} parent=5 // pred_check_branch
        %162 = sbr.rel (%p160) target = $region20
      $region19: #{scale_estimator_forward.16} parent=5 // pred_region
        // Predicated region
        $region21: #{scale_estimator_forward.16} parent=19 // pred_check
          %p163 = pneg %p50
        $region22: #{scale_estimator_forward.16} parent=19 // pred_check_branch
          %165 = sbr.rel (%p163) target = $region24
        $region23: #{scale_estimator_forward.16} parent=19 // pred_region
          %s166 = sand.u32 %s40, 1
          %s167 = sand.u32 %s40, 1
          %s168 = smul.addr %s167, 64
          %s169 = scalar_lea.vmem [#allocation3], %s168
          %s170 = smul.u32 16, %s16
          %s171 = smul.addr %s170, 9
          %s172 = sadd.s32 %s18, %s171
          %s173 = smul.addr %s172, 4
          %s174 = scalar_lea.vmem %s0, %s173
          // Predicated region
          $region25: #{scale_estimator_forward.16} parent=23 // pred_check
            _
          $region26: #{scale_estimator_forward.16} parent=23 // pred_check_branch
            %176 = sbr.rel (0) target = $region28
          $region27: #{scale_estimator_forward.16} parent=23 // pred_region
            // Predicated region
            $region29: #{scale_estimator_forward.16} parent=27 // pred_check
              _
            $region30: #{scale_estimator_forward.16} parent=27 // pred_check_branch
              %178 = sbr.rel target = $region32
            $region31: #{scale_estimator_forward.16} parent=27 // pred_region
              // Predicated region
              $region44: #{scale_estimator_forward.16} parent=31 // pred_check
                _
              $region45: #{scale_estimator_forward.16} parent=31 // pred_check_branch
                %224 = sbr.rel (0) target = $region47
              $region46: #{scale_estimator_forward.16} parent=31 // pred_region
                loop: start=0, step=1, limit=1
                $region48: #{scale_estimator_forward.16} parent=46 // loop_pre_header
                  _
                $region49: #{scale_estimator_forward.16} parent=46 // loop_header
                  %s226 = sphi 0, %s230
                  %p227 = scmp.ge.s32.totalorder %s226, 1
                  %s231 = sphi %s174, %s174
                  %s232 = sphi %s169, %s169
                $region50: #{scale_estimator_forward.16} parent=46 // loop_header_branch
                  %229 = sbr.rel (%p227) target = $region54
                $region51: #{scale_estimator_forward.16} parent=46 // loop_body
                  _
                $region52: #{scale_estimator_forward.16} parent=46 // loop_footer
                  %s230 = sadd.s32 1, %s226
                $region53: #{scale_estimator_forward.16} parent=46 // loop_footer_branch
                  %225 = sbr.rel target = $region49
                $region54: #{scale_estimator_forward.16} parent=46 // loop_exit
                  _
                %s234 = ssub.s32 16, 1
                loop: start=0, step=1, limit=1
                $region55: #{scale_estimator_forward.16} parent=46 // loop_pre_header
                  _
                $region56: #{scale_estimator_forward.16} parent=46 // loop_header
                  %s236 = sphi 0, %s240
                  %p237 = scmp.ge.s32.totalorder %s236, 1
                  %s241 = sphi %s174, %s174
                  %s242 = sphi %s169, %s169
                $region57: #{scale_estimator_forward.16} parent=46 // loop_header_branch
                  %239 = sbr.rel (%p237) target = $region61
                $region58: #{scale_estimator_forward.16} parent=46 // loop_body
                  %v243 = vld [vmem:[%s241] sm:%s234]
                  %244 = vst [vmem:[%s242] sm:%s234] %v243
                  %v245 = vld [vmem:[%s241 + $0x24] sm:%s234]
                  %246 = vst [vmem:[%s242 + $0x4] sm:%s234] %v245
                  %v247 = vld [vmem:[%s241 + $0x48] sm:%s234]
                  %248 = vst [vmem:[%s242 + $0x8] sm:%s234] %v247
                  %v249 = vld [vmem:[%s241 + $0x6c] sm:%s234]
                  %250 = vst [vmem:[%s242 + $0xc] sm:%s234] %v249
                  %v251 = vld [vmem:[%s241 + $0x90] sm:%s234]
                  %252 = vst [vmem:[%s242 + $0x10] sm:%s234] %v251
                  %v253 = vld [vmem:[%s241 + $0xb4] sm:%s234]
                  %254 = vst [vmem:[%s242 + $0x14] sm:%s234] %v253
                  %v255 = vld [vmem:[%s241 + $0xd8] sm:%s234]
                  %256 = vst [vmem:[%s242 + $0x18] sm:%s234] %v255
                  %v257 = vld [vmem:[%s241 + $0xfc] sm:%s234]
                  %258 = vst [vmem:[%s242 + $0x1c] sm:%s234] %v257
                  %v259 = vld [vmem:[%s241 + $0x120] sm:%s234]
                  %260 = vst [vmem:[%s242 + $0x20] sm:%s234] %v259
                  %v261 = vld [vmem:[%s241 + $0x144] sm:%s234]
                  %262 = vst [vmem:[%s242 + $0x24] sm:%s234] %v261
                  %v263 = vld [vmem:[%s241 + $0x168] sm:%s234]
                  %264 = vst [vmem:[%s242 + $0x28] sm:%s234] %v263
                  %v265 = vld [vmem:[%s241 + $0x18c] sm:%s234]
                  %266 = vst [vmem:[%s242 + $0x2c] sm:%s234] %v265
                  %v267 = vld [vmem:[%s241 + $0x1b0] sm:%s234]
                  %268 = vst [vmem:[%s242 + $0x30] sm:%s234] %v267
                  %v269 = vld [vmem:[%s241 + $0x1d4] sm:%s234]
                  %270 = vst [vmem:[%s242 + $0x34] sm:%s234] %v269
                  %v271 = vld [vmem:[%s241 + $0x1f8] sm:%s234]
                  %272 = vst [vmem:[%s242 + $0x38] sm:%s234] %v271
                  %v273 = vld [vmem:[%s241 + $0x21c] sm:%s234]
                  %274 = vst [vmem:[%s242 + $0x3c] sm:%s234] %v273
                $region59: #{scale_estimator_forward.16} parent=46 // loop_footer
                  %s240 = sadd.s32 1, %s236
                $region60: #{scale_estimator_forward.16} parent=46 // loop_footer_branch
                  %235 = sbr.rel target = $region56
                $region61: #{scale_estimator_forward.16} parent=46 // loop_exit
                  _
              $region47: #{scale_estimator_forward.16} parent=31 // pred_fallthru
                _
            $region32: #{scale_estimator_forward.16} parent=27 // pred_fallthru
              _
            // Predicated region
            $region33: #{scale_estimator_forward.16} parent=27 // pred_check
              _
            $region34: #{scale_estimator_forward.16} parent=27 // pred_check_branch
              %180 = sbr.rel (0) target = $region36
            $region35: #{scale_estimator_forward.16} parent=27 // pred_region
              %s182 = ssub.s32 16, 1
              loop: start=0, step=1, limit=1
              $region37: #{scale_estimator_forward.16} parent=35 // loop_pre_header
                _
              $region38: #{scale_estimator_forward.16} parent=35 // loop_header
                %s184 = sphi 0, %s188
                %p185 = scmp.ge.s32.totalorder %s184, 1
                %s189 = sphi %s174, %s174
                %s190 = sphi %s169, %s169
              $region39: #{scale_estimator_forward.16} parent=35 // loop_header_branch
                %187 = sbr.rel (%p185) target = $region43
              $region40: #{scale_estimator_forward.16} parent=35 // loop_body
                %v191 = vld [vmem:[%s189] sm:%s182]
                %192 = vst [vmem:[%s190] sm:%s182] %v191
                %v193 = vld [vmem:[%s189 + $0x24] sm:%s182]
                %194 = vst [vmem:[%s190 + $0x4] sm:%s182] %v193
                %v195 = vld [vmem:[%s189 + $0x48] sm:%s182]
                %196 = vst [vmem:[%s190 + $0x8] sm:%s182] %v195
                %v197 = vld [vmem:[%s189 + $0x6c] sm:%s182]
                %198 = vst [vmem:[%s190 + $0xc] sm:%s182] %v197
                %v199 = vld [vmem:[%s189 + $0x90] sm:%s182]
                %200 = vst [vmem:[%s190 + $0x10] sm:%s182] %v199
                %v201 = vld [vmem:[%s189 + $0xb4] sm:%s182]
                %202 = vst [vmem:[%s190 + $0x14] sm:%s182] %v201
                %v203 = vld [vmem:[%s189 + $0xd8] sm:%s182]
                %204 = vst [vmem:[%s190 + $0x18] sm:%s182] %v203
                %v205 = vld [vmem:[%s189 + $0xfc] sm:%s182]
                %206 = vst [vmem:[%s190 + $0x1c] sm:%s182] %v205
                %v207 = vld [vmem:[%s189 + $0x120] sm:%s182]
                %208 = vst [vmem:[%s190 + $0x20] sm:%s182] %v207
                %v209 = vld [vmem:[%s189 + $0x144] sm:%s182]
                %210 = vst [vmem:[%s190 + $0x24] sm:%s182] %v209
                %v211 = vld [vmem:[%s189 + $0x168] sm:%s182]
                %212 = vst [vmem:[%s190 + $0x28] sm:%s182] %v211
                %v213 = vld [vmem:[%s189 + $0x18c] sm:%s182]
                %214 = vst [vmem:[%s190 + $0x2c] sm:%s182] %v213
                %v215 = vld [vmem:[%s189 + $0x1b0] sm:%s182]
                %216 = vst [vmem:[%s190 + $0x30] sm:%s182] %v215
                %v217 = vld [vmem:[%s189 + $0x1d4] sm:%s182]
                %218 = vst [vmem:[%s190 + $0x34] sm:%s182] %v217
                %v219 = vld [vmem:[%s189 + $0x1f8] sm:%s182]
                %220 = vst [vmem:[%s190 + $0x38] sm:%s182] %v219
                %v221 = vld [vmem:[%s189 + $0x21c] sm:%s182]
                %222 = vst [vmem:[%s190 + $0x3c] sm:%s182] %v221
              $region41: #{scale_estimator_forward.16} parent=35 // loop_footer
                %s188 = sadd.s32 1, %s184
              $region42: #{scale_estimator_forward.16} parent=35 // loop_footer_branch
                %183 = sbr.rel target = $region38
              $region43: #{scale_estimator_forward.16} parent=35 // loop_exit
                _
            $region36: #{scale_estimator_forward.16} parent=27 // pred_fallthru
              _
          $region28: #{scale_estimator_forward.16} parent=23 // pred_fallthru
            _
          %275 = vnop
        $region24: #{scale_estimator_forward.16} parent=19 // pred_fallthru
          _
        // Predicated region
        $region62: #{scale_estimator_forward.16} parent=19 // pred_check
          %p276 = pneg %p78
        $region63: #{scale_estimator_forward.16} parent=19 // pred_check_branch
          %278 = sbr.rel (%p276) target = $region65
        $region64: #{scale_estimator_forward.16} parent=19 // pred_region
          %s279 = smul.u32 16, %s18
          %p280 = scmp.lt.s32.totalorder %s279, 143
          %s281 = scalar_select %p280, %s279, 143
          %p282 = scmp.lt.s32.totalorder %s17, 0
          %s283 = scalar_select %p282, %s17, 0
          %s284 = sadd.s32 %s283, %s281
          %s285 = smul.addr %s284, 4
          %s286 = scalar_lea.vmem %s1, %s285
          %s287 = smul.u32 16, %s18
        $region65: #{scale_estimator_forward.16} parent=19 // pred_fallthru
          _
      $region20: #{scale_estimator_forward.16} parent=5 // pred_fallthru
        _
      %p288 = scmp.le.s32.totalorder 1, %s9
      %p289 = scmp.lt.s32.totalorder %s9, 10
      %p290 = pnand %p288, %p289
      %p291 = pneg %p290
      // Predicated region
      $region66: #{scale_estimator_forward.16} parent=5 // pred_check
        _
      $region67: #{scale_estimator_forward.16} parent=5 // pred_check_branch
        %293 = sbr.rel (%p290) target = $region69
      $region68: #{scale_estimator_forward.16} parent=5 // pred_region
        %s294 = ssub.s32 %s9, 1
        %s295 = sand.u32 %s43, 1
        %s296 = sand.u32 %s43, 1
        %s297 = smul.addr %s296, 64
        %s298 = scalar_lea.vmem [#allocation3], %s297
        // Predicated region
        $region70: #{scale_estimator_forward.16} parent=68 // pred_check
          %p299 = pneg %p56
        $region71: #{scale_estimator_forward.16} parent=68 // pred_check_branch
          %301 = sbr.rel (%p299) target = $region73
        $region72: #{scale_estimator_forward.16} parent=68 // pred_region
          _
        $region73: #{scale_estimator_forward.16} parent=68 // pred_fallthru
          _
        %s302 = sand.u32 %s43, 1
        %s303 = sand.u32 %s43, 1
        %s304 = smul.addr %s303, 64
        %s305 = scalar_lea.vmem [#allocation3], %s304
        %p306 = pneg %p56
        %p307 = pneg %p53
        %s308 = smul.u32 16, %s21
        %p309 = scmp.lt.s32.totalorder %s308, 143
        %s310 = scalar_select %p309, %s308, 143
        %p311 = scmp.lt.s32.totalorder %s20, 0
        %s312 = scalar_select %p311, %s20, 0
        %s313 = sadd.s32 %s312, %s310
        %s314 = smul.addr %s313, 4
        %s315 = scalar_lea.vmem %s1, %s314
        %p316 = pneg %p84
        %p317 = pneg %p81
        %p318 = scmp.lt.s32.totalorder %s20, 0
        %s319 = scalar_select %p318, %s20, 0
        %s320 = scalar_lea.vmem %s2, %s319
        %p321 = pneg %p110
        %p322 = pneg %p107
        %p323 = pneg %p138
        %p324 = pneg %p135
        %s325 = smul.u32 16, %s19
        %p326 = scmp.lt.s32.totalorder %s325, 15
        %s327 = scalar_select %p326, %s325, 15
        %p328 = scmp.lt.s32.totalorder %s20, 0
        %s329 = scalar_select %p328, %s20, 0
        %s330 = sadd.s32 %s329, %s327
        %s331 = smul.addr %s330, 8
        %s332 = scalar_lea.vmem %s3, %s331
        %s333 = smul.u32 16, %s19
        %s334 = smul.u32 16, %s21
        %p335 = scmp.lt.s32.totalorder %s334, 143
        %s336 = scalar_select %p335, %s334, 143
        %p337 = scmp.lt.s32.totalorder %s20, 0
        %s338 = scalar_select %p337, %s20, 0
        %s339 = sadd.s32 %s338, %s336
        %s340 = smul.addr %s339, 4
        %s341 = scalar_lea.vmem %s1, %s340
        %s342 = smul.u32 16, %s21
        %p343 = scmp.lt.s32.totalorder %s20, 0
        %s344 = scalar_select %p343, %s20, 0
        %s345 = scalar_lea.vmem %s2, %s344
        %s346 = smul.u32 16, %s19
        %p347 = scmp.lt.s32.totalorder %s346, 15
        %s348 = scalar_select %p347, %s346, 15
        %p349 = scmp.lt.s32.totalorder %s20, 0
        %s350 = scalar_select %p349, %s20, 0
        %s351 = sadd.s32 %s350, %s348
        %s352 = smul.addr %s351, 8
        %s353 = scalar_lea.vmem %s3, %s352
        %s354 = smul.u32 16, %s19
        %p355 = scmp.eq.s32.totalorder %s21, 0
        // Predicated region
        $region74: #{scale_estimator_forward.16} parent=68 // pred_check
          %p356 = pneg %p355
        $region75: #{scale_estimator_forward.16} parent=68 // pred_check_branch
          %358 = sbr.rel (%p356) target = $region77
        $region76: #{scale_estimator_forward.16} parent=68 // pred_region
          %359 = vst [vmem:[#allocation2] sm:$0xff] 0.0
          %360 = vst [vmem:[#allocation2 + $0x8] sm:$0xff] 0.0
          %361 = vst [vmem:[#allocation2 + $0x10] sm:$0xff] 0.0
          %362 = vst [vmem:[#allocation2 + $0x18] sm:$0xff] 0.0
          %363 = vst [vmem:[#allocation2 + $0x20] sm:$0xff] 0.0
          %364 = vst [vmem:[#allocation2 + $0x28] sm:$0xff] 0.0
          %365 = vst [vmem:[#allocation2 + $0x30] sm:$0xff] 0.0
          %366 = vst [vmem:[#allocation2 + $0x38] sm:$0xff] 0.0
          %367 = vst [vmem:[#allocation2 + $0x40] sm:$0xff] 0.0
          %368 = vst [vmem:[#allocation2 + $0x48] sm:$0xff] 0.0
          %369 = vst [vmem:[#allocation2 + $0x50] sm:$0xff] 0.0
          %370 = vst [vmem:[#allocation2 + $0x58] sm:$0xff] 0.0
          %371 = vst [vmem:[#allocation2 + $0x60] sm:$0xff] 0.0
          %372 = vst [vmem:[#allocation2 + $0x68] sm:$0xff] 0.0
          %373 = vst [vmem:[#allocation2 + $0x70] sm:$0xff] 0.0
          %374 = vst [vmem:[#allocation2 + $0x78] sm:$0xff] 0.0
        $region77: #{scale_estimator_forward.16} parent=68 // pred_fallthru
          _
        %v375 = vld [vmem:[#allocation2] sm:$0xff]
        %v376 = vld [vmem:[#allocation2 + $0x8] sm:$0xff]
        %v377 = vld [vmem:[#allocation2 + $0x10] sm:$0xff]
        %v378 = vld [vmem:[#allocation2 + $0x18] sm:$0xff]
        %v379 = vld [vmem:[#allocation2 + $0x20] sm:$0xff]
        %v380 = vld [vmem:[#allocation2 + $0x28] sm:$0xff]
        %v381 = vld [vmem:[#allocation2 + $0x30] sm:$0xff]
        %v382 = vld [vmem:[#allocation2 + $0x38] sm:$0xff]
        %v383 = vld [vmem:[#allocation2 + $0x40] sm:$0xff]
        %v384 = vld [vmem:[#allocation2 + $0x48] sm:$0xff]
        %v385 = vld [vmem:[#allocation2 + $0x50] sm:$0xff]
        %v386 = vld [vmem:[#allocation2 + $0x58] sm:$0xff]
        %v387 = vld [vmem:[#allocation2 + $0x60] sm:$0xff]
        %v388 = vld [vmem:[#allocation2 + $0x68] sm:$0xff]
        %v389 = vld [vmem:[#allocation2 + $0x70] sm:$0xff]
        %v390 = vld [vmem:[#allocation2 + $0x78] sm:$0xff]
        %v391 = vld [vmem:[%s298] sm:$0xf]
        %v392 = vld [vmem:[%s298 + $0x4] sm:$0xf]
        %v393 = vld [vmem:[%s298 + $0x8] sm:$0xf]
        %v394 = vld [vmem:[%s298 + $0xc] sm:$0xf]
        %v395 = vld [vmem:[%s298 + $0x10] sm:$0xf]
        %v396 = vld [vmem:[%s298 + $0x14] sm:$0xf]
        %v397 = vld [vmem:[%s298 + $0x18] sm:$0xf]
        %v398 = vld [vmem:[%s298 + $0x1c] sm:$0xf]
        %v399 = vld [vmem:[%s298 + $0x20] sm:$0xf]
        %v400 = vld [vmem:[%s298 + $0x24] sm:$0xf]
        %v401 = vld [vmem:[%s298 + $0x28] sm:$0xf]
        %v402 = vld [vmem:[%s298 + $0x2c] sm:$0xf]
        %v403 = vld [vmem:[%s298 + $0x30] sm:$0xf]
        %v404 = vld [vmem:[%s298 + $0x34] sm:$0xf]
        %v405 = vld [vmem:[%s298 + $0x38] sm:$0xf]
        %v406 = vld [vmem:[%s298 + $0x3c] sm:$0xf]
        %v407 = vld [vmem:[%s341] sm:$0xf]
        %v408 = vld [vmem:[%s341 + $0x4] sm:$0xf]
        %v409 = vld [vmem:[%s341 + $0x8] sm:$0xf]
        %v410 = vld [vmem:[%s341 + $0xc] sm:$0xf]
        %v411 = vld [vmem:[%s341 + $0x10] sm:$0xf]
        %v412 = vld [vmem:[%s341 + $0x14] sm:$0xf]
        %v413 = vld [vmem:[%s341 + $0x18] sm:$0xf]
        %v414 = vld [vmem:[%s341 + $0x1c] sm:$0xf]
        %v415 = vld [vmem:[%s341 + $0x20] sm:$0xf]
        %v416 = vld [vmem:[%s341 + $0x24] sm:$0xf]
        %v417 = vld [vmem:[%s341 + $0x28] sm:$0xf]
        %v418 = vld [vmem:[%s341 + $0x2c] sm:$0xf]
        %v419 = vld [vmem:[%s341 + $0x30] sm:$0xf]
        %v420 = vld [vmem:[%s341 + $0x34] sm:$0xf]
        %v421 = vld [vmem:[%s341 + $0x38] sm:$0xf]
        %v422 = vld [vmem:[%s341 + $0x3c] sm:$0xf]
        %v439 = vunpack.c.l.b16 %v391
        %v440 = vunpack.c.l.b16 %v392
        %v441 = vunpack.c.l.b16 %v393
        %v442 = vunpack.c.l.b16 %v394
        %v443 = vunpack.c.l.b16 %v395
        %v444 = vunpack.c.l.b16 %v396
        %v445 = vunpack.c.l.b16 %v397
        %v446 = vunpack.c.l.b16 %v398
        %v447 = vunpack.c.l.b16 %v399
        %v448 = vunpack.c.l.b16 %v400
        %v449 = vunpack.c.l.b16 %v401
        %v450 = vunpack.c.l.b16 %v402
        %v451 = vunpack.c.l.b16 %v403
        %v452 = vunpack.c.l.b16 %v404
        %v453 = vunpack.c.l.b16 %v405
        %v454 = vunpack.c.l.b16 %v406
        %v455 = vpack.c.b16 %v440, %v439
        %v456 = vpack.c.b16 %v442, %v441
        %v457 = vpack.c.b16 %v444, %v443
        %v458 = vpack.c.b16 %v446, %v445
        %v459 = vpack.c.b16 %v448, %v447
        %v460 = vpack.c.b16 %v450, %v449
        %v461 = vpack.c.b16 %v452, %v451
        %v462 = vpack.c.b16 %v454, %v453
        %v487 = vunpack.c.l.b16 %v407
        %v488 = vunpack.c.l.b16 %v408
        %v489 = vunpack.c.l.b16 %v409
        %v490 = vunpack.c.l.b16 %v410
        %v491 = vunpack.c.l.b16 %v411
        %v492 = vunpack.c.l.b16 %v412
        %v493 = vunpack.c.l.b16 %v413
        %v494 = vunpack.c.l.b16 %v414
        %v495 = vunpack.c.l.b16 %v415
        %v496 = vunpack.c.l.b16 %v416
        %v497 = vunpack.c.l.b16 %v417
        %v498 = vunpack.c.l.b16 %v418
        %v499 = vunpack.c.l.b16 %v419
        %v500 = vunpack.c.l.b16 %v420
        %v501 = vunpack.c.l.b16 %v421
        %v502 = vunpack.c.l.b16 %v422
        %v503 = vpack.c.b16 %v488, %v487
        %v504 = vpack.c.b16 %v490, %v489
        %v505 = vpack.c.b16 %v492, %v491
        %v506 = vpack.c.b16 %v494, %v493
        %v507 = vpack.c.b16 %v496, %v495
        %v508 = vpack.c.b16 %v498, %v497
        %v509 = vpack.c.b16 %v500, %v499
        %v510 = vpack.c.b16 %v502, %v501
        %519 = vmatpush.bf16.msra.mxu0 %v510
        %520 = vmatpush.bf16.msra.mxu0 %v509
        %521 = vmatpush.bf16.msra.mxu0 %v508
        %522 = vmatpush.bf16.msra.mxu0 %v507
        %523 = vmatpush.bf16.msra.mxu0 %v506
        %524 = vmatpush.bf16.msra.mxu0 %v505
        %525 = vmatpush.bf16.msra.mxu0 %v504
        %526 = vmatpush.bf16.msra.mxu0 %v503
        %527 = vmatmul.bf16.gmra.mxu0 %v455
        %v528 = vpop.f32.mrf.mxu0
        %v529 = vadd.f32 0.0, %v528
        %v530 = vpop.f32.mrf.mxu0
        %v531 = vadd.f32 0.0, %v530
        %532 = vmatmul.bf16.gmra.mxu0 %v456
        %v533 = vpop.f32.mrf.mxu0
        %v534 = vadd.f32 0.0, %v533
        %v535 = vpop.f32.mrf.mxu0
        %v536 = vadd.f32 0.0, %v535
        %537 = vmatmul.bf16.gmra.mxu0 %v457
        %v538 = vpop.f32.mrf.mxu0
        %v539 = vadd.f32 0.0, %v538
        %v540 = vpop.f32.mrf.mxu0
        %v541 = vadd.f32 0.0, %v540
        %542 = vmatmul.bf16.gmra.mxu0 %v458
        %v543 = vpop.f32.mrf.mxu0
        %v544 = vadd.f32 0.0, %v543
        %v545 = vpop.f32.mrf.mxu0
        %v546 = vadd.f32 0.0, %v545
        %547 = vmatmul.bf16.gmra.mxu0 %v459
        %v548 = vpop.f32.mrf.mxu0
        %v549 = vadd.f32 0.0, %v548
        %v550 = vpop.f32.mrf.mxu0
        %v551 = vadd.f32 0.0, %v550
        %552 = vmatmul.bf16.gmra.mxu0 %v460
        %v553 = vpop.f32.mrf.mxu0
        %v554 = vadd.f32 0.0, %v553
        %v555 = vpop.f32.mrf.mxu0
        %v556 = vadd.f32 0.0, %v555
        %557 = vmatmul.bf16.gmra.mxu0 %v461
        %v558 = vpop.f32.mrf.mxu0
        %v559 = vadd.f32 0.0, %v558
        %v560 = vpop.f32.mrf.mxu0
        %v561 = vadd.f32 0.0, %v560
        %562 = vmatmul.bf16.gmra.mxu0 %v462
        %v563 = vpop.f32.mrf.mxu0
        %v564 = vadd.f32 0.0, %v563
        %v565 = vpop.f32.mrf.mxu0
        %v566 = vadd.f32 0.0, %v565
        %567 = vdwg.mxu0
        %v568 = vadd.f32 %v375, %v529
        %v569 = vadd.f32 %v376, %v531
        %v570 = vadd.f32 %v377, %v534
        %v571 = vadd.f32 %v378, %v536
        %v572 = vadd.f32 %v379, %v539
        %v573 = vadd.f32 %v380, %v541
        %v574 = vadd.f32 %v381, %v544
        %v575 = vadd.f32 %v382, %v546
        %v576 = vadd.f32 %v383, %v549
        %v577 = vadd.f32 %v384, %v551
        %v578 = vadd.f32 %v385, %v554
        %v579 = vadd.f32 %v386, %v556
        %v580 = vadd.f32 %v387, %v559
        %v581 = vadd.f32 %v388, %v561
        %v582 = vadd.f32 %v389, %v564
        %v583 = vadd.f32 %v390, %v566
        %584 = vst [vmem:[#allocation2] sm:$0xff] %v568
        %585 = vst [vmem:[#allocation2 + $0x8] sm:$0xff] %v569
        %586 = vst [vmem:[#allocation2 + $0x10] sm:$0xff] %v570
        %587 = vst [vmem:[#allocation2 + $0x18] sm:$0xff] %v571
        %588 = vst [vmem:[#allocation2 + $0x20] sm:$0xff] %v572
        %589 = vst [vmem:[#allocation2 + $0x28] sm:$0xff] %v573
        %590 = vst [vmem:[#allocation2 + $0x30] sm:$0xff] %v574
        %591 = vst [vmem:[#allocation2 + $0x38] sm:$0xff] %v575
        %592 = vst [vmem:[#allocation2 + $0x40] sm:$0xff] %v576
        %593 = vst [vmem:[#allocation2 + $0x48] sm:$0xff] %v577
        %594 = vst [vmem:[#allocation2 + $0x50] sm:$0xff] %v578
        %595 = vst [vmem:[#allocation2 + $0x58] sm:$0xff] %v579
        %596 = vst [vmem:[#allocation2 + $0x60] sm:$0xff] %v580
        %597 = vst [vmem:[#allocation2 + $0x68] sm:$0xff] %v581
        %598 = vst [vmem:[#allocation2 + $0x70] sm:$0xff] %v582
        %599 = vst [vmem:[#allocation2 + $0x78] sm:$0xff] %v583
        %p600 = scmp.eq.s32.totalorder %s21, 8
        // Predicated region
        $region78: #{scale_estimator_forward.16} parent=68 // pred_check
          %p601 = pneg %p600
        $region79: #{scale_estimator_forward.16} parent=68 // pred_check_branch
          %603 = sbr.rel (%p601) target = $region81
        $region80: #{scale_estimator_forward.16} parent=68 // pred_region
          %v604 = vld [vmem:[#allocation2] sm:$0xff]
          %v605 = vld [vmem:[#allocation2 + $0x8] sm:$0xff]
          %v606 = vld [vmem:[#allocation2 + $0x10] sm:$0xff]
          %v607 = vld [vmem:[#allocation2 + $0x18] sm:$0xff]
          %v608 = vld [vmem:[#allocation2 + $0x20] sm:$0xff]
          %v609 = vld [vmem:[#allocation2 + $0x28] sm:$0xff]
          %v610 = vld [vmem:[#allocation2 + $0x30] sm:$0xff]
          %v611 = vld [vmem:[#allocation2 + $0x38] sm:$0xff]
          %v612 = vld [vmem:[#allocation2 + $0x40] sm:$0xff]
          %v613 = vld [vmem:[#allocation2 + $0x48] sm:$0xff]
          %v614 = vld [vmem:[#allocation2 + $0x50] sm:$0xff]
          %v615 = vld [vmem:[#allocation2 + $0x58] sm:$0xff]
          %v616 = vld [vmem:[#allocation2 + $0x60] sm:$0xff]
          %v617 = vld [vmem:[#allocation2 + $0x68] sm:$0xff]
          %v618 = vld [vmem:[#allocation2 + $0x70] sm:$0xff]
          %v619 = vld [vmem:[#allocation2 + $0x78] sm:$0xff]
          %v620 = vld [vmem:[%s345] sm:$0x1]
          %v622 = vperm.slane %v620, 0
          %v624 = vadd.f32 %v604, %v622
          %v625 = vadd.f32 %v605, %v622
          %v626 = vadd.f32 %v606, %v622
          %v627 = vadd.f32 %v607, %v622
          %v628 = vadd.f32 %v608, %v622
          %v629 = vadd.f32 %v609, %v622
          %v630 = vadd.f32 %v610, %v622
          %v631 = vadd.f32 %v611, %v622
          %v632 = vadd.f32 %v612, %v622
          %v633 = vadd.f32 %v613, %v622
          %v634 = vadd.f32 %v614, %v622
          %v635 = vadd.f32 %v615, %v622
          %v636 = vadd.f32 %v616, %v622
          %v637 = vadd.f32 %v617, %v622
          %v638 = vadd.f32 %v618, %v622
          %v639 = vadd.f32 %v619, %v622
          %640 = vst [vmem:[%s353] sm:$0xff] %v624
          %641 = vst [vmem:[%s353 + $0x8] sm:$0xff] %v625
          %642 = vst [vmem:[%s353 + $0x10] sm:$0xff] %v626
          %643 = vst [vmem:[%s353 + $0x18] sm:$0xff] %v627
          %644 = vst [vmem:[%s353 + $0x20] sm:$0xff] %v628
          %645 = vst [vmem:[%s353 + $0x28] sm:$0xff] %v629
          %646 = vst [vmem:[%s353 + $0x30] sm:$0xff] %v630
          %647 = vst [vmem:[%s353 + $0x38] sm:$0xff] %v631
          %648 = vst [vmem:[%s353 + $0x40] sm:$0xff] %v632
          %649 = vst [vmem:[%s353 + $0x48] sm:$0xff] %v633
          %650 = vst [vmem:[%s353 + $0x50] sm:$0xff] %v634
          %651 = vst [vmem:[%s353 + $0x58] sm:$0xff] %v635
          %652 = vst [vmem:[%s353 + $0x60] sm:$0xff] %v636
          %653 = vst [vmem:[%s353 + $0x68] sm:$0xff] %v637
          %654 = vst [vmem:[%s353 + $0x70] sm:$0xff] %v638
          %655 = vst [vmem:[%s353 + $0x78] sm:$0xff] %v639
        $region81: #{scale_estimator_forward.16} parent=68 // pred_fallthru
          _
        %s656 = smul.u32 16, %s19
        %p657 = scmp.lt.s32.totalorder %s656, 15
        %s658 = scalar_select %p657, %s656, 15
        %p659 = scmp.lt.s32.totalorder %s20, 0
        %s660 = scalar_select %p659, %s20, 0
        %s661 = sadd.s32 %s660, %s658
        %s662 = smul.addr %s661, 8
        %s663 = scalar_lea.vmem %s3, %s662
        // Predicated region
        $region82: #{scale_estimator_forward.16} parent=68 // pred_check
          %p664 = pneg %p135
        $region83: #{scale_estimator_forward.16} parent=68 // pred_check_branch
          %666 = sbr.rel (%p664) target = $region85
        $region84: #{scale_estimator_forward.16} parent=68 // pred_region
          %s667 = smul.u32 16, %s19
        $region85: #{scale_estimator_forward.16} parent=68 // pred_fallthru
          _
        // Predicated region
        $region86: #{scale_estimator_forward.16} parent=68 // pred_check
          %p668 = pneg %p135
        $region87: #{scale_estimator_forward.16} parent=68 // pred_check_branch
          %670 = sbr.rel (%p668) target = $region89
        $region88: #{scale_estimator_forward.16} parent=68 // pred_region
          %s671 = smul.u32 16, %s19
          %p672 = scmp.lt.s32.totalorder %s671, 15
          %s673 = scalar_select %p672, %s671, 15
          %p674 = scmp.lt.s32.totalorder %s20, 0
          %s675 = scalar_select %p674, %s20, 0
          %s676 = sadd.s32 %s675, %s673
          %s677 = smul.addr %s676, 8
          %s678 = scalar_lea.vmem %s3, %s677
        $region89: #{scale_estimator_forward.16} parent=68 // pred_fallthru
          _
      $region69: #{scale_estimator_forward.16} parent=5 // pred_fallthru
        _
      %p679 = scmp.le.s32.totalorder 2, %s9
      // Predicated region
      $region90: #{scale_estimator_forward.16} parent=5 // pred_check
        %p680 = pneg %p679
      $region91: #{scale_estimator_forward.16} parent=5 // pred_check_branch
        %682 = sbr.rel (%p680) target = $region93
      $region92: #{scale_estimator_forward.16} parent=5 // pred_region
        %s683 = ssub.s32 %s9, 2
      $region93: #{scale_estimator_forward.16} parent=5 // pred_fallthru
        _
    $region6: #{scale_estimator_forward.16} parent=1 // loop_footer
      %s13 = sadd.s32 1, %s9
    $region7: #{scale_estimator_forward.16} parent=1 // loop_footer_branch
      %8 = sbr.rel target = $region3
    $region8: #{scale_estimator_forward.16} parent=1 // loop_exit
      _

// kernel: scale_estimator_forward.17
$region0: #{scale_estimator_forward.17}
  #allocation0 [shape = 'u32[]', space=smem, size = 0x4, offset = 0x4, fixed_abs, tag = 'smem constant byte address 0x4 - core index']
  #allocation1 [shape = 'u32[72,128]{1,0:T(1,128)}', space=vmem, size = 0x9000, scoped, tag = 'internal scratch']
  %s0 = inlined_call_operand.vmem [shape: f32[1,128], index: 0, kind: input, shape index: {}]
  %s1 = inlined_call_operand.vmem [shape: f32[1,128], index: 1, kind: input, shape index: {}]
  %s2 = inlined_call_operand.vmem [shape: f32[1,128], index: 2, kind: input, shape index: {}]
  %s3 = inlined_call_operand.hbm [shape: f32[1,1], index: 3, kind: output, shape index: {0}]
  %s4 = inlined_call_operand.hbm [shape: f32[1,1], index: 4, kind: output, shape index: {1}]
  %5 = xla_tuple %s3, %s4
  %s6 = sld [smem:[#allocation0]]
  $region30: #{scale_estimator_forward.17} parent=0
    _
  %s8 = ssub.s32 1, %s6
  %s9 = scalar_select 0, %s8, %s6
  $region1: #{scale_estimator_forward.17} parent=0
    #allocation2 [shape = 'u8[512]{0}', space=vmem, size = 0x400, scoped, tag = 'output window, operand 0, single buffered']
    #allocation3 [shape = 's32[1]{0}', space=sflag, size = 0x4, scoped, tag = 'scoped memory for scale_estimator_forward.17']
    #allocation4 [shape = 'u8[512]{0}', space=vmem, size = 0x400, scoped, tag = 'output window, operand 1, single buffered']
    #allocation5 [shape = 's32[1]{0}', space=sflag, size = 0x4, scoped, tag = 'scoped memory for scale_estimator_forward.17']
    %10 = vsyncpa [#allocation3], 0
    %11 = vsyncpa [#allocation5], 0
    // Predicated region
    $region2: #{scale_estimator_forward.17} parent=1 // pred_check
      _
    $region3: #{scale_estimator_forward.17} parent=1 // pred_check_branch
      %13 = sbr.rel (0) target = $region5
    $region4: #{scale_estimator_forward.17} parent=1 // pred_region
      _
    $region5: #{scale_estimator_forward.17} parent=1 // pred_fallthru
      _
    // Predicated region
    $region6: #{scale_estimator_forward.17} parent=1 // pred_check
      _
    $region7: #{scale_estimator_forward.17} parent=1 // pred_check_branch
      %15 = sbr.rel (0) target = $region9
    $region8: #{scale_estimator_forward.17} parent=1 // pred_region
      _
    $region9: #{scale_estimator_forward.17} parent=1 // pred_fallthru
      _
    // Predicated region
    $region10: #{scale_estimator_forward.17} parent=1 // pred_check
      _
    $region11: #{scale_estimator_forward.17} parent=1 // pred_check_branch
      %17 = sbr.rel (0) target = $region13
    $region12: #{scale_estimator_forward.17} parent=1 // pred_region
      _
    $region13: #{scale_estimator_forward.17} parent=1 // pred_fallthru
      _
    %v18 = vld [vmem:[%s0] sm:$0x1]
    %v19 = vld [vmem:[%s1] sm:$0x1]
    %v20 = vsub.f32 %v18, %v19
    %v21 = vand.u32 2147483647, %v20
    %v22 = vld [vmem:[%s2] sm:$0x1]
    %v23 = vmul.f32 %v21, %v22
    %vm24 = vcmask 1040384
    %v25 = vsel %vm24, %v23, 0.0
    %26 = vadd.xlane.f32.xlu0 %v25
    %v27 = vpop.xlane.xlu0 %26
    %v28 = vrot.slane %v27, 4
    %v29 = vadd.f32 %v27, %v28
    %v30 = vrot.slane %v29, 2
    %v31 = vadd.f32 %v29, %v30
    %v32 = vrot.slane %v31, 1
    %v33 = vadd.f32 %v31, %v32
    %s34 = vtos %v33
    %v35 = vstv %s34
    %vm36 = vcmask 0
    %37 = vst.msk [vmem:[#allocation2] sm:$0x1] %vm36, %v35
    %v38 = vld [vmem:[%s2] sm:$0x1]
    %v39 = vsel %vm24, %v38, 0.0
    %40 = vadd.xlane.f32.xlu0 %v39
    %v41 = vpop.xlane.xlu0 %40
    %v42 = vrot.slane %v41, 4
    %v43 = vadd.f32 %v41, %v42
    %v44 = vrot.slane %v43, 2
    %v45 = vadd.f32 %v43, %v44
    %v46 = vrot.slane %v45, 1
    %v47 = vadd.f32 %v45, %v46
    %s48 = vtos %v47
    %v49 = vstv %s48
    %50 = vst.msk [vmem:[#allocation4] sm:$0x1] %vm36, %v49
    // Predicated region
    $region14: #{scale_estimator_forward.17} parent=1 // pred_check
      _
    $region15: #{scale_estimator_forward.17} parent=1 // pred_check_branch
      %52 = sbr.rel (0) target = $region17
    $region16: #{scale_estimator_forward.17} parent=1 // pred_region
      %54 = vsyncadd [#allocation3], 0
      %s56 = sshll.u32 [#allocation2], 4
      %s57 = int_to_ptr.vmem [resolvable:$true] %s56
      %s58 = sshll.u32 %s3, 4
      %s59 = int_to_ptr.hbm [resolvable:$true] %s58
      %61 = dma.vmem_to_hbm [thread:$0]  %s57, 16, %s59, [#allocation3]
    $region17: #{scale_estimator_forward.17} parent=1 // pred_fallthru
      _
    // Predicated region
    $region18: #{scale_estimator_forward.17} parent=1 // pred_check
      _
    $region19: #{scale_estimator_forward.17} parent=1 // pred_check_branch
      %63 = sbr.rel (0) target = $region21
    $region20: #{scale_estimator_forward.17} parent=1 // pred_region
      %65 = vsyncadd [#allocation5], 0
      %s67 = sshll.u32 [#allocation4], 4
      %s68 = int_to_ptr.vmem [resolvable:$true] %s67
      %s69 = sshll.u32 %s4, 4
      %s70 = int_to_ptr.hbm [resolvable:$true] %s69
      %72 = dma.vmem_to_hbm [thread:$0]  %s68, 16, %s70, [#allocation5]
    $region21: #{scale_estimator_forward.17} parent=1 // pred_fallthru
      _
    // Predicated region
    $region22: #{scale_estimator_forward.17} parent=1 // pred_check
      _
    $region23: #{scale_estimator_forward.17} parent=1 // pred_check_branch
      %74 = sbr.rel (0) target = $region25
    $region24: #{scale_estimator_forward.17} parent=1 // pred_region
      %76 = dma.done [#allocation3], 16
    $region25: #{scale_estimator_forward.17} parent=1 // pred_fallthru
      _
    // Predicated region
    $region26: #{scale_estimator_forward.17} parent=1 // pred_check
      _
    $region27: #{scale_estimator_forward.17} parent=1 // pred_check_branch
      %78 = sbr.rel (0) target = $region29
    $region28: #{scale_estimator_forward.17} parent=1 // pred_region
      %80 = dma.done [#allocation5], 16
    $region29: #{scale_estimator_forward.17} parent=1 // pred_fallthru
      _
    %81 = vsyncpa [#allocation3], 1
    %82 = vsyncpa [#allocation5], 1

</llo_original>
